<compile_context>
chip_gen: v5e
topology: v5e:2x2
jax: 0.10.0
libtpu: 0.0.40
codegen_flags: <defaults>
</compile_context>

<pallas_src>
import math

import jax
import jax.numpy as jnp
from jax.experimental import pallas as pl
from jax.experimental.pallas import tpu as pltpu


# ----------------------------- fused Pallas kernel ---------------------------------

def _fused_head_kernel(x_ref, wp_ref, bp_ref, w1_ref, b1_ref, w2_ref, b2_ref, o_ref):
    """One batch-tile of: global avgpool -> proj(2048->768) -> linear -> sigmoid -> linear1."""
    inv_s = 1.0 / x_ref.shape[-1]

    # Global average pool over T'*H'*W' (last / lane axis): f32 lane reduce on the XLU,
    # no materialized f32 temporary beyond the streamed block itself.
    pooled = jnp.sum(x_ref[...], axis=-1) * inv_s                         # (TB, C) f32

    # Replaced resnet.blocks[5].proj : Linear(2048, 768). bf16 MXU inputs, f32 accumulation.
    h0 = jnp.dot(pooled.astype(jnp.bfloat16), wp_ref[...],
                 preferred_element_type=jnp.float32) + bp_ref[...]        # (TB, 768)

    # TODO(synk): nn.Dropout(0.5) is inference-mode identity here (train-time masking not implemented).

    # self.linear : Linear(768, 300)
    z1 = jnp.dot(h0.astype(jnp.bfloat16), w1_ref[...],
                 preferred_element_type=jnp.float32) + b1_ref[...]        # (TB, 300)

    # self.sigmoid — exact (exp on the EUP, full-precision divide); tiny tensor so it is free.
    h1 = 1.0 / (1.0 + jnp.exp(-z1))

    # self.linear1 : Linear(300, output_dim). Module returns raw logits (no final activation).
    out = jnp.dot(h1.astype(jnp.bfloat16), w2_ref[...],
                  preferred_element_type=jnp.float32) + b2_ref[...]       # (TB, out_dim)
    o_ref[...] = out.astype(o_ref.dtype)


# --------------------------------- wrapper ------------------------------------------

def _vmem_budget_bytes():
    """Per-generation VMEM budget (leave headroom for compiler internal scratch)."""
    cap = 64 * 1024 * 1024  # conservative default: v7x physical VMEM per TensorCore
    try:
        info = pltpu.get_tpu_info()
        cap = int(getattr(info, "vmem_capacity_bytes", cap)) or cap
    except Exception:
        pass
    return (cap * 3) // 4   # v7x -> ~48 MiB, v5e/v6e -> ~96 MiB


def _estimate_vmem(tile_b, C, S, proj_dim=768):
    """Double-buffered f32 activation block + resident (double-buffered) weights + slack."""
    s_pad = pl.cdiv(S, 128) * 128
    x_bytes = 2 * tile_b * C * s_pad * 4                     # activation stream (f32, 2 bufs)
    w_bytes = 2 * (C * proj_dim + proj_dim * 384 + 320 * 128) * 2   # bf16 weights (padded, 2 bufs)
    return x_bytes + w_bytes + (2 << 20)


def _pick_batch_tile(B, C, S, budget):
    """Pick tile_b (multiple of 8, or the full batch) fitting the VMEM budget; pad B if needed."""
    if B <= 8 and _estimate_vmem(B, C, S) <= budget:
        return B, B                                          # full batch, single tile
    b_pad = pl.cdiv(B, 8) * 8
    for tb in (32, 16, 8):                                   # bigger tiles amortize the epilogue GEMMs
        if b_pad % tb == 0 and _estimate_vmem(tb, C, S) <= budget:
            return tb, b_pad
    return 8, b_pad                                          # safe floor (fits every generation)


def resnet50_classification_head(feats, params):
    """feats: (B, C=2048, T', H', W') slow_r50 trunk features (NCDHW, as PyTorch produces).
    Returns (B, output_dim) logits — matches ResNet50Classification.forward after the trunk."""
    wp, bp, w1, b1, w2, b2 = params
    B, C, T, H, W = feats.shape
    S = T * H * W
    proj_dim = wp.shape[1]
    hid_dim = w1.shape[1]
    out_dim = w2.shape[1]

    # Native NCS layout, f32 — no transpose / cast materialization pass before the kernel.
    x = feats.reshape(B, C, S)

    budget = _vmem_budget_bytes()
    tile_b, b_pad = _pick_batch_tile(B, C, S, budget)
    if b_pad != B:
        x = jnp.pad(x, ((0, b_pad - B), (0, 0), (0, 0)))
    grid = (b_pad // tile_b,)                                # 1-D batch grid, megacore-parallel

    flops = 2 * B * (C * S + C * proj_dim + proj_dim * hid_dim + hid_dim * out_dim)
    bytes_accessed = (4 * B * C * S + 2 * C * proj_dim +
                      2 * (proj_dim * hid_dim + hid_dim * out_dim) +
                      4 * (proj_dim + hid_dim + out_dim + B * out_dim))
    cost = pl.CostEstimate(flops=int(flops), transcendentals=int(B * hid_dim),
                           bytes_accessed=int(bytes_accessed))

    grid_spec = pltpu.PrefetchScalarGridSpec(
        num_scalar_prefetch=0,
        grid=grid,
        in_specs=[
            pl.BlockSpec((tile_b, C, S), lambda b: (b, 0, 0)),       # activations: streamed/pipelined
            pl.BlockSpec((C, proj_dim), lambda b: (0, 0)),           # proj weight: resident (fetched once)
            pl.BlockSpec((1, proj_dim), lambda b: (0, 0)),           # small params: resident
            pl.BlockSpec((proj_dim, hid_dim), lambda b: (0, 0)),
            pl.BlockSpec((1, hid_dim), lambda b: (0, 0)),
            pl.BlockSpec((hid_dim, out_dim), lambda b: (0, 0)),
            pl.BlockSpec((1, out_dim), lambda b: (0, 0)),
        ],
        out_specs=pl.BlockSpec((tile_b, out_dim), lambda b: (b, 0)),
    )

    out = pl.pallas_call(
        _fused_head_kernel,
        out_shape=jax.ShapeDtypeStruct((b_pad, out_dim), jnp.float32),
        grid_spec=grid_spec,
        compiler_params=pltpu.CompilerParams(
            dimension_semantics=("parallel",),
            vmem_limit_bytes=int(budget),
        ),
        cost_estimate=cost,
    )(x, wp, bp.reshape(1, proj_dim), w1, b1.reshape(1, hid_dim), w2, b2.reshape(1, out_dim))

    return out[:B]


# --------------------------- deterministic params ------------------------------------

def init_params(key, output_dim):
    """Weights stored pre-transposed to (in, out) == PyTorch weight.T and pre-cast to bf16
    at init (one-time, no runtime re-layout); biases stay f32."""
    def uni(k, shape, fan_in, dtype=jnp.float32):
        bound = 1.0 / math.sqrt(fan_in)
        return jax.random.uniform(k, shape, jnp.float32, -bound, bound).astype(dtype)

    ks = jax.random.split(key, 6)
    wp = uni(ks[0], (2048, 768), 2048, jnp.bfloat16)   # replaced resnet.blocks[5].proj
    bp = uni(ks[1], (768,), 2048)
    w1 = uni(ks[2], (768, 300), 768, jnp.bfloat16)     # self.linear
    b1 = uni(ks[3], (300,), 768)
    w2 = uni(ks[4], (300, output_dim), 300, jnp.bfloat16)   # self.linear1
    b2 = uni(ks[5], (output_dim,), 300)
    return (wp, bp, w1, b1, w2, b2)


# ------------------------------------ main --------------------------------------------

if __name__ == "__main__":
    # Small trunk-feature shape consistent with slow_r50 (pre-head features are (B, 2048, T', 7, 7)).
    B, C, T, H, W = 2, 2048, 4, 7, 7
    output_dim = 1

    key = jax.random.PRNGKey(0)
    kx, kp = jax.random.split(key)
    # TODO(synk): pretrained torch.hub slow_r50 trunk weights are not reproducible self-contained;
    # synthetic trunk features of the correct shape stand in for the trunk output.
    feats = jax.random.normal(kx, (B, C, T, H, W), jnp.float32)
    params = init_params(kp, output_dim)

    out = resnet50_classification_head(feats, params)
    out = jax.block_until_ready(out)
    assert out.shape == (B, output_dim)
    assert bool(jnp.all(jnp.isfinite(out)))
    print("KERNEL_OK")
</pallas_src>

<mosaic_0001>
module attributes {stable_mosaic.version = 11 : i64} {
  func.func @_fused_head_kernel(%arg0: i32, %arg1: memref<2x2048x196xf32, #tpu.memory_space<vmem>>, %arg2: memref<2048x768xbf16, #tpu.memory_space<vmem>>, %arg3: memref<1x768xf32, #tpu.memory_space<vmem>>, %arg4: memref<768x300xbf16, #tpu.memory_space<vmem>>, %arg5: memref<1x300xf32, #tpu.memory_space<vmem>>, %arg6: memref<300x1xbf16, #tpu.memory_space<vmem>>, %arg7: memref<1x1xf32, #tpu.memory_space<vmem>>, %arg8: memref<2x1xf32, #tpu.memory_space<vmem>>) attributes {dimension_semantics = [#tpu.dimension_semantics<parallel>], iteration_bounds = array<i64: 1>, scalar_prefetch = 0 : i64, scratch_operands = 0 : i64, tpu.core_type = #tpu.core_type<tc>, window_params = [{transform_indices = @transform_0, window_bounds = array<i64: 2, 2048, 196>}, {pipeline_mode = #tpu.pipeline_mode<synchronous>, transform_indices = @transform_1, window_bounds = array<i64: 2048, 768>}, {pipeline_mode = #tpu.pipeline_mode<synchronous>, transform_indices = @transform_2, window_bounds = array<i64: 1, 768>}, {pipeline_mode = #tpu.pipeline_mode<synchronous>, transform_indices = @transform_3, window_bounds = array<i64: 768, 300>}, {pipeline_mode = #tpu.pipeline_mode<synchronous>, transform_indices = @transform_4, window_bounds = array<i64: 1, 300>}, {pipeline_mode = #tpu.pipeline_mode<synchronous>, transform_indices = @transform_5, window_bounds = array<i64: 300, 1>}, {pipeline_mode = #tpu.pipeline_mode<synchronous>, transform_indices = @transform_6, window_bounds = array<i64: 1, 1>}, {transform_indices = @transform_7, window_bounds = array<i64: 2, 1>}]} {
    %c0 = arith.constant 0 : index
    %c0_0 = arith.constant 0 : index
    %c0_1 = arith.constant 0 : index
    %0 = vector.load %arg1[%c0, %c0_0, %c0_1] : memref<2x2048x196xf32, #tpu.memory_space<vmem>>, vector<2x2048x196xf32>
    %cst = arith.constant dense<0.000000e+00> : vector<2x2048xf32>
    %1 = vector.multi_reduction <add>, %0, %cst [2] : vector<2x2048x196xf32> to vector<2x2048xf32>
    %cst_2 = arith.constant 0.00510204071 : f32
    %2 = vector.broadcast %cst_2 : f32 to vector<2x2048xf32>
    %3 = arith.mulf %1, %2 : vector<2x2048xf32>
    %4 = arith.truncf %3 : vector<2x2048xf32> to vector<2x2048xbf16>
    %c0_3 = arith.constant 0 : index
    %c0_4 = arith.constant 0 : index
    %5 = vector.load %arg2[%c0_3, %c0_4] : memref<2048x768xbf16, #tpu.memory_space<vmem>>, vector<2048x768xbf16>
    %cst_5 = arith.constant dense<0.000000e+00> : vector<2x768xf32>
    %6 = tpu.matmul %4, %5, %cst_5 {dimension_numbers = #tpu.dot_dimension_numbers<[1], [0], [0], [1], [0, 0, 1, 1], [], []>} : vector<2x2048xbf16>, vector<2048x768xbf16>, vector<2x768xf32> -> vector<2x768xf32>
    %c0_6 = arith.constant 0 : index
    %c0_7 = arith.constant 0 : index
    %7 = vector.load %arg3[%c0_6, %c0_7] : memref<1x768xf32, #tpu.memory_space<vmem>>, vector<1x768xf32>
    %8 = vector.broadcast %7 : vector<1x768xf32> to vector<2x768xf32>
    %9 = arith.addf %6, %8 : vector<2x768xf32>
    %10 = arith.truncf %9 : vector<2x768xf32> to vector<2x768xbf16>
    %c0_8 = arith.constant 0 : index
    %c0_9 = arith.constant 0 : index
    %11 = vector.load %arg4[%c0_8, %c0_9] : memref<768x300xbf16, #tpu.memory_space<vmem>>, vector<768x300xbf16>
    %cst_10 = arith.constant dense<0.000000e+00> : vector<2x300xf32>
    %12 = tpu.matmul %10, %11, %cst_10 {dimension_numbers = #tpu.dot_dimension_numbers<[1], [0], [0], [1], [0, 0, 1, 1], [], []>} : vector<2x768xbf16>, vector<768x300xbf16>, vector<2x300xf32> -> vector<2x300xf32>
    %c0_11 = arith.constant 0 : index
    %c0_12 = arith.constant 0 : index
    %13 = vector.load %arg5[%c0_11, %c0_12] : memref<1x300xf32, #tpu.memory_space<vmem>>, vector<1x300xf32>
    %14 = vector.broadcast %13 : vector<1x300xf32> to vector<2x300xf32>
    %15 = arith.addf %12, %14 : vector<2x300xf32>
    %cst_13 = arith.constant 0.000000e+00 : f32
    %16 = vector.broadcast %cst_13 : f32 to vector<2x300xf32>
    %17 = arith.subf %16, %15 : vector<2x300xf32>
    %18 = math.exp %17 : vector<2x300xf32>
    %cst_14 = arith.constant 1.000000e+00 : f32
    %19 = vector.broadcast %cst_14 : f32 to vector<2x300xf32>
    %20 = arith.addf %19, %18 : vector<2x300xf32>
    %cst_15 = arith.constant 1.000000e+00 : f32
    %21 = vector.broadcast %cst_15 : f32 to vector<2x300xf32>
    %22 = arith.divf %21, %20 : vector<2x300xf32>
    %23 = arith.truncf %22 : vector<2x300xf32> to vector<2x300xbf16>
    %c0_16 = arith.constant 0 : index
    %c0_17 = arith.constant 0 : index
    %24 = vector.load %arg6[%c0_16, %c0_17] : memref<300x1xbf16, #tpu.memory_space<vmem>>, vector<300x1xbf16>
    %cst_18 = arith.constant dense<0.000000e+00> : vector<2x1xf32>
    %25 = tpu.matmul %23, %24, %cst_18 {dimension_numbers = #tpu.dot_dimension_numbers<[1], [0], [0], [1], [0, 0, 1, 1], [], []>} : vector<2x300xbf16>, vector<300x1xbf16>, vector<2x1xf32> -> vector<2x1xf32>
    %c0_19 = arith.constant 0 : index
    %c0_20 = arith.constant 0 : index
    %26 = vector.load %arg7[%c0_19, %c0_20] : memref<1x1xf32, #tpu.memory_space<vmem>>, vector<1x1xf32>
    %27 = vector.broadcast %26 : vector<1x1xf32> to vector<2x1xf32>
    %28 = arith.addf %25, %27 : vector<2x1xf32>
    %c0_21 = arith.constant 0 : index
    %c0_22 = arith.constant 0 : index
    %29 = vector.load %arg8[%c0_21, %c0_22] : memref<2x1xf32, #tpu.memory_space<vmem>>, vector<2x1xf32>
    tpu.vector_store %arg8[%c0_21, %c0_22], %28 {strides = array<i32>} : memref<2x1xf32, #tpu.memory_space<vmem>>, vector<2x1xf32>,
    return
  }
  func.func @transform_0(%arg0: i32) -> (i32, i32, i32) {
    %c0_i32 = arith.constant 0 : i32
    %c0_i32_0 = arith.constant 0 : i32
    %c0_i32_1 = arith.constant 0 : i32
    return %arg0, %c0_i32, %c0_i32_0 : i32, i32, i32
  }
  func.func @transform_1(%arg0: i32) -> (i32, i32) {
    %c0_i32 = arith.constant 0 : i32
    %c0_i32_0 = arith.constant 0 : i32
    %c0_i32_1 = arith.constant 0 : i32
    return %c0_i32, %c0_i32_0 : i32, i32
  }
  func.func @transform_2(%arg0: i32) -> (i32, i32) {
    %c0_i32 = arith.constant 0 : i32
    %c0_i32_0 = arith.constant 0 : i32
    %c0_i32_1 = arith.constant 0 : i32
    return %c0_i32, %c0_i32_0 : i32, i32
  }
  func.func @transform_3(%arg0: i32) -> (i32, i32) {
    %c0_i32 = arith.constant 0 : i32
    %c0_i32_0 = arith.constant 0 : i32
    %c0_i32_1 = arith.constant 0 : i32
    return %c0_i32, %c0_i32_0 : i32, i32
  }
  func.func @transform_4(%arg0: i32) -> (i32, i32) {
    %c0_i32 = arith.constant 0 : i32
    %c0_i32_0 = arith.constant 0 : i32
    %c0_i32_1 = arith.constant 0 : i32
    return %c0_i32, %c0_i32_0 : i32, i32
  }
  func.func @transform_5(%arg0: i32) -> (i32, i32) {
    %c0_i32 = arith.constant 0 : i32
    %c0_i32_0 = arith.constant 0 : i32
    %c0_i32_1 = arith.constant 0 : i32
    return %c0_i32, %c0_i32_0 : i32, i32
  }
  func.func @transform_6(%arg0: i32) -> (i32, i32) {
    %c0_i32 = arith.constant 0 : i32
    %c0_i32_0 = arith.constant 0 : i32
    %c0_i32_1 = arith.constant 0 : i32
    return %c0_i32, %c0_i32_0 : i32, i32
  }
  func.func @transform_7(%arg0: i32) -> (i32, i32) {
    %c0_i32 = arith.constant 0 : i32
    %c0_i32_0 = arith.constant 0 : i32
    return %arg0, %c0_i32 : i32, i32
  }
}

</mosaic_0001>

<llo_original>
// kernel: tpu_custom_call.1
$region0: #{tpu_custom_call.1}
  #allocation0 [shape = 'u32[]', space=smem, size = 0x4, offset = 0x4, fixed_abs, tag = 'smem constant byte address 0x4 - core index']
  #allocation1 [shape = 'u32[72,128]{1,0:T(1,128)}', space=vmem, size = 0x9000, scoped, tag = 'internal scratch']
  #allocation2 [shape = 'f32[1,1]{1,0:T(1,128)S(1)}', space=vmem, size = 0x200, scoped, tag = 'scoped memory for tpu_custom_call.1']
  %s0 = inlined_call_operand.vmem [shape: f32[2,2048,196], index: 0, kind: input, shape index: {}]
  %s1 = inlined_call_operand.vmem [shape: bf16[2048,768], index: 1, kind: input, shape index: {}]
  %s2 = inlined_call_operand.vmem [shape: f32[1,768], index: 2, kind: input, shape index: {}]
  %s3 = inlined_call_operand.vmem [shape: bf16[768,300], index: 3, kind: input, shape index: {}]
  %s4 = inlined_call_operand.vmem [shape: f32[1,300], index: 4, kind: input, shape index: {}]
  %s5 = inlined_call_operand.vmem [shape: bf16[300,1], index: 5, kind: input, shape index: {}]
  %s6 = inlined_call_operand.<no memory space> [shape: f32[1,1], index: 6, kind: input, shape index: {}]
  %s7 = inlined_call_operand.vmem [shape: f32[2,1], index: 7, kind: output, shape index: {}]
  %s8 = sld [smem:[#allocation0]]
  $region38: #{tpu_custom_call.1} parent=0
    _
  %s10 = ssub.s32 1, %s8
  %s11 = scalar_select 0, %s10, %s8
  %v12 = vstv %s6
  %13 = vst [vmem:[#allocation2] sm:$0x1] %v12
  // Predicated region
  $region2: #{tpu_custom_call.1} parent=0 // pred_check
    _
  $region3: #{tpu_custom_call.1} parent=0 // pred_check_branch
    %15 = sbr.rel (0) target = $region5
  $region4: #{tpu_custom_call.1} parent=0 // pred_region
    _
  $region5: #{tpu_custom_call.1} parent=0 // pred_fallthru
    _
  // Predicated region
  $region6: #{tpu_custom_call.1} parent=0 // pred_check
    _
  $region7: #{tpu_custom_call.1} parent=0 // pred_check_branch
    %17 = sbr.rel (0) target = $region9
  $region8: #{tpu_custom_call.1} parent=0 // pred_region
    _
  $region9: #{tpu_custom_call.1} parent=0 // pred_fallthru
    _
  // Predicated region
  $region10: #{tpu_custom_call.1} parent=0 // pred_check
    _
  $region11: #{tpu_custom_call.1} parent=0 // pred_check_branch
    %19 = sbr.rel (0) target = $region13
  $region12: #{tpu_custom_call.1} parent=0 // pred_region
    _
  $region13: #{tpu_custom_call.1} parent=0 // pred_fallthru
    _
  // Predicated region
  $region14: #{tpu_custom_call.1} parent=0 // pred_check
    _
  $region15: #{tpu_custom_call.1} parent=0 // pred_check_branch
    %21 = sbr.rel (0) target = $region17
  $region16: #{tpu_custom_call.1} parent=0 // pred_region
    _
  $region17: #{tpu_custom_call.1} parent=0 // pred_fallthru
    _
  // Predicated region
  $region18: #{tpu_custom_call.1} parent=0 // pred_check
    _
  $region19: #{tpu_custom_call.1} parent=0 // pred_check_branch
    %23 = sbr.rel (0) target = $region21
  $region20: #{tpu_custom_call.1} parent=0 // pred_region
    _
  $region21: #{tpu_custom_call.1} parent=0 // pred_fallthru
    _
  // Predicated region
  $region22: #{tpu_custom_call.1} parent=0 // pred_check
    _
  $region23: #{tpu_custom_call.1} parent=0 // pred_check_branch
    %25 = sbr.rel (0) target = $region25
  $region24: #{tpu_custom_call.1} parent=0 // pred_region
    _
  $region25: #{tpu_custom_call.1} parent=0 // pred_fallthru
    _
  // Predicated region
  $region26: #{tpu_custom_call.1} parent=0 // pred_check
    _
  $region27: #{tpu_custom_call.1} parent=0 // pred_check_branch
    %27 = sbr.rel (0) target = $region29
  $region28: #{tpu_custom_call.1} parent=0 // pred_region
    _
  $region29: #{tpu_custom_call.1} parent=0 // pred_fallthru
    _
  %v29 = vld [vmem:[%s0] sm:$0xff]
  %v30 = vld [vmem:[%s0 + $0x8] sm:$0xff]
  %v31 = vld [vmem:[%s0 + $0x10] sm:$0xff]
  %v32 = vld [vmem:[%s0 + $0x18] sm:$0xff]
  %v33 = vld [vmem:[%s0 + $0x20] sm:$0xff]
  %v34 = vld [vmem:[%s0 + $0x28] sm:$0xff]
  %v35 = vld [vmem:[%s0 + $0x30] sm:$0xff]
  %v36 = vld [vmem:[%s0 + $0x38] sm:$0xff]
  %v37 = vld [vmem:[%s0 + $0x40] sm:$0xff]
  %v38 = vld [vmem:[%s0 + $0x48] sm:$0xff]
  %v39 = vld [vmem:[%s0 + $0x50] sm:$0xff]
  %v40 = vld [vmem:[%s0 + $0x58] sm:$0xff]
  %v41 = vld [vmem:[%s0 + $0x60] sm:$0xff]
  %v42 = vld [vmem:[%s0 + $0x68] sm:$0xff]
  %v43 = vld [vmem:[%s0 + $0x70] sm:$0xff]
  %v44 = vld [vmem:[%s0 + $0x78] sm:$0xff]
  %v45 = vld [vmem:[%s0 + $0x80] sm:$0xff]
  %v46 = vld [vmem:[%s0 + $0x88] sm:$0xff]
  %v47 = vld [vmem:[%s0 + $0x90] sm:$0xff]
  %v48 = vld [vmem:[%s0 + $0x98] sm:$0xff]
  %v49 = vld [vmem:[%s0 + $0xa0] sm:$0xff]
  %v50 = vld [vmem:[%s0 + $0xa8] sm:$0xff]
  %v51 = vld [vmem:[%s0 + $0xb0] sm:$0xff]
  %v52 = vld [vmem:[%s0 + $0xb8] sm:$0xff]
  %v53 = vld [vmem:[%s0 + $0xc0] sm:$0xff]
  %v54 = vld [vmem:[%s0 + $0xc8] sm:$0xff]
  %v55 = vld [vmem:[%s0 + $0xd0] sm:$0xff]
  %v56 = vld [vmem:[%s0 + $0xd8] sm:$0xff]
  %v57 = vld [vmem:[%s0 + $0xe0] sm:$0xff]
  %v58 = vld [vmem:[%s0 + $0xe8] sm:$0xff]
  %v59 = vld [vmem:[%s0 + $0xf0] sm:$0xff]
  %v60 = vld [vmem:[%s0 + $0xf8] sm:$0xff]
  %v61 = vld [vmem:[%s0 + $0x100] sm:$0xff]
  %v62 = vld [vmem:[%s0 + $0x108] sm:$0xff]
  %v63 = vld [vmem:[%s0 + $0x110] sm:$0xff]
  %v64 = vld [vmem:[%s0 + $0x118] sm:$0xff]
  %v65 = vld [vmem:[%s0 + $0x120] sm:$0xff]
  %v66 = vld [vmem:[%s0 + $0x128] sm:$0xff]
  %v67 = vld [vmem:[%s0 + $0x130] sm:$0xff]
  %v68 = vld [vmem:[%s0 + $0x138] sm:$0xff]
  %v69 = vld [vmem:[%s0 + $0x140] sm:$0xff]
  %v70 = vld [vmem:[%s0 + $0x148] sm:$0xff]
  %v71 = vld [vmem:[%s0 + $0x150] sm:$0xff]
  %v72 = vld [vmem:[%s0 + $0x158] sm:$0xff]
  %v73 = vld [vmem:[%s0 + $0x160] sm:$0xff]
  %v74 = vld [vmem:[%s0 + $0x168] sm:$0xff]
  %v75 = vld [vmem:[%s0 + $0x170] sm:$0xff]
  %v76 = vld [vmem:[%s0 + $0x178] sm:$0xff]
  %v77 = vld [vmem:[%s0 + $0x180] sm:$0xff]
  %v78 = vld [vmem:[%s0 + $0x188] sm:$0xff]
  %v79 = vld [vmem:[%s0 + $0x190] sm:$0xff]
  %v80 = vld [vmem:[%s0 + $0x198] sm:$0xff]
  %v81 = vld [vmem:[%s0 + $0x1a0] sm:$0xff]
  %v82 = vld [vmem:[%s0 + $0x1a8] sm:$0xff]
  %v83 = vld [vmem:[%s0 + $0x1b0] sm:$0xff]
  %v84 = vld [vmem:[%s0 + $0x1b8] sm:$0xff]
  %v85 = vld [vmem:[%s0 + $0x1c0] sm:$0xff]
  %v86 = vld [vmem:[%s0 + $0x1c8] sm:$0xff]
  %v87 = vld [vmem:[%s0 + $0x1d0] sm:$0xff]
  %v88 = vld [vmem:[%s0 + $0x1d8] sm:$0xff]
  %v89 = vld [vmem:[%s0 + $0x1e0] sm:$0xff]
  %v90 = vld [vmem:[%s0 + $0x1e8] sm:$0xff]
  %v91 = vld [vmem:[%s0 + $0x1f0] sm:$0xff]
  %v92 = vld [vmem:[%s0 + $0x1f8] sm:$0xff]
  %v93 = vld [vmem:[%s0 + $0x200] sm:$0xff]
  %v94 = vld [vmem:[%s0 + $0x208] sm:$0xff]
  %v95 = vld [vmem:[%s0 + $0x210] sm:$0xff]
  %v96 = vld [vmem:[%s0 + $0x218] sm:$0xff]
  %v97 = vld [vmem:[%s0 + $0x220] sm:$0xff]
  %v98 = vld [vmem:[%s0 + $0x228] sm:$0xff]
  %v99 = vld [vmem:[%s0 + $0x230] sm:$0xff]
  %v100 = vld [vmem:[%s0 + $0x238] sm:$0xff]
  %v101 = vld [vmem:[%s0 + $0x240] sm:$0xff]
  %v102 = vld [vmem:[%s0 + $0x248] sm:$0xff]
  %v103 = vld [vmem:[%s0 + $0x250] sm:$0xff]
  %v104 = vld [vmem:[%s0 + $0x258] sm:$0xff]
  %v105 = vld [vmem:[%s0 + $0x260] sm:$0xff]
  %v106 = vld [vmem:[%s0 + $0x268] sm:$0xff]
  %v107 = vld [vmem:[%s0 + $0x270] sm:$0xff]
  %v108 = vld [vmem:[%s0 + $0x278] sm:$0xff]
  %v109 = vld [vmem:[%s0 + $0x280] sm:$0xff]
  %v110 = vld [vmem:[%s0 + $0x288] sm:$0xff]
  %v111 = vld [vmem:[%s0 + $0x290] sm:$0xff]
  %v112 = vld [vmem:[%s0 + $0x298] sm:$0xff]
  %v113 = vld [vmem:[%s0 + $0x2a0] sm:$0xff]
  %v114 = vld [vmem:[%s0 + $0x2a8] sm:$0xff]
  %v115 = vld [vmem:[%s0 + $0x2b0] sm:$0xff]
  %v116 = vld [vmem:[%s0 + $0x2b8] sm:$0xff]
  %v117 = vld [vmem:[%s0 + $0x2c0] sm:$0xff]
  %v118 = vld [vmem:[%s0 + $0x2c8] sm:$0xff]
  %v119 = vld [vmem:[%s0 + $0x2d0] sm:$0xff]
  %v120 = vld [vmem:[%s0 + $0x2d8] sm:$0xff]
  %v121 = vld [vmem:[%s0 + $0x2e0] sm:$0xff]
  %v122 = vld [vmem:[%s0 + $0x2e8] sm:$0xff]
  %v123 = vld [vmem:[%s0 + $0x2f0] sm:$0xff]
  %v124 = vld [vmem:[%s0 + $0x2f8] sm:$0xff]
  %v125 = vld [vmem:[%s0 + $0x300] sm:$0xff]
  %v126 = vld [vmem:[%s0 + $0x308] sm:$0xff]
  %v127 = vld [vmem:[%s0 + $0x310] sm:$0xff]
  %v128 = vld [vmem:[%s0 + $0x318] sm:$0xff]
  %v129 = vld [vmem:[%s0 + $0x320] sm:$0xff]
  %v130 = vld [vmem:[%s0 + $0x328] sm:$0xff]
  %v131 = vld [vmem:[%s0 + $0x330] sm:$0xff]
  %v132 = vld [vmem:[%s0 + $0x338] sm:$0xff]
  %v133 = vld [vmem:[%s0 + $0x340] sm:$0xff]
  %v134 = vld [vmem:[%s0 + $0x348] sm:$0xff]
  %v135 = vld [vmem:[%s0 + $0x350] sm:$0xff]
  %v136 = vld [vmem:[%s0 + $0x358] sm:$0xff]
  %v137 = vld [vmem:[%s0 + $0x360] sm:$0xff]
  %v138 = vld [vmem:[%s0 + $0x368] sm:$0xff]
  %v139 = vld [vmem:[%s0 + $0x370] sm:$0xff]
  %v140 = vld [vmem:[%s0 + $0x378] sm:$0xff]
  %v141 = vld [vmem:[%s0 + $0x380] sm:$0xff]
  %v142 = vld [vmem:[%s0 + $0x388] sm:$0xff]
  %v143 = vld [vmem:[%s0 + $0x390] sm:$0xff]
  %v144 = vld [vmem:[%s0 + $0x398] sm:$0xff]
  %v145 = vld [vmem:[%s0 + $0x3a0] sm:$0xff]
  %v146 = vld [vmem:[%s0 + $0x3a8] sm:$0xff]
  %v147 = vld [vmem:[%s0 + $0x3b0] sm:$0xff]
  %v148 = vld [vmem:[%s0 + $0x3b8] sm:$0xff]
  %v149 = vld [vmem:[%s0 + $0x3c0] sm:$0xff]
  %v150 = vld [vmem:[%s0 + $0x3c8] sm:$0xff]
  %v151 = vld [vmem:[%s0 + $0x3d0] sm:$0xff]
  %v152 = vld [vmem:[%s0 + $0x3d8] sm:$0xff]
  %v153 = vld [vmem:[%s0 + $0x3e0] sm:$0xff]
  %v154 = vld [vmem:[%s0 + $0x3e8] sm:$0xff]
  %v155 = vld [vmem:[%s0 + $0x3f0] sm:$0xff]
  %v156 = vld [vmem:[%s0 + $0x3f8] sm:$0xff]
  %v157 = vld [vmem:[%s0 + $0x400] sm:$0xff]
  %v158 = vld [vmem:[%s0 + $0x408] sm:$0xff]
  %v159 = vld [vmem:[%s0 + $0x410] sm:$0xff]
  %v160 = vld [vmem:[%s0 + $0x418] sm:$0xff]
  %v161 = vld [vmem:[%s0 + $0x420] sm:$0xff]
  %v162 = vld [vmem:[%s0 + $0x428] sm:$0xff]
  %v163 = vld [vmem:[%s0 + $0x430] sm:$0xff]
  %v164 = vld [vmem:[%s0 + $0x438] sm:$0xff]
  %v165 = vld [vmem:[%s0 + $0x440] sm:$0xff]
  %v166 = vld [vmem:[%s0 + $0x448] sm:$0xff]
  %v167 = vld [vmem:[%s0 + $0x450] sm:$0xff]
  %v168 = vld [vmem:[%s0 + $0x458] sm:$0xff]
  %v169 = vld [vmem:[%s0 + $0x460] sm:$0xff]
  %v170 = vld [vmem:[%s0 + $0x468] sm:$0xff]
  %v171 = vld [vmem:[%s0 + $0x470] sm:$0xff]
  %v172 = vld [vmem:[%s0 + $0x478] sm:$0xff]
  %v173 = vld [vmem:[%s0 + $0x480] sm:$0xff]
  %v174 = vld [vmem:[%s0 + $0x488] sm:$0xff]
  %v175 = vld [vmem:[%s0 + $0x490] sm:$0xff]
  %v176 = vld [vmem:[%s0 + $0x498] sm:$0xff]
  %v177 = vld [vmem:[%s0 + $0x4a0] sm:$0xff]
  %v178 = vld [vmem:[%s0 + $0x4a8] sm:$0xff]
  %v179 = vld [vmem:[%s0 + $0x4b0] sm:$0xff]
  %v180 = vld [vmem:[%s0 + $0x4b8] sm:$0xff]
  %v181 = vld [vmem:[%s0 + $0x4c0] sm:$0xff]
  %v182 = vld [vmem:[%s0 + $0x4c8] sm:$0xff]
  %v183 = vld [vmem:[%s0 + $0x4d0] sm:$0xff]
  %v184 = vld [vmem:[%s0 + $0x4d8] sm:$0xff]
  %v185 = vld [vmem:[%s0 + $0x4e0] sm:$0xff]
  %v186 = vld [vmem:[%s0 + $0x4e8] sm:$0xff]
  %v187 = vld [vmem:[%s0 + $0x4f0] sm:$0xff]
  %v188 = vld [vmem:[%s0 + $0x4f8] sm:$0xff]
  %v189 = vld [vmem:[%s0 + $0x500] sm:$0xff]
  %v190 = vld [vmem:[%s0 + $0x508] sm:$0xff]
  %v191 = vld [vmem:[%s0 + $0x510] sm:$0xff]
  %v192 = vld [vmem:[%s0 + $0x518] sm:$0xff]
  %v193 = vld [vmem:[%s0 + $0x520] sm:$0xff]
  %v194 = vld [vmem:[%s0 + $0x528] sm:$0xff]
  %v195 = vld [vmem:[%s0 + $0x530] sm:$0xff]
  %v196 = vld [vmem:[%s0 + $0x538] sm:$0xff]
  %v197 = vld [vmem:[%s0 + $0x540] sm:$0xff]
  %v198 = vld [vmem:[%s0 + $0x548] sm:$0xff]
  %v199 = vld [vmem:[%s0 + $0x550] sm:$0xff]
  %v200 = vld [vmem:[%s0 + $0x558] sm:$0xff]
  %v201 = vld [vmem:[%s0 + $0x560] sm:$0xff]
  %v202 = vld [vmem:[%s0 + $0x568] sm:$0xff]
  %v203 = vld [vmem:[%s0 + $0x570] sm:$0xff]
  %v204 = vld [vmem:[%s0 + $0x578] sm:$0xff]
  %v205 = vld [vmem:[%s0 + $0x580] sm:$0xff]
  %v206 = vld [vmem:[%s0 + $0x588] sm:$0xff]
  %v207 = vld [vmem:[%s0 + $0x590] sm:$0xff]
  %v208 = vld [vmem:[%s0 + $0x598] sm:$0xff]
  %v209 = vld [vmem:[%s0 + $0x5a0] sm:$0xff]
  %v210 = vld [vmem:[%s0 + $0x5a8] sm:$0xff]
  %v211 = vld [vmem:[%s0 + $0x5b0] sm:$0xff]
  %v212 = vld [vmem:[%s0 + $0x5b8] sm:$0xff]
  %v213 = vld [vmem:[%s0 + $0x5c0] sm:$0xff]
  %v214 = vld [vmem:[%s0 + $0x5c8] sm:$0xff]
  %v215 = vld [vmem:[%s0 + $0x5d0] sm:$0xff]
  %v216 = vld [vmem:[%s0 + $0x5d8] sm:$0xff]
  %v217 = vld [vmem:[%s0 + $0x5e0] sm:$0xff]
  %v218 = vld [vmem:[%s0 + $0x5e8] sm:$0xff]
  %v219 = vld [vmem:[%s0 + $0x5f0] sm:$0xff]
  %v220 = vld [vmem:[%s0 + $0x5f8] sm:$0xff]
  %v221 = vld [vmem:[%s0 + $0x600] sm:$0xff]
  %v222 = vld [vmem:[%s0 + $0x608] sm:$0xff]
  %v223 = vld [vmem:[%s0 + $0x610] sm:$0xff]
  %v224 = vld [vmem:[%s0 + $0x618] sm:$0xff]
  %v225 = vld [vmem:[%s0 + $0x620] sm:$0xff]
  %v226 = vld [vmem:[%s0 + $0x628] sm:$0xff]
  %v227 = vld [vmem:[%s0 + $0x630] sm:$0xff]
  %v228 = vld [vmem:[%s0 + $0x638] sm:$0xff]
  %v229 = vld [vmem:[%s0 + $0x640] sm:$0xff]
  %v230 = vld [vmem:[%s0 + $0x648] sm:$0xff]
  %v231 = vld [vmem:[%s0 + $0x650] sm:$0xff]
  %v232 = vld [vmem:[%s0 + $0x658] sm:$0xff]
  %v233 = vld [vmem:[%s0 + $0x660] sm:$0xff]
  %v234 = vld [vmem:[%s0 + $0x668] sm:$0xff]
  %v235 = vld [vmem:[%s0 + $0x670] sm:$0xff]
  %v236 = vld [vmem:[%s0 + $0x678] sm:$0xff]
  %v237 = vld [vmem:[%s0 + $0x680] sm:$0xff]
  %v238 = vld [vmem:[%s0 + $0x688] sm:$0xff]
  %v239 = vld [vmem:[%s0 + $0x690] sm:$0xff]
  %v240 = vld [vmem:[%s0 + $0x698] sm:$0xff]
  %v241 = vld [vmem:[%s0 + $0x6a0] sm:$0xff]
  %v242 = vld [vmem:[%s0 + $0x6a8] sm:$0xff]
  %v243 = vld [vmem:[%s0 + $0x6b0] sm:$0xff]
  %v244 = vld [vmem:[%s0 + $0x6b8] sm:$0xff]
  %v245 = vld [vmem:[%s0 + $0x6c0] sm:$0xff]
  %v246 = vld [vmem:[%s0 + $0x6c8] sm:$0xff]
  %v247 = vld [vmem:[%s0 + $0x6d0] sm:$0xff]
  %v248 = vld [vmem:[%s0 + $0x6d8] sm:$0xff]
  %v249 = vld [vmem:[%s0 + $0x6e0] sm:$0xff]
  %v250 = vld [vmem:[%s0 + $0x6e8] sm:$0xff]
  %v251 = vld [vmem:[%s0 + $0x6f0] sm:$0xff]
  %v252 = vld [vmem:[%s0 + $0x6f8] sm:$0xff]
  %v253 = vld [vmem:[%s0 + $0x700] sm:$0xff]
  %v254 = vld [vmem:[%s0 + $0x708] sm:$0xff]
  %v255 = vld [vmem:[%s0 + $0x710] sm:$0xff]
  %v256 = vld [vmem:[%s0 + $0x718] sm:$0xff]
  %v257 = vld [vmem:[%s0 + $0x720] sm:$0xff]
  %v258 = vld [vmem:[%s0 + $0x728] sm:$0xff]
  %v259 = vld [vmem:[%s0 + $0x730] sm:$0xff]
  %v260 = vld [vmem:[%s0 + $0x738] sm:$0xff]
  %v261 = vld [vmem:[%s0 + $0x740] sm:$0xff]
  %v262 = vld [vmem:[%s0 + $0x748] sm:$0xff]
  %v263 = vld [vmem:[%s0 + $0x750] sm:$0xff]
  %v264 = vld [vmem:[%s0 + $0x758] sm:$0xff]
  %v265 = vld [vmem:[%s0 + $0x760] sm:$0xff]
  %v266 = vld [vmem:[%s0 + $0x768] sm:$0xff]
  %v267 = vld [vmem:[%s0 + $0x770] sm:$0xff]
  %v268 = vld [vmem:[%s0 + $0x778] sm:$0xff]
  %v269 = vld [vmem:[%s0 + $0x780] sm:$0xff]
  %v270 = vld [vmem:[%s0 + $0x788] sm:$0xff]
  %v271 = vld [vmem:[%s0 + $0x790] sm:$0xff]
  %v272 = vld [vmem:[%s0 + $0x798] sm:$0xff]
  %v273 = vld [vmem:[%s0 + $0x7a0] sm:$0xff]
  %v274 = vld [vmem:[%s0 + $0x7a8] sm:$0xff]
  %v275 = vld [vmem:[%s0 + $0x7b0] sm:$0xff]
  %v276 = vld [vmem:[%s0 + $0x7b8] sm:$0xff]
  %v277 = vld [vmem:[%s0 + $0x7c0] sm:$0xff]
  %v278 = vld [vmem:[%s0 + $0x7c8] sm:$0xff]
  %v279 = vld [vmem:[%s0 + $0x7d0] sm:$0xff]
  %v280 = vld [vmem:[%s0 + $0x7d8] sm:$0xff]
  %v281 = vld [vmem:[%s0 + $0x7e0] sm:$0xff]
  %v282 = vld [vmem:[%s0 + $0x7e8] sm:$0xff]
  %v283 = vld [vmem:[%s0 + $0x7f0] sm:$0xff]
  %v284 = vld [vmem:[%s0 + $0x7f8] sm:$0xff]
  %v285 = vld [vmem:[%s0 + $0x800] sm:$0xff]
  %v286 = vld [vmem:[%s0 + $0x808] sm:$0xff]
  %v287 = vld [vmem:[%s0 + $0x810] sm:$0xff]
  %v288 = vld [vmem:[%s0 + $0x818] sm:$0xff]
  %v289 = vld [vmem:[%s0 + $0x820] sm:$0xff]
  %v290 = vld [vmem:[%s0 + $0x828] sm:$0xff]
  %v291 = vld [vmem:[%s0 + $0x830] sm:$0xff]
  %v292 = vld [vmem:[%s0 + $0x838] sm:$0xff]
  %v293 = vld [vmem:[%s0 + $0x840] sm:$0xff]
  %v294 = vld [vmem:[%s0 + $0x848] sm:$0xff]
  %v295 = vld [vmem:[%s0 + $0x850] sm:$0xff]
  %v296 = vld [vmem:[%s0 + $0x858] sm:$0xff]
  %v297 = vld [vmem:[%s0 + $0x860] sm:$0xff]
  %v298 = vld [vmem:[%s0 + $0x868] sm:$0xff]
  %v299 = vld [vmem:[%s0 + $0x870] sm:$0xff]
  %v300 = vld [vmem:[%s0 + $0x878] sm:$0xff]
  %v301 = vld [vmem:[%s0 + $0x880] sm:$0xff]
  %v302 = vld [vmem:[%s0 + $0x888] sm:$0xff]
  %v303 = vld [vmem:[%s0 + $0x890] sm:$0xff]
  %v304 = vld [vmem:[%s0 + $0x898] sm:$0xff]
  %v305 = vld [vmem:[%s0 + $0x8a0] sm:$0xff]
  %v306 = vld [vmem:[%s0 + $0x8a8] sm:$0xff]
  %v307 = vld [vmem:[%s0 + $0x8b0] sm:$0xff]
  %v308 = vld [vmem:[%s0 + $0x8b8] sm:$0xff]
  %v309 = vld [vmem:[%s0 + $0x8c0] sm:$0xff]
  %v310 = vld [vmem:[%s0 + $0x8c8] sm:$0xff]
  %v311 = vld [vmem:[%s0 + $0x8d0] sm:$0xff]
  %v312 = vld [vmem:[%s0 + $0x8d8] sm:$0xff]
  %v313 = vld [vmem:[%s0 + $0x8e0] sm:$0xff]
  %v314 = vld [vmem:[%s0 + $0x8e8] sm:$0xff]
  %v315 = vld [vmem:[%s0 + $0x8f0] sm:$0xff]
  %v316 = vld [vmem:[%s0 + $0x8f8] sm:$0xff]
  %v317 = vld [vmem:[%s0 + $0x900] sm:$0xff]
  %v318 = vld [vmem:[%s0 + $0x908] sm:$0xff]
  %v319 = vld [vmem:[%s0 + $0x910] sm:$0xff]
  %v320 = vld [vmem:[%s0 + $0x918] sm:$0xff]
  %v321 = vld [vmem:[%s0 + $0x920] sm:$0xff]
  %v322 = vld [vmem:[%s0 + $0x928] sm:$0xff]
  %v323 = vld [vmem:[%s0 + $0x930] sm:$0xff]
  %v324 = vld [vmem:[%s0 + $0x938] sm:$0xff]
  %v325 = vld [vmem:[%s0 + $0x940] sm:$0xff]
  %v326 = vld [vmem:[%s0 + $0x948] sm:$0xff]
  %v327 = vld [vmem:[%s0 + $0x950] sm:$0xff]
  %v328 = vld [vmem:[%s0 + $0x958] sm:$0xff]
  %v329 = vld [vmem:[%s0 + $0x960] sm:$0xff]
  %v330 = vld [vmem:[%s0 + $0x968] sm:$0xff]
  %v331 = vld [vmem:[%s0 + $0x970] sm:$0xff]
  %v332 = vld [vmem:[%s0 + $0x978] sm:$0xff]
  %v333 = vld [vmem:[%s0 + $0x980] sm:$0xff]
  %v334 = vld [vmem:[%s0 + $0x988] sm:$0xff]
  %v335 = vld [vmem:[%s0 + $0x990] sm:$0xff]
  %v336 = vld [vmem:[%s0 + $0x998] sm:$0xff]
  %v337 = vld [vmem:[%s0 + $0x9a0] sm:$0xff]
  %v338 = vld [vmem:[%s0 + $0x9a8] sm:$0xff]
  %v339 = vld [vmem:[%s0 + $0x9b0] sm:$0xff]
  %v340 = vld [vmem:[%s0 + $0x9b8] sm:$0xff]
  %v341 = vld [vmem:[%s0 + $0x9c0] sm:$0xff]
  %v342 = vld [vmem:[%s0 + $0x9c8] sm:$0xff]
  %v343 = vld [vmem:[%s0 + $0x9d0] sm:$0xff]
  %v344 = vld [vmem:[%s0 + $0x9d8] sm:$0xff]
  %v345 = vld [vmem:[%s0 + $0x9e0] sm:$0xff]
  %v346 = vld [vmem:[%s0 + $0x9e8] sm:$0xff]
  %v347 = vld [vmem:[%s0 + $0x9f0] sm:$0xff]
  %v348 = vld [vmem:[%s0 + $0x9f8] sm:$0xff]
  %v349 = vld [vmem:[%s0 + $0xa00] sm:$0xff]
  %v350 = vld [vmem:[%s0 + $0xa08] sm:$0xff]
  %v351 = vld [vmem:[%s0 + $0xa10] sm:$0xff]
  %v352 = vld [vmem:[%s0 + $0xa18] sm:$0xff]
  %v353 = vld [vmem:[%s0 + $0xa20] sm:$0xff]
  %v354 = vld [vmem:[%s0 + $0xa28] sm:$0xff]
  %v355 = vld [vmem:[%s0 + $0xa30] sm:$0xff]
  %v356 = vld [vmem:[%s0 + $0xa38] sm:$0xff]
  %v357 = vld [vmem:[%s0 + $0xa40] sm:$0xff]
  %v358 = vld [vmem:[%s0 + $0xa48] sm:$0xff]
  %v359 = vld [vmem:[%s0 + $0xa50] sm:$0xff]
  %v360 = vld [vmem:[%s0 + $0xa58] sm:$0xff]
  %v361 = vld [vmem:[%s0 + $0xa60] sm:$0xff]
  %v362 = vld [vmem:[%s0 + $0xa68] sm:$0xff]
  %v363 = vld [vmem:[%s0 + $0xa70] sm:$0xff]
  %v364 = vld [vmem:[%s0 + $0xa78] sm:$0xff]
  %v365 = vld [vmem:[%s0 + $0xa80] sm:$0xff]
  %v366 = vld [vmem:[%s0 + $0xa88] sm:$0xff]
  %v367 = vld [vmem:[%s0 + $0xa90] sm:$0xff]
  %v368 = vld [vmem:[%s0 + $0xa98] sm:$0xff]
  %v369 = vld [vmem:[%s0 + $0xaa0] sm:$0xff]
  %v370 = vld [vmem:[%s0 + $0xaa8] sm:$0xff]
  %v371 = vld [vmem:[%s0 + $0xab0] sm:$0xff]
  %v372 = vld [vmem:[%s0 + $0xab8] sm:$0xff]
  %v373 = vld [vmem:[%s0 + $0xac0] sm:$0xff]
  %v374 = vld [vmem:[%s0 + $0xac8] sm:$0xff]
  %v375 = vld [vmem:[%s0 + $0xad0] sm:$0xff]
  %v376 = vld [vmem:[%s0 + $0xad8] sm:$0xff]
  %v377 = vld [vmem:[%s0 + $0xae0] sm:$0xff]
  %v378 = vld [vmem:[%s0 + $0xae8] sm:$0xff]
  %v379 = vld [vmem:[%s0 + $0xaf0] sm:$0xff]
  %v380 = vld [vmem:[%s0 + $0xaf8] sm:$0xff]
  %v381 = vld [vmem:[%s0 + $0xb00] sm:$0xff]
  %v382 = vld [vmem:[%s0 + $0xb08] sm:$0xff]
  %v383 = vld [vmem:[%s0 + $0xb10] sm:$0xff]
  %v384 = vld [vmem:[%s0 + $0xb18] sm:$0xff]
  %v385 = vld [vmem:[%s0 + $0xb20] sm:$0xff]
  %v386 = vld [vmem:[%s0 + $0xb28] sm:$0xff]
  %v387 = vld [vmem:[%s0 + $0xb30] sm:$0xff]
  %v388 = vld [vmem:[%s0 + $0xb38] sm:$0xff]
  %v389 = vld [vmem:[%s0 + $0xb40] sm:$0xff]
  %v390 = vld [vmem:[%s0 + $0xb48] sm:$0xff]
  %v391 = vld [vmem:[%s0 + $0xb50] sm:$0xff]
  %v392 = vld [vmem:[%s0 + $0xb58] sm:$0xff]
  %v393 = vld [vmem:[%s0 + $0xb60] sm:$0xff]
  %v394 = vld [vmem:[%s0 + $0xb68] sm:$0xff]
  %v395 = vld [vmem:[%s0 + $0xb70] sm:$0xff]
  %v396 = vld [vmem:[%s0 + $0xb78] sm:$0xff]
  %v397 = vld [vmem:[%s0 + $0xb80] sm:$0xff]
  %v398 = vld [vmem:[%s0 + $0xb88] sm:$0xff]
  %v399 = vld [vmem:[%s0 + $0xb90] sm:$0xff]
  %v400 = vld [vmem:[%s0 + $0xb98] sm:$0xff]
  %v401 = vld [vmem:[%s0 + $0xba0] sm:$0xff]
  %v402 = vld [vmem:[%s0 + $0xba8] sm:$0xff]
  %v403 = vld [vmem:[%s0 + $0xbb0] sm:$0xff]
  %v404 = vld [vmem:[%s0 + $0xbb8] sm:$0xff]
  %v405 = vld [vmem:[%s0 + $0xbc0] sm:$0xff]
  %v406 = vld [vmem:[%s0 + $0xbc8] sm:$0xff]
  %v407 = vld [vmem:[%s0 + $0xbd0] sm:$0xff]
  %v408 = vld [vmem:[%s0 + $0xbd8] sm:$0xff]
  %v409 = vld [vmem:[%s0 + $0xbe0] sm:$0xff]
  %v410 = vld [vmem:[%s0 + $0xbe8] sm:$0xff]
  %v411 = vld [vmem:[%s0 + $0xbf0] sm:$0xff]
  %v412 = vld [vmem:[%s0 + $0xbf8] sm:$0xff]
  %v413 = vld [vmem:[%s0 + $0xc00] sm:$0xff]
  %v414 = vld [vmem:[%s0 + $0xc08] sm:$0xff]
  %v415 = vld [vmem:[%s0 + $0xc10] sm:$0xff]
  %v416 = vld [vmem:[%s0 + $0xc18] sm:$0xff]
  %v417 = vld [vmem:[%s0 + $0xc20] sm:$0xff]
  %v418 = vld [vmem:[%s0 + $0xc28] sm:$0xff]
  %v419 = vld [vmem:[%s0 + $0xc30] sm:$0xff]
  %v420 = vld [vmem:[%s0 + $0xc38] sm:$0xff]
  %v421 = vld [vmem:[%s0 + $0xc40] sm:$0xff]
  %v422 = vld [vmem:[%s0 + $0xc48] sm:$0xff]
  %v423 = vld [vmem:[%s0 + $0xc50] sm:$0xff]
  %v424 = vld [vmem:[%s0 + $0xc58] sm:$0xff]
  %v425 = vld [vmem:[%s0 + $0xc60] sm:$0xff]
  %v426 = vld [vmem:[%s0 + $0xc68] sm:$0xff]
  %v427 = vld [vmem:[%s0 + $0xc70] sm:$0xff]
  %v428 = vld [vmem:[%s0 + $0xc78] sm:$0xff]
  %v429 = vld [vmem:[%s0 + $0xc80] sm:$0xff]
  %v430 = vld [vmem:[%s0 + $0xc88] sm:$0xff]
  %v431 = vld [vmem:[%s0 + $0xc90] sm:$0xff]
  %v432 = vld [vmem:[%s0 + $0xc98] sm:$0xff]
  %v433 = vld [vmem:[%s0 + $0xca0] sm:$0xff]
  %v434 = vld [vmem:[%s0 + $0xca8] sm:$0xff]
  %v435 = vld [vmem:[%s0 + $0xcb0] sm:$0xff]
  %v436 = vld [vmem:[%s0 + $0xcb8] sm:$0xff]
  %v437 = vld [vmem:[%s0 + $0xcc0] sm:$0xff]
  %v438 = vld [vmem:[%s0 + $0xcc8] sm:$0xff]
  %v439 = vld [vmem:[%s0 + $0xcd0] sm:$0xff]
  %v440 = vld [vmem:[%s0 + $0xcd8] sm:$0xff]
  %v441 = vld [vmem:[%s0 + $0xce0] sm:$0xff]
  %v442 = vld [vmem:[%s0 + $0xce8] sm:$0xff]
  %v443 = vld [vmem:[%s0 + $0xcf0] sm:$0xff]
  %v444 = vld [vmem:[%s0 + $0xcf8] sm:$0xff]
  %v445 = vld [vmem:[%s0 + $0xd00] sm:$0xff]
  %v446 = vld [vmem:[%s0 + $0xd08] sm:$0xff]
  %v447 = vld [vmem:[%s0 + $0xd10] sm:$0xff]
  %v448 = vld [vmem:[%s0 + $0xd18] sm:$0xff]
  %v449 = vld [vmem:[%s0 + $0xd20] sm:$0xff]
  %v450 = vld [vmem:[%s0 + $0xd28] sm:$0xff]
  %v451 = vld [vmem:[%s0 + $0xd30] sm:$0xff]
  %v452 = vld [vmem:[%s0 + $0xd38] sm:$0xff]
  %v453 = vld [vmem:[%s0 + $0xd40] sm:$0xff]
  %v454 = vld [vmem:[%s0 + $0xd48] sm:$0xff]
  %v455 = vld [vmem:[%s0 + $0xd50] sm:$0xff]
  %v456 = vld [vmem:[%s0 + $0xd58] sm:$0xff]
  %v457 = vld [vmem:[%s0 + $0xd60] sm:$0xff]
  %v458 = vld [vmem:[%s0 + $0xd68] sm:$0xff]
  %v459 = vld [vmem:[%s0 + $0xd70] sm:$0xff]
  %v460 = vld [vmem:[%s0 + $0xd78] sm:$0xff]
  %v461 = vld [vmem:[%s0 + $0xd80] sm:$0xff]
  %v462 = vld [vmem:[%s0 + $0xd88] sm:$0xff]
  %v463 = vld [vmem:[%s0 + $0xd90] sm:$0xff]
  %v464 = vld [vmem:[%s0 + $0xd98] sm:$0xff]
  %v465 = vld [vmem:[%s0 + $0xda0] sm:$0xff]
  %v466 = vld [vmem:[%s0 + $0xda8] sm:$0xff]
  %v467 = vld [vmem:[%s0 + $0xdb0] sm:$0xff]
  %v468 = vld [vmem:[%s0 + $0xdb8] sm:$0xff]
  %v469 = vld [vmem:[%s0 + $0xdc0] sm:$0xff]
  %v470 = vld [vmem:[%s0 + $0xdc8] sm:$0xff]
  %v471 = vld [vmem:[%s0 + $0xdd0] sm:$0xff]
  %v472 = vld [vmem:[%s0 + $0xdd8] sm:$0xff]
  %v473 = vld [vmem:[%s0 + $0xde0] sm:$0xff]
  %v474 = vld [vmem:[%s0 + $0xde8] sm:$0xff]
  %v475 = vld [vmem:[%s0 + $0xdf0] sm:$0xff]
  %v476 = vld [vmem:[%s0 + $0xdf8] sm:$0xff]
  %v477 = vld [vmem:[%s0 + $0xe00] sm:$0xff]
  %v478 = vld [vmem:[%s0 + $0xe08] sm:$0xff]
  %v479 = vld [vmem:[%s0 + $0xe10] sm:$0xff]
  %v480 = vld [vmem:[%s0 + $0xe18] sm:$0xff]
  %v481 = vld [vmem:[%s0 + $0xe20] sm:$0xff]
  %v482 = vld [vmem:[%s0 + $0xe28] sm:$0xff]
  %v483 = vld [vmem:[%s0 + $0xe30] sm:$0xff]
  %v484 = vld [vmem:[%s0 + $0xe38] sm:$0xff]
  %v485 = vld [vmem:[%s0 + $0xe40] sm:$0xff]
  %v486 = vld [vmem:[%s0 + $0xe48] sm:$0xff]
  %v487 = vld [vmem:[%s0 + $0xe50] sm:$0xff]
  %v488 = vld [vmem:[%s0 + $0xe58] sm:$0xff]
  %v489 = vld [vmem:[%s0 + $0xe60] sm:$0xff]
  %v490 = vld [vmem:[%s0 + $0xe68] sm:$0xff]
  %v491 = vld [vmem:[%s0 + $0xe70] sm:$0xff]
  %v492 = vld [vmem:[%s0 + $0xe78] sm:$0xff]
  %v493 = vld [vmem:[%s0 + $0xe80] sm:$0xff]
  %v494 = vld [vmem:[%s0 + $0xe88] sm:$0xff]
  %v495 = vld [vmem:[%s0 + $0xe90] sm:$0xff]
  %v496 = vld [vmem:[%s0 + $0xe98] sm:$0xff]
  %v497 = vld [vmem:[%s0 + $0xea0] sm:$0xff]
  %v498 = vld [vmem:[%s0 + $0xea8] sm:$0xff]
  %v499 = vld [vmem:[%s0 + $0xeb0] sm:$0xff]
  %v500 = vld [vmem:[%s0 + $0xeb8] sm:$0xff]
  %v501 = vld [vmem:[%s0 + $0xec0] sm:$0xff]
  %v502 = vld [vmem:[%s0 + $0xec8] sm:$0xff]
  %v503 = vld [vmem:[%s0 + $0xed0] sm:$0xff]
  %v504 = vld [vmem:[%s0 + $0xed8] sm:$0xff]
  %v505 = vld [vmem:[%s0 + $0xee0] sm:$0xff]
  %v506 = vld [vmem:[%s0 + $0xee8] sm:$0xff]
  %v507 = vld [vmem:[%s0 + $0xef0] sm:$0xff]
  %v508 = vld [vmem:[%s0 + $0xef8] sm:$0xff]
  %v509 = vld [vmem:[%s0 + $0xf00] sm:$0xff]
  %v510 = vld [vmem:[%s0 + $0xf08] sm:$0xff]
  %v511 = vld [vmem:[%s0 + $0xf10] sm:$0xff]
  %v512 = vld [vmem:[%s0 + $0xf18] sm:$0xff]
  %v513 = vld [vmem:[%s0 + $0xf20] sm:$0xff]
  %v514 = vld [vmem:[%s0 + $0xf28] sm:$0xff]
  %v515 = vld [vmem:[%s0 + $0xf30] sm:$0xff]
  %v516 = vld [vmem:[%s0 + $0xf38] sm:$0xff]
  %v517 = vld [vmem:[%s0 + $0xf40] sm:$0xff]
  %v518 = vld [vmem:[%s0 + $0xf48] sm:$0xff]
  %v519 = vld [vmem:[%s0 + $0xf50] sm:$0xff]
  %v520 = vld [vmem:[%s0 + $0xf58] sm:$0xff]
  %v521 = vld [vmem:[%s0 + $0xf60] sm:$0xff]
  %v522 = vld [vmem:[%s0 + $0xf68] sm:$0xff]
  %v523 = vld [vmem:[%s0 + $0xf70] sm:$0xff]
  %v524 = vld [vmem:[%s0 + $0xf78] sm:$0xff]
  %v525 = vld [vmem:[%s0 + $0xf80] sm:$0xff]
  %v526 = vld [vmem:[%s0 + $0xf88] sm:$0xff]
  %v527 = vld [vmem:[%s0 + $0xf90] sm:$0xff]
  %v528 = vld [vmem:[%s0 + $0xf98] sm:$0xff]
  %v529 = vld [vmem:[%s0 + $0xfa0] sm:$0xff]
  %v530 = vld [vmem:[%s0 + $0xfa8] sm:$0xff]
  %v531 = vld [vmem:[%s0 + $0xfb0] sm:$0xff]
  %v532 = vld [vmem:[%s0 + $0xfb8] sm:$0xff]
  %v533 = vld [vmem:[%s0 + $0xfc0] sm:$0xff]
  %v534 = vld [vmem:[%s0 + $0xfc8] sm:$0xff]
  %v535 = vld [vmem:[%s0 + $0xfd0] sm:$0xff]
  %v536 = vld [vmem:[%s0 + $0xfd8] sm:$0xff]
  %v537 = vld [vmem:[%s0 + $0xfe0] sm:$0xff]
  %v538 = vld [vmem:[%s0 + $0xfe8] sm:$0xff]
  %v539 = vld [vmem:[%s0 + $0xff0] sm:$0xff]
  %v540 = vld [vmem:[%s0 + $0xff8] sm:$0xff]
  %v541 = vld [vmem:[%s0 + $0x1000] sm:$0xff]
  %v542 = vld [vmem:[%s0 + $0x1008] sm:$0xff]
  %v543 = vld [vmem:[%s0 + $0x1010] sm:$0xff]
  %v544 = vld [vmem:[%s0 + $0x1018] sm:$0xff]
  %v545 = vld [vmem:[%s0 + $0x1020] sm:$0xff]
  %v546 = vld [vmem:[%s0 + $0x1028] sm:$0xff]
  %v547 = vld [vmem:[%s0 + $0x1030] sm:$0xff]
  %v548 = vld [vmem:[%s0 + $0x1038] sm:$0xff]
  %v549 = vld [vmem:[%s0 + $0x1040] sm:$0xff]
  %v550 = vld [vmem:[%s0 + $0x1048] sm:$0xff]
  %v551 = vld [vmem:[%s0 + $0x1050] sm:$0xff]
  %v552 = vld [vmem:[%s0 + $0x1058] sm:$0xff]
  %v553 = vld [vmem:[%s0 + $0x1060] sm:$0xff]
  %v554 = vld [vmem:[%s0 + $0x1068] sm:$0xff]
  %v555 = vld [vmem:[%s0 + $0x1070] sm:$0xff]
  %v556 = vld [vmem:[%s0 + $0x1078] sm:$0xff]
  %v557 = vld [vmem:[%s0 + $0x1080] sm:$0xff]
  %v558 = vld [vmem:[%s0 + $0x1088] sm:$0xff]
  %v559 = vld [vmem:[%s0 + $0x1090] sm:$0xff]
  %v560 = vld [vmem:[%s0 + $0x1098] sm:$0xff]
  %v561 = vld [vmem:[%s0 + $0x10a0] sm:$0xff]
  %v562 = vld [vmem:[%s0 + $0x10a8] sm:$0xff]
  %v563 = vld [vmem:[%s0 + $0x10b0] sm:$0xff]
  %v564 = vld [vmem:[%s0 + $0x10b8] sm:$0xff]
  %v565 = vld [vmem:[%s0 + $0x10c0] sm:$0xff]
  %v566 = vld [vmem:[%s0 + $0x10c8] sm:$0xff]
  %v567 = vld [vmem:[%s0 + $0x10d0] sm:$0xff]
  %v568 = vld [vmem:[%s0 + $0x10d8] sm:$0xff]
  %v569 = vld [vmem:[%s0 + $0x10e0] sm:$0xff]
  %v570 = vld [vmem:[%s0 + $0x10e8] sm:$0xff]
  %v571 = vld [vmem:[%s0 + $0x10f0] sm:$0xff]
  %v572 = vld [vmem:[%s0 + $0x10f8] sm:$0xff]
  %v573 = vld [vmem:[%s0 + $0x1100] sm:$0xff]
  %v574 = vld [vmem:[%s0 + $0x1108] sm:$0xff]
  %v575 = vld [vmem:[%s0 + $0x1110] sm:$0xff]
  %v576 = vld [vmem:[%s0 + $0x1118] sm:$0xff]
  %v577 = vld [vmem:[%s0 + $0x1120] sm:$0xff]
  %v578 = vld [vmem:[%s0 + $0x1128] sm:$0xff]
  %v579 = vld [vmem:[%s0 + $0x1130] sm:$0xff]
  %v580 = vld [vmem:[%s0 + $0x1138] sm:$0xff]
  %v581 = vld [vmem:[%s0 + $0x1140] sm:$0xff]
  %v582 = vld [vmem:[%s0 + $0x1148] sm:$0xff]
  %v583 = vld [vmem:[%s0 + $0x1150] sm:$0xff]
  %v584 = vld [vmem:[%s0 + $0x1158] sm:$0xff]
  %v585 = vld [vmem:[%s0 + $0x1160] sm:$0xff]
  %v586 = vld [vmem:[%s0 + $0x1168] sm:$0xff]
  %v587 = vld [vmem:[%s0 + $0x1170] sm:$0xff]
  %v588 = vld [vmem:[%s0 + $0x1178] sm:$0xff]
  %v589 = vld [vmem:[%s0 + $0x1180] sm:$0xff]
  %v590 = vld [vmem:[%s0 + $0x1188] sm:$0xff]
  %v591 = vld [vmem:[%s0 + $0x1190] sm:$0xff]
  %v592 = vld [vmem:[%s0 + $0x1198] sm:$0xff]
  %v593 = vld [vmem:[%s0 + $0x11a0] sm:$0xff]
  %v594 = vld [vmem:[%s0 + $0x11a8] sm:$0xff]
  %v595 = vld [vmem:[%s0 + $0x11b0] sm:$0xff]
  %v596 = vld [vmem:[%s0 + $0x11b8] sm:$0xff]
  %v597 = vld [vmem:[%s0 + $0x11c0] sm:$0xff]
  %v598 = vld [vmem:[%s0 + $0x11c8] sm:$0xff]
  %v599 = vld [vmem:[%s0 + $0x11d0] sm:$0xff]
  %v600 = vld [vmem:[%s0 + $0x11d8] sm:$0xff]
  %v601 = vld [vmem:[%s0 + $0x11e0] sm:$0xff]
  %v602 = vld [vmem:[%s0 + $0x11e8] sm:$0xff]
  %v603 = vld [vmem:[%s0 + $0x11f0] sm:$0xff]
  %v604 = vld [vmem:[%s0 + $0x11f8] sm:$0xff]
  %v605 = vld [vmem:[%s0 + $0x1200] sm:$0xff]
  %v606 = vld [vmem:[%s0 + $0x1208] sm:$0xff]
  %v607 = vld [vmem:[%s0 + $0x1210] sm:$0xff]
  %v608 = vld [vmem:[%s0 + $0x1218] sm:$0xff]
  %v609 = vld [vmem:[%s0 + $0x1220] sm:$0xff]
  %v610 = vld [vmem:[%s0 + $0x1228] sm:$0xff]
  %v611 = vld [vmem:[%s0 + $0x1230] sm:$0xff]
  %v612 = vld [vmem:[%s0 + $0x1238] sm:$0xff]
  %v613 = vld [vmem:[%s0 + $0x1240] sm:$0xff]
  %v614 = vld [vmem:[%s0 + $0x1248] sm:$0xff]
  %v615 = vld [vmem:[%s0 + $0x1250] sm:$0xff]
  %v616 = vld [vmem:[%s0 + $0x1258] sm:$0xff]
  %v617 = vld [vmem:[%s0 + $0x1260] sm:$0xff]
  %v618 = vld [vmem:[%s0 + $0x1268] sm:$0xff]
  %v619 = vld [vmem:[%s0 + $0x1270] sm:$0xff]
  %v620 = vld [vmem:[%s0 + $0x1278] sm:$0xff]
  %v621 = vld [vmem:[%s0 + $0x1280] sm:$0xff]
  %v622 = vld [vmem:[%s0 + $0x1288] sm:$0xff]
  %v623 = vld [vmem:[%s0 + $0x1290] sm:$0xff]
  %v624 = vld [vmem:[%s0 + $0x1298] sm:$0xff]
  %v625 = vld [vmem:[%s0 + $0x12a0] sm:$0xff]
  %v626 = vld [vmem:[%s0 + $0x12a8] sm:$0xff]
  %v627 = vld [vmem:[%s0 + $0x12b0] sm:$0xff]
  %v628 = vld [vmem:[%s0 + $0x12b8] sm:$0xff]
  %v629 = vld [vmem:[%s0 + $0x12c0] sm:$0xff]
  %v630 = vld [vmem:[%s0 + $0x12c8] sm:$0xff]
  %v631 = vld [vmem:[%s0 + $0x12d0] sm:$0xff]
  %v632 = vld [vmem:[%s0 + $0x12d8] sm:$0xff]
  %v633 = vld [vmem:[%s0 + $0x12e0] sm:$0xff]
  %v634 = vld [vmem:[%s0 + $0x12e8] sm:$0xff]
  %v635 = vld [vmem:[%s0 + $0x12f0] sm:$0xff]
  %v636 = vld [vmem:[%s0 + $0x12f8] sm:$0xff]
  %v637 = vld [vmem:[%s0 + $0x1300] sm:$0xff]
  %v638 = vld [vmem:[%s0 + $0x1308] sm:$0xff]
  %v639 = vld [vmem:[%s0 + $0x1310] sm:$0xff]
  %v640 = vld [vmem:[%s0 + $0x1318] sm:$0xff]
  %v641 = vld [vmem:[%s0 + $0x1320] sm:$0xff]
  %v642 = vld [vmem:[%s0 + $0x1328] sm:$0xff]
  %v643 = vld [vmem:[%s0 + $0x1330] sm:$0xff]
  %v644 = vld [vmem:[%s0 + $0x1338] sm:$0xff]
  %v645 = vld [vmem:[%s0 + $0x1340] sm:$0xff]
  %v646 = vld [vmem:[%s0 + $0x1348] sm:$0xff]
  %v647 = vld [vmem:[%s0 + $0x1350] sm:$0xff]
  %v648 = vld [vmem:[%s0 + $0x1358] sm:$0xff]
  %v649 = vld [vmem:[%s0 + $0x1360] sm:$0xff]
  %v650 = vld [vmem:[%s0 + $0x1368] sm:$0xff]
  %v651 = vld [vmem:[%s0 + $0x1370] sm:$0xff]
  %v652 = vld [vmem:[%s0 + $0x1378] sm:$0xff]
  %v653 = vld [vmem:[%s0 + $0x1380] sm:$0xff]
  %v654 = vld [vmem:[%s0 + $0x1388] sm:$0xff]
  %v655 = vld [vmem:[%s0 + $0x1390] sm:$0xff]
  %v656 = vld [vmem:[%s0 + $0x1398] sm:$0xff]
  %v657 = vld [vmem:[%s0 + $0x13a0] sm:$0xff]
  %v658 = vld [vmem:[%s0 + $0x13a8] sm:$0xff]
  %v659 = vld [vmem:[%s0 + $0x13b0] sm:$0xff]
  %v660 = vld [vmem:[%s0 + $0x13b8] sm:$0xff]
  %v661 = vld [vmem:[%s0 + $0x13c0] sm:$0xff]
  %v662 = vld [vmem:[%s0 + $0x13c8] sm:$0xff]
  %v663 = vld [vmem:[%s0 + $0x13d0] sm:$0xff]
  %v664 = vld [vmem:[%s0 + $0x13d8] sm:$0xff]
  %v665 = vld [vmem:[%s0 + $0x13e0] sm:$0xff]
  %v666 = vld [vmem:[%s0 + $0x13e8] sm:$0xff]
  %v667 = vld [vmem:[%s0 + $0x13f0] sm:$0xff]
  %v668 = vld [vmem:[%s0 + $0x13f8] sm:$0xff]
  %v669 = vld [vmem:[%s0 + $0x1400] sm:$0xff]
  %v670 = vld [vmem:[%s0 + $0x1408] sm:$0xff]
  %v671 = vld [vmem:[%s0 + $0x1410] sm:$0xff]
  %v672 = vld [vmem:[%s0 + $0x1418] sm:$0xff]
  %v673 = vld [vmem:[%s0 + $0x1420] sm:$0xff]
  %v674 = vld [vmem:[%s0 + $0x1428] sm:$0xff]
  %v675 = vld [vmem:[%s0 + $0x1430] sm:$0xff]
  %v676 = vld [vmem:[%s0 + $0x1438] sm:$0xff]
  %v677 = vld [vmem:[%s0 + $0x1440] sm:$0xff]
  %v678 = vld [vmem:[%s0 + $0x1448] sm:$0xff]
  %v679 = vld [vmem:[%s0 + $0x1450] sm:$0xff]
  %v680 = vld [vmem:[%s0 + $0x1458] sm:$0xff]
  %v681 = vld [vmem:[%s0 + $0x1460] sm:$0xff]
  %v682 = vld [vmem:[%s0 + $0x1468] sm:$0xff]
  %v683 = vld [vmem:[%s0 + $0x1470] sm:$0xff]
  %v684 = vld [vmem:[%s0 + $0x1478] sm:$0xff]
  %v685 = vld [vmem:[%s0 + $0x1480] sm:$0xff]
  %v686 = vld [vmem:[%s0 + $0x1488] sm:$0xff]
  %v687 = vld [vmem:[%s0 + $0x1490] sm:$0xff]
  %v688 = vld [vmem:[%s0 + $0x1498] sm:$0xff]
  %v689 = vld [vmem:[%s0 + $0x14a0] sm:$0xff]
  %v690 = vld [vmem:[%s0 + $0x14a8] sm:$0xff]
  %v691 = vld [vmem:[%s0 + $0x14b0] sm:$0xff]
  %v692 = vld [vmem:[%s0 + $0x14b8] sm:$0xff]
  %v693 = vld [vmem:[%s0 + $0x14c0] sm:$0xff]
  %v694 = vld [vmem:[%s0 + $0x14c8] sm:$0xff]
  %v695 = vld [vmem:[%s0 + $0x14d0] sm:$0xff]
  %v696 = vld [vmem:[%s0 + $0x14d8] sm:$0xff]
  %v697 = vld [vmem:[%s0 + $0x14e0] sm:$0xff]
  %v698 = vld [vmem:[%s0 + $0x14e8] sm:$0xff]
  %v699 = vld [vmem:[%s0 + $0x14f0] sm:$0xff]
  %v700 = vld [vmem:[%s0 + $0x14f8] sm:$0xff]
  %v701 = vld [vmem:[%s0 + $0x1500] sm:$0xff]
  %v702 = vld [vmem:[%s0 + $0x1508] sm:$0xff]
  %v703 = vld [vmem:[%s0 + $0x1510] sm:$0xff]
  %v704 = vld [vmem:[%s0 + $0x1518] sm:$0xff]
  %v705 = vld [vmem:[%s0 + $0x1520] sm:$0xff]
  %v706 = vld [vmem:[%s0 + $0x1528] sm:$0xff]
  %v707 = vld [vmem:[%s0 + $0x1530] sm:$0xff]
  %v708 = vld [vmem:[%s0 + $0x1538] sm:$0xff]
  %v709 = vld [vmem:[%s0 + $0x1540] sm:$0xff]
  %v710 = vld [vmem:[%s0 + $0x1548] sm:$0xff]
  %v711 = vld [vmem:[%s0 + $0x1550] sm:$0xff]
  %v712 = vld [vmem:[%s0 + $0x1558] sm:$0xff]
  %v713 = vld [vmem:[%s0 + $0x1560] sm:$0xff]
  %v714 = vld [vmem:[%s0 + $0x1568] sm:$0xff]
  %v715 = vld [vmem:[%s0 + $0x1570] sm:$0xff]
  %v716 = vld [vmem:[%s0 + $0x1578] sm:$0xff]
  %v717 = vld [vmem:[%s0 + $0x1580] sm:$0xff]
  %v718 = vld [vmem:[%s0 + $0x1588] sm:$0xff]
  %v719 = vld [vmem:[%s0 + $0x1590] sm:$0xff]
  %v720 = vld [vmem:[%s0 + $0x1598] sm:$0xff]
  %v721 = vld [vmem:[%s0 + $0x15a0] sm:$0xff]
  %v722 = vld [vmem:[%s0 + $0x15a8] sm:$0xff]
  %v723 = vld [vmem:[%s0 + $0x15b0] sm:$0xff]
  %v724 = vld [vmem:[%s0 + $0x15b8] sm:$0xff]
  %v725 = vld [vmem:[%s0 + $0x15c0] sm:$0xff]
  %v726 = vld [vmem:[%s0 + $0x15c8] sm:$0xff]
  %v727 = vld [vmem:[%s0 + $0x15d0] sm:$0xff]
  %v728 = vld [vmem:[%s0 + $0x15d8] sm:$0xff]
  %v729 = vld [vmem:[%s0 + $0x15e0] sm:$0xff]
  %v730 = vld [vmem:[%s0 + $0x15e8] sm:$0xff]
  %v731 = vld [vmem:[%s0 + $0x15f0] sm:$0xff]
  %v732 = vld [vmem:[%s0 + $0x15f8] sm:$0xff]
  %v733 = vld [vmem:[%s0 + $0x1600] sm:$0xff]
  %v734 = vld [vmem:[%s0 + $0x1608] sm:$0xff]
  %v735 = vld [vmem:[%s0 + $0x1610] sm:$0xff]
  %v736 = vld [vmem:[%s0 + $0x1618] sm:$0xff]
  %v737 = vld [vmem:[%s0 + $0x1620] sm:$0xff]
  %v738 = vld [vmem:[%s0 + $0x1628] sm:$0xff]
  %v739 = vld [vmem:[%s0 + $0x1630] sm:$0xff]
  %v740 = vld [vmem:[%s0 + $0x1638] sm:$0xff]
  %v741 = vld [vmem:[%s0 + $0x1640] sm:$0xff]
  %v742 = vld [vmem:[%s0 + $0x1648] sm:$0xff]
  %v743 = vld [vmem:[%s0 + $0x1650] sm:$0xff]
  %v744 = vld [vmem:[%s0 + $0x1658] sm:$0xff]
  %v745 = vld [vmem:[%s0 + $0x1660] sm:$0xff]
  %v746 = vld [vmem:[%s0 + $0x1668] sm:$0xff]
  %v747 = vld [vmem:[%s0 + $0x1670] sm:$0xff]
  %v748 = vld [vmem:[%s0 + $0x1678] sm:$0xff]
  %v749 = vld [vmem:[%s0 + $0x1680] sm:$0xff]
  %v750 = vld [vmem:[%s0 + $0x1688] sm:$0xff]
  %v751 = vld [vmem:[%s0 + $0x1690] sm:$0xff]
  %v752 = vld [vmem:[%s0 + $0x1698] sm:$0xff]
  %v753 = vld [vmem:[%s0 + $0x16a0] sm:$0xff]
  %v754 = vld [vmem:[%s0 + $0x16a8] sm:$0xff]
  %v755 = vld [vmem:[%s0 + $0x16b0] sm:$0xff]
  %v756 = vld [vmem:[%s0 + $0x16b8] sm:$0xff]
  %v757 = vld [vmem:[%s0 + $0x16c0] sm:$0xff]
  %v758 = vld [vmem:[%s0 + $0x16c8] sm:$0xff]
  %v759 = vld [vmem:[%s0 + $0x16d0] sm:$0xff]
  %v760 = vld [vmem:[%s0 + $0x16d8] sm:$0xff]
  %v761 = vld [vmem:[%s0 + $0x16e0] sm:$0xff]
  %v762 = vld [vmem:[%s0 + $0x16e8] sm:$0xff]
  %v763 = vld [vmem:[%s0 + $0x16f0] sm:$0xff]
  %v764 = vld [vmem:[%s0 + $0x16f8] sm:$0xff]
  %v765 = vld [vmem:[%s0 + $0x1700] sm:$0xff]
  %v766 = vld [vmem:[%s0 + $0x1708] sm:$0xff]
  %v767 = vld [vmem:[%s0 + $0x1710] sm:$0xff]
  %v768 = vld [vmem:[%s0 + $0x1718] sm:$0xff]
  %v769 = vld [vmem:[%s0 + $0x1720] sm:$0xff]
  %v770 = vld [vmem:[%s0 + $0x1728] sm:$0xff]
  %v771 = vld [vmem:[%s0 + $0x1730] sm:$0xff]
  %v772 = vld [vmem:[%s0 + $0x1738] sm:$0xff]
  %v773 = vld [vmem:[%s0 + $0x1740] sm:$0xff]
  %v774 = vld [vmem:[%s0 + $0x1748] sm:$0xff]
  %v775 = vld [vmem:[%s0 + $0x1750] sm:$0xff]
  %v776 = vld [vmem:[%s0 + $0x1758] sm:$0xff]
  %v777 = vld [vmem:[%s0 + $0x1760] sm:$0xff]
  %v778 = vld [vmem:[%s0 + $0x1768] sm:$0xff]
  %v779 = vld [vmem:[%s0 + $0x1770] sm:$0xff]
  %v780 = vld [vmem:[%s0 + $0x1778] sm:$0xff]
  %v781 = vld [vmem:[%s0 + $0x1780] sm:$0xff]
  %v782 = vld [vmem:[%s0 + $0x1788] sm:$0xff]
  %v783 = vld [vmem:[%s0 + $0x1790] sm:$0xff]
  %v784 = vld [vmem:[%s0 + $0x1798] sm:$0xff]
  %v785 = vld [vmem:[%s0 + $0x17a0] sm:$0xff]
  %v786 = vld [vmem:[%s0 + $0x17a8] sm:$0xff]
  %v787 = vld [vmem:[%s0 + $0x17b0] sm:$0xff]
  %v788 = vld [vmem:[%s0 + $0x17b8] sm:$0xff]
  %v789 = vld [vmem:[%s0 + $0x17c0] sm:$0xff]
  %v790 = vld [vmem:[%s0 + $0x17c8] sm:$0xff]
  %v791 = vld [vmem:[%s0 + $0x17d0] sm:$0xff]
  %v792 = vld [vmem:[%s0 + $0x17d8] sm:$0xff]
  %v793 = vld [vmem:[%s0 + $0x17e0] sm:$0xff]
  %v794 = vld [vmem:[%s0 + $0x17e8] sm:$0xff]
  %v795 = vld [vmem:[%s0 + $0x17f0] sm:$0xff]
  %v796 = vld [vmem:[%s0 + $0x17f8] sm:$0xff]
  %v797 = vld [vmem:[%s0 + $0x1800] sm:$0xff]
  %v798 = vld [vmem:[%s0 + $0x1808] sm:$0xff]
  %v799 = vld [vmem:[%s0 + $0x1810] sm:$0xff]
  %v800 = vld [vmem:[%s0 + $0x1818] sm:$0xff]
  %v801 = vld [vmem:[%s0 + $0x1820] sm:$0xff]
  %v802 = vld [vmem:[%s0 + $0x1828] sm:$0xff]
  %v803 = vld [vmem:[%s0 + $0x1830] sm:$0xff]
  %v804 = vld [vmem:[%s0 + $0x1838] sm:$0xff]
  %v805 = vld [vmem:[%s0 + $0x1840] sm:$0xff]
  %v806 = vld [vmem:[%s0 + $0x1848] sm:$0xff]
  %v807 = vld [vmem:[%s0 + $0x1850] sm:$0xff]
  %v808 = vld [vmem:[%s0 + $0x1858] sm:$0xff]
  %v809 = vld [vmem:[%s0 + $0x1860] sm:$0xff]
  %v810 = vld [vmem:[%s0 + $0x1868] sm:$0xff]
  %v811 = vld [vmem:[%s0 + $0x1870] sm:$0xff]
  %v812 = vld [vmem:[%s0 + $0x1878] sm:$0xff]
  %v813 = vld [vmem:[%s0 + $0x1880] sm:$0xff]
  %v814 = vld [vmem:[%s0 + $0x1888] sm:$0xff]
  %v815 = vld [vmem:[%s0 + $0x1890] sm:$0xff]
  %v816 = vld [vmem:[%s0 + $0x1898] sm:$0xff]
  %v817 = vld [vmem:[%s0 + $0x18a0] sm:$0xff]
  %v818 = vld [vmem:[%s0 + $0x18a8] sm:$0xff]
  %v819 = vld [vmem:[%s0 + $0x18b0] sm:$0xff]
  %v820 = vld [vmem:[%s0 + $0x18b8] sm:$0xff]
  %v821 = vld [vmem:[%s0 + $0x18c0] sm:$0xff]
  %v822 = vld [vmem:[%s0 + $0x18c8] sm:$0xff]
  %v823 = vld [vmem:[%s0 + $0x18d0] sm:$0xff]
  %v824 = vld [vmem:[%s0 + $0x18d8] sm:$0xff]
  %v825 = vld [vmem:[%s0 + $0x18e0] sm:$0xff]
  %v826 = vld [vmem:[%s0 + $0x18e8] sm:$0xff]
  %v827 = vld [vmem:[%s0 + $0x18f0] sm:$0xff]
  %v828 = vld [vmem:[%s0 + $0x18f8] sm:$0xff]
  %v829 = vld [vmem:[%s0 + $0x1900] sm:$0xff]
  %v830 = vld [vmem:[%s0 + $0x1908] sm:$0xff]
  %v831 = vld [vmem:[%s0 + $0x1910] sm:$0xff]
  %v832 = vld [vmem:[%s0 + $0x1918] sm:$0xff]
  %v833 = vld [vmem:[%s0 + $0x1920] sm:$0xff]
  %v834 = vld [vmem:[%s0 + $0x1928] sm:$0xff]
  %v835 = vld [vmem:[%s0 + $0x1930] sm:$0xff]
  %v836 = vld [vmem:[%s0 + $0x1938] sm:$0xff]
  %v837 = vld [vmem:[%s0 + $0x1940] sm:$0xff]
  %v838 = vld [vmem:[%s0 + $0x1948] sm:$0xff]
  %v839 = vld [vmem:[%s0 + $0x1950] sm:$0xff]
  %v840 = vld [vmem:[%s0 + $0x1958] sm:$0xff]
  %v841 = vld [vmem:[%s0 + $0x1960] sm:$0xff]
  %v842 = vld [vmem:[%s0 + $0x1968] sm:$0xff]
  %v843 = vld [vmem:[%s0 + $0x1970] sm:$0xff]
  %v844 = vld [vmem:[%s0 + $0x1978] sm:$0xff]
  %v845 = vld [vmem:[%s0 + $0x1980] sm:$0xff]
  %v846 = vld [vmem:[%s0 + $0x1988] sm:$0xff]
  %v847 = vld [vmem:[%s0 + $0x1990] sm:$0xff]
  %v848 = vld [vmem:[%s0 + $0x1998] sm:$0xff]
  %v849 = vld [vmem:[%s0 + $0x19a0] sm:$0xff]
  %v850 = vld [vmem:[%s0 + $0x19a8] sm:$0xff]
  %v851 = vld [vmem:[%s0 + $0x19b0] sm:$0xff]
  %v852 = vld [vmem:[%s0 + $0x19b8] sm:$0xff]
  %v853 = vld [vmem:[%s0 + $0x19c0] sm:$0xff]
  %v854 = vld [vmem:[%s0 + $0x19c8] sm:$0xff]
  %v855 = vld [vmem:[%s0 + $0x19d0] sm:$0xff]
  %v856 = vld [vmem:[%s0 + $0x19d8] sm:$0xff]
  %v857 = vld [vmem:[%s0 + $0x19e0] sm:$0xff]
  %v858 = vld [vmem:[%s0 + $0x19e8] sm:$0xff]
  %v859 = vld [vmem:[%s0 + $0x19f0] sm:$0xff]
  %v860 = vld [vmem:[%s0 + $0x19f8] sm:$0xff]
  %v861 = vld [vmem:[%s0 + $0x1a00] sm:$0xff]
  %v862 = vld [vmem:[%s0 + $0x1a08] sm:$0xff]
  %v863 = vld [vmem:[%s0 + $0x1a10] sm:$0xff]
  %v864 = vld [vmem:[%s0 + $0x1a18] sm:$0xff]
  %v865 = vld [vmem:[%s0 + $0x1a20] sm:$0xff]
  %v866 = vld [vmem:[%s0 + $0x1a28] sm:$0xff]
  %v867 = vld [vmem:[%s0 + $0x1a30] sm:$0xff]
  %v868 = vld [vmem:[%s0 + $0x1a38] sm:$0xff]
  %v869 = vld [vmem:[%s0 + $0x1a40] sm:$0xff]
  %v870 = vld [vmem:[%s0 + $0x1a48] sm:$0xff]
  %v871 = vld [vmem:[%s0 + $0x1a50] sm:$0xff]
  %v872 = vld [vmem:[%s0 + $0x1a58] sm:$0xff]
  %v873 = vld [vmem:[%s0 + $0x1a60] sm:$0xff]
  %v874 = vld [vmem:[%s0 + $0x1a68] sm:$0xff]
  %v875 = vld [vmem:[%s0 + $0x1a70] sm:$0xff]
  %v876 = vld [vmem:[%s0 + $0x1a78] sm:$0xff]
  %v877 = vld [vmem:[%s0 + $0x1a80] sm:$0xff]
  %v878 = vld [vmem:[%s0 + $0x1a88] sm:$0xff]
  %v879 = vld [vmem:[%s0 + $0x1a90] sm:$0xff]
  %v880 = vld [vmem:[%s0 + $0x1a98] sm:$0xff]
  %v881 = vld [vmem:[%s0 + $0x1aa0] sm:$0xff]
  %v882 = vld [vmem:[%s0 + $0x1aa8] sm:$0xff]
  %v883 = vld [vmem:[%s0 + $0x1ab0] sm:$0xff]
  %v884 = vld [vmem:[%s0 + $0x1ab8] sm:$0xff]
  %v885 = vld [vmem:[%s0 + $0x1ac0] sm:$0xff]
  %v886 = vld [vmem:[%s0 + $0x1ac8] sm:$0xff]
  %v887 = vld [vmem:[%s0 + $0x1ad0] sm:$0xff]
  %v888 = vld [vmem:[%s0 + $0x1ad8] sm:$0xff]
  %v889 = vld [vmem:[%s0 + $0x1ae0] sm:$0xff]
  %v890 = vld [vmem:[%s0 + $0x1ae8] sm:$0xff]
  %v891 = vld [vmem:[%s0 + $0x1af0] sm:$0xff]
  %v892 = vld [vmem:[%s0 + $0x1af8] sm:$0xff]
  %v893 = vld [vmem:[%s0 + $0x1b00] sm:$0xff]
  %v894 = vld [vmem:[%s0 + $0x1b08] sm:$0xff]
  %v895 = vld [vmem:[%s0 + $0x1b10] sm:$0xff]
  %v896 = vld [vmem:[%s0 + $0x1b18] sm:$0xff]
  %v897 = vld [vmem:[%s0 + $0x1b20] sm:$0xff]
  %v898 = vld [vmem:[%s0 + $0x1b28] sm:$0xff]
  %v899 = vld [vmem:[%s0 + $0x1b30] sm:$0xff]
  %v900 = vld [vmem:[%s0 + $0x1b38] sm:$0xff]
  %v901 = vld [vmem:[%s0 + $0x1b40] sm:$0xff]
  %v902 = vld [vmem:[%s0 + $0x1b48] sm:$0xff]
  %v903 = vld [vmem:[%s0 + $0x1b50] sm:$0xff]
  %v904 = vld [vmem:[%s0 + $0x1b58] sm:$0xff]
  %v905 = vld [vmem:[%s0 + $0x1b60] sm:$0xff]
  %v906 = vld [vmem:[%s0 + $0x1b68] sm:$0xff]
  %v907 = vld [vmem:[%s0 + $0x1b70] sm:$0xff]
  %v908 = vld [vmem:[%s0 + $0x1b78] sm:$0xff]
  %v909 = vld [vmem:[%s0 + $0x1b80] sm:$0xff]
  %v910 = vld [vmem:[%s0 + $0x1b88] sm:$0xff]
  %v911 = vld [vmem:[%s0 + $0x1b90] sm:$0xff]
  %v912 = vld [vmem:[%s0 + $0x1b98] sm:$0xff]
  %v913 = vld [vmem:[%s0 + $0x1ba0] sm:$0xff]
  %v914 = vld [vmem:[%s0 + $0x1ba8] sm:$0xff]
  %v915 = vld [vmem:[%s0 + $0x1bb0] sm:$0xff]
  %v916 = vld [vmem:[%s0 + $0x1bb8] sm:$0xff]
  %v917 = vld [vmem:[%s0 + $0x1bc0] sm:$0xff]
  %v918 = vld [vmem:[%s0 + $0x1bc8] sm:$0xff]
  %v919 = vld [vmem:[%s0 + $0x1bd0] sm:$0xff]
  %v920 = vld [vmem:[%s0 + $0x1bd8] sm:$0xff]
  %v921 = vld [vmem:[%s0 + $0x1be0] sm:$0xff]
  %v922 = vld [vmem:[%s0 + $0x1be8] sm:$0xff]
  %v923 = vld [vmem:[%s0 + $0x1bf0] sm:$0xff]
  %v924 = vld [vmem:[%s0 + $0x1bf8] sm:$0xff]
  %v925 = vld [vmem:[%s0 + $0x1c00] sm:$0xff]
  %v926 = vld [vmem:[%s0 + $0x1c08] sm:$0xff]
  %v927 = vld [vmem:[%s0 + $0x1c10] sm:$0xff]
  %v928 = vld [vmem:[%s0 + $0x1c18] sm:$0xff]
  %v929 = vld [vmem:[%s0 + $0x1c20] sm:$0xff]
  %v930 = vld [vmem:[%s0 + $0x1c28] sm:$0xff]
  %v931 = vld [vmem:[%s0 + $0x1c30] sm:$0xff]
  %v932 = vld [vmem:[%s0 + $0x1c38] sm:$0xff]
  %v933 = vld [vmem:[%s0 + $0x1c40] sm:$0xff]
  %v934 = vld [vmem:[%s0 + $0x1c48] sm:$0xff]
  %v935 = vld [vmem:[%s0 + $0x1c50] sm:$0xff]
  %v936 = vld [vmem:[%s0 + $0x1c58] sm:$0xff]
  %v937 = vld [vmem:[%s0 + $0x1c60] sm:$0xff]
  %v938 = vld [vmem:[%s0 + $0x1c68] sm:$0xff]
  %v939 = vld [vmem:[%s0 + $0x1c70] sm:$0xff]
  %v940 = vld [vmem:[%s0 + $0x1c78] sm:$0xff]
  %v941 = vld [vmem:[%s0 + $0x1c80] sm:$0xff]
  %v942 = vld [vmem:[%s0 + $0x1c88] sm:$0xff]
  %v943 = vld [vmem:[%s0 + $0x1c90] sm:$0xff]
  %v944 = vld [vmem:[%s0 + $0x1c98] sm:$0xff]
  %v945 = vld [vmem:[%s0 + $0x1ca0] sm:$0xff]
  %v946 = vld [vmem:[%s0 + $0x1ca8] sm:$0xff]
  %v947 = vld [vmem:[%s0 + $0x1cb0] sm:$0xff]
  %v948 = vld [vmem:[%s0 + $0x1cb8] sm:$0xff]
  %v949 = vld [vmem:[%s0 + $0x1cc0] sm:$0xff]
  %v950 = vld [vmem:[%s0 + $0x1cc8] sm:$0xff]
  %v951 = vld [vmem:[%s0 + $0x1cd0] sm:$0xff]
  %v952 = vld [vmem:[%s0 + $0x1cd8] sm:$0xff]
  %v953 = vld [vmem:[%s0 + $0x1ce0] sm:$0xff]
  %v954 = vld [vmem:[%s0 + $0x1ce8] sm:$0xff]
  %v955 = vld [vmem:[%s0 + $0x1cf0] sm:$0xff]
  %v956 = vld [vmem:[%s0 + $0x1cf8] sm:$0xff]
  %v957 = vld [vmem:[%s0 + $0x1d00] sm:$0xff]
  %v958 = vld [vmem:[%s0 + $0x1d08] sm:$0xff]
  %v959 = vld [vmem:[%s0 + $0x1d10] sm:$0xff]
  %v960 = vld [vmem:[%s0 + $0x1d18] sm:$0xff]
  %v961 = vld [vmem:[%s0 + $0x1d20] sm:$0xff]
  %v962 = vld [vmem:[%s0 + $0x1d28] sm:$0xff]
  %v963 = vld [vmem:[%s0 + $0x1d30] sm:$0xff]
  %v964 = vld [vmem:[%s0 + $0x1d38] sm:$0xff]
  %v965 = vld [vmem:[%s0 + $0x1d40] sm:$0xff]
  %v966 = vld [vmem:[%s0 + $0x1d48] sm:$0xff]
  %v967 = vld [vmem:[%s0 + $0x1d50] sm:$0xff]
  %v968 = vld [vmem:[%s0 + $0x1d58] sm:$0xff]
  %v969 = vld [vmem:[%s0 + $0x1d60] sm:$0xff]
  %v970 = vld [vmem:[%s0 + $0x1d68] sm:$0xff]
  %v971 = vld [vmem:[%s0 + $0x1d70] sm:$0xff]
  %v972 = vld [vmem:[%s0 + $0x1d78] sm:$0xff]
  %v973 = vld [vmem:[%s0 + $0x1d80] sm:$0xff]
  %v974 = vld [vmem:[%s0 + $0x1d88] sm:$0xff]
  %v975 = vld [vmem:[%s0 + $0x1d90] sm:$0xff]
  %v976 = vld [vmem:[%s0 + $0x1d98] sm:$0xff]
  %v977 = vld [vmem:[%s0 + $0x1da0] sm:$0xff]
  %v978 = vld [vmem:[%s0 + $0x1da8] sm:$0xff]
  %v979 = vld [vmem:[%s0 + $0x1db0] sm:$0xff]
  %v980 = vld [vmem:[%s0 + $0x1db8] sm:$0xff]
  %v981 = vld [vmem:[%s0 + $0x1dc0] sm:$0xff]
  %v982 = vld [vmem:[%s0 + $0x1dc8] sm:$0xff]
  %v983 = vld [vmem:[%s0 + $0x1dd0] sm:$0xff]
  %v984 = vld [vmem:[%s0 + $0x1dd8] sm:$0xff]
  %v985 = vld [vmem:[%s0 + $0x1de0] sm:$0xff]
  %v986 = vld [vmem:[%s0 + $0x1de8] sm:$0xff]
  %v987 = vld [vmem:[%s0 + $0x1df0] sm:$0xff]
  %v988 = vld [vmem:[%s0 + $0x1df8] sm:$0xff]
  %v989 = vld [vmem:[%s0 + $0x1e00] sm:$0xff]
  %v990 = vld [vmem:[%s0 + $0x1e08] sm:$0xff]
  %v991 = vld [vmem:[%s0 + $0x1e10] sm:$0xff]
  %v992 = vld [vmem:[%s0 + $0x1e18] sm:$0xff]
  %v993 = vld [vmem:[%s0 + $0x1e20] sm:$0xff]
  %v994 = vld [vmem:[%s0 + $0x1e28] sm:$0xff]
  %v995 = vld [vmem:[%s0 + $0x1e30] sm:$0xff]
  %v996 = vld [vmem:[%s0 + $0x1e38] sm:$0xff]
  %v997 = vld [vmem:[%s0 + $0x1e40] sm:$0xff]
  %v998 = vld [vmem:[%s0 + $0x1e48] sm:$0xff]
  %v999 = vld [vmem:[%s0 + $0x1e50] sm:$0xff]
  %v1000 = vld [vmem:[%s0 + $0x1e58] sm:$0xff]
  %v1001 = vld [vmem:[%s0 + $0x1e60] sm:$0xff]
  %v1002 = vld [vmem:[%s0 + $0x1e68] sm:$0xff]
  %v1003 = vld [vmem:[%s0 + $0x1e70] sm:$0xff]
  %v1004 = vld [vmem:[%s0 + $0x1e78] sm:$0xff]
  %v1005 = vld [vmem:[%s0 + $0x1e80] sm:$0xff]
  %v1006 = vld [vmem:[%s0 + $0x1e88] sm:$0xff]
  %v1007 = vld [vmem:[%s0 + $0x1e90] sm:$0xff]
  %v1008 = vld [vmem:[%s0 + $0x1e98] sm:$0xff]
  %v1009 = vld [vmem:[%s0 + $0x1ea0] sm:$0xff]
  %v1010 = vld [vmem:[%s0 + $0x1ea8] sm:$0xff]
  %v1011 = vld [vmem:[%s0 + $0x1eb0] sm:$0xff]
  %v1012 = vld [vmem:[%s0 + $0x1eb8] sm:$0xff]
  %v1013 = vld [vmem:[%s0 + $0x1ec0] sm:$0xff]
  %v1014 = vld [vmem:[%s0 + $0x1ec8] sm:$0xff]
  %v1015 = vld [vmem:[%s0 + $0x1ed0] sm:$0xff]
  %v1016 = vld [vmem:[%s0 + $0x1ed8] sm:$0xff]
  %v1017 = vld [vmem:[%s0 + $0x1ee0] sm:$0xff]
  %v1018 = vld [vmem:[%s0 + $0x1ee8] sm:$0xff]
  %v1019 = vld [vmem:[%s0 + $0x1ef0] sm:$0xff]
  %v1020 = vld [vmem:[%s0 + $0x1ef8] sm:$0xff]
  %v1021 = vld [vmem:[%s0 + $0x1f00] sm:$0xff]
  %v1022 = vld [vmem:[%s0 + $0x1f08] sm:$0xff]
  %v1023 = vld [vmem:[%s0 + $0x1f10] sm:$0xff]
  %v1024 = vld [vmem:[%s0 + $0x1f18] sm:$0xff]
  %v1025 = vld [vmem:[%s0 + $0x1f20] sm:$0xff]
  %v1026 = vld [vmem:[%s0 + $0x1f28] sm:$0xff]
  %v1027 = vld [vmem:[%s0 + $0x1f30] sm:$0xff]
  %v1028 = vld [vmem:[%s0 + $0x1f38] sm:$0xff]
  %v1029 = vld [vmem:[%s0 + $0x1f40] sm:$0xff]
  %v1030 = vld [vmem:[%s0 + $0x1f48] sm:$0xff]
  %v1031 = vld [vmem:[%s0 + $0x1f50] sm:$0xff]
  %v1032 = vld [vmem:[%s0 + $0x1f58] sm:$0xff]
  %v1033 = vld [vmem:[%s0 + $0x1f60] sm:$0xff]
  %v1034 = vld [vmem:[%s0 + $0x1f68] sm:$0xff]
  %v1035 = vld [vmem:[%s0 + $0x1f70] sm:$0xff]
  %v1036 = vld [vmem:[%s0 + $0x1f78] sm:$0xff]
  %v1037 = vld [vmem:[%s0 + $0x1f80] sm:$0xff]
  %v1038 = vld [vmem:[%s0 + $0x1f88] sm:$0xff]
  %v1039 = vld [vmem:[%s0 + $0x1f90] sm:$0xff]
  %v1040 = vld [vmem:[%s0 + $0x1f98] sm:$0xff]
  %v1041 = vld [vmem:[%s0 + $0x1fa0] sm:$0xff]
  %v1042 = vld [vmem:[%s0 + $0x1fa8] sm:$0xff]
  %v1043 = vld [vmem:[%s0 + $0x1fb0] sm:$0xff]
  %v1044 = vld [vmem:[%s0 + $0x1fb8] sm:$0xff]
  %v1045 = vld [vmem:[%s0 + $0x1fc0] sm:$0xff]
  %v1046 = vld [vmem:[%s0 + $0x1fc8] sm:$0xff]
  %v1047 = vld [vmem:[%s0 + $0x1fd0] sm:$0xff]
  %v1048 = vld [vmem:[%s0 + $0x1fd8] sm:$0xff]
  %v1049 = vld [vmem:[%s0 + $0x1fe0] sm:$0xff]
  %v1050 = vld [vmem:[%s0 + $0x1fe8] sm:$0xff]
  %v1051 = vld [vmem:[%s0 + $0x1ff0] sm:$0xff]
  %v1052 = vld [vmem:[%s0 + $0x1ff8] sm:$0xff]
  %vm1053 = vcmask 556032
  %v1054 = vsel %vm1053, %v30, 0.0
  %v1055 = vadd.f32 %v29, %v1054
  %1056 = vadd.xlane.f32.xlu0 %v1055
  %v1057 = vpop.xlane.xlu0 %1056
  %v1058 = vsel %vm1053, %v32, 0.0
  %v1059 = vadd.f32 %v31, %v1058
  %1060 = vadd.xlane.f32.xlu0 %v1059
  %v1061 = vpop.xlane.xlu0 %1060
  %v1062 = vsel %vm1053, %v34, 0.0
  %v1063 = vadd.f32 %v33, %v1062
  %1064 = vadd.xlane.f32.xlu0 %v1063
  %v1065 = vpop.xlane.xlu0 %1064
  %v1066 = vsel %vm1053, %v36, 0.0
  %v1067 = vadd.f32 %v35, %v1066
  %1068 = vadd.xlane.f32.xlu0 %v1067
  %v1069 = vpop.xlane.xlu0 %1068
  %v1070 = vsel %vm1053, %v38, 0.0
  %v1071 = vadd.f32 %v37, %v1070
  %1072 = vadd.xlane.f32.xlu0 %v1071
  %v1073 = vpop.xlane.xlu0 %1072
  %v1074 = vsel %vm1053, %v40, 0.0
  %v1075 = vadd.f32 %v39, %v1074
  %1076 = vadd.xlane.f32.xlu0 %v1075
  %v1077 = vpop.xlane.xlu0 %1076
  %v1078 = vsel %vm1053, %v42, 0.0
  %v1079 = vadd.f32 %v41, %v1078
  %1080 = vadd.xlane.f32.xlu0 %v1079
  %v1081 = vpop.xlane.xlu0 %1080
  %v1082 = vsel %vm1053, %v44, 0.0
  %v1083 = vadd.f32 %v43, %v1082
  %1084 = vadd.xlane.f32.xlu0 %v1083
  %v1085 = vpop.xlane.xlu0 %1084
  %v1086 = vsel %vm1053, %v46, 0.0
  %v1087 = vadd.f32 %v45, %v1086
  %1088 = vadd.xlane.f32.xlu0 %v1087
  %v1089 = vpop.xlane.xlu0 %1088
  %v1090 = vsel %vm1053, %v48, 0.0
  %v1091 = vadd.f32 %v47, %v1090
  %1092 = vadd.xlane.f32.xlu0 %v1091
  %v1093 = vpop.xlane.xlu0 %1092
  %v1094 = vsel %vm1053, %v50, 0.0
  %v1095 = vadd.f32 %v49, %v1094
  %1096 = vadd.xlane.f32.xlu0 %v1095
  %v1097 = vpop.xlane.xlu0 %1096
  %v1098 = vsel %vm1053, %v52, 0.0
  %v1099 = vadd.f32 %v51, %v1098
  %1100 = vadd.xlane.f32.xlu0 %v1099
  %v1101 = vpop.xlane.xlu0 %1100
  %v1102 = vsel %vm1053, %v54, 0.0
  %v1103 = vadd.f32 %v53, %v1102
  %1104 = vadd.xlane.f32.xlu0 %v1103
  %v1105 = vpop.xlane.xlu0 %1104
  %v1106 = vsel %vm1053, %v56, 0.0
  %v1107 = vadd.f32 %v55, %v1106
  %1108 = vadd.xlane.f32.xlu0 %v1107
  %v1109 = vpop.xlane.xlu0 %1108
  %v1110 = vsel %vm1053, %v58, 0.0
  %v1111 = vadd.f32 %v57, %v1110
  %1112 = vadd.xlane.f32.xlu0 %v1111
  %v1113 = vpop.xlane.xlu0 %1112
  %v1114 = vsel %vm1053, %v60, 0.0
  %v1115 = vadd.f32 %v59, %v1114
  %1116 = vadd.xlane.f32.xlu0 %v1115
  %v1117 = vpop.xlane.xlu0 %1116
  %v1118 = vsel %vm1053, %v62, 0.0
  %v1119 = vadd.f32 %v61, %v1118
  %1120 = vadd.xlane.f32.xlu0 %v1119
  %v1121 = vpop.xlane.xlu0 %1120
  %v1122 = vsel %vm1053, %v64, 0.0
  %v1123 = vadd.f32 %v63, %v1122
  %1124 = vadd.xlane.f32.xlu0 %v1123
  %v1125 = vpop.xlane.xlu0 %1124
  %v1126 = vsel %vm1053, %v66, 0.0
  %v1127 = vadd.f32 %v65, %v1126
  %1128 = vadd.xlane.f32.xlu0 %v1127
  %v1129 = vpop.xlane.xlu0 %1128
  %v1130 = vsel %vm1053, %v68, 0.0
  %v1131 = vadd.f32 %v67, %v1130
  %1132 = vadd.xlane.f32.xlu0 %v1131
  %v1133 = vpop.xlane.xlu0 %1132
  %v1134 = vsel %vm1053, %v70, 0.0
  %v1135 = vadd.f32 %v69, %v1134
  %1136 = vadd.xlane.f32.xlu0 %v1135
  %v1137 = vpop.xlane.xlu0 %1136
  %v1138 = vsel %vm1053, %v72, 0.0
  %v1139 = vadd.f32 %v71, %v1138
  %1140 = vadd.xlane.f32.xlu0 %v1139
  %v1141 = vpop.xlane.xlu0 %1140
  %v1142 = vsel %vm1053, %v74, 0.0
  %v1143 = vadd.f32 %v73, %v1142
  %1144 = vadd.xlane.f32.xlu0 %v1143
  %v1145 = vpop.xlane.xlu0 %1144
  %v1146 = vsel %vm1053, %v76, 0.0
  %v1147 = vadd.f32 %v75, %v1146
  %1148 = vadd.xlane.f32.xlu0 %v1147
  %v1149 = vpop.xlane.xlu0 %1148
  %v1150 = vsel %vm1053, %v78, 0.0
  %v1151 = vadd.f32 %v77, %v1150
  %1152 = vadd.xlane.f32.xlu0 %v1151
  %v1153 = vpop.xlane.xlu0 %1152
  %v1154 = vsel %vm1053, %v80, 0.0
  %v1155 = vadd.f32 %v79, %v1154
  %1156 = vadd.xlane.f32.xlu0 %v1155
  %v1157 = vpop.xlane.xlu0 %1156
  %v1158 = vsel %vm1053, %v82, 0.0
  %v1159 = vadd.f32 %v81, %v1158
  %1160 = vadd.xlane.f32.xlu0 %v1159
  %v1161 = vpop.xlane.xlu0 %1160
  %v1162 = vsel %vm1053, %v84, 0.0
  %v1163 = vadd.f32 %v83, %v1162
  %1164 = vadd.xlane.f32.xlu0 %v1163
  %v1165 = vpop.xlane.xlu0 %1164
  %v1166 = vsel %vm1053, %v86, 0.0
  %v1167 = vadd.f32 %v85, %v1166
  %1168 = vadd.xlane.f32.xlu0 %v1167
  %v1169 = vpop.xlane.xlu0 %1168
  %v1170 = vsel %vm1053, %v88, 0.0
  %v1171 = vadd.f32 %v87, %v1170
  %1172 = vadd.xlane.f32.xlu0 %v1171
  %v1173 = vpop.xlane.xlu0 %1172
  %v1174 = vsel %vm1053, %v90, 0.0
  %v1175 = vadd.f32 %v89, %v1174
  %1176 = vadd.xlane.f32.xlu0 %v1175
  %v1177 = vpop.xlane.xlu0 %1176
  %v1178 = vsel %vm1053, %v92, 0.0
  %v1179 = vadd.f32 %v91, %v1178
  %1180 = vadd.xlane.f32.xlu0 %v1179
  %v1181 = vpop.xlane.xlu0 %1180
  %v1182 = vsel %vm1053, %v94, 0.0
  %v1183 = vadd.f32 %v93, %v1182
  %1184 = vadd.xlane.f32.xlu0 %v1183
  %v1185 = vpop.xlane.xlu0 %1184
  %v1186 = vsel %vm1053, %v96, 0.0
  %v1187 = vadd.f32 %v95, %v1186
  %1188 = vadd.xlane.f32.xlu0 %v1187
  %v1189 = vpop.xlane.xlu0 %1188
  %v1190 = vsel %vm1053, %v98, 0.0
  %v1191 = vadd.f32 %v97, %v1190
  %1192 = vadd.xlane.f32.xlu0 %v1191
  %v1193 = vpop.xlane.xlu0 %1192
  %v1194 = vsel %vm1053, %v100, 0.0
  %v1195 = vadd.f32 %v99, %v1194
  %1196 = vadd.xlane.f32.xlu0 %v1195
  %v1197 = vpop.xlane.xlu0 %1196
  %v1198 = vsel %vm1053, %v102, 0.0
  %v1199 = vadd.f32 %v101, %v1198
  %1200 = vadd.xlane.f32.xlu0 %v1199
  %v1201 = vpop.xlane.xlu0 %1200
  %v1202 = vsel %vm1053, %v104, 0.0
  %v1203 = vadd.f32 %v103, %v1202
  %1204 = vadd.xlane.f32.xlu0 %v1203
  %v1205 = vpop.xlane.xlu0 %1204
  %v1206 = vsel %vm1053, %v106, 0.0
  %v1207 = vadd.f32 %v105, %v1206
  %1208 = vadd.xlane.f32.xlu0 %v1207
  %v1209 = vpop.xlane.xlu0 %1208
  %v1210 = vsel %vm1053, %v108, 0.0
  %v1211 = vadd.f32 %v107, %v1210
  %1212 = vadd.xlane.f32.xlu0 %v1211
  %v1213 = vpop.xlane.xlu0 %1212
  %v1214 = vsel %vm1053, %v110, 0.0
  %v1215 = vadd.f32 %v109, %v1214
  %1216 = vadd.xlane.f32.xlu0 %v1215
  %v1217 = vpop.xlane.xlu0 %1216
  %v1218 = vsel %vm1053, %v112, 0.0
  %v1219 = vadd.f32 %v111, %v1218
  %1220 = vadd.xlane.f32.xlu0 %v1219
  %v1221 = vpop.xlane.xlu0 %1220
  %v1222 = vsel %vm1053, %v114, 0.0
  %v1223 = vadd.f32 %v113, %v1222
  %1224 = vadd.xlane.f32.xlu0 %v1223
  %v1225 = vpop.xlane.xlu0 %1224
  %v1226 = vsel %vm1053, %v116, 0.0
  %v1227 = vadd.f32 %v115, %v1226
  %1228 = vadd.xlane.f32.xlu0 %v1227
  %v1229 = vpop.xlane.xlu0 %1228
  %v1230 = vsel %vm1053, %v118, 0.0
  %v1231 = vadd.f32 %v117, %v1230
  %1232 = vadd.xlane.f32.xlu0 %v1231
  %v1233 = vpop.xlane.xlu0 %1232
  %v1234 = vsel %vm1053, %v120, 0.0
  %v1235 = vadd.f32 %v119, %v1234
  %1236 = vadd.xlane.f32.xlu0 %v1235
  %v1237 = vpop.xlane.xlu0 %1236
  %v1238 = vsel %vm1053, %v122, 0.0
  %v1239 = vadd.f32 %v121, %v1238
  %1240 = vadd.xlane.f32.xlu0 %v1239
  %v1241 = vpop.xlane.xlu0 %1240
  %v1242 = vsel %vm1053, %v124, 0.0
  %v1243 = vadd.f32 %v123, %v1242
  %1244 = vadd.xlane.f32.xlu0 %v1243
  %v1245 = vpop.xlane.xlu0 %1244
  %v1246 = vsel %vm1053, %v126, 0.0
  %v1247 = vadd.f32 %v125, %v1246
  %1248 = vadd.xlane.f32.xlu0 %v1247
  %v1249 = vpop.xlane.xlu0 %1248
  %v1250 = vsel %vm1053, %v128, 0.0
  %v1251 = vadd.f32 %v127, %v1250
  %1252 = vadd.xlane.f32.xlu0 %v1251
  %v1253 = vpop.xlane.xlu0 %1252
  %v1254 = vsel %vm1053, %v130, 0.0
  %v1255 = vadd.f32 %v129, %v1254
  %1256 = vadd.xlane.f32.xlu0 %v1255
  %v1257 = vpop.xlane.xlu0 %1256
  %v1258 = vsel %vm1053, %v132, 0.0
  %v1259 = vadd.f32 %v131, %v1258
  %1260 = vadd.xlane.f32.xlu0 %v1259
  %v1261 = vpop.xlane.xlu0 %1260
  %v1262 = vsel %vm1053, %v134, 0.0
  %v1263 = vadd.f32 %v133, %v1262
  %1264 = vadd.xlane.f32.xlu0 %v1263
  %v1265 = vpop.xlane.xlu0 %1264
  %v1266 = vsel %vm1053, %v136, 0.0
  %v1267 = vadd.f32 %v135, %v1266
  %1268 = vadd.xlane.f32.xlu0 %v1267
  %v1269 = vpop.xlane.xlu0 %1268
  %v1270 = vsel %vm1053, %v138, 0.0
  %v1271 = vadd.f32 %v137, %v1270
  %1272 = vadd.xlane.f32.xlu0 %v1271
  %v1273 = vpop.xlane.xlu0 %1272
  %v1274 = vsel %vm1053, %v140, 0.0
  %v1275 = vadd.f32 %v139, %v1274
  %1276 = vadd.xlane.f32.xlu0 %v1275
  %v1277 = vpop.xlane.xlu0 %1276
  %v1278 = vsel %vm1053, %v142, 0.0
  %v1279 = vadd.f32 %v141, %v1278
  %1280 = vadd.xlane.f32.xlu0 %v1279
  %v1281 = vpop.xlane.xlu0 %1280
  %v1282 = vsel %vm1053, %v144, 0.0
  %v1283 = vadd.f32 %v143, %v1282
  %1284 = vadd.xlane.f32.xlu0 %v1283
  %v1285 = vpop.xlane.xlu0 %1284
  %v1286 = vsel %vm1053, %v146, 0.0
  %v1287 = vadd.f32 %v145, %v1286
  %1288 = vadd.xlane.f32.xlu0 %v1287
  %v1289 = vpop.xlane.xlu0 %1288
  %v1290 = vsel %vm1053, %v148, 0.0
  %v1291 = vadd.f32 %v147, %v1290
  %1292 = vadd.xlane.f32.xlu0 %v1291
  %v1293 = vpop.xlane.xlu0 %1292
  %v1294 = vsel %vm1053, %v150, 0.0
  %v1295 = vadd.f32 %v149, %v1294
  %1296 = vadd.xlane.f32.xlu0 %v1295
  %v1297 = vpop.xlane.xlu0 %1296
  %v1298 = vsel %vm1053, %v152, 0.0
  %v1299 = vadd.f32 %v151, %v1298
  %1300 = vadd.xlane.f32.xlu0 %v1299
  %v1301 = vpop.xlane.xlu0 %1300
  %v1302 = vsel %vm1053, %v154, 0.0
  %v1303 = vadd.f32 %v153, %v1302
  %1304 = vadd.xlane.f32.xlu0 %v1303
  %v1305 = vpop.xlane.xlu0 %1304
  %v1306 = vsel %vm1053, %v156, 0.0
  %v1307 = vadd.f32 %v155, %v1306
  %1308 = vadd.xlane.f32.xlu0 %v1307
  %v1309 = vpop.xlane.xlu0 %1308
  %v1310 = vsel %vm1053, %v158, 0.0
  %v1311 = vadd.f32 %v157, %v1310
  %1312 = vadd.xlane.f32.xlu0 %v1311
  %v1313 = vpop.xlane.xlu0 %1312
  %v1314 = vsel %vm1053, %v160, 0.0
  %v1315 = vadd.f32 %v159, %v1314
  %1316 = vadd.xlane.f32.xlu0 %v1315
  %v1317 = vpop.xlane.xlu0 %1316
  %v1318 = vsel %vm1053, %v162, 0.0
  %v1319 = vadd.f32 %v161, %v1318
  %1320 = vadd.xlane.f32.xlu0 %v1319
  %v1321 = vpop.xlane.xlu0 %1320
  %v1322 = vsel %vm1053, %v164, 0.0
  %v1323 = vadd.f32 %v163, %v1322
  %1324 = vadd.xlane.f32.xlu0 %v1323
  %v1325 = vpop.xlane.xlu0 %1324
  %v1326 = vsel %vm1053, %v166, 0.0
  %v1327 = vadd.f32 %v165, %v1326
  %1328 = vadd.xlane.f32.xlu0 %v1327
  %v1329 = vpop.xlane.xlu0 %1328
  %v1330 = vsel %vm1053, %v168, 0.0
  %v1331 = vadd.f32 %v167, %v1330
  %1332 = vadd.xlane.f32.xlu0 %v1331
  %v1333 = vpop.xlane.xlu0 %1332
  %v1334 = vsel %vm1053, %v170, 0.0
  %v1335 = vadd.f32 %v169, %v1334
  %1336 = vadd.xlane.f32.xlu0 %v1335
  %v1337 = vpop.xlane.xlu0 %1336
  %v1338 = vsel %vm1053, %v172, 0.0
  %v1339 = vadd.f32 %v171, %v1338
  %1340 = vadd.xlane.f32.xlu0 %v1339
  %v1341 = vpop.xlane.xlu0 %1340
  %v1342 = vsel %vm1053, %v174, 0.0
  %v1343 = vadd.f32 %v173, %v1342
  %1344 = vadd.xlane.f32.xlu0 %v1343
  %v1345 = vpop.xlane.xlu0 %1344
  %v1346 = vsel %vm1053, %v176, 0.0
  %v1347 = vadd.f32 %v175, %v1346
  %1348 = vadd.xlane.f32.xlu0 %v1347
  %v1349 = vpop.xlane.xlu0 %1348
  %v1350 = vsel %vm1053, %v178, 0.0
  %v1351 = vadd.f32 %v177, %v1350
  %1352 = vadd.xlane.f32.xlu0 %v1351
  %v1353 = vpop.xlane.xlu0 %1352
  %v1354 = vsel %vm1053, %v180, 0.0
  %v1355 = vadd.f32 %v179, %v1354
  %1356 = vadd.xlane.f32.xlu0 %v1355
  %v1357 = vpop.xlane.xlu0 %1356
  %v1358 = vsel %vm1053, %v182, 0.0
  %v1359 = vadd.f32 %v181, %v1358
  %1360 = vadd.xlane.f32.xlu0 %v1359
  %v1361 = vpop.xlane.xlu0 %1360
  %v1362 = vsel %vm1053, %v184, 0.0
  %v1363 = vadd.f32 %v183, %v1362
  %1364 = vadd.xlane.f32.xlu0 %v1363
  %v1365 = vpop.xlane.xlu0 %1364
  %v1366 = vsel %vm1053, %v186, 0.0
  %v1367 = vadd.f32 %v185, %v1366
  %1368 = vadd.xlane.f32.xlu0 %v1367
  %v1369 = vpop.xlane.xlu0 %1368
  %v1370 = vsel %vm1053, %v188, 0.0
  %v1371 = vadd.f32 %v187, %v1370
  %1372 = vadd.xlane.f32.xlu0 %v1371
  %v1373 = vpop.xlane.xlu0 %1372
  %v1374 = vsel %vm1053, %v190, 0.0
  %v1375 = vadd.f32 %v189, %v1374
  %1376 = vadd.xlane.f32.xlu0 %v1375
  %v1377 = vpop.xlane.xlu0 %1376
  %v1378 = vsel %vm1053, %v192, 0.0
  %v1379 = vadd.f32 %v191, %v1378
  %1380 = vadd.xlane.f32.xlu0 %v1379
  %v1381 = vpop.xlane.xlu0 %1380
  %v1382 = vsel %vm1053, %v194, 0.0
  %v1383 = vadd.f32 %v193, %v1382
  %1384 = vadd.xlane.f32.xlu0 %v1383
  %v1385 = vpop.xlane.xlu0 %1384
  %v1386 = vsel %vm1053, %v196, 0.0
  %v1387 = vadd.f32 %v195, %v1386
  %1388 = vadd.xlane.f32.xlu0 %v1387
  %v1389 = vpop.xlane.xlu0 %1388
  %v1390 = vsel %vm1053, %v198, 0.0
  %v1391 = vadd.f32 %v197, %v1390
  %1392 = vadd.xlane.f32.xlu0 %v1391
  %v1393 = vpop.xlane.xlu0 %1392
  %v1394 = vsel %vm1053, %v200, 0.0
  %v1395 = vadd.f32 %v199, %v1394
  %1396 = vadd.xlane.f32.xlu0 %v1395
  %v1397 = vpop.xlane.xlu0 %1396
  %v1398 = vsel %vm1053, %v202, 0.0
  %v1399 = vadd.f32 %v201, %v1398
  %1400 = vadd.xlane.f32.xlu0 %v1399
  %v1401 = vpop.xlane.xlu0 %1400
  %v1402 = vsel %vm1053, %v204, 0.0
  %v1403 = vadd.f32 %v203, %v1402
  %1404 = vadd.xlane.f32.xlu0 %v1403
  %v1405 = vpop.xlane.xlu0 %1404
  %v1406 = vsel %vm1053, %v206, 0.0
  %v1407 = vadd.f32 %v205, %v1406
  %1408 = vadd.xlane.f32.xlu0 %v1407
  %v1409 = vpop.xlane.xlu0 %1408
  %v1410 = vsel %vm1053, %v208, 0.0
  %v1411 = vadd.f32 %v207, %v1410
  %1412 = vadd.xlane.f32.xlu0 %v1411
  %v1413 = vpop.xlane.xlu0 %1412
  %v1414 = vsel %vm1053, %v210, 0.0
  %v1415 = vadd.f32 %v209, %v1414
  %1416 = vadd.xlane.f32.xlu0 %v1415
  %v1417 = vpop.xlane.xlu0 %1416
  %v1418 = vsel %vm1053, %v212, 0.0
  %v1419 = vadd.f32 %v211, %v1418
  %1420 = vadd.xlane.f32.xlu0 %v1419
  %v1421 = vpop.xlane.xlu0 %1420
  %v1422 = vsel %vm1053, %v214, 0.0
  %v1423 = vadd.f32 %v213, %v1422
  %1424 = vadd.xlane.f32.xlu0 %v1423
  %v1425 = vpop.xlane.xlu0 %1424
  %v1426 = vsel %vm1053, %v216, 0.0
  %v1427 = vadd.f32 %v215, %v1426
  %1428 = vadd.xlane.f32.xlu0 %v1427
  %v1429 = vpop.xlane.xlu0 %1428
  %v1430 = vsel %vm1053, %v218, 0.0
  %v1431 = vadd.f32 %v217, %v1430
  %1432 = vadd.xlane.f32.xlu0 %v1431
  %v1433 = vpop.xlane.xlu0 %1432
  %v1434 = vsel %vm1053, %v220, 0.0
  %v1435 = vadd.f32 %v219, %v1434
  %1436 = vadd.xlane.f32.xlu0 %v1435
  %v1437 = vpop.xlane.xlu0 %1436
  %v1438 = vsel %vm1053, %v222, 0.0
  %v1439 = vadd.f32 %v221, %v1438
  %1440 = vadd.xlane.f32.xlu0 %v1439
  %v1441 = vpop.xlane.xlu0 %1440
  %v1442 = vsel %vm1053, %v224, 0.0
  %v1443 = vadd.f32 %v223, %v1442
  %1444 = vadd.xlane.f32.xlu0 %v1443
  %v1445 = vpop.xlane.xlu0 %1444
  %v1446 = vsel %vm1053, %v226, 0.0
  %v1447 = vadd.f32 %v225, %v1446
  %1448 = vadd.xlane.f32.xlu0 %v1447
  %v1449 = vpop.xlane.xlu0 %1448
  %v1450 = vsel %vm1053, %v228, 0.0
  %v1451 = vadd.f32 %v227, %v1450
  %1452 = vadd.xlane.f32.xlu0 %v1451
  %v1453 = vpop.xlane.xlu0 %1452
  %v1454 = vsel %vm1053, %v230, 0.0
  %v1455 = vadd.f32 %v229, %v1454
  %1456 = vadd.xlane.f32.xlu0 %v1455
  %v1457 = vpop.xlane.xlu0 %1456
  %v1458 = vsel %vm1053, %v232, 0.0
  %v1459 = vadd.f32 %v231, %v1458
  %1460 = vadd.xlane.f32.xlu0 %v1459
  %v1461 = vpop.xlane.xlu0 %1460
  %v1462 = vsel %vm1053, %v234, 0.0
  %v1463 = vadd.f32 %v233, %v1462
  %1464 = vadd.xlane.f32.xlu0 %v1463
  %v1465 = vpop.xlane.xlu0 %1464
  %v1466 = vsel %vm1053, %v236, 0.0
  %v1467 = vadd.f32 %v235, %v1466
  %1468 = vadd.xlane.f32.xlu0 %v1467
  %v1469 = vpop.xlane.xlu0 %1468
  %v1470 = vsel %vm1053, %v238, 0.0
  %v1471 = vadd.f32 %v237, %v1470
  %1472 = vadd.xlane.f32.xlu0 %v1471
  %v1473 = vpop.xlane.xlu0 %1472
  %v1474 = vsel %vm1053, %v240, 0.0
  %v1475 = vadd.f32 %v239, %v1474
  %1476 = vadd.xlane.f32.xlu0 %v1475
  %v1477 = vpop.xlane.xlu0 %1476
  %v1478 = vsel %vm1053, %v242, 0.0
  %v1479 = vadd.f32 %v241, %v1478
  %1480 = vadd.xlane.f32.xlu0 %v1479
  %v1481 = vpop.xlane.xlu0 %1480
  %v1482 = vsel %vm1053, %v244, 0.0
  %v1483 = vadd.f32 %v243, %v1482
  %1484 = vadd.xlane.f32.xlu0 %v1483
  %v1485 = vpop.xlane.xlu0 %1484
  %v1486 = vsel %vm1053, %v246, 0.0
  %v1487 = vadd.f32 %v245, %v1486
  %1488 = vadd.xlane.f32.xlu0 %v1487
  %v1489 = vpop.xlane.xlu0 %1488
  %v1490 = vsel %vm1053, %v248, 0.0
  %v1491 = vadd.f32 %v247, %v1490
  %1492 = vadd.xlane.f32.xlu0 %v1491
  %v1493 = vpop.xlane.xlu0 %1492
  %v1494 = vsel %vm1053, %v250, 0.0
  %v1495 = vadd.f32 %v249, %v1494
  %1496 = vadd.xlane.f32.xlu0 %v1495
  %v1497 = vpop.xlane.xlu0 %1496
  %v1498 = vsel %vm1053, %v252, 0.0
  %v1499 = vadd.f32 %v251, %v1498
  %1500 = vadd.xlane.f32.xlu0 %v1499
  %v1501 = vpop.xlane.xlu0 %1500
  %v1502 = vsel %vm1053, %v254, 0.0
  %v1503 = vadd.f32 %v253, %v1502
  %1504 = vadd.xlane.f32.xlu0 %v1503
  %v1505 = vpop.xlane.xlu0 %1504
  %v1506 = vsel %vm1053, %v256, 0.0
  %v1507 = vadd.f32 %v255, %v1506
  %1508 = vadd.xlane.f32.xlu0 %v1507
  %v1509 = vpop.xlane.xlu0 %1508
  %v1510 = vsel %vm1053, %v258, 0.0
  %v1511 = vadd.f32 %v257, %v1510
  %1512 = vadd.xlane.f32.xlu0 %v1511
  %v1513 = vpop.xlane.xlu0 %1512
  %v1514 = vsel %vm1053, %v260, 0.0
  %v1515 = vadd.f32 %v259, %v1514
  %1516 = vadd.xlane.f32.xlu0 %v1515
  %v1517 = vpop.xlane.xlu0 %1516
  %v1518 = vsel %vm1053, %v262, 0.0
  %v1519 = vadd.f32 %v261, %v1518
  %1520 = vadd.xlane.f32.xlu0 %v1519
  %v1521 = vpop.xlane.xlu0 %1520
  %v1522 = vsel %vm1053, %v264, 0.0
  %v1523 = vadd.f32 %v263, %v1522
  %1524 = vadd.xlane.f32.xlu0 %v1523
  %v1525 = vpop.xlane.xlu0 %1524
  %v1526 = vsel %vm1053, %v266, 0.0
  %v1527 = vadd.f32 %v265, %v1526
  %1528 = vadd.xlane.f32.xlu0 %v1527
  %v1529 = vpop.xlane.xlu0 %1528
  %v1530 = vsel %vm1053, %v268, 0.0
  %v1531 = vadd.f32 %v267, %v1530
  %1532 = vadd.xlane.f32.xlu0 %v1531
  %v1533 = vpop.xlane.xlu0 %1532
  %v1534 = vsel %vm1053, %v270, 0.0
  %v1535 = vadd.f32 %v269, %v1534
  %1536 = vadd.xlane.f32.xlu0 %v1535
  %v1537 = vpop.xlane.xlu0 %1536
  %v1538 = vsel %vm1053, %v272, 0.0
  %v1539 = vadd.f32 %v271, %v1538
  %1540 = vadd.xlane.f32.xlu0 %v1539
  %v1541 = vpop.xlane.xlu0 %1540
  %v1542 = vsel %vm1053, %v274, 0.0
  %v1543 = vadd.f32 %v273, %v1542
  %1544 = vadd.xlane.f32.xlu0 %v1543
  %v1545 = vpop.xlane.xlu0 %1544
  %v1546 = vsel %vm1053, %v276, 0.0
  %v1547 = vadd.f32 %v275, %v1546
  %1548 = vadd.xlane.f32.xlu0 %v1547
  %v1549 = vpop.xlane.xlu0 %1548
  %v1550 = vsel %vm1053, %v278, 0.0
  %v1551 = vadd.f32 %v277, %v1550
  %1552 = vadd.xlane.f32.xlu0 %v1551
  %v1553 = vpop.xlane.xlu0 %1552
  %v1554 = vsel %vm1053, %v280, 0.0
  %v1555 = vadd.f32 %v279, %v1554
  %1556 = vadd.xlane.f32.xlu0 %v1555
  %v1557 = vpop.xlane.xlu0 %1556
  %v1558 = vsel %vm1053, %v282, 0.0
  %v1559 = vadd.f32 %v281, %v1558
  %1560 = vadd.xlane.f32.xlu0 %v1559
  %v1561 = vpop.xlane.xlu0 %1560
  %v1562 = vsel %vm1053, %v284, 0.0
  %v1563 = vadd.f32 %v283, %v1562
  %1564 = vadd.xlane.f32.xlu0 %v1563
  %v1565 = vpop.xlane.xlu0 %1564
  %v1566 = vsel %vm1053, %v286, 0.0
  %v1567 = vadd.f32 %v285, %v1566
  %1568 = vadd.xlane.f32.xlu0 %v1567
  %v1569 = vpop.xlane.xlu0 %1568
  %v1570 = vsel %vm1053, %v288, 0.0
  %v1571 = vadd.f32 %v287, %v1570
  %1572 = vadd.xlane.f32.xlu0 %v1571
  %v1573 = vpop.xlane.xlu0 %1572
  %v1574 = vsel %vm1053, %v290, 0.0
  %v1575 = vadd.f32 %v289, %v1574
  %1576 = vadd.xlane.f32.xlu0 %v1575
  %v1577 = vpop.xlane.xlu0 %1576
  %v1578 = vsel %vm1053, %v292, 0.0
  %v1579 = vadd.f32 %v291, %v1578
  %1580 = vadd.xlane.f32.xlu0 %v1579
  %v1581 = vpop.xlane.xlu0 %1580
  %v1582 = vsel %vm1053, %v294, 0.0
  %v1583 = vadd.f32 %v293, %v1582
  %1584 = vadd.xlane.f32.xlu0 %v1583
  %v1585 = vpop.xlane.xlu0 %1584
  %v1586 = vsel %vm1053, %v296, 0.0
  %v1587 = vadd.f32 %v295, %v1586
  %1588 = vadd.xlane.f32.xlu0 %v1587
  %v1589 = vpop.xlane.xlu0 %1588
  %v1590 = vsel %vm1053, %v298, 0.0
  %v1591 = vadd.f32 %v297, %v1590
  %1592 = vadd.xlane.f32.xlu0 %v1591
  %v1593 = vpop.xlane.xlu0 %1592
  %v1594 = vsel %vm1053, %v300, 0.0
  %v1595 = vadd.f32 %v299, %v1594
  %1596 = vadd.xlane.f32.xlu0 %v1595
  %v1597 = vpop.xlane.xlu0 %1596
  %v1598 = vsel %vm1053, %v302, 0.0
  %v1599 = vadd.f32 %v301, %v1598
  %1600 = vadd.xlane.f32.xlu0 %v1599
  %v1601 = vpop.xlane.xlu0 %1600
  %v1602 = vsel %vm1053, %v304, 0.0
  %v1603 = vadd.f32 %v303, %v1602
  %1604 = vadd.xlane.f32.xlu0 %v1603
  %v1605 = vpop.xlane.xlu0 %1604
  %v1606 = vsel %vm1053, %v306, 0.0
  %v1607 = vadd.f32 %v305, %v1606
  %1608 = vadd.xlane.f32.xlu0 %v1607
  %v1609 = vpop.xlane.xlu0 %1608
  %v1610 = vsel %vm1053, %v308, 0.0
  %v1611 = vadd.f32 %v307, %v1610
  %1612 = vadd.xlane.f32.xlu0 %v1611
  %v1613 = vpop.xlane.xlu0 %1612
  %v1614 = vsel %vm1053, %v310, 0.0
  %v1615 = vadd.f32 %v309, %v1614
  %1616 = vadd.xlane.f32.xlu0 %v1615
  %v1617 = vpop.xlane.xlu0 %1616
  %v1618 = vsel %vm1053, %v312, 0.0
  %v1619 = vadd.f32 %v311, %v1618
  %1620 = vadd.xlane.f32.xlu0 %v1619
  %v1621 = vpop.xlane.xlu0 %1620
  %v1622 = vsel %vm1053, %v314, 0.0
  %v1623 = vadd.f32 %v313, %v1622
  %1624 = vadd.xlane.f32.xlu0 %v1623
  %v1625 = vpop.xlane.xlu0 %1624
  %v1626 = vsel %vm1053, %v316, 0.0
  %v1627 = vadd.f32 %v315, %v1626
  %1628 = vadd.xlane.f32.xlu0 %v1627
  %v1629 = vpop.xlane.xlu0 %1628
  %v1630 = vsel %vm1053, %v318, 0.0
  %v1631 = vadd.f32 %v317, %v1630
  %1632 = vadd.xlane.f32.xlu0 %v1631
  %v1633 = vpop.xlane.xlu0 %1632
  %v1634 = vsel %vm1053, %v320, 0.0
  %v1635 = vadd.f32 %v319, %v1634
  %1636 = vadd.xlane.f32.xlu0 %v1635
  %v1637 = vpop.xlane.xlu0 %1636
  %v1638 = vsel %vm1053, %v322, 0.0
  %v1639 = vadd.f32 %v321, %v1638
  %1640 = vadd.xlane.f32.xlu0 %v1639
  %v1641 = vpop.xlane.xlu0 %1640
  %v1642 = vsel %vm1053, %v324, 0.0
  %v1643 = vadd.f32 %v323, %v1642
  %1644 = vadd.xlane.f32.xlu0 %v1643
  %v1645 = vpop.xlane.xlu0 %1644
  %v1646 = vsel %vm1053, %v326, 0.0
  %v1647 = vadd.f32 %v325, %v1646
  %1648 = vadd.xlane.f32.xlu0 %v1647
  %v1649 = vpop.xlane.xlu0 %1648
  %v1650 = vsel %vm1053, %v328, 0.0
  %v1651 = vadd.f32 %v327, %v1650
  %1652 = vadd.xlane.f32.xlu0 %v1651
  %v1653 = vpop.xlane.xlu0 %1652
  %v1654 = vsel %vm1053, %v330, 0.0
  %v1655 = vadd.f32 %v329, %v1654
  %1656 = vadd.xlane.f32.xlu0 %v1655
  %v1657 = vpop.xlane.xlu0 %1656
  %v1658 = vsel %vm1053, %v332, 0.0
  %v1659 = vadd.f32 %v331, %v1658
  %1660 = vadd.xlane.f32.xlu0 %v1659
  %v1661 = vpop.xlane.xlu0 %1660
  %v1662 = vsel %vm1053, %v334, 0.0
  %v1663 = vadd.f32 %v333, %v1662
  %1664 = vadd.xlane.f32.xlu0 %v1663
  %v1665 = vpop.xlane.xlu0 %1664
  %v1666 = vsel %vm1053, %v336, 0.0
  %v1667 = vadd.f32 %v335, %v1666
  %1668 = vadd.xlane.f32.xlu0 %v1667
  %v1669 = vpop.xlane.xlu0 %1668
  %v1670 = vsel %vm1053, %v338, 0.0
  %v1671 = vadd.f32 %v337, %v1670
  %1672 = vadd.xlane.f32.xlu0 %v1671
  %v1673 = vpop.xlane.xlu0 %1672
  %v1674 = vsel %vm1053, %v340, 0.0
  %v1675 = vadd.f32 %v339, %v1674
  %1676 = vadd.xlane.f32.xlu0 %v1675
  %v1677 = vpop.xlane.xlu0 %1676
  %v1678 = vsel %vm1053, %v342, 0.0
  %v1679 = vadd.f32 %v341, %v1678
  %1680 = vadd.xlane.f32.xlu0 %v1679
  %v1681 = vpop.xlane.xlu0 %1680
  %v1682 = vsel %vm1053, %v344, 0.0
  %v1683 = vadd.f32 %v343, %v1682
  %1684 = vadd.xlane.f32.xlu0 %v1683
  %v1685 = vpop.xlane.xlu0 %1684
  %v1686 = vsel %vm1053, %v346, 0.0
  %v1687 = vadd.f32 %v345, %v1686
  %1688 = vadd.xlane.f32.xlu0 %v1687
  %v1689 = vpop.xlane.xlu0 %1688
  %v1690 = vsel %vm1053, %v348, 0.0
  %v1691 = vadd.f32 %v347, %v1690
  %1692 = vadd.xlane.f32.xlu0 %v1691
  %v1693 = vpop.xlane.xlu0 %1692
  %v1694 = vsel %vm1053, %v350, 0.0
  %v1695 = vadd.f32 %v349, %v1694
  %1696 = vadd.xlane.f32.xlu0 %v1695
  %v1697 = vpop.xlane.xlu0 %1696
  %v1698 = vsel %vm1053, %v352, 0.0
  %v1699 = vadd.f32 %v351, %v1698
  %1700 = vadd.xlane.f32.xlu0 %v1699
  %v1701 = vpop.xlane.xlu0 %1700
  %v1702 = vsel %vm1053, %v354, 0.0
  %v1703 = vadd.f32 %v353, %v1702
  %1704 = vadd.xlane.f32.xlu0 %v1703
  %v1705 = vpop.xlane.xlu0 %1704
  %v1706 = vsel %vm1053, %v356, 0.0
  %v1707 = vadd.f32 %v355, %v1706
  %1708 = vadd.xlane.f32.xlu0 %v1707
  %v1709 = vpop.xlane.xlu0 %1708
  %v1710 = vsel %vm1053, %v358, 0.0
  %v1711 = vadd.f32 %v357, %v1710
  %1712 = vadd.xlane.f32.xlu0 %v1711
  %v1713 = vpop.xlane.xlu0 %1712
  %v1714 = vsel %vm1053, %v360, 0.0
  %v1715 = vadd.f32 %v359, %v1714
  %1716 = vadd.xlane.f32.xlu0 %v1715
  %v1717 = vpop.xlane.xlu0 %1716
  %v1718 = vsel %vm1053, %v362, 0.0
  %v1719 = vadd.f32 %v361, %v1718
  %1720 = vadd.xlane.f32.xlu0 %v1719
  %v1721 = vpop.xlane.xlu0 %1720
  %v1722 = vsel %vm1053, %v364, 0.0
  %v1723 = vadd.f32 %v363, %v1722
  %1724 = vadd.xlane.f32.xlu0 %v1723
  %v1725 = vpop.xlane.xlu0 %1724
  %v1726 = vsel %vm1053, %v366, 0.0
  %v1727 = vadd.f32 %v365, %v1726
  %1728 = vadd.xlane.f32.xlu0 %v1727
  %v1729 = vpop.xlane.xlu0 %1728
  %v1730 = vsel %vm1053, %v368, 0.0
  %v1731 = vadd.f32 %v367, %v1730
  %1732 = vadd.xlane.f32.xlu0 %v1731
  %v1733 = vpop.xlane.xlu0 %1732
  %v1734 = vsel %vm1053, %v370, 0.0
  %v1735 = vadd.f32 %v369, %v1734
  %1736 = vadd.xlane.f32.xlu0 %v1735
  %v1737 = vpop.xlane.xlu0 %1736
  %v1738 = vsel %vm1053, %v372, 0.0
  %v1739 = vadd.f32 %v371, %v1738
  %1740 = vadd.xlane.f32.xlu0 %v1739
  %v1741 = vpop.xlane.xlu0 %1740
  %v1742 = vsel %vm1053, %v374, 0.0
  %v1743 = vadd.f32 %v373, %v1742
  %1744 = vadd.xlane.f32.xlu0 %v1743
  %v1745 = vpop.xlane.xlu0 %1744
  %v1746 = vsel %vm1053, %v376, 0.0
  %v1747 = vadd.f32 %v375, %v1746
  %1748 = vadd.xlane.f32.xlu0 %v1747
  %v1749 = vpop.xlane.xlu0 %1748
  %v1750 = vsel %vm1053, %v378, 0.0
  %v1751 = vadd.f32 %v377, %v1750
  %1752 = vadd.xlane.f32.xlu0 %v1751
  %v1753 = vpop.xlane.xlu0 %1752
  %v1754 = vsel %vm1053, %v380, 0.0
  %v1755 = vadd.f32 %v379, %v1754
  %1756 = vadd.xlane.f32.xlu0 %v1755
  %v1757 = vpop.xlane.xlu0 %1756
  %v1758 = vsel %vm1053, %v382, 0.0
  %v1759 = vadd.f32 %v381, %v1758
  %1760 = vadd.xlane.f32.xlu0 %v1759
  %v1761 = vpop.xlane.xlu0 %1760
  %v1762 = vsel %vm1053, %v384, 0.0
  %v1763 = vadd.f32 %v383, %v1762
  %1764 = vadd.xlane.f32.xlu0 %v1763
  %v1765 = vpop.xlane.xlu0 %1764
  %v1766 = vsel %vm1053, %v386, 0.0
  %v1767 = vadd.f32 %v385, %v1766
  %1768 = vadd.xlane.f32.xlu0 %v1767
  %v1769 = vpop.xlane.xlu0 %1768
  %v1770 = vsel %vm1053, %v388, 0.0
  %v1771 = vadd.f32 %v387, %v1770
  %1772 = vadd.xlane.f32.xlu0 %v1771
  %v1773 = vpop.xlane.xlu0 %1772
  %v1774 = vsel %vm1053, %v390, 0.0
  %v1775 = vadd.f32 %v389, %v1774
  %1776 = vadd.xlane.f32.xlu0 %v1775
  %v1777 = vpop.xlane.xlu0 %1776
  %v1778 = vsel %vm1053, %v392, 0.0
  %v1779 = vadd.f32 %v391, %v1778
  %1780 = vadd.xlane.f32.xlu0 %v1779
  %v1781 = vpop.xlane.xlu0 %1780
  %v1782 = vsel %vm1053, %v394, 0.0
  %v1783 = vadd.f32 %v393, %v1782
  %1784 = vadd.xlane.f32.xlu0 %v1783
  %v1785 = vpop.xlane.xlu0 %1784
  %v1786 = vsel %vm1053, %v396, 0.0
  %v1787 = vadd.f32 %v395, %v1786
  %1788 = vadd.xlane.f32.xlu0 %v1787
  %v1789 = vpop.xlane.xlu0 %1788
  %v1790 = vsel %vm1053, %v398, 0.0
  %v1791 = vadd.f32 %v397, %v1790
  %1792 = vadd.xlane.f32.xlu0 %v1791
  %v1793 = vpop.xlane.xlu0 %1792
  %v1794 = vsel %vm1053, %v400, 0.0
  %v1795 = vadd.f32 %v399, %v1794
  %1796 = vadd.xlane.f32.xlu0 %v1795
  %v1797 = vpop.xlane.xlu0 %1796
  %v1798 = vsel %vm1053, %v402, 0.0
  %v1799 = vadd.f32 %v401, %v1798
  %1800 = vadd.xlane.f32.xlu0 %v1799
  %v1801 = vpop.xlane.xlu0 %1800
  %v1802 = vsel %vm1053, %v404, 0.0
  %v1803 = vadd.f32 %v403, %v1802
  %1804 = vadd.xlane.f32.xlu0 %v1803
  %v1805 = vpop.xlane.xlu0 %1804
  %v1806 = vsel %vm1053, %v406, 0.0
  %v1807 = vadd.f32 %v405, %v1806
  %1808 = vadd.xlane.f32.xlu0 %v1807
  %v1809 = vpop.xlane.xlu0 %1808
  %v1810 = vsel %vm1053, %v408, 0.0
  %v1811 = vadd.f32 %v407, %v1810
  %1812 = vadd.xlane.f32.xlu0 %v1811
  %v1813 = vpop.xlane.xlu0 %1812
  %v1814 = vsel %vm1053, %v410, 0.0
  %v1815 = vadd.f32 %v409, %v1814
  %1816 = vadd.xlane.f32.xlu0 %v1815
  %v1817 = vpop.xlane.xlu0 %1816
  %v1818 = vsel %vm1053, %v412, 0.0
  %v1819 = vadd.f32 %v411, %v1818
  %1820 = vadd.xlane.f32.xlu0 %v1819
  %v1821 = vpop.xlane.xlu0 %1820
  %v1822 = vsel %vm1053, %v414, 0.0
  %v1823 = vadd.f32 %v413, %v1822
  %1824 = vadd.xlane.f32.xlu0 %v1823
  %v1825 = vpop.xlane.xlu0 %1824
  %v1826 = vsel %vm1053, %v416, 0.0
  %v1827 = vadd.f32 %v415, %v1826
  %1828 = vadd.xlane.f32.xlu0 %v1827
  %v1829 = vpop.xlane.xlu0 %1828
  %v1830 = vsel %vm1053, %v418, 0.0
  %v1831 = vadd.f32 %v417, %v1830
  %1832 = vadd.xlane.f32.xlu0 %v1831
  %v1833 = vpop.xlane.xlu0 %1832
  %v1834 = vsel %vm1053, %v420, 0.0
  %v1835 = vadd.f32 %v419, %v1834
  %1836 = vadd.xlane.f32.xlu0 %v1835
  %v1837 = vpop.xlane.xlu0 %1836
  %v1838 = vsel %vm1053, %v422, 0.0
  %v1839 = vadd.f32 %v421, %v1838
  %1840 = vadd.xlane.f32.xlu0 %v1839
  %v1841 = vpop.xlane.xlu0 %1840
  %v1842 = vsel %vm1053, %v424, 0.0
  %v1843 = vadd.f32 %v423, %v1842
  %1844 = vadd.xlane.f32.xlu0 %v1843
  %v1845 = vpop.xlane.xlu0 %1844
  %v1846 = vsel %vm1053, %v426, 0.0
  %v1847 = vadd.f32 %v425, %v1846
  %1848 = vadd.xlane.f32.xlu0 %v1847
  %v1849 = vpop.xlane.xlu0 %1848
  %v1850 = vsel %vm1053, %v428, 0.0
  %v1851 = vadd.f32 %v427, %v1850
  %1852 = vadd.xlane.f32.xlu0 %v1851
  %v1853 = vpop.xlane.xlu0 %1852
  %v1854 = vsel %vm1053, %v430, 0.0
  %v1855 = vadd.f32 %v429, %v1854
  %1856 = vadd.xlane.f32.xlu0 %v1855
  %v1857 = vpop.xlane.xlu0 %1856
  %v1858 = vsel %vm1053, %v432, 0.0
  %v1859 = vadd.f32 %v431, %v1858
  %1860 = vadd.xlane.f32.xlu0 %v1859
  %v1861 = vpop.xlane.xlu0 %1860
  %v1862 = vsel %vm1053, %v434, 0.0
  %v1863 = vadd.f32 %v433, %v1862
  %1864 = vadd.xlane.f32.xlu0 %v1863
  %v1865 = vpop.xlane.xlu0 %1864
  %v1866 = vsel %vm1053, %v436, 0.0
  %v1867 = vadd.f32 %v435, %v1866
  %1868 = vadd.xlane.f32.xlu0 %v1867
  %v1869 = vpop.xlane.xlu0 %1868
  %v1870 = vsel %vm1053, %v438, 0.0
  %v1871 = vadd.f32 %v437, %v1870
  %1872 = vadd.xlane.f32.xlu0 %v1871
  %v1873 = vpop.xlane.xlu0 %1872
  %v1874 = vsel %vm1053, %v440, 0.0
  %v1875 = vadd.f32 %v439, %v1874
  %1876 = vadd.xlane.f32.xlu0 %v1875
  %v1877 = vpop.xlane.xlu0 %1876
  %v1878 = vsel %vm1053, %v442, 0.0
  %v1879 = vadd.f32 %v441, %v1878
  %1880 = vadd.xlane.f32.xlu0 %v1879
  %v1881 = vpop.xlane.xlu0 %1880
  %v1882 = vsel %vm1053, %v444, 0.0
  %v1883 = vadd.f32 %v443, %v1882
  %1884 = vadd.xlane.f32.xlu0 %v1883
  %v1885 = vpop.xlane.xlu0 %1884
  %v1886 = vsel %vm1053, %v446, 0.0
  %v1887 = vadd.f32 %v445, %v1886
  %1888 = vadd.xlane.f32.xlu0 %v1887
  %v1889 = vpop.xlane.xlu0 %1888
  %v1890 = vsel %vm1053, %v448, 0.0
  %v1891 = vadd.f32 %v447, %v1890
  %1892 = vadd.xlane.f32.xlu0 %v1891
  %v1893 = vpop.xlane.xlu0 %1892
  %v1894 = vsel %vm1053, %v450, 0.0
  %v1895 = vadd.f32 %v449, %v1894
  %1896 = vadd.xlane.f32.xlu0 %v1895
  %v1897 = vpop.xlane.xlu0 %1896
  %v1898 = vsel %vm1053, %v452, 0.0
  %v1899 = vadd.f32 %v451, %v1898
  %1900 = vadd.xlane.f32.xlu0 %v1899
  %v1901 = vpop.xlane.xlu0 %1900
  %v1902 = vsel %vm1053, %v454, 0.0
  %v1903 = vadd.f32 %v453, %v1902
  %1904 = vadd.xlane.f32.xlu0 %v1903
  %v1905 = vpop.xlane.xlu0 %1904
  %v1906 = vsel %vm1053, %v456, 0.0
  %v1907 = vadd.f32 %v455, %v1906
  %1908 = vadd.xlane.f32.xlu0 %v1907
  %v1909 = vpop.xlane.xlu0 %1908
  %v1910 = vsel %vm1053, %v458, 0.0
  %v1911 = vadd.f32 %v457, %v1910
  %1912 = vadd.xlane.f32.xlu0 %v1911
  %v1913 = vpop.xlane.xlu0 %1912
  %v1914 = vsel %vm1053, %v460, 0.0
  %v1915 = vadd.f32 %v459, %v1914
  %1916 = vadd.xlane.f32.xlu0 %v1915
  %v1917 = vpop.xlane.xlu0 %1916
  %v1918 = vsel %vm1053, %v462, 0.0
  %v1919 = vadd.f32 %v461, %v1918
  %1920 = vadd.xlane.f32.xlu0 %v1919
  %v1921 = vpop.xlane.xlu0 %1920
  %v1922 = vsel %vm1053, %v464, 0.0
  %v1923 = vadd.f32 %v463, %v1922
  %1924 = vadd.xlane.f32.xlu0 %v1923
  %v1925 = vpop.xlane.xlu0 %1924
  %v1926 = vsel %vm1053, %v466, 0.0
  %v1927 = vadd.f32 %v465, %v1926
  %1928 = vadd.xlane.f32.xlu0 %v1927
  %v1929 = vpop.xlane.xlu0 %1928
  %v1930 = vsel %vm1053, %v468, 0.0
  %v1931 = vadd.f32 %v467, %v1930
  %1932 = vadd.xlane.f32.xlu0 %v1931
  %v1933 = vpop.xlane.xlu0 %1932
  %v1934 = vsel %vm1053, %v470, 0.0
  %v1935 = vadd.f32 %v469, %v1934
  %1936 = vadd.xlane.f32.xlu0 %v1935
  %v1937 = vpop.xlane.xlu0 %1936
  %v1938 = vsel %vm1053, %v472, 0.0
  %v1939 = vadd.f32 %v471, %v1938
  %1940 = vadd.xlane.f32.xlu0 %v1939
  %v1941 = vpop.xlane.xlu0 %1940
  %v1942 = vsel %vm1053, %v474, 0.0
  %v1943 = vadd.f32 %v473, %v1942
  %1944 = vadd.xlane.f32.xlu0 %v1943
  %v1945 = vpop.xlane.xlu0 %1944
  %v1946 = vsel %vm1053, %v476, 0.0
  %v1947 = vadd.f32 %v475, %v1946
  %1948 = vadd.xlane.f32.xlu0 %v1947
  %v1949 = vpop.xlane.xlu0 %1948
  %v1950 = vsel %vm1053, %v478, 0.0
  %v1951 = vadd.f32 %v477, %v1950
  %1952 = vadd.xlane.f32.xlu0 %v1951
  %v1953 = vpop.xlane.xlu0 %1952
  %v1954 = vsel %vm1053, %v480, 0.0
  %v1955 = vadd.f32 %v479, %v1954
  %1956 = vadd.xlane.f32.xlu0 %v1955
  %v1957 = vpop.xlane.xlu0 %1956
  %v1958 = vsel %vm1053, %v482, 0.0
  %v1959 = vadd.f32 %v481, %v1958
  %1960 = vadd.xlane.f32.xlu0 %v1959
  %v1961 = vpop.xlane.xlu0 %1960
  %v1962 = vsel %vm1053, %v484, 0.0
  %v1963 = vadd.f32 %v483, %v1962
  %1964 = vadd.xlane.f32.xlu0 %v1963
  %v1965 = vpop.xlane.xlu0 %1964
  %v1966 = vsel %vm1053, %v486, 0.0
  %v1967 = vadd.f32 %v485, %v1966
  %1968 = vadd.xlane.f32.xlu0 %v1967
  %v1969 = vpop.xlane.xlu0 %1968
  %v1970 = vsel %vm1053, %v488, 0.0
  %v1971 = vadd.f32 %v487, %v1970
  %1972 = vadd.xlane.f32.xlu0 %v1971
  %v1973 = vpop.xlane.xlu0 %1972
  %v1974 = vsel %vm1053, %v490, 0.0
  %v1975 = vadd.f32 %v489, %v1974
  %1976 = vadd.xlane.f32.xlu0 %v1975
  %v1977 = vpop.xlane.xlu0 %1976
  %v1978 = vsel %vm1053, %v492, 0.0
  %v1979 = vadd.f32 %v491, %v1978
  %1980 = vadd.xlane.f32.xlu0 %v1979
  %v1981 = vpop.xlane.xlu0 %1980
  %v1982 = vsel %vm1053, %v494, 0.0
  %v1983 = vadd.f32 %v493, %v1982
  %1984 = vadd.xlane.f32.xlu0 %v1983
  %v1985 = vpop.xlane.xlu0 %1984
  %v1986 = vsel %vm1053, %v496, 0.0
  %v1987 = vadd.f32 %v495, %v1986
  %1988 = vadd.xlane.f32.xlu0 %v1987
  %v1989 = vpop.xlane.xlu0 %1988
  %v1990 = vsel %vm1053, %v498, 0.0
  %v1991 = vadd.f32 %v497, %v1990
  %1992 = vadd.xlane.f32.xlu0 %v1991
  %v1993 = vpop.xlane.xlu0 %1992
  %v1994 = vsel %vm1053, %v500, 0.0
  %v1995 = vadd.f32 %v499, %v1994
  %1996 = vadd.xlane.f32.xlu0 %v1995
  %v1997 = vpop.xlane.xlu0 %1996
  %v1998 = vsel %vm1053, %v502, 0.0
  %v1999 = vadd.f32 %v501, %v1998
  %2000 = vadd.xlane.f32.xlu0 %v1999
  %v2001 = vpop.xlane.xlu0 %2000
  %v2002 = vsel %vm1053, %v504, 0.0
  %v2003 = vadd.f32 %v503, %v2002
  %2004 = vadd.xlane.f32.xlu0 %v2003
  %v2005 = vpop.xlane.xlu0 %2004
  %v2006 = vsel %vm1053, %v506, 0.0
  %v2007 = vadd.f32 %v505, %v2006
  %2008 = vadd.xlane.f32.xlu0 %v2007
  %v2009 = vpop.xlane.xlu0 %2008
  %v2010 = vsel %vm1053, %v508, 0.0
  %v2011 = vadd.f32 %v507, %v2010
  %2012 = vadd.xlane.f32.xlu0 %v2011
  %v2013 = vpop.xlane.xlu0 %2012
  %v2014 = vsel %vm1053, %v510, 0.0
  %v2015 = vadd.f32 %v509, %v2014
  %2016 = vadd.xlane.f32.xlu0 %v2015
  %v2017 = vpop.xlane.xlu0 %2016
  %v2018 = vsel %vm1053, %v512, 0.0
  %v2019 = vadd.f32 %v511, %v2018
  %2020 = vadd.xlane.f32.xlu0 %v2019
  %v2021 = vpop.xlane.xlu0 %2020
  %v2022 = vsel %vm1053, %v514, 0.0
  %v2023 = vadd.f32 %v513, %v2022
  %2024 = vadd.xlane.f32.xlu0 %v2023
  %v2025 = vpop.xlane.xlu0 %2024
  %v2026 = vsel %vm1053, %v516, 0.0
  %v2027 = vadd.f32 %v515, %v2026
  %2028 = vadd.xlane.f32.xlu0 %v2027
  %v2029 = vpop.xlane.xlu0 %2028
  %v2030 = vsel %vm1053, %v518, 0.0
  %v2031 = vadd.f32 %v517, %v2030
  %2032 = vadd.xlane.f32.xlu0 %v2031
  %v2033 = vpop.xlane.xlu0 %2032
  %v2034 = vsel %vm1053, %v520, 0.0
  %v2035 = vadd.f32 %v519, %v2034
  %2036 = vadd.xlane.f32.xlu0 %v2035
  %v2037 = vpop.xlane.xlu0 %2036
  %v2038 = vsel %vm1053, %v522, 0.0
  %v2039 = vadd.f32 %v521, %v2038
  %2040 = vadd.xlane.f32.xlu0 %v2039
  %v2041 = vpop.xlane.xlu0 %2040
  %v2042 = vsel %vm1053, %v524, 0.0
  %v2043 = vadd.f32 %v523, %v2042
  %2044 = vadd.xlane.f32.xlu0 %v2043
  %v2045 = vpop.xlane.xlu0 %2044
  %v2046 = vsel %vm1053, %v526, 0.0
  %v2047 = vadd.f32 %v525, %v2046
  %2048 = vadd.xlane.f32.xlu0 %v2047
  %v2049 = vpop.xlane.xlu0 %2048
  %v2050 = vsel %vm1053, %v528, 0.0
  %v2051 = vadd.f32 %v527, %v2050
  %2052 = vadd.xlane.f32.xlu0 %v2051
  %v2053 = vpop.xlane.xlu0 %2052
  %v2054 = vsel %vm1053, %v530, 0.0
  %v2055 = vadd.f32 %v529, %v2054
  %2056 = vadd.xlane.f32.xlu0 %v2055
  %v2057 = vpop.xlane.xlu0 %2056
  %v2058 = vsel %vm1053, %v532, 0.0
  %v2059 = vadd.f32 %v531, %v2058
  %2060 = vadd.xlane.f32.xlu0 %v2059
  %v2061 = vpop.xlane.xlu0 %2060
  %v2062 = vsel %vm1053, %v534, 0.0
  %v2063 = vadd.f32 %v533, %v2062
  %2064 = vadd.xlane.f32.xlu0 %v2063
  %v2065 = vpop.xlane.xlu0 %2064
  %v2066 = vsel %vm1053, %v536, 0.0
  %v2067 = vadd.f32 %v535, %v2066
  %2068 = vadd.xlane.f32.xlu0 %v2067
  %v2069 = vpop.xlane.xlu0 %2068
  %v2070 = vsel %vm1053, %v538, 0.0
  %v2071 = vadd.f32 %v537, %v2070
  %2072 = vadd.xlane.f32.xlu0 %v2071
  %v2073 = vpop.xlane.xlu0 %2072
  %v2074 = vsel %vm1053, %v540, 0.0
  %v2075 = vadd.f32 %v539, %v2074
  %2076 = vadd.xlane.f32.xlu0 %v2075
  %v2077 = vpop.xlane.xlu0 %2076
  %v2078 = vsel %vm1053, %v542, 0.0
  %v2079 = vadd.f32 %v541, %v2078
  %2080 = vadd.xlane.f32.xlu0 %v2079
  %v2081 = vpop.xlane.xlu0 %2080
  %v2082 = vsel %vm1053, %v544, 0.0
  %v2083 = vadd.f32 %v543, %v2082
  %2084 = vadd.xlane.f32.xlu0 %v2083
  %v2085 = vpop.xlane.xlu0 %2084
  %v2086 = vsel %vm1053, %v546, 0.0
  %v2087 = vadd.f32 %v545, %v2086
  %2088 = vadd.xlane.f32.xlu0 %v2087
  %v2089 = vpop.xlane.xlu0 %2088
  %v2090 = vsel %vm1053, %v548, 0.0
  %v2091 = vadd.f32 %v547, %v2090
  %2092 = vadd.xlane.f32.xlu0 %v2091
  %v2093 = vpop.xlane.xlu0 %2092
  %v2094 = vsel %vm1053, %v550, 0.0
  %v2095 = vadd.f32 %v549, %v2094
  %2096 = vadd.xlane.f32.xlu0 %v2095
  %v2097 = vpop.xlane.xlu0 %2096
  %v2098 = vsel %vm1053, %v552, 0.0
  %v2099 = vadd.f32 %v551, %v2098
  %2100 = vadd.xlane.f32.xlu0 %v2099
  %v2101 = vpop.xlane.xlu0 %2100
  %v2102 = vsel %vm1053, %v554, 0.0
  %v2103 = vadd.f32 %v553, %v2102
  %2104 = vadd.xlane.f32.xlu0 %v2103
  %v2105 = vpop.xlane.xlu0 %2104
  %v2106 = vsel %vm1053, %v556, 0.0
  %v2107 = vadd.f32 %v555, %v2106
  %2108 = vadd.xlane.f32.xlu0 %v2107
  %v2109 = vpop.xlane.xlu0 %2108
  %v2110 = vsel %vm1053, %v558, 0.0
  %v2111 = vadd.f32 %v557, %v2110
  %2112 = vadd.xlane.f32.xlu0 %v2111
  %v2113 = vpop.xlane.xlu0 %2112
  %v2114 = vsel %vm1053, %v560, 0.0
  %v2115 = vadd.f32 %v559, %v2114
  %2116 = vadd.xlane.f32.xlu0 %v2115
  %v2117 = vpop.xlane.xlu0 %2116
  %v2118 = vsel %vm1053, %v562, 0.0
  %v2119 = vadd.f32 %v561, %v2118
  %2120 = vadd.xlane.f32.xlu0 %v2119
  %v2121 = vpop.xlane.xlu0 %2120
  %v2122 = vsel %vm1053, %v564, 0.0
  %v2123 = vadd.f32 %v563, %v2122
  %2124 = vadd.xlane.f32.xlu0 %v2123
  %v2125 = vpop.xlane.xlu0 %2124
  %v2126 = vsel %vm1053, %v566, 0.0
  %v2127 = vadd.f32 %v565, %v2126
  %2128 = vadd.xlane.f32.xlu0 %v2127
  %v2129 = vpop.xlane.xlu0 %2128
  %v2130 = vsel %vm1053, %v568, 0.0
  %v2131 = vadd.f32 %v567, %v2130
  %2132 = vadd.xlane.f32.xlu0 %v2131
  %v2133 = vpop.xlane.xlu0 %2132
  %v2134 = vsel %vm1053, %v570, 0.0
  %v2135 = vadd.f32 %v569, %v2134
  %2136 = vadd.xlane.f32.xlu0 %v2135
  %v2137 = vpop.xlane.xlu0 %2136
  %v2138 = vsel %vm1053, %v572, 0.0
  %v2139 = vadd.f32 %v571, %v2138
  %2140 = vadd.xlane.f32.xlu0 %v2139
  %v2141 = vpop.xlane.xlu0 %2140
  %v2142 = vsel %vm1053, %v574, 0.0
  %v2143 = vadd.f32 %v573, %v2142
  %2144 = vadd.xlane.f32.xlu0 %v2143
  %v2145 = vpop.xlane.xlu0 %2144
  %v2146 = vsel %vm1053, %v576, 0.0
  %v2147 = vadd.f32 %v575, %v2146
  %2148 = vadd.xlane.f32.xlu0 %v2147
  %v2149 = vpop.xlane.xlu0 %2148
  %v2150 = vsel %vm1053, %v578, 0.0
  %v2151 = vadd.f32 %v577, %v2150
  %2152 = vadd.xlane.f32.xlu0 %v2151
  %v2153 = vpop.xlane.xlu0 %2152
  %v2154 = vsel %vm1053, %v580, 0.0
  %v2155 = vadd.f32 %v579, %v2154
  %2156 = vadd.xlane.f32.xlu0 %v2155
  %v2157 = vpop.xlane.xlu0 %2156
  %v2158 = vsel %vm1053, %v582, 0.0
  %v2159 = vadd.f32 %v581, %v2158
  %2160 = vadd.xlane.f32.xlu0 %v2159
  %v2161 = vpop.xlane.xlu0 %2160
  %v2162 = vsel %vm1053, %v584, 0.0
  %v2163 = vadd.f32 %v583, %v2162
  %2164 = vadd.xlane.f32.xlu0 %v2163
  %v2165 = vpop.xlane.xlu0 %2164
  %v2166 = vsel %vm1053, %v586, 0.0
  %v2167 = vadd.f32 %v585, %v2166
  %2168 = vadd.xlane.f32.xlu0 %v2167
  %v2169 = vpop.xlane.xlu0 %2168
  %v2170 = vsel %vm1053, %v588, 0.0
  %v2171 = vadd.f32 %v587, %v2170
  %2172 = vadd.xlane.f32.xlu0 %v2171
  %v2173 = vpop.xlane.xlu0 %2172
  %v2174 = vsel %vm1053, %v590, 0.0
  %v2175 = vadd.f32 %v589, %v2174
  %2176 = vadd.xlane.f32.xlu0 %v2175
  %v2177 = vpop.xlane.xlu0 %2176
  %v2178 = vsel %vm1053, %v592, 0.0
  %v2179 = vadd.f32 %v591, %v2178
  %2180 = vadd.xlane.f32.xlu0 %v2179
  %v2181 = vpop.xlane.xlu0 %2180
  %v2182 = vsel %vm1053, %v594, 0.0
  %v2183 = vadd.f32 %v593, %v2182
  %2184 = vadd.xlane.f32.xlu0 %v2183
  %v2185 = vpop.xlane.xlu0 %2184
  %v2186 = vsel %vm1053, %v596, 0.0
  %v2187 = vadd.f32 %v595, %v2186
  %2188 = vadd.xlane.f32.xlu0 %v2187
  %v2189 = vpop.xlane.xlu0 %2188
  %v2190 = vsel %vm1053, %v598, 0.0
  %v2191 = vadd.f32 %v597, %v2190
  %2192 = vadd.xlane.f32.xlu0 %v2191
  %v2193 = vpop.xlane.xlu0 %2192
  %v2194 = vsel %vm1053, %v600, 0.0
  %v2195 = vadd.f32 %v599, %v2194
  %2196 = vadd.xlane.f32.xlu0 %v2195
  %v2197 = vpop.xlane.xlu0 %2196
  %v2198 = vsel %vm1053, %v602, 0.0
  %v2199 = vadd.f32 %v601, %v2198
  %2200 = vadd.xlane.f32.xlu0 %v2199
  %v2201 = vpop.xlane.xlu0 %2200
  %v2202 = vsel %vm1053, %v604, 0.0
  %v2203 = vadd.f32 %v603, %v2202
  %2204 = vadd.xlane.f32.xlu0 %v2203
  %v2205 = vpop.xlane.xlu0 %2204
  %v2206 = vsel %vm1053, %v606, 0.0
  %v2207 = vadd.f32 %v605, %v2206
  %2208 = vadd.xlane.f32.xlu0 %v2207
  %v2209 = vpop.xlane.xlu0 %2208
  %v2210 = vsel %vm1053, %v608, 0.0
  %v2211 = vadd.f32 %v607, %v2210
  %2212 = vadd.xlane.f32.xlu0 %v2211
  %v2213 = vpop.xlane.xlu0 %2212
  %v2214 = vsel %vm1053, %v610, 0.0
  %v2215 = vadd.f32 %v609, %v2214
  %2216 = vadd.xlane.f32.xlu0 %v2215
  %v2217 = vpop.xlane.xlu0 %2216
  %v2218 = vsel %vm1053, %v612, 0.0
  %v2219 = vadd.f32 %v611, %v2218
  %2220 = vadd.xlane.f32.xlu0 %v2219
  %v2221 = vpop.xlane.xlu0 %2220
  %v2222 = vsel %vm1053, %v614, 0.0
  %v2223 = vadd.f32 %v613, %v2222
  %2224 = vadd.xlane.f32.xlu0 %v2223
  %v2225 = vpop.xlane.xlu0 %2224
  %v2226 = vsel %vm1053, %v616, 0.0
  %v2227 = vadd.f32 %v615, %v2226
  %2228 = vadd.xlane.f32.xlu0 %v2227
  %v2229 = vpop.xlane.xlu0 %2228
  %v2230 = vsel %vm1053, %v618, 0.0
  %v2231 = vadd.f32 %v617, %v2230
  %2232 = vadd.xlane.f32.xlu0 %v2231
  %v2233 = vpop.xlane.xlu0 %2232
  %v2234 = vsel %vm1053, %v620, 0.0
  %v2235 = vadd.f32 %v619, %v2234
  %2236 = vadd.xlane.f32.xlu0 %v2235
  %v2237 = vpop.xlane.xlu0 %2236
  %v2238 = vsel %vm1053, %v622, 0.0
  %v2239 = vadd.f32 %v621, %v2238
  %2240 = vadd.xlane.f32.xlu0 %v2239
  %v2241 = vpop.xlane.xlu0 %2240
  %v2242 = vsel %vm1053, %v624, 0.0
  %v2243 = vadd.f32 %v623, %v2242
  %2244 = vadd.xlane.f32.xlu0 %v2243
  %v2245 = vpop.xlane.xlu0 %2244
  %v2246 = vsel %vm1053, %v626, 0.0
  %v2247 = vadd.f32 %v625, %v2246
  %2248 = vadd.xlane.f32.xlu0 %v2247
  %v2249 = vpop.xlane.xlu0 %2248
  %v2250 = vsel %vm1053, %v628, 0.0
  %v2251 = vadd.f32 %v627, %v2250
  %2252 = vadd.xlane.f32.xlu0 %v2251
  %v2253 = vpop.xlane.xlu0 %2252
  %v2254 = vsel %vm1053, %v630, 0.0
  %v2255 = vadd.f32 %v629, %v2254
  %2256 = vadd.xlane.f32.xlu0 %v2255
  %v2257 = vpop.xlane.xlu0 %2256
  %v2258 = vsel %vm1053, %v632, 0.0
  %v2259 = vadd.f32 %v631, %v2258
  %2260 = vadd.xlane.f32.xlu0 %v2259
  %v2261 = vpop.xlane.xlu0 %2260
  %v2262 = vsel %vm1053, %v634, 0.0
  %v2263 = vadd.f32 %v633, %v2262
  %2264 = vadd.xlane.f32.xlu0 %v2263
  %v2265 = vpop.xlane.xlu0 %2264
  %v2266 = vsel %vm1053, %v636, 0.0
  %v2267 = vadd.f32 %v635, %v2266
  %2268 = vadd.xlane.f32.xlu0 %v2267
  %v2269 = vpop.xlane.xlu0 %2268
  %v2270 = vsel %vm1053, %v638, 0.0
  %v2271 = vadd.f32 %v637, %v2270
  %2272 = vadd.xlane.f32.xlu0 %v2271
  %v2273 = vpop.xlane.xlu0 %2272
  %v2274 = vsel %vm1053, %v640, 0.0
  %v2275 = vadd.f32 %v639, %v2274
  %2276 = vadd.xlane.f32.xlu0 %v2275
  %v2277 = vpop.xlane.xlu0 %2276
  %v2278 = vsel %vm1053, %v642, 0.0
  %v2279 = vadd.f32 %v641, %v2278
  %2280 = vadd.xlane.f32.xlu0 %v2279
  %v2281 = vpop.xlane.xlu0 %2280
  %v2282 = vsel %vm1053, %v644, 0.0
  %v2283 = vadd.f32 %v643, %v2282
  %2284 = vadd.xlane.f32.xlu0 %v2283
  %v2285 = vpop.xlane.xlu0 %2284
  %v2286 = vsel %vm1053, %v646, 0.0
  %v2287 = vadd.f32 %v645, %v2286
  %2288 = vadd.xlane.f32.xlu0 %v2287
  %v2289 = vpop.xlane.xlu0 %2288
  %v2290 = vsel %vm1053, %v648, 0.0
  %v2291 = vadd.f32 %v647, %v2290
  %2292 = vadd.xlane.f32.xlu0 %v2291
  %v2293 = vpop.xlane.xlu0 %2292
  %v2294 = vsel %vm1053, %v650, 0.0
  %v2295 = vadd.f32 %v649, %v2294
  %2296 = vadd.xlane.f32.xlu0 %v2295
  %v2297 = vpop.xlane.xlu0 %2296
  %v2298 = vsel %vm1053, %v652, 0.0
  %v2299 = vadd.f32 %v651, %v2298
  %2300 = vadd.xlane.f32.xlu0 %v2299
  %v2301 = vpop.xlane.xlu0 %2300
  %v2302 = vsel %vm1053, %v654, 0.0
  %v2303 = vadd.f32 %v653, %v2302
  %2304 = vadd.xlane.f32.xlu0 %v2303
  %v2305 = vpop.xlane.xlu0 %2304
  %v2306 = vsel %vm1053, %v656, 0.0
  %v2307 = vadd.f32 %v655, %v2306
  %2308 = vadd.xlane.f32.xlu0 %v2307
  %v2309 = vpop.xlane.xlu0 %2308
  %v2310 = vsel %vm1053, %v658, 0.0
  %v2311 = vadd.f32 %v657, %v2310
  %2312 = vadd.xlane.f32.xlu0 %v2311
  %v2313 = vpop.xlane.xlu0 %2312
  %v2314 = vsel %vm1053, %v660, 0.0
  %v2315 = vadd.f32 %v659, %v2314
  %2316 = vadd.xlane.f32.xlu0 %v2315
  %v2317 = vpop.xlane.xlu0 %2316
  %v2318 = vsel %vm1053, %v662, 0.0
  %v2319 = vadd.f32 %v661, %v2318
  %2320 = vadd.xlane.f32.xlu0 %v2319
  %v2321 = vpop.xlane.xlu0 %2320
  %v2322 = vsel %vm1053, %v664, 0.0
  %v2323 = vadd.f32 %v663, %v2322
  %2324 = vadd.xlane.f32.xlu0 %v2323
  %v2325 = vpop.xlane.xlu0 %2324
  %v2326 = vsel %vm1053, %v666, 0.0
  %v2327 = vadd.f32 %v665, %v2326
  %2328 = vadd.xlane.f32.xlu0 %v2327
  %v2329 = vpop.xlane.xlu0 %2328
  %v2330 = vsel %vm1053, %v668, 0.0
  %v2331 = vadd.f32 %v667, %v2330
  %2332 = vadd.xlane.f32.xlu0 %v2331
  %v2333 = vpop.xlane.xlu0 %2332
  %v2334 = vsel %vm1053, %v670, 0.0
  %v2335 = vadd.f32 %v669, %v2334
  %2336 = vadd.xlane.f32.xlu0 %v2335
  %v2337 = vpop.xlane.xlu0 %2336
  %v2338 = vsel %vm1053, %v672, 0.0
  %v2339 = vadd.f32 %v671, %v2338
  %2340 = vadd.xlane.f32.xlu0 %v2339
  %v2341 = vpop.xlane.xlu0 %2340
  %v2342 = vsel %vm1053, %v674, 0.0
  %v2343 = vadd.f32 %v673, %v2342
  %2344 = vadd.xlane.f32.xlu0 %v2343
  %v2345 = vpop.xlane.xlu0 %2344
  %v2346 = vsel %vm1053, %v676, 0.0
  %v2347 = vadd.f32 %v675, %v2346
  %2348 = vadd.xlane.f32.xlu0 %v2347
  %v2349 = vpop.xlane.xlu0 %2348
  %v2350 = vsel %vm1053, %v678, 0.0
  %v2351 = vadd.f32 %v677, %v2350
  %2352 = vadd.xlane.f32.xlu0 %v2351
  %v2353 = vpop.xlane.xlu0 %2352
  %v2354 = vsel %vm1053, %v680, 0.0
  %v2355 = vadd.f32 %v679, %v2354
  %2356 = vadd.xlane.f32.xlu0 %v2355
  %v2357 = vpop.xlane.xlu0 %2356
  %v2358 = vsel %vm1053, %v682, 0.0
  %v2359 = vadd.f32 %v681, %v2358
  %2360 = vadd.xlane.f32.xlu0 %v2359
  %v2361 = vpop.xlane.xlu0 %2360
  %v2362 = vsel %vm1053, %v684, 0.0
  %v2363 = vadd.f32 %v683, %v2362
  %2364 = vadd.xlane.f32.xlu0 %v2363
  %v2365 = vpop.xlane.xlu0 %2364
  %v2366 = vsel %vm1053, %v686, 0.0
  %v2367 = vadd.f32 %v685, %v2366
  %2368 = vadd.xlane.f32.xlu0 %v2367
  %v2369 = vpop.xlane.xlu0 %2368
  %v2370 = vsel %vm1053, %v688, 0.0
  %v2371 = vadd.f32 %v687, %v2370
  %2372 = vadd.xlane.f32.xlu0 %v2371
  %v2373 = vpop.xlane.xlu0 %2372
  %v2374 = vsel %vm1053, %v690, 0.0
  %v2375 = vadd.f32 %v689, %v2374
  %2376 = vadd.xlane.f32.xlu0 %v2375
  %v2377 = vpop.xlane.xlu0 %2376
  %v2378 = vsel %vm1053, %v692, 0.0
  %v2379 = vadd.f32 %v691, %v2378
  %2380 = vadd.xlane.f32.xlu0 %v2379
  %v2381 = vpop.xlane.xlu0 %2380
  %v2382 = vsel %vm1053, %v694, 0.0
  %v2383 = vadd.f32 %v693, %v2382
  %2384 = vadd.xlane.f32.xlu0 %v2383
  %v2385 = vpop.xlane.xlu0 %2384
  %v2386 = vsel %vm1053, %v696, 0.0
  %v2387 = vadd.f32 %v695, %v2386
  %2388 = vadd.xlane.f32.xlu0 %v2387
  %v2389 = vpop.xlane.xlu0 %2388
  %v2390 = vsel %vm1053, %v698, 0.0
  %v2391 = vadd.f32 %v697, %v2390
  %2392 = vadd.xlane.f32.xlu0 %v2391
  %v2393 = vpop.xlane.xlu0 %2392
  %v2394 = vsel %vm1053, %v700, 0.0
  %v2395 = vadd.f32 %v699, %v2394
  %2396 = vadd.xlane.f32.xlu0 %v2395
  %v2397 = vpop.xlane.xlu0 %2396
  %v2398 = vsel %vm1053, %v702, 0.0
  %v2399 = vadd.f32 %v701, %v2398
  %2400 = vadd.xlane.f32.xlu0 %v2399
  %v2401 = vpop.xlane.xlu0 %2400
  %v2402 = vsel %vm1053, %v704, 0.0
  %v2403 = vadd.f32 %v703, %v2402
  %2404 = vadd.xlane.f32.xlu0 %v2403
  %v2405 = vpop.xlane.xlu0 %2404
  %v2406 = vsel %vm1053, %v706, 0.0
  %v2407 = vadd.f32 %v705, %v2406
  %2408 = vadd.xlane.f32.xlu0 %v2407
  %v2409 = vpop.xlane.xlu0 %2408
  %v2410 = vsel %vm1053, %v708, 0.0
  %v2411 = vadd.f32 %v707, %v2410
  %2412 = vadd.xlane.f32.xlu0 %v2411
  %v2413 = vpop.xlane.xlu0 %2412
  %v2414 = vsel %vm1053, %v710, 0.0
  %v2415 = vadd.f32 %v709, %v2414
  %2416 = vadd.xlane.f32.xlu0 %v2415
  %v2417 = vpop.xlane.xlu0 %2416
  %v2418 = vsel %vm1053, %v712, 0.0
  %v2419 = vadd.f32 %v711, %v2418
  %2420 = vadd.xlane.f32.xlu0 %v2419
  %v2421 = vpop.xlane.xlu0 %2420
  %v2422 = vsel %vm1053, %v714, 0.0
  %v2423 = vadd.f32 %v713, %v2422
  %2424 = vadd.xlane.f32.xlu0 %v2423
  %v2425 = vpop.xlane.xlu0 %2424
  %v2426 = vsel %vm1053, %v716, 0.0
  %v2427 = vadd.f32 %v715, %v2426
  %2428 = vadd.xlane.f32.xlu0 %v2427
  %v2429 = vpop.xlane.xlu0 %2428
  %v2430 = vsel %vm1053, %v718, 0.0
  %v2431 = vadd.f32 %v717, %v2430
  %2432 = vadd.xlane.f32.xlu0 %v2431
  %v2433 = vpop.xlane.xlu0 %2432
  %v2434 = vsel %vm1053, %v720, 0.0
  %v2435 = vadd.f32 %v719, %v2434
  %2436 = vadd.xlane.f32.xlu0 %v2435
  %v2437 = vpop.xlane.xlu0 %2436
  %v2438 = vsel %vm1053, %v722, 0.0
  %v2439 = vadd.f32 %v721, %v2438
  %2440 = vadd.xlane.f32.xlu0 %v2439
  %v2441 = vpop.xlane.xlu0 %2440
  %v2442 = vsel %vm1053, %v724, 0.0
  %v2443 = vadd.f32 %v723, %v2442
  %2444 = vadd.xlane.f32.xlu0 %v2443
  %v2445 = vpop.xlane.xlu0 %2444
  %v2446 = vsel %vm1053, %v726, 0.0
  %v2447 = vadd.f32 %v725, %v2446
  %2448 = vadd.xlane.f32.xlu0 %v2447
  %v2449 = vpop.xlane.xlu0 %2448
  %v2450 = vsel %vm1053, %v728, 0.0
  %v2451 = vadd.f32 %v727, %v2450
  %2452 = vadd.xlane.f32.xlu0 %v2451
  %v2453 = vpop.xlane.xlu0 %2452
  %v2454 = vsel %vm1053, %v730, 0.0
  %v2455 = vadd.f32 %v729, %v2454
  %2456 = vadd.xlane.f32.xlu0 %v2455
  %v2457 = vpop.xlane.xlu0 %2456
  %v2458 = vsel %vm1053, %v732, 0.0
  %v2459 = vadd.f32 %v731, %v2458
  %2460 = vadd.xlane.f32.xlu0 %v2459
  %v2461 = vpop.xlane.xlu0 %2460
  %v2462 = vsel %vm1053, %v734, 0.0
  %v2463 = vadd.f32 %v733, %v2462
  %2464 = vadd.xlane.f32.xlu0 %v2463
  %v2465 = vpop.xlane.xlu0 %2464
  %v2466 = vsel %vm1053, %v736, 0.0
  %v2467 = vadd.f32 %v735, %v2466
  %2468 = vadd.xlane.f32.xlu0 %v2467
  %v2469 = vpop.xlane.xlu0 %2468
  %v2470 = vsel %vm1053, %v738, 0.0
  %v2471 = vadd.f32 %v737, %v2470
  %2472 = vadd.xlane.f32.xlu0 %v2471
  %v2473 = vpop.xlane.xlu0 %2472
  %v2474 = vsel %vm1053, %v740, 0.0
  %v2475 = vadd.f32 %v739, %v2474
  %2476 = vadd.xlane.f32.xlu0 %v2475
  %v2477 = vpop.xlane.xlu0 %2476
  %v2478 = vsel %vm1053, %v742, 0.0
  %v2479 = vadd.f32 %v741, %v2478
  %2480 = vadd.xlane.f32.xlu0 %v2479
  %v2481 = vpop.xlane.xlu0 %2480
  %v2482 = vsel %vm1053, %v744, 0.0
  %v2483 = vadd.f32 %v743, %v2482
  %2484 = vadd.xlane.f32.xlu0 %v2483
  %v2485 = vpop.xlane.xlu0 %2484
  %v2486 = vsel %vm1053, %v746, 0.0
  %v2487 = vadd.f32 %v745, %v2486
  %2488 = vadd.xlane.f32.xlu0 %v2487
  %v2489 = vpop.xlane.xlu0 %2488
  %v2490 = vsel %vm1053, %v748, 0.0
  %v2491 = vadd.f32 %v747, %v2490
  %2492 = vadd.xlane.f32.xlu0 %v2491
  %v2493 = vpop.xlane.xlu0 %2492
  %v2494 = vsel %vm1053, %v750, 0.0
  %v2495 = vadd.f32 %v749, %v2494
  %2496 = vadd.xlane.f32.xlu0 %v2495
  %v2497 = vpop.xlane.xlu0 %2496
  %v2498 = vsel %vm1053, %v752, 0.0
  %v2499 = vadd.f32 %v751, %v2498
  %2500 = vadd.xlane.f32.xlu0 %v2499
  %v2501 = vpop.xlane.xlu0 %2500
  %v2502 = vsel %vm1053, %v754, 0.0
  %v2503 = vadd.f32 %v753, %v2502
  %2504 = vadd.xlane.f32.xlu0 %v2503
  %v2505 = vpop.xlane.xlu0 %2504
  %v2506 = vsel %vm1053, %v756, 0.0
  %v2507 = vadd.f32 %v755, %v2506
  %2508 = vadd.xlane.f32.xlu0 %v2507
  %v2509 = vpop.xlane.xlu0 %2508
  %v2510 = vsel %vm1053, %v758, 0.0
  %v2511 = vadd.f32 %v757, %v2510
  %2512 = vadd.xlane.f32.xlu0 %v2511
  %v2513 = vpop.xlane.xlu0 %2512
  %v2514 = vsel %vm1053, %v760, 0.0
  %v2515 = vadd.f32 %v759, %v2514
  %2516 = vadd.xlane.f32.xlu0 %v2515
  %v2517 = vpop.xlane.xlu0 %2516
  %v2518 = vsel %vm1053, %v762, 0.0
  %v2519 = vadd.f32 %v761, %v2518
  %2520 = vadd.xlane.f32.xlu0 %v2519
  %v2521 = vpop.xlane.xlu0 %2520
  %v2522 = vsel %vm1053, %v764, 0.0
  %v2523 = vadd.f32 %v763, %v2522
  %2524 = vadd.xlane.f32.xlu0 %v2523
  %v2525 = vpop.xlane.xlu0 %2524
  %v2526 = vsel %vm1053, %v766, 0.0
  %v2527 = vadd.f32 %v765, %v2526
  %2528 = vadd.xlane.f32.xlu0 %v2527
  %v2529 = vpop.xlane.xlu0 %2528
  %v2530 = vsel %vm1053, %v768, 0.0
  %v2531 = vadd.f32 %v767, %v2530
  %2532 = vadd.xlane.f32.xlu0 %v2531
  %v2533 = vpop.xlane.xlu0 %2532
  %v2534 = vsel %vm1053, %v770, 0.0
  %v2535 = vadd.f32 %v769, %v2534
  %2536 = vadd.xlane.f32.xlu0 %v2535
  %v2537 = vpop.xlane.xlu0 %2536
  %v2538 = vsel %vm1053, %v772, 0.0
  %v2539 = vadd.f32 %v771, %v2538
  %2540 = vadd.xlane.f32.xlu0 %v2539
  %v2541 = vpop.xlane.xlu0 %2540
  %v2542 = vsel %vm1053, %v774, 0.0
  %v2543 = vadd.f32 %v773, %v2542
  %2544 = vadd.xlane.f32.xlu0 %v2543
  %v2545 = vpop.xlane.xlu0 %2544
  %v2546 = vsel %vm1053, %v776, 0.0
  %v2547 = vadd.f32 %v775, %v2546
  %2548 = vadd.xlane.f32.xlu0 %v2547
  %v2549 = vpop.xlane.xlu0 %2548
  %v2550 = vsel %vm1053, %v778, 0.0
  %v2551 = vadd.f32 %v777, %v2550
  %2552 = vadd.xlane.f32.xlu0 %v2551
  %v2553 = vpop.xlane.xlu0 %2552
  %v2554 = vsel %vm1053, %v780, 0.0
  %v2555 = vadd.f32 %v779, %v2554
  %2556 = vadd.xlane.f32.xlu0 %v2555
  %v2557 = vpop.xlane.xlu0 %2556
  %v2558 = vsel %vm1053, %v782, 0.0
  %v2559 = vadd.f32 %v781, %v2558
  %2560 = vadd.xlane.f32.xlu0 %v2559
  %v2561 = vpop.xlane.xlu0 %2560
  %v2562 = vsel %vm1053, %v784, 0.0
  %v2563 = vadd.f32 %v783, %v2562
  %2564 = vadd.xlane.f32.xlu0 %v2563
  %v2565 = vpop.xlane.xlu0 %2564
  %v2566 = vsel %vm1053, %v786, 0.0
  %v2567 = vadd.f32 %v785, %v2566
  %2568 = vadd.xlane.f32.xlu0 %v2567
  %v2569 = vpop.xlane.xlu0 %2568
  %v2570 = vsel %vm1053, %v788, 0.0
  %v2571 = vadd.f32 %v787, %v2570
  %2572 = vadd.xlane.f32.xlu0 %v2571
  %v2573 = vpop.xlane.xlu0 %2572
  %v2574 = vsel %vm1053, %v790, 0.0
  %v2575 = vadd.f32 %v789, %v2574
  %2576 = vadd.xlane.f32.xlu0 %v2575
  %v2577 = vpop.xlane.xlu0 %2576
  %v2578 = vsel %vm1053, %v792, 0.0
  %v2579 = vadd.f32 %v791, %v2578
  %2580 = vadd.xlane.f32.xlu0 %v2579
  %v2581 = vpop.xlane.xlu0 %2580
  %v2582 = vsel %vm1053, %v794, 0.0
  %v2583 = vadd.f32 %v793, %v2582
  %2584 = vadd.xlane.f32.xlu0 %v2583
  %v2585 = vpop.xlane.xlu0 %2584
  %v2586 = vsel %vm1053, %v796, 0.0
  %v2587 = vadd.f32 %v795, %v2586
  %2588 = vadd.xlane.f32.xlu0 %v2587
  %v2589 = vpop.xlane.xlu0 %2588
  %v2590 = vsel %vm1053, %v798, 0.0
  %v2591 = vadd.f32 %v797, %v2590
  %2592 = vadd.xlane.f32.xlu0 %v2591
  %v2593 = vpop.xlane.xlu0 %2592
  %v2594 = vsel %vm1053, %v800, 0.0
  %v2595 = vadd.f32 %v799, %v2594
  %2596 = vadd.xlane.f32.xlu0 %v2595
  %v2597 = vpop.xlane.xlu0 %2596
  %v2598 = vsel %vm1053, %v802, 0.0
  %v2599 = vadd.f32 %v801, %v2598
  %2600 = vadd.xlane.f32.xlu0 %v2599
  %v2601 = vpop.xlane.xlu0 %2600
  %v2602 = vsel %vm1053, %v804, 0.0
  %v2603 = vadd.f32 %v803, %v2602
  %2604 = vadd.xlane.f32.xlu0 %v2603
  %v2605 = vpop.xlane.xlu0 %2604
  %v2606 = vsel %vm1053, %v806, 0.0
  %v2607 = vadd.f32 %v805, %v2606
  %2608 = vadd.xlane.f32.xlu0 %v2607
  %v2609 = vpop.xlane.xlu0 %2608
  %v2610 = vsel %vm1053, %v808, 0.0
  %v2611 = vadd.f32 %v807, %v2610
  %2612 = vadd.xlane.f32.xlu0 %v2611
  %v2613 = vpop.xlane.xlu0 %2612
  %v2614 = vsel %vm1053, %v810, 0.0
  %v2615 = vadd.f32 %v809, %v2614
  %2616 = vadd.xlane.f32.xlu0 %v2615
  %v2617 = vpop.xlane.xlu0 %2616
  %v2618 = vsel %vm1053, %v812, 0.0
  %v2619 = vadd.f32 %v811, %v2618
  %2620 = vadd.xlane.f32.xlu0 %v2619
  %v2621 = vpop.xlane.xlu0 %2620
  %v2622 = vsel %vm1053, %v814, 0.0
  %v2623 = vadd.f32 %v813, %v2622
  %2624 = vadd.xlane.f32.xlu0 %v2623
  %v2625 = vpop.xlane.xlu0 %2624
  %v2626 = vsel %vm1053, %v816, 0.0
  %v2627 = vadd.f32 %v815, %v2626
  %2628 = vadd.xlane.f32.xlu0 %v2627
  %v2629 = vpop.xlane.xlu0 %2628
  %v2630 = vsel %vm1053, %v818, 0.0
  %v2631 = vadd.f32 %v817, %v2630
  %2632 = vadd.xlane.f32.xlu0 %v2631
  %v2633 = vpop.xlane.xlu0 %2632
  %v2634 = vsel %vm1053, %v820, 0.0
  %v2635 = vadd.f32 %v819, %v2634
  %2636 = vadd.xlane.f32.xlu0 %v2635
  %v2637 = vpop.xlane.xlu0 %2636
  %v2638 = vsel %vm1053, %v822, 0.0
  %v2639 = vadd.f32 %v821, %v2638
  %2640 = vadd.xlane.f32.xlu0 %v2639
  %v2641 = vpop.xlane.xlu0 %2640
  %v2642 = vsel %vm1053, %v824, 0.0
  %v2643 = vadd.f32 %v823, %v2642
  %2644 = vadd.xlane.f32.xlu0 %v2643
  %v2645 = vpop.xlane.xlu0 %2644
  %v2646 = vsel %vm1053, %v826, 0.0
  %v2647 = vadd.f32 %v825, %v2646
  %2648 = vadd.xlane.f32.xlu0 %v2647
  %v2649 = vpop.xlane.xlu0 %2648
  %v2650 = vsel %vm1053, %v828, 0.0
  %v2651 = vadd.f32 %v827, %v2650
  %2652 = vadd.xlane.f32.xlu0 %v2651
  %v2653 = vpop.xlane.xlu0 %2652
  %v2654 = vsel %vm1053, %v830, 0.0
  %v2655 = vadd.f32 %v829, %v2654
  %2656 = vadd.xlane.f32.xlu0 %v2655
  %v2657 = vpop.xlane.xlu0 %2656
  %v2658 = vsel %vm1053, %v832, 0.0
  %v2659 = vadd.f32 %v831, %v2658
  %2660 = vadd.xlane.f32.xlu0 %v2659
  %v2661 = vpop.xlane.xlu0 %2660
  %v2662 = vsel %vm1053, %v834, 0.0
  %v2663 = vadd.f32 %v833, %v2662
  %2664 = vadd.xlane.f32.xlu0 %v2663
  %v2665 = vpop.xlane.xlu0 %2664
  %v2666 = vsel %vm1053, %v836, 0.0
  %v2667 = vadd.f32 %v835, %v2666
  %2668 = vadd.xlane.f32.xlu0 %v2667
  %v2669 = vpop.xlane.xlu0 %2668
  %v2670 = vsel %vm1053, %v838, 0.0
  %v2671 = vadd.f32 %v837, %v2670
  %2672 = vadd.xlane.f32.xlu0 %v2671
  %v2673 = vpop.xlane.xlu0 %2672
  %v2674 = vsel %vm1053, %v840, 0.0
  %v2675 = vadd.f32 %v839, %v2674
  %2676 = vadd.xlane.f32.xlu0 %v2675
  %v2677 = vpop.xlane.xlu0 %2676
  %v2678 = vsel %vm1053, %v842, 0.0
  %v2679 = vadd.f32 %v841, %v2678
  %2680 = vadd.xlane.f32.xlu0 %v2679
  %v2681 = vpop.xlane.xlu0 %2680
  %v2682 = vsel %vm1053, %v844, 0.0
  %v2683 = vadd.f32 %v843, %v2682
  %2684 = vadd.xlane.f32.xlu0 %v2683
  %v2685 = vpop.xlane.xlu0 %2684
  %v2686 = vsel %vm1053, %v846, 0.0
  %v2687 = vadd.f32 %v845, %v2686
  %2688 = vadd.xlane.f32.xlu0 %v2687
  %v2689 = vpop.xlane.xlu0 %2688
  %v2690 = vsel %vm1053, %v848, 0.0
  %v2691 = vadd.f32 %v847, %v2690
  %2692 = vadd.xlane.f32.xlu0 %v2691
  %v2693 = vpop.xlane.xlu0 %2692
  %v2694 = vsel %vm1053, %v850, 0.0
  %v2695 = vadd.f32 %v849, %v2694
  %2696 = vadd.xlane.f32.xlu0 %v2695
  %v2697 = vpop.xlane.xlu0 %2696
  %v2698 = vsel %vm1053, %v852, 0.0
  %v2699 = vadd.f32 %v851, %v2698
  %2700 = vadd.xlane.f32.xlu0 %v2699
  %v2701 = vpop.xlane.xlu0 %2700
  %v2702 = vsel %vm1053, %v854, 0.0
  %v2703 = vadd.f32 %v853, %v2702
  %2704 = vadd.xlane.f32.xlu0 %v2703
  %v2705 = vpop.xlane.xlu0 %2704
  %v2706 = vsel %vm1053, %v856, 0.0
  %v2707 = vadd.f32 %v855, %v2706
  %2708 = vadd.xlane.f32.xlu0 %v2707
  %v2709 = vpop.xlane.xlu0 %2708
  %v2710 = vsel %vm1053, %v858, 0.0
  %v2711 = vadd.f32 %v857, %v2710
  %2712 = vadd.xlane.f32.xlu0 %v2711
  %v2713 = vpop.xlane.xlu0 %2712
  %v2714 = vsel %vm1053, %v860, 0.0
  %v2715 = vadd.f32 %v859, %v2714
  %2716 = vadd.xlane.f32.xlu0 %v2715
  %v2717 = vpop.xlane.xlu0 %2716
  %v2718 = vsel %vm1053, %v862, 0.0
  %v2719 = vadd.f32 %v861, %v2718
  %2720 = vadd.xlane.f32.xlu0 %v2719
  %v2721 = vpop.xlane.xlu0 %2720
  %v2722 = vsel %vm1053, %v864, 0.0
  %v2723 = vadd.f32 %v863, %v2722
  %2724 = vadd.xlane.f32.xlu0 %v2723
  %v2725 = vpop.xlane.xlu0 %2724
  %v2726 = vsel %vm1053, %v866, 0.0
  %v2727 = vadd.f32 %v865, %v2726
  %2728 = vadd.xlane.f32.xlu0 %v2727
  %v2729 = vpop.xlane.xlu0 %2728
  %v2730 = vsel %vm1053, %v868, 0.0
  %v2731 = vadd.f32 %v867, %v2730
  %2732 = vadd.xlane.f32.xlu0 %v2731
  %v2733 = vpop.xlane.xlu0 %2732
  %v2734 = vsel %vm1053, %v870, 0.0
  %v2735 = vadd.f32 %v869, %v2734
  %2736 = vadd.xlane.f32.xlu0 %v2735
  %v2737 = vpop.xlane.xlu0 %2736
  %v2738 = vsel %vm1053, %v872, 0.0
  %v2739 = vadd.f32 %v871, %v2738
  %2740 = vadd.xlane.f32.xlu0 %v2739
  %v2741 = vpop.xlane.xlu0 %2740
  %v2742 = vsel %vm1053, %v874, 0.0
  %v2743 = vadd.f32 %v873, %v2742
  %2744 = vadd.xlane.f32.xlu0 %v2743
  %v2745 = vpop.xlane.xlu0 %2744
  %v2746 = vsel %vm1053, %v876, 0.0
  %v2747 = vadd.f32 %v875, %v2746
  %2748 = vadd.xlane.f32.xlu0 %v2747
  %v2749 = vpop.xlane.xlu0 %2748
  %v2750 = vsel %vm1053, %v878, 0.0
  %v2751 = vadd.f32 %v877, %v2750
  %2752 = vadd.xlane.f32.xlu0 %v2751
  %v2753 = vpop.xlane.xlu0 %2752
  %v2754 = vsel %vm1053, %v880, 0.0
  %v2755 = vadd.f32 %v879, %v2754
  %2756 = vadd.xlane.f32.xlu0 %v2755
  %v2757 = vpop.xlane.xlu0 %2756
  %v2758 = vsel %vm1053, %v882, 0.0
  %v2759 = vadd.f32 %v881, %v2758
  %2760 = vadd.xlane.f32.xlu0 %v2759
  %v2761 = vpop.xlane.xlu0 %2760
  %v2762 = vsel %vm1053, %v884, 0.0
  %v2763 = vadd.f32 %v883, %v2762
  %2764 = vadd.xlane.f32.xlu0 %v2763
  %v2765 = vpop.xlane.xlu0 %2764
  %v2766 = vsel %vm1053, %v886, 0.0
  %v2767 = vadd.f32 %v885, %v2766
  %2768 = vadd.xlane.f32.xlu0 %v2767
  %v2769 = vpop.xlane.xlu0 %2768
  %v2770 = vsel %vm1053, %v888, 0.0
  %v2771 = vadd.f32 %v887, %v2770
  %2772 = vadd.xlane.f32.xlu0 %v2771
  %v2773 = vpop.xlane.xlu0 %2772
  %v2774 = vsel %vm1053, %v890, 0.0
  %v2775 = vadd.f32 %v889, %v2774
  %2776 = vadd.xlane.f32.xlu0 %v2775
  %v2777 = vpop.xlane.xlu0 %2776
  %v2778 = vsel %vm1053, %v892, 0.0
  %v2779 = vadd.f32 %v891, %v2778
  %2780 = vadd.xlane.f32.xlu0 %v2779
  %v2781 = vpop.xlane.xlu0 %2780
  %v2782 = vsel %vm1053, %v894, 0.0
  %v2783 = vadd.f32 %v893, %v2782
  %2784 = vadd.xlane.f32.xlu0 %v2783
  %v2785 = vpop.xlane.xlu0 %2784
  %v2786 = vsel %vm1053, %v896, 0.0
  %v2787 = vadd.f32 %v895, %v2786
  %2788 = vadd.xlane.f32.xlu0 %v2787
  %v2789 = vpop.xlane.xlu0 %2788
  %v2790 = vsel %vm1053, %v898, 0.0
  %v2791 = vadd.f32 %v897, %v2790
  %2792 = vadd.xlane.f32.xlu0 %v2791
  %v2793 = vpop.xlane.xlu0 %2792
  %v2794 = vsel %vm1053, %v900, 0.0
  %v2795 = vadd.f32 %v899, %v2794
  %2796 = vadd.xlane.f32.xlu0 %v2795
  %v2797 = vpop.xlane.xlu0 %2796
  %v2798 = vsel %vm1053, %v902, 0.0
  %v2799 = vadd.f32 %v901, %v2798
  %2800 = vadd.xlane.f32.xlu0 %v2799
  %v2801 = vpop.xlane.xlu0 %2800
  %v2802 = vsel %vm1053, %v904, 0.0
  %v2803 = vadd.f32 %v903, %v2802
  %2804 = vadd.xlane.f32.xlu0 %v2803
  %v2805 = vpop.xlane.xlu0 %2804
  %v2806 = vsel %vm1053, %v906, 0.0
  %v2807 = vadd.f32 %v905, %v2806
  %2808 = vadd.xlane.f32.xlu0 %v2807
  %v2809 = vpop.xlane.xlu0 %2808
  %v2810 = vsel %vm1053, %v908, 0.0
  %v2811 = vadd.f32 %v907, %v2810
  %2812 = vadd.xlane.f32.xlu0 %v2811
  %v2813 = vpop.xlane.xlu0 %2812
  %v2814 = vsel %vm1053, %v910, 0.0
  %v2815 = vadd.f32 %v909, %v2814
  %2816 = vadd.xlane.f32.xlu0 %v2815
  %v2817 = vpop.xlane.xlu0 %2816
  %v2818 = vsel %vm1053, %v912, 0.0
  %v2819 = vadd.f32 %v911, %v2818
  %2820 = vadd.xlane.f32.xlu0 %v2819
  %v2821 = vpop.xlane.xlu0 %2820
  %v2822 = vsel %vm1053, %v914, 0.0
  %v2823 = vadd.f32 %v913, %v2822
  %2824 = vadd.xlane.f32.xlu0 %v2823
  %v2825 = vpop.xlane.xlu0 %2824
  %v2826 = vsel %vm1053, %v916, 0.0
  %v2827 = vadd.f32 %v915, %v2826
  %2828 = vadd.xlane.f32.xlu0 %v2827
  %v2829 = vpop.xlane.xlu0 %2828
  %v2830 = vsel %vm1053, %v918, 0.0
  %v2831 = vadd.f32 %v917, %v2830
  %2832 = vadd.xlane.f32.xlu0 %v2831
  %v2833 = vpop.xlane.xlu0 %2832
  %v2834 = vsel %vm1053, %v920, 0.0
  %v2835 = vadd.f32 %v919, %v2834
  %2836 = vadd.xlane.f32.xlu0 %v2835
  %v2837 = vpop.xlane.xlu0 %2836
  %v2838 = vsel %vm1053, %v922, 0.0
  %v2839 = vadd.f32 %v921, %v2838
  %2840 = vadd.xlane.f32.xlu0 %v2839
  %v2841 = vpop.xlane.xlu0 %2840
  %v2842 = vsel %vm1053, %v924, 0.0
  %v2843 = vadd.f32 %v923, %v2842
  %2844 = vadd.xlane.f32.xlu0 %v2843
  %v2845 = vpop.xlane.xlu0 %2844
  %v2846 = vsel %vm1053, %v926, 0.0
  %v2847 = vadd.f32 %v925, %v2846
  %2848 = vadd.xlane.f32.xlu0 %v2847
  %v2849 = vpop.xlane.xlu0 %2848
  %v2850 = vsel %vm1053, %v928, 0.0
  %v2851 = vadd.f32 %v927, %v2850
  %2852 = vadd.xlane.f32.xlu0 %v2851
  %v2853 = vpop.xlane.xlu0 %2852
  %v2854 = vsel %vm1053, %v930, 0.0
  %v2855 = vadd.f32 %v929, %v2854
  %2856 = vadd.xlane.f32.xlu0 %v2855
  %v2857 = vpop.xlane.xlu0 %2856
  %v2858 = vsel %vm1053, %v932, 0.0
  %v2859 = vadd.f32 %v931, %v2858
  %2860 = vadd.xlane.f32.xlu0 %v2859
  %v2861 = vpop.xlane.xlu0 %2860
  %v2862 = vsel %vm1053, %v934, 0.0
  %v2863 = vadd.f32 %v933, %v2862
  %2864 = vadd.xlane.f32.xlu0 %v2863
  %v2865 = vpop.xlane.xlu0 %2864
  %v2866 = vsel %vm1053, %v936, 0.0
  %v2867 = vadd.f32 %v935, %v2866
  %2868 = vadd.xlane.f32.xlu0 %v2867
  %v2869 = vpop.xlane.xlu0 %2868
  %v2870 = vsel %vm1053, %v938, 0.0
  %v2871 = vadd.f32 %v937, %v2870
  %2872 = vadd.xlane.f32.xlu0 %v2871
  %v2873 = vpop.xlane.xlu0 %2872
  %v2874 = vsel %vm1053, %v940, 0.0
  %v2875 = vadd.f32 %v939, %v2874
  %2876 = vadd.xlane.f32.xlu0 %v2875
  %v2877 = vpop.xlane.xlu0 %2876
  %v2878 = vsel %vm1053, %v942, 0.0
  %v2879 = vadd.f32 %v941, %v2878
  %2880 = vadd.xlane.f32.xlu0 %v2879
  %v2881 = vpop.xlane.xlu0 %2880
  %v2882 = vsel %vm1053, %v944, 0.0
  %v2883 = vadd.f32 %v943, %v2882
  %2884 = vadd.xlane.f32.xlu0 %v2883
  %v2885 = vpop.xlane.xlu0 %2884
  %v2886 = vsel %vm1053, %v946, 0.0
  %v2887 = vadd.f32 %v945, %v2886
  %2888 = vadd.xlane.f32.xlu0 %v2887
  %v2889 = vpop.xlane.xlu0 %2888
  %v2890 = vsel %vm1053, %v948, 0.0
  %v2891 = vadd.f32 %v947, %v2890
  %2892 = vadd.xlane.f32.xlu0 %v2891
  %v2893 = vpop.xlane.xlu0 %2892
  %v2894 = vsel %vm1053, %v950, 0.0
  %v2895 = vadd.f32 %v949, %v2894
  %2896 = vadd.xlane.f32.xlu0 %v2895
  %v2897 = vpop.xlane.xlu0 %2896
  %v2898 = vsel %vm1053, %v952, 0.0
  %v2899 = vadd.f32 %v951, %v2898
  %2900 = vadd.xlane.f32.xlu0 %v2899
  %v2901 = vpop.xlane.xlu0 %2900
  %v2902 = vsel %vm1053, %v954, 0.0
  %v2903 = vadd.f32 %v953, %v2902
  %2904 = vadd.xlane.f32.xlu0 %v2903
  %v2905 = vpop.xlane.xlu0 %2904
  %v2906 = vsel %vm1053, %v956, 0.0
  %v2907 = vadd.f32 %v955, %v2906
  %2908 = vadd.xlane.f32.xlu0 %v2907
  %v2909 = vpop.xlane.xlu0 %2908
  %v2910 = vsel %vm1053, %v958, 0.0
  %v2911 = vadd.f32 %v957, %v2910
  %2912 = vadd.xlane.f32.xlu0 %v2911
  %v2913 = vpop.xlane.xlu0 %2912
  %v2914 = vsel %vm1053, %v960, 0.0
  %v2915 = vadd.f32 %v959, %v2914
  %2916 = vadd.xlane.f32.xlu0 %v2915
  %v2917 = vpop.xlane.xlu0 %2916
  %v2918 = vsel %vm1053, %v962, 0.0
  %v2919 = vadd.f32 %v961, %v2918
  %2920 = vadd.xlane.f32.xlu0 %v2919
  %v2921 = vpop.xlane.xlu0 %2920
  %v2922 = vsel %vm1053, %v964, 0.0
  %v2923 = vadd.f32 %v963, %v2922
  %2924 = vadd.xlane.f32.xlu0 %v2923
  %v2925 = vpop.xlane.xlu0 %2924
  %v2926 = vsel %vm1053, %v966, 0.0
  %v2927 = vadd.f32 %v965, %v2926
  %2928 = vadd.xlane.f32.xlu0 %v2927
  %v2929 = vpop.xlane.xlu0 %2928
  %v2930 = vsel %vm1053, %v968, 0.0
  %v2931 = vadd.f32 %v967, %v2930
  %2932 = vadd.xlane.f32.xlu0 %v2931
  %v2933 = vpop.xlane.xlu0 %2932
  %v2934 = vsel %vm1053, %v970, 0.0
  %v2935 = vadd.f32 %v969, %v2934
  %2936 = vadd.xlane.f32.xlu0 %v2935
  %v2937 = vpop.xlane.xlu0 %2936
  %v2938 = vsel %vm1053, %v972, 0.0
  %v2939 = vadd.f32 %v971, %v2938
  %2940 = vadd.xlane.f32.xlu0 %v2939
  %v2941 = vpop.xlane.xlu0 %2940
  %v2942 = vsel %vm1053, %v974, 0.0
  %v2943 = vadd.f32 %v973, %v2942
  %2944 = vadd.xlane.f32.xlu0 %v2943
  %v2945 = vpop.xlane.xlu0 %2944
  %v2946 = vsel %vm1053, %v976, 0.0
  %v2947 = vadd.f32 %v975, %v2946
  %2948 = vadd.xlane.f32.xlu0 %v2947
  %v2949 = vpop.xlane.xlu0 %2948
  %v2950 = vsel %vm1053, %v978, 0.0
  %v2951 = vadd.f32 %v977, %v2950
  %2952 = vadd.xlane.f32.xlu0 %v2951
  %v2953 = vpop.xlane.xlu0 %2952
  %v2954 = vsel %vm1053, %v980, 0.0
  %v2955 = vadd.f32 %v979, %v2954
  %2956 = vadd.xlane.f32.xlu0 %v2955
  %v2957 = vpop.xlane.xlu0 %2956
  %v2958 = vsel %vm1053, %v982, 0.0
  %v2959 = vadd.f32 %v981, %v2958
  %2960 = vadd.xlane.f32.xlu0 %v2959
  %v2961 = vpop.xlane.xlu0 %2960
  %v2962 = vsel %vm1053, %v984, 0.0
  %v2963 = vadd.f32 %v983, %v2962
  %2964 = vadd.xlane.f32.xlu0 %v2963
  %v2965 = vpop.xlane.xlu0 %2964
  %v2966 = vsel %vm1053, %v986, 0.0
  %v2967 = vadd.f32 %v985, %v2966
  %2968 = vadd.xlane.f32.xlu0 %v2967
  %v2969 = vpop.xlane.xlu0 %2968
  %v2970 = vsel %vm1053, %v988, 0.0
  %v2971 = vadd.f32 %v987, %v2970
  %2972 = vadd.xlane.f32.xlu0 %v2971
  %v2973 = vpop.xlane.xlu0 %2972
  %v2974 = vsel %vm1053, %v990, 0.0
  %v2975 = vadd.f32 %v989, %v2974
  %2976 = vadd.xlane.f32.xlu0 %v2975
  %v2977 = vpop.xlane.xlu0 %2976
  %v2978 = vsel %vm1053, %v992, 0.0
  %v2979 = vadd.f32 %v991, %v2978
  %2980 = vadd.xlane.f32.xlu0 %v2979
  %v2981 = vpop.xlane.xlu0 %2980
  %v2982 = vsel %vm1053, %v994, 0.0
  %v2983 = vadd.f32 %v993, %v2982
  %2984 = vadd.xlane.f32.xlu0 %v2983
  %v2985 = vpop.xlane.xlu0 %2984
  %v2986 = vsel %vm1053, %v996, 0.0
  %v2987 = vadd.f32 %v995, %v2986
  %2988 = vadd.xlane.f32.xlu0 %v2987
  %v2989 = vpop.xlane.xlu0 %2988
  %v2990 = vsel %vm1053, %v998, 0.0
  %v2991 = vadd.f32 %v997, %v2990
  %2992 = vadd.xlane.f32.xlu0 %v2991
  %v2993 = vpop.xlane.xlu0 %2992
  %v2994 = vsel %vm1053, %v1000, 0.0
  %v2995 = vadd.f32 %v999, %v2994
  %2996 = vadd.xlane.f32.xlu0 %v2995
  %v2997 = vpop.xlane.xlu0 %2996
  %v2998 = vsel %vm1053, %v1002, 0.0
  %v2999 = vadd.f32 %v1001, %v2998
  %3000 = vadd.xlane.f32.xlu0 %v2999
  %v3001 = vpop.xlane.xlu0 %3000
  %v3002 = vsel %vm1053, %v1004, 0.0
  %v3003 = vadd.f32 %v1003, %v3002
  %3004 = vadd.xlane.f32.xlu0 %v3003
  %v3005 = vpop.xlane.xlu0 %3004
  %v3006 = vsel %vm1053, %v1006, 0.0
  %v3007 = vadd.f32 %v1005, %v3006
  %3008 = vadd.xlane.f32.xlu0 %v3007
  %v3009 = vpop.xlane.xlu0 %3008
  %v3010 = vsel %vm1053, %v1008, 0.0
  %v3011 = vadd.f32 %v1007, %v3010
  %3012 = vadd.xlane.f32.xlu0 %v3011
  %v3013 = vpop.xlane.xlu0 %3012
  %v3014 = vsel %vm1053, %v1010, 0.0
  %v3015 = vadd.f32 %v1009, %v3014
  %3016 = vadd.xlane.f32.xlu0 %v3015
  %v3017 = vpop.xlane.xlu0 %3016
  %v3018 = vsel %vm1053, %v1012, 0.0
  %v3019 = vadd.f32 %v1011, %v3018
  %3020 = vadd.xlane.f32.xlu0 %v3019
  %v3021 = vpop.xlane.xlu0 %3020
  %v3022 = vsel %vm1053, %v1014, 0.0
  %v3023 = vadd.f32 %v1013, %v3022
  %3024 = vadd.xlane.f32.xlu0 %v3023
  %v3025 = vpop.xlane.xlu0 %3024
  %v3026 = vsel %vm1053, %v1016, 0.0
  %v3027 = vadd.f32 %v1015, %v3026
  %3028 = vadd.xlane.f32.xlu0 %v3027
  %v3029 = vpop.xlane.xlu0 %3028
  %v3030 = vsel %vm1053, %v1018, 0.0
  %v3031 = vadd.f32 %v1017, %v3030
  %3032 = vadd.xlane.f32.xlu0 %v3031
  %v3033 = vpop.xlane.xlu0 %3032
  %v3034 = vsel %vm1053, %v1020, 0.0
  %v3035 = vadd.f32 %v1019, %v3034
  %3036 = vadd.xlane.f32.xlu0 %v3035
  %v3037 = vpop.xlane.xlu0 %3036
  %v3038 = vsel %vm1053, %v1022, 0.0
  %v3039 = vadd.f32 %v1021, %v3038
  %3040 = vadd.xlane.f32.xlu0 %v3039
  %v3041 = vpop.xlane.xlu0 %3040
  %v3042 = vsel %vm1053, %v1024, 0.0
  %v3043 = vadd.f32 %v1023, %v3042
  %3044 = vadd.xlane.f32.xlu0 %v3043
  %v3045 = vpop.xlane.xlu0 %3044
  %v3046 = vsel %vm1053, %v1026, 0.0
  %v3047 = vadd.f32 %v1025, %v3046
  %3048 = vadd.xlane.f32.xlu0 %v3047
  %v3049 = vpop.xlane.xlu0 %3048
  %v3050 = vsel %vm1053, %v1028, 0.0
  %v3051 = vadd.f32 %v1027, %v3050
  %3052 = vadd.xlane.f32.xlu0 %v3051
  %v3053 = vpop.xlane.xlu0 %3052
  %v3054 = vsel %vm1053, %v1030, 0.0
  %v3055 = vadd.f32 %v1029, %v3054
  %3056 = vadd.xlane.f32.xlu0 %v3055
  %v3057 = vpop.xlane.xlu0 %3056
  %v3058 = vsel %vm1053, %v1032, 0.0
  %v3059 = vadd.f32 %v1031, %v3058
  %3060 = vadd.xlane.f32.xlu0 %v3059
  %v3061 = vpop.xlane.xlu0 %3060
  %v3062 = vsel %vm1053, %v1034, 0.0
  %v3063 = vadd.f32 %v1033, %v3062
  %3064 = vadd.xlane.f32.xlu0 %v3063
  %v3065 = vpop.xlane.xlu0 %3064
  %v3066 = vsel %vm1053, %v1036, 0.0
  %v3067 = vadd.f32 %v1035, %v3066
  %3068 = vadd.xlane.f32.xlu0 %v3067
  %v3069 = vpop.xlane.xlu0 %3068
  %v3070 = vsel %vm1053, %v1038, 0.0
  %v3071 = vadd.f32 %v1037, %v3070
  %3072 = vadd.xlane.f32.xlu0 %v3071
  %v3073 = vpop.xlane.xlu0 %3072
  %v3074 = vsel %vm1053, %v1040, 0.0
  %v3075 = vadd.f32 %v1039, %v3074
  %3076 = vadd.xlane.f32.xlu0 %v3075
  %v3077 = vpop.xlane.xlu0 %3076
  %v3078 = vsel %vm1053, %v1042, 0.0
  %v3079 = vadd.f32 %v1041, %v3078
  %3080 = vadd.xlane.f32.xlu0 %v3079
  %v3081 = vpop.xlane.xlu0 %3080
  %v3082 = vsel %vm1053, %v1044, 0.0
  %v3083 = vadd.f32 %v1043, %v3082
  %3084 = vadd.xlane.f32.xlu0 %v3083
  %v3085 = vpop.xlane.xlu0 %3084
  %v3086 = vsel %vm1053, %v1046, 0.0
  %v3087 = vadd.f32 %v1045, %v3086
  %3088 = vadd.xlane.f32.xlu0 %v3087
  %v3089 = vpop.xlane.xlu0 %3088
  %v3090 = vsel %vm1053, %v1048, 0.0
  %v3091 = vadd.f32 %v1047, %v3090
  %3092 = vadd.xlane.f32.xlu0 %v3091
  %v3093 = vpop.xlane.xlu0 %3092
  %v3094 = vsel %vm1053, %v1050, 0.0
  %v3095 = vadd.f32 %v1049, %v3094
  %3096 = vadd.xlane.f32.xlu0 %v3095
  %v3097 = vpop.xlane.xlu0 %3096
  %v3098 = vsel %vm1053, %v1052, 0.0
  %v3099 = vadd.f32 %v1051, %v3098
  %3100 = vadd.xlane.f32.xlu0 %v3099
  %v3101 = vpop.xlane.xlu0 %3100
  %v3102 = vmul.f32 %v1057, 0.0051020407
  %v3103 = vmul.f32 %v1061, 0.0051020407
  %v3104 = vmul.f32 %v1065, 0.0051020407
  %v3105 = vmul.f32 %v1069, 0.0051020407
  %v3106 = vmul.f32 %v1073, 0.0051020407
  %v3107 = vmul.f32 %v1077, 0.0051020407
  %v3108 = vmul.f32 %v1081, 0.0051020407
  %v3109 = vmul.f32 %v1085, 0.0051020407
  %v3110 = vmul.f32 %v1089, 0.0051020407
  %v3111 = vmul.f32 %v1093, 0.0051020407
  %v3112 = vmul.f32 %v1097, 0.0051020407
  %v3113 = vmul.f32 %v1101, 0.0051020407
  %v3114 = vmul.f32 %v1105, 0.0051020407
  %v3115 = vmul.f32 %v1109, 0.0051020407
  %v3116 = vmul.f32 %v1113, 0.0051020407
  %v3117 = vmul.f32 %v1117, 0.0051020407
  %v3118 = vmul.f32 %v1121, 0.0051020407
  %v3119 = vmul.f32 %v1125, 0.0051020407
  %v3120 = vmul.f32 %v1129, 0.0051020407
  %v3121 = vmul.f32 %v1133, 0.0051020407
  %v3122 = vmul.f32 %v1137, 0.0051020407
  %v3123 = vmul.f32 %v1141, 0.0051020407
  %v3124 = vmul.f32 %v1145, 0.0051020407
  %v3125 = vmul.f32 %v1149, 0.0051020407
  %v3126 = vmul.f32 %v1153, 0.0051020407
  %v3127 = vmul.f32 %v1157, 0.0051020407
  %v3128 = vmul.f32 %v1161, 0.0051020407
  %v3129 = vmul.f32 %v1165, 0.0051020407
  %v3130 = vmul.f32 %v1169, 0.0051020407
  %v3131 = vmul.f32 %v1173, 0.0051020407
  %v3132 = vmul.f32 %v1177, 0.0051020407
  %v3133 = vmul.f32 %v1181, 0.0051020407
  %v3134 = vmul.f32 %v1185, 0.0051020407
  %v3135 = vmul.f32 %v1189, 0.0051020407
  %v3136 = vmul.f32 %v1193, 0.0051020407
  %v3137 = vmul.f32 %v1197, 0.0051020407
  %v3138 = vmul.f32 %v1201, 0.0051020407
  %v3139 = vmul.f32 %v1205, 0.0051020407
  %v3140 = vmul.f32 %v1209, 0.0051020407
  %v3141 = vmul.f32 %v1213, 0.0051020407
  %v3142 = vmul.f32 %v1217, 0.0051020407
  %v3143 = vmul.f32 %v1221, 0.0051020407
  %v3144 = vmul.f32 %v1225, 0.0051020407
  %v3145 = vmul.f32 %v1229, 0.0051020407
  %v3146 = vmul.f32 %v1233, 0.0051020407
  %v3147 = vmul.f32 %v1237, 0.0051020407
  %v3148 = vmul.f32 %v1241, 0.0051020407
  %v3149 = vmul.f32 %v1245, 0.0051020407
  %v3150 = vmul.f32 %v1249, 0.0051020407
  %v3151 = vmul.f32 %v1253, 0.0051020407
  %v3152 = vmul.f32 %v1257, 0.0051020407
  %v3153 = vmul.f32 %v1261, 0.0051020407
  %v3154 = vmul.f32 %v1265, 0.0051020407
  %v3155 = vmul.f32 %v1269, 0.0051020407
  %v3156 = vmul.f32 %v1273, 0.0051020407
  %v3157 = vmul.f32 %v1277, 0.0051020407
  %v3158 = vmul.f32 %v1281, 0.0051020407
  %v3159 = vmul.f32 %v1285, 0.0051020407
  %v3160 = vmul.f32 %v1289, 0.0051020407
  %v3161 = vmul.f32 %v1293, 0.0051020407
  %v3162 = vmul.f32 %v1297, 0.0051020407
  %v3163 = vmul.f32 %v1301, 0.0051020407
  %v3164 = vmul.f32 %v1305, 0.0051020407
  %v3165 = vmul.f32 %v1309, 0.0051020407
  %v3166 = vmul.f32 %v1313, 0.0051020407
  %v3167 = vmul.f32 %v1317, 0.0051020407
  %v3168 = vmul.f32 %v1321, 0.0051020407
  %v3169 = vmul.f32 %v1325, 0.0051020407
  %v3170 = vmul.f32 %v1329, 0.0051020407
  %v3171 = vmul.f32 %v1333, 0.0051020407
  %v3172 = vmul.f32 %v1337, 0.0051020407
  %v3173 = vmul.f32 %v1341, 0.0051020407
  %v3174 = vmul.f32 %v1345, 0.0051020407
  %v3175 = vmul.f32 %v1349, 0.0051020407
  %v3176 = vmul.f32 %v1353, 0.0051020407
  %v3177 = vmul.f32 %v1357, 0.0051020407
  %v3178 = vmul.f32 %v1361, 0.0051020407
  %v3179 = vmul.f32 %v1365, 0.0051020407
  %v3180 = vmul.f32 %v1369, 0.0051020407
  %v3181 = vmul.f32 %v1373, 0.0051020407
  %v3182 = vmul.f32 %v1377, 0.0051020407
  %v3183 = vmul.f32 %v1381, 0.0051020407
  %v3184 = vmul.f32 %v1385, 0.0051020407
  %v3185 = vmul.f32 %v1389, 0.0051020407
  %v3186 = vmul.f32 %v1393, 0.0051020407
  %v3187 = vmul.f32 %v1397, 0.0051020407
  %v3188 = vmul.f32 %v1401, 0.0051020407
  %v3189 = vmul.f32 %v1405, 0.0051020407
  %v3190 = vmul.f32 %v1409, 0.0051020407
  %v3191 = vmul.f32 %v1413, 0.0051020407
  %v3192 = vmul.f32 %v1417, 0.0051020407
  %v3193 = vmul.f32 %v1421, 0.0051020407
  %v3194 = vmul.f32 %v1425, 0.0051020407
  %v3195 = vmul.f32 %v1429, 0.0051020407
  %v3196 = vmul.f32 %v1433, 0.0051020407
  %v3197 = vmul.f32 %v1437, 0.0051020407
  %v3198 = vmul.f32 %v1441, 0.0051020407
  %v3199 = vmul.f32 %v1445, 0.0051020407
  %v3200 = vmul.f32 %v1449, 0.0051020407
  %v3201 = vmul.f32 %v1453, 0.0051020407
  %v3202 = vmul.f32 %v1457, 0.0051020407
  %v3203 = vmul.f32 %v1461, 0.0051020407
  %v3204 = vmul.f32 %v1465, 0.0051020407
  %v3205 = vmul.f32 %v1469, 0.0051020407
  %v3206 = vmul.f32 %v1473, 0.0051020407
  %v3207 = vmul.f32 %v1477, 0.0051020407
  %v3208 = vmul.f32 %v1481, 0.0051020407
  %v3209 = vmul.f32 %v1485, 0.0051020407
  %v3210 = vmul.f32 %v1489, 0.0051020407
  %v3211 = vmul.f32 %v1493, 0.0051020407
  %v3212 = vmul.f32 %v1497, 0.0051020407
  %v3213 = vmul.f32 %v1501, 0.0051020407
  %v3214 = vmul.f32 %v1505, 0.0051020407
  %v3215 = vmul.f32 %v1509, 0.0051020407
  %v3216 = vmul.f32 %v1513, 0.0051020407
  %v3217 = vmul.f32 %v1517, 0.0051020407
  %v3218 = vmul.f32 %v1521, 0.0051020407
  %v3219 = vmul.f32 %v1525, 0.0051020407
  %v3220 = vmul.f32 %v1529, 0.0051020407
  %v3221 = vmul.f32 %v1533, 0.0051020407
  %v3222 = vmul.f32 %v1537, 0.0051020407
  %v3223 = vmul.f32 %v1541, 0.0051020407
  %v3224 = vmul.f32 %v1545, 0.0051020407
  %v3225 = vmul.f32 %v1549, 0.0051020407
  %v3226 = vmul.f32 %v1553, 0.0051020407
  %v3227 = vmul.f32 %v1557, 0.0051020407
  %v3228 = vmul.f32 %v1561, 0.0051020407
  %v3229 = vmul.f32 %v1565, 0.0051020407
  %v3230 = vmul.f32 %v1569, 0.0051020407
  %v3231 = vmul.f32 %v1573, 0.0051020407
  %v3232 = vmul.f32 %v1577, 0.0051020407
  %v3233 = vmul.f32 %v1581, 0.0051020407
  %v3234 = vmul.f32 %v1585, 0.0051020407
  %v3235 = vmul.f32 %v1589, 0.0051020407
  %v3236 = vmul.f32 %v1593, 0.0051020407
  %v3237 = vmul.f32 %v1597, 0.0051020407
  %v3238 = vmul.f32 %v1601, 0.0051020407
  %v3239 = vmul.f32 %v1605, 0.0051020407
  %v3240 = vmul.f32 %v1609, 0.0051020407
  %v3241 = vmul.f32 %v1613, 0.0051020407
  %v3242 = vmul.f32 %v1617, 0.0051020407
  %v3243 = vmul.f32 %v1621, 0.0051020407
  %v3244 = vmul.f32 %v1625, 0.0051020407
  %v3245 = vmul.f32 %v1629, 0.0051020407
  %v3246 = vmul.f32 %v1633, 0.0051020407
  %v3247 = vmul.f32 %v1637, 0.0051020407
  %v3248 = vmul.f32 %v1641, 0.0051020407
  %v3249 = vmul.f32 %v1645, 0.0051020407
  %v3250 = vmul.f32 %v1649, 0.0051020407
  %v3251 = vmul.f32 %v1653, 0.0051020407
  %v3252 = vmul.f32 %v1657, 0.0051020407
  %v3253 = vmul.f32 %v1661, 0.0051020407
  %v3254 = vmul.f32 %v1665, 0.0051020407
  %v3255 = vmul.f32 %v1669, 0.0051020407
  %v3256 = vmul.f32 %v1673, 0.0051020407
  %v3257 = vmul.f32 %v1677, 0.0051020407
  %v3258 = vmul.f32 %v1681, 0.0051020407
  %v3259 = vmul.f32 %v1685, 0.0051020407
  %v3260 = vmul.f32 %v1689, 0.0051020407
  %v3261 = vmul.f32 %v1693, 0.0051020407
  %v3262 = vmul.f32 %v1697, 0.0051020407
  %v3263 = vmul.f32 %v1701, 0.0051020407
  %v3264 = vmul.f32 %v1705, 0.0051020407
  %v3265 = vmul.f32 %v1709, 0.0051020407
  %v3266 = vmul.f32 %v1713, 0.0051020407
  %v3267 = vmul.f32 %v1717, 0.0051020407
  %v3268 = vmul.f32 %v1721, 0.0051020407
  %v3269 = vmul.f32 %v1725, 0.0051020407
  %v3270 = vmul.f32 %v1729, 0.0051020407
  %v3271 = vmul.f32 %v1733, 0.0051020407
  %v3272 = vmul.f32 %v1737, 0.0051020407
  %v3273 = vmul.f32 %v1741, 0.0051020407
  %v3274 = vmul.f32 %v1745, 0.0051020407
  %v3275 = vmul.f32 %v1749, 0.0051020407
  %v3276 = vmul.f32 %v1753, 0.0051020407
  %v3277 = vmul.f32 %v1757, 0.0051020407
  %v3278 = vmul.f32 %v1761, 0.0051020407
  %v3279 = vmul.f32 %v1765, 0.0051020407
  %v3280 = vmul.f32 %v1769, 0.0051020407
  %v3281 = vmul.f32 %v1773, 0.0051020407
  %v3282 = vmul.f32 %v1777, 0.0051020407
  %v3283 = vmul.f32 %v1781, 0.0051020407
  %v3284 = vmul.f32 %v1785, 0.0051020407
  %v3285 = vmul.f32 %v1789, 0.0051020407
  %v3286 = vmul.f32 %v1793, 0.0051020407
  %v3287 = vmul.f32 %v1797, 0.0051020407
  %v3288 = vmul.f32 %v1801, 0.0051020407
  %v3289 = vmul.f32 %v1805, 0.0051020407
  %v3290 = vmul.f32 %v1809, 0.0051020407
  %v3291 = vmul.f32 %v1813, 0.0051020407
  %v3292 = vmul.f32 %v1817, 0.0051020407
  %v3293 = vmul.f32 %v1821, 0.0051020407
  %v3294 = vmul.f32 %v1825, 0.0051020407
  %v3295 = vmul.f32 %v1829, 0.0051020407
  %v3296 = vmul.f32 %v1833, 0.0051020407
  %v3297 = vmul.f32 %v1837, 0.0051020407
  %v3298 = vmul.f32 %v1841, 0.0051020407
  %v3299 = vmul.f32 %v1845, 0.0051020407
  %v3300 = vmul.f32 %v1849, 0.0051020407
  %v3301 = vmul.f32 %v1853, 0.0051020407
  %v3302 = vmul.f32 %v1857, 0.0051020407
  %v3303 = vmul.f32 %v1861, 0.0051020407
  %v3304 = vmul.f32 %v1865, 0.0051020407
  %v3305 = vmul.f32 %v1869, 0.0051020407
  %v3306 = vmul.f32 %v1873, 0.0051020407
  %v3307 = vmul.f32 %v1877, 0.0051020407
  %v3308 = vmul.f32 %v1881, 0.0051020407
  %v3309 = vmul.f32 %v1885, 0.0051020407
  %v3310 = vmul.f32 %v1889, 0.0051020407
  %v3311 = vmul.f32 %v1893, 0.0051020407
  %v3312 = vmul.f32 %v1897, 0.0051020407
  %v3313 = vmul.f32 %v1901, 0.0051020407
  %v3314 = vmul.f32 %v1905, 0.0051020407
  %v3315 = vmul.f32 %v1909, 0.0051020407
  %v3316 = vmul.f32 %v1913, 0.0051020407
  %v3317 = vmul.f32 %v1917, 0.0051020407
  %v3318 = vmul.f32 %v1921, 0.0051020407
  %v3319 = vmul.f32 %v1925, 0.0051020407
  %v3320 = vmul.f32 %v1929, 0.0051020407
  %v3321 = vmul.f32 %v1933, 0.0051020407
  %v3322 = vmul.f32 %v1937, 0.0051020407
  %v3323 = vmul.f32 %v1941, 0.0051020407
  %v3324 = vmul.f32 %v1945, 0.0051020407
  %v3325 = vmul.f32 %v1949, 0.0051020407
  %v3326 = vmul.f32 %v1953, 0.0051020407
  %v3327 = vmul.f32 %v1957, 0.0051020407
  %v3328 = vmul.f32 %v1961, 0.0051020407
  %v3329 = vmul.f32 %v1965, 0.0051020407
  %v3330 = vmul.f32 %v1969, 0.0051020407
  %v3331 = vmul.f32 %v1973, 0.0051020407
  %v3332 = vmul.f32 %v1977, 0.0051020407
  %v3333 = vmul.f32 %v1981, 0.0051020407
  %v3334 = vmul.f32 %v1985, 0.0051020407
  %v3335 = vmul.f32 %v1989, 0.0051020407
  %v3336 = vmul.f32 %v1993, 0.0051020407
  %v3337 = vmul.f32 %v1997, 0.0051020407
  %v3338 = vmul.f32 %v2001, 0.0051020407
  %v3339 = vmul.f32 %v2005, 0.0051020407
  %v3340 = vmul.f32 %v2009, 0.0051020407
  %v3341 = vmul.f32 %v2013, 0.0051020407
  %v3342 = vmul.f32 %v2017, 0.0051020407
  %v3343 = vmul.f32 %v2021, 0.0051020407
  %v3344 = vmul.f32 %v2025, 0.0051020407
  %v3345 = vmul.f32 %v2029, 0.0051020407
  %v3346 = vmul.f32 %v2033, 0.0051020407
  %v3347 = vmul.f32 %v2037, 0.0051020407
  %v3348 = vmul.f32 %v2041, 0.0051020407
  %v3349 = vmul.f32 %v2045, 0.0051020407
  %v3350 = vmul.f32 %v2049, 0.0051020407
  %v3351 = vmul.f32 %v2053, 0.0051020407
  %v3352 = vmul.f32 %v2057, 0.0051020407
  %v3353 = vmul.f32 %v2061, 0.0051020407
  %v3354 = vmul.f32 %v2065, 0.0051020407
  %v3355 = vmul.f32 %v2069, 0.0051020407
  %v3356 = vmul.f32 %v2073, 0.0051020407
  %v3357 = vmul.f32 %v2077, 0.0051020407
  %v3358 = vmul.f32 %v2081, 0.0051020407
  %v3359 = vmul.f32 %v2085, 0.0051020407
  %v3360 = vmul.f32 %v2089, 0.0051020407
  %v3361 = vmul.f32 %v2093, 0.0051020407
  %v3362 = vmul.f32 %v2097, 0.0051020407
  %v3363 = vmul.f32 %v2101, 0.0051020407
  %v3364 = vmul.f32 %v2105, 0.0051020407
  %v3365 = vmul.f32 %v2109, 0.0051020407
  %v3366 = vmul.f32 %v2113, 0.0051020407
  %v3367 = vmul.f32 %v2117, 0.0051020407
  %v3368 = vmul.f32 %v2121, 0.0051020407
  %v3369 = vmul.f32 %v2125, 0.0051020407
  %v3370 = vmul.f32 %v2129, 0.0051020407
  %v3371 = vmul.f32 %v2133, 0.0051020407
  %v3372 = vmul.f32 %v2137, 0.0051020407
  %v3373 = vmul.f32 %v2141, 0.0051020407
  %v3374 = vmul.f32 %v2145, 0.0051020407
  %v3375 = vmul.f32 %v2149, 0.0051020407
  %v3376 = vmul.f32 %v2153, 0.0051020407
  %v3377 = vmul.f32 %v2157, 0.0051020407
  %v3378 = vmul.f32 %v2161, 0.0051020407
  %v3379 = vmul.f32 %v2165, 0.0051020407
  %v3380 = vmul.f32 %v2169, 0.0051020407
  %v3381 = vmul.f32 %v2173, 0.0051020407
  %v3382 = vmul.f32 %v2177, 0.0051020407
  %v3383 = vmul.f32 %v2181, 0.0051020407
  %v3384 = vmul.f32 %v2185, 0.0051020407
  %v3385 = vmul.f32 %v2189, 0.0051020407
  %v3386 = vmul.f32 %v2193, 0.0051020407
  %v3387 = vmul.f32 %v2197, 0.0051020407
  %v3388 = vmul.f32 %v2201, 0.0051020407
  %v3389 = vmul.f32 %v2205, 0.0051020407
  %v3390 = vmul.f32 %v2209, 0.0051020407
  %v3391 = vmul.f32 %v2213, 0.0051020407
  %v3392 = vmul.f32 %v2217, 0.0051020407
  %v3393 = vmul.f32 %v2221, 0.0051020407
  %v3394 = vmul.f32 %v2225, 0.0051020407
  %v3395 = vmul.f32 %v2229, 0.0051020407
  %v3396 = vmul.f32 %v2233, 0.0051020407
  %v3397 = vmul.f32 %v2237, 0.0051020407
  %v3398 = vmul.f32 %v2241, 0.0051020407
  %v3399 = vmul.f32 %v2245, 0.0051020407
  %v3400 = vmul.f32 %v2249, 0.0051020407
  %v3401 = vmul.f32 %v2253, 0.0051020407
  %v3402 = vmul.f32 %v2257, 0.0051020407
  %v3403 = vmul.f32 %v2261, 0.0051020407
  %v3404 = vmul.f32 %v2265, 0.0051020407
  %v3405 = vmul.f32 %v2269, 0.0051020407
  %v3406 = vmul.f32 %v2273, 0.0051020407
  %v3407 = vmul.f32 %v2277, 0.0051020407
  %v3408 = vmul.f32 %v2281, 0.0051020407
  %v3409 = vmul.f32 %v2285, 0.0051020407
  %v3410 = vmul.f32 %v2289, 0.0051020407
  %v3411 = vmul.f32 %v2293, 0.0051020407
  %v3412 = vmul.f32 %v2297, 0.0051020407
  %v3413 = vmul.f32 %v2301, 0.0051020407
  %v3414 = vmul.f32 %v2305, 0.0051020407
  %v3415 = vmul.f32 %v2309, 0.0051020407
  %v3416 = vmul.f32 %v2313, 0.0051020407
  %v3417 = vmul.f32 %v2317, 0.0051020407
  %v3418 = vmul.f32 %v2321, 0.0051020407
  %v3419 = vmul.f32 %v2325, 0.0051020407
  %v3420 = vmul.f32 %v2329, 0.0051020407
  %v3421 = vmul.f32 %v2333, 0.0051020407
  %v3422 = vmul.f32 %v2337, 0.0051020407
  %v3423 = vmul.f32 %v2341, 0.0051020407
  %v3424 = vmul.f32 %v2345, 0.0051020407
  %v3425 = vmul.f32 %v2349, 0.0051020407
  %v3426 = vmul.f32 %v2353, 0.0051020407
  %v3427 = vmul.f32 %v2357, 0.0051020407
  %v3428 = vmul.f32 %v2361, 0.0051020407
  %v3429 = vmul.f32 %v2365, 0.0051020407
  %v3430 = vmul.f32 %v2369, 0.0051020407
  %v3431 = vmul.f32 %v2373, 0.0051020407
  %v3432 = vmul.f32 %v2377, 0.0051020407
  %v3433 = vmul.f32 %v2381, 0.0051020407
  %v3434 = vmul.f32 %v2385, 0.0051020407
  %v3435 = vmul.f32 %v2389, 0.0051020407
  %v3436 = vmul.f32 %v2393, 0.0051020407
  %v3437 = vmul.f32 %v2397, 0.0051020407
  %v3438 = vmul.f32 %v2401, 0.0051020407
  %v3439 = vmul.f32 %v2405, 0.0051020407
  %v3440 = vmul.f32 %v2409, 0.0051020407
  %v3441 = vmul.f32 %v2413, 0.0051020407
  %v3442 = vmul.f32 %v2417, 0.0051020407
  %v3443 = vmul.f32 %v2421, 0.0051020407
  %v3444 = vmul.f32 %v2425, 0.0051020407
  %v3445 = vmul.f32 %v2429, 0.0051020407
  %v3446 = vmul.f32 %v2433, 0.0051020407
  %v3447 = vmul.f32 %v2437, 0.0051020407
  %v3448 = vmul.f32 %v2441, 0.0051020407
  %v3449 = vmul.f32 %v2445, 0.0051020407
  %v3450 = vmul.f32 %v2449, 0.0051020407
  %v3451 = vmul.f32 %v2453, 0.0051020407
  %v3452 = vmul.f32 %v2457, 0.0051020407
  %v3453 = vmul.f32 %v2461, 0.0051020407
  %v3454 = vmul.f32 %v2465, 0.0051020407
  %v3455 = vmul.f32 %v2469, 0.0051020407
  %v3456 = vmul.f32 %v2473, 0.0051020407
  %v3457 = vmul.f32 %v2477, 0.0051020407
  %v3458 = vmul.f32 %v2481, 0.0051020407
  %v3459 = vmul.f32 %v2485, 0.0051020407
  %v3460 = vmul.f32 %v2489, 0.0051020407
  %v3461 = vmul.f32 %v2493, 0.0051020407
  %v3462 = vmul.f32 %v2497, 0.0051020407
  %v3463 = vmul.f32 %v2501, 0.0051020407
  %v3464 = vmul.f32 %v2505, 0.0051020407
  %v3465 = vmul.f32 %v2509, 0.0051020407
  %v3466 = vmul.f32 %v2513, 0.0051020407
  %v3467 = vmul.f32 %v2517, 0.0051020407
  %v3468 = vmul.f32 %v2521, 0.0051020407
  %v3469 = vmul.f32 %v2525, 0.0051020407
  %v3470 = vmul.f32 %v2529, 0.0051020407
  %v3471 = vmul.f32 %v2533, 0.0051020407
  %v3472 = vmul.f32 %v2537, 0.0051020407
  %v3473 = vmul.f32 %v2541, 0.0051020407
  %v3474 = vmul.f32 %v2545, 0.0051020407
  %v3475 = vmul.f32 %v2549, 0.0051020407
  %v3476 = vmul.f32 %v2553, 0.0051020407
  %v3477 = vmul.f32 %v2557, 0.0051020407
  %v3478 = vmul.f32 %v2561, 0.0051020407
  %v3479 = vmul.f32 %v2565, 0.0051020407
  %v3480 = vmul.f32 %v2569, 0.0051020407
  %v3481 = vmul.f32 %v2573, 0.0051020407
  %v3482 = vmul.f32 %v2577, 0.0051020407
  %v3483 = vmul.f32 %v2581, 0.0051020407
  %v3484 = vmul.f32 %v2585, 0.0051020407
  %v3485 = vmul.f32 %v2589, 0.0051020407
  %v3486 = vmul.f32 %v2593, 0.0051020407
  %v3487 = vmul.f32 %v2597, 0.0051020407
  %v3488 = vmul.f32 %v2601, 0.0051020407
  %v3489 = vmul.f32 %v2605, 0.0051020407
  %v3490 = vmul.f32 %v2609, 0.0051020407
  %v3491 = vmul.f32 %v2613, 0.0051020407
  %v3492 = vmul.f32 %v2617, 0.0051020407
  %v3493 = vmul.f32 %v2621, 0.0051020407
  %v3494 = vmul.f32 %v2625, 0.0051020407
  %v3495 = vmul.f32 %v2629, 0.0051020407
  %v3496 = vmul.f32 %v2633, 0.0051020407
  %v3497 = vmul.f32 %v2637, 0.0051020407
  %v3498 = vmul.f32 %v2641, 0.0051020407
  %v3499 = vmul.f32 %v2645, 0.0051020407
  %v3500 = vmul.f32 %v2649, 0.0051020407
  %v3501 = vmul.f32 %v2653, 0.0051020407
  %v3502 = vmul.f32 %v2657, 0.0051020407
  %v3503 = vmul.f32 %v2661, 0.0051020407
  %v3504 = vmul.f32 %v2665, 0.0051020407
  %v3505 = vmul.f32 %v2669, 0.0051020407
  %v3506 = vmul.f32 %v2673, 0.0051020407
  %v3507 = vmul.f32 %v2677, 0.0051020407
  %v3508 = vmul.f32 %v2681, 0.0051020407
  %v3509 = vmul.f32 %v2685, 0.0051020407
  %v3510 = vmul.f32 %v2689, 0.0051020407
  %v3511 = vmul.f32 %v2693, 0.0051020407
  %v3512 = vmul.f32 %v2697, 0.0051020407
  %v3513 = vmul.f32 %v2701, 0.0051020407
  %v3514 = vmul.f32 %v2705, 0.0051020407
  %v3515 = vmul.f32 %v2709, 0.0051020407
  %v3516 = vmul.f32 %v2713, 0.0051020407
  %v3517 = vmul.f32 %v2717, 0.0051020407
  %v3518 = vmul.f32 %v2721, 0.0051020407
  %v3519 = vmul.f32 %v2725, 0.0051020407
  %v3520 = vmul.f32 %v2729, 0.0051020407
  %v3521 = vmul.f32 %v2733, 0.0051020407
  %v3522 = vmul.f32 %v2737, 0.0051020407
  %v3523 = vmul.f32 %v2741, 0.0051020407
  %v3524 = vmul.f32 %v2745, 0.0051020407
  %v3525 = vmul.f32 %v2749, 0.0051020407
  %v3526 = vmul.f32 %v2753, 0.0051020407
  %v3527 = vmul.f32 %v2757, 0.0051020407
  %v3528 = vmul.f32 %v2761, 0.0051020407
  %v3529 = vmul.f32 %v2765, 0.0051020407
  %v3530 = vmul.f32 %v2769, 0.0051020407
  %v3531 = vmul.f32 %v2773, 0.0051020407
  %v3532 = vmul.f32 %v2777, 0.0051020407
  %v3533 = vmul.f32 %v2781, 0.0051020407
  %v3534 = vmul.f32 %v2785, 0.0051020407
  %v3535 = vmul.f32 %v2789, 0.0051020407
  %v3536 = vmul.f32 %v2793, 0.0051020407
  %v3537 = vmul.f32 %v2797, 0.0051020407
  %v3538 = vmul.f32 %v2801, 0.0051020407
  %v3539 = vmul.f32 %v2805, 0.0051020407
  %v3540 = vmul.f32 %v2809, 0.0051020407
  %v3541 = vmul.f32 %v2813, 0.0051020407
  %v3542 = vmul.f32 %v2817, 0.0051020407
  %v3543 = vmul.f32 %v2821, 0.0051020407
  %v3544 = vmul.f32 %v2825, 0.0051020407
  %v3545 = vmul.f32 %v2829, 0.0051020407
  %v3546 = vmul.f32 %v2833, 0.0051020407
  %v3547 = vmul.f32 %v2837, 0.0051020407
  %v3548 = vmul.f32 %v2841, 0.0051020407
  %v3549 = vmul.f32 %v2845, 0.0051020407
  %v3550 = vmul.f32 %v2849, 0.0051020407
  %v3551 = vmul.f32 %v2853, 0.0051020407
  %v3552 = vmul.f32 %v2857, 0.0051020407
  %v3553 = vmul.f32 %v2861, 0.0051020407
  %v3554 = vmul.f32 %v2865, 0.0051020407
  %v3555 = vmul.f32 %v2869, 0.0051020407
  %v3556 = vmul.f32 %v2873, 0.0051020407
  %v3557 = vmul.f32 %v2877, 0.0051020407
  %v3558 = vmul.f32 %v2881, 0.0051020407
  %v3559 = vmul.f32 %v2885, 0.0051020407
  %v3560 = vmul.f32 %v2889, 0.0051020407
  %v3561 = vmul.f32 %v2893, 0.0051020407
  %v3562 = vmul.f32 %v2897, 0.0051020407
  %v3563 = vmul.f32 %v2901, 0.0051020407
  %v3564 = vmul.f32 %v2905, 0.0051020407
  %v3565 = vmul.f32 %v2909, 0.0051020407
  %v3566 = vmul.f32 %v2913, 0.0051020407
  %v3567 = vmul.f32 %v2917, 0.0051020407
  %v3568 = vmul.f32 %v2921, 0.0051020407
  %v3569 = vmul.f32 %v2925, 0.0051020407
  %v3570 = vmul.f32 %v2929, 0.0051020407
  %v3571 = vmul.f32 %v2933, 0.0051020407
  %v3572 = vmul.f32 %v2937, 0.0051020407
  %v3573 = vmul.f32 %v2941, 0.0051020407
  %v3574 = vmul.f32 %v2945, 0.0051020407
  %v3575 = vmul.f32 %v2949, 0.0051020407
  %v3576 = vmul.f32 %v2953, 0.0051020407
  %v3577 = vmul.f32 %v2957, 0.0051020407
  %v3578 = vmul.f32 %v2961, 0.0051020407
  %v3579 = vmul.f32 %v2965, 0.0051020407
  %v3580 = vmul.f32 %v2969, 0.0051020407
  %v3581 = vmul.f32 %v2973, 0.0051020407
  %v3582 = vmul.f32 %v2977, 0.0051020407
  %v3583 = vmul.f32 %v2981, 0.0051020407
  %v3584 = vmul.f32 %v2985, 0.0051020407
  %v3585 = vmul.f32 %v2989, 0.0051020407
  %v3586 = vmul.f32 %v2993, 0.0051020407
  %v3587 = vmul.f32 %v2997, 0.0051020407
  %v3588 = vmul.f32 %v3001, 0.0051020407
  %v3589 = vmul.f32 %v3005, 0.0051020407
  %v3590 = vmul.f32 %v3009, 0.0051020407
  %v3591 = vmul.f32 %v3013, 0.0051020407
  %v3592 = vmul.f32 %v3017, 0.0051020407
  %v3593 = vmul.f32 %v3021, 0.0051020407
  %v3594 = vmul.f32 %v3025, 0.0051020407
  %v3595 = vmul.f32 %v3029, 0.0051020407
  %v3596 = vmul.f32 %v3033, 0.0051020407
  %v3597 = vmul.f32 %v3037, 0.0051020407
  %v3598 = vmul.f32 %v3041, 0.0051020407
  %v3599 = vmul.f32 %v3045, 0.0051020407
  %v3600 = vmul.f32 %v3049, 0.0051020407
  %v3601 = vmul.f32 %v3053, 0.0051020407
  %v3602 = vmul.f32 %v3057, 0.0051020407
  %v3603 = vmul.f32 %v3061, 0.0051020407
  %v3604 = vmul.f32 %v3065, 0.0051020407
  %v3605 = vmul.f32 %v3069, 0.0051020407
  %v3606 = vmul.f32 %v3073, 0.0051020407
  %v3607 = vmul.f32 %v3077, 0.0051020407
  %v3608 = vmul.f32 %v3081, 0.0051020407
  %v3609 = vmul.f32 %v3085, 0.0051020407
  %v3610 = vmul.f32 %v3089, 0.0051020407
  %v3611 = vmul.f32 %v3093, 0.0051020407
  %v3612 = vmul.f32 %v3097, 0.0051020407
  %v3613 = vmul.f32 %v3101, 0.0051020407
  %v3614 = vpack.c.bf16 %v3103, %v3102
  %v3615 = vpack.c.bf16 %v3105, %v3104
  %v3616 = vpack.c.bf16 %v3107, %v3106
  %v3617 = vpack.c.bf16 %v3109, %v3108
  %v3618 = vpack.c.bf16 %v3111, %v3110
  %v3619 = vpack.c.bf16 %v3113, %v3112
  %v3620 = vpack.c.bf16 %v3115, %v3114
  %v3621 = vpack.c.bf16 %v3117, %v3116
  %v3622 = vpack.c.bf16 %v3119, %v3118
  %v3623 = vpack.c.bf16 %v3121, %v3120
  %v3624 = vpack.c.bf16 %v3123, %v3122
  %v3625 = vpack.c.bf16 %v3125, %v3124
  %v3626 = vpack.c.bf16 %v3127, %v3126
  %v3627 = vpack.c.bf16 %v3129, %v3128
  %v3628 = vpack.c.bf16 %v3131, %v3130
  %v3629 = vpack.c.bf16 %v3133, %v3132
  %v3630 = vpack.c.bf16 %v3135, %v3134
  %v3631 = vpack.c.bf16 %v3137, %v3136
  %v3632 = vpack.c.bf16 %v3139, %v3138
  %v3633 = vpack.c.bf16 %v3141, %v3140
  %v3634 = vpack.c.bf16 %v3143, %v3142
  %v3635 = vpack.c.bf16 %v3145, %v3144
  %v3636 = vpack.c.bf16 %v3147, %v3146
  %v3637 = vpack.c.bf16 %v3149, %v3148
  %v3638 = vpack.c.bf16 %v3151, %v3150
  %v3639 = vpack.c.bf16 %v3153, %v3152
  %v3640 = vpack.c.bf16 %v3155, %v3154
  %v3641 = vpack.c.bf16 %v3157, %v3156
  %v3642 = vpack.c.bf16 %v3159, %v3158
  %v3643 = vpack.c.bf16 %v3161, %v3160
  %v3644 = vpack.c.bf16 %v3163, %v3162
  %v3645 = vpack.c.bf16 %v3165, %v3164
  %v3646 = vpack.c.bf16 %v3167, %v3166
  %v3647 = vpack.c.bf16 %v3169, %v3168
  %v3648 = vpack.c.bf16 %v3171, %v3170
  %v3649 = vpack.c.bf16 %v3173, %v3172
  %v3650 = vpack.c.bf16 %v3175, %v3174
  %v3651 = vpack.c.bf16 %v3177, %v3176
  %v3652 = vpack.c.bf16 %v3179, %v3178
  %v3653 = vpack.c.bf16 %v3181, %v3180
  %v3654 = vpack.c.bf16 %v3183, %v3182
  %v3655 = vpack.c.bf16 %v3185, %v3184
  %v3656 = vpack.c.bf16 %v3187, %v3186
  %v3657 = vpack.c.bf16 %v3189, %v3188
  %v3658 = vpack.c.bf16 %v3191, %v3190
  %v3659 = vpack.c.bf16 %v3193, %v3192
  %v3660 = vpack.c.bf16 %v3195, %v3194
  %v3661 = vpack.c.bf16 %v3197, %v3196
  %v3662 = vpack.c.bf16 %v3199, %v3198
  %v3663 = vpack.c.bf16 %v3201, %v3200
  %v3664 = vpack.c.bf16 %v3203, %v3202
  %v3665 = vpack.c.bf16 %v3205, %v3204
  %v3666 = vpack.c.bf16 %v3207, %v3206
  %v3667 = vpack.c.bf16 %v3209, %v3208
  %v3668 = vpack.c.bf16 %v3211, %v3210
  %v3669 = vpack.c.bf16 %v3213, %v3212
  %v3670 = vpack.c.bf16 %v3215, %v3214
  %v3671 = vpack.c.bf16 %v3217, %v3216
  %v3672 = vpack.c.bf16 %v3219, %v3218
  %v3673 = vpack.c.bf16 %v3221, %v3220
  %v3674 = vpack.c.bf16 %v3223, %v3222
  %v3675 = vpack.c.bf16 %v3225, %v3224
  %v3676 = vpack.c.bf16 %v3227, %v3226
  %v3677 = vpack.c.bf16 %v3229, %v3228
  %v3678 = vpack.c.bf16 %v3231, %v3230
  %v3679 = vpack.c.bf16 %v3233, %v3232
  %v3680 = vpack.c.bf16 %v3235, %v3234
  %v3681 = vpack.c.bf16 %v3237, %v3236
  %v3682 = vpack.c.bf16 %v3239, %v3238
  %v3683 = vpack.c.bf16 %v3241, %v3240
  %v3684 = vpack.c.bf16 %v3243, %v3242
  %v3685 = vpack.c.bf16 %v3245, %v3244
  %v3686 = vpack.c.bf16 %v3247, %v3246
  %v3687 = vpack.c.bf16 %v3249, %v3248
  %v3688 = vpack.c.bf16 %v3251, %v3250
  %v3689 = vpack.c.bf16 %v3253, %v3252
  %v3690 = vpack.c.bf16 %v3255, %v3254
  %v3691 = vpack.c.bf16 %v3257, %v3256
  %v3692 = vpack.c.bf16 %v3259, %v3258
  %v3693 = vpack.c.bf16 %v3261, %v3260
  %v3694 = vpack.c.bf16 %v3263, %v3262
  %v3695 = vpack.c.bf16 %v3265, %v3264
  %v3696 = vpack.c.bf16 %v3267, %v3266
  %v3697 = vpack.c.bf16 %v3269, %v3268
  %v3698 = vpack.c.bf16 %v3271, %v3270
  %v3699 = vpack.c.bf16 %v3273, %v3272
  %v3700 = vpack.c.bf16 %v3275, %v3274
  %v3701 = vpack.c.bf16 %v3277, %v3276
  %v3702 = vpack.c.bf16 %v3279, %v3278
  %v3703 = vpack.c.bf16 %v3281, %v3280
  %v3704 = vpack.c.bf16 %v3283, %v3282
  %v3705 = vpack.c.bf16 %v3285, %v3284
  %v3706 = vpack.c.bf16 %v3287, %v3286
  %v3707 = vpack.c.bf16 %v3289, %v3288
  %v3708 = vpack.c.bf16 %v3291, %v3290
  %v3709 = vpack.c.bf16 %v3293, %v3292
  %v3710 = vpack.c.bf16 %v3295, %v3294
  %v3711 = vpack.c.bf16 %v3297, %v3296
  %v3712 = vpack.c.bf16 %v3299, %v3298
  %v3713 = vpack.c.bf16 %v3301, %v3300
  %v3714 = vpack.c.bf16 %v3303, %v3302
  %v3715 = vpack.c.bf16 %v3305, %v3304
  %v3716 = vpack.c.bf16 %v3307, %v3306
  %v3717 = vpack.c.bf16 %v3309, %v3308
  %v3718 = vpack.c.bf16 %v3311, %v3310
  %v3719 = vpack.c.bf16 %v3313, %v3312
  %v3720 = vpack.c.bf16 %v3315, %v3314
  %v3721 = vpack.c.bf16 %v3317, %v3316
  %v3722 = vpack.c.bf16 %v3319, %v3318
  %v3723 = vpack.c.bf16 %v3321, %v3320
  %v3724 = vpack.c.bf16 %v3323, %v3322
  %v3725 = vpack.c.bf16 %v3325, %v3324
  %v3726 = vpack.c.bf16 %v3327, %v3326
  %v3727 = vpack.c.bf16 %v3329, %v3328
  %v3728 = vpack.c.bf16 %v3331, %v3330
  %v3729 = vpack.c.bf16 %v3333, %v3332
  %v3730 = vpack.c.bf16 %v3335, %v3334
  %v3731 = vpack.c.bf16 %v3337, %v3336
  %v3732 = vpack.c.bf16 %v3339, %v3338
  %v3733 = vpack.c.bf16 %v3341, %v3340
  %v3734 = vpack.c.bf16 %v3343, %v3342
  %v3735 = vpack.c.bf16 %v3345, %v3344
  %v3736 = vpack.c.bf16 %v3347, %v3346
  %v3737 = vpack.c.bf16 %v3349, %v3348
  %v3738 = vpack.c.bf16 %v3351, %v3350
  %v3739 = vpack.c.bf16 %v3353, %v3352
  %v3740 = vpack.c.bf16 %v3355, %v3354
  %v3741 = vpack.c.bf16 %v3357, %v3356
  %v3742 = vpack.c.bf16 %v3359, %v3358
  %v3743 = vpack.c.bf16 %v3361, %v3360
  %v3744 = vpack.c.bf16 %v3363, %v3362
  %v3745 = vpack.c.bf16 %v3365, %v3364
  %v3746 = vpack.c.bf16 %v3367, %v3366
  %v3747 = vpack.c.bf16 %v3369, %v3368
  %v3748 = vpack.c.bf16 %v3371, %v3370
  %v3749 = vpack.c.bf16 %v3373, %v3372
  %v3750 = vpack.c.bf16 %v3375, %v3374
  %v3751 = vpack.c.bf16 %v3377, %v3376
  %v3752 = vpack.c.bf16 %v3379, %v3378
  %v3753 = vpack.c.bf16 %v3381, %v3380
  %v3754 = vpack.c.bf16 %v3383, %v3382
  %v3755 = vpack.c.bf16 %v3385, %v3384
  %v3756 = vpack.c.bf16 %v3387, %v3386
  %v3757 = vpack.c.bf16 %v3389, %v3388
  %v3758 = vpack.c.bf16 %v3391, %v3390
  %v3759 = vpack.c.bf16 %v3393, %v3392
  %v3760 = vpack.c.bf16 %v3395, %v3394
  %v3761 = vpack.c.bf16 %v3397, %v3396
  %v3762 = vpack.c.bf16 %v3399, %v3398
  %v3763 = vpack.c.bf16 %v3401, %v3400
  %v3764 = vpack.c.bf16 %v3403, %v3402
  %v3765 = vpack.c.bf16 %v3405, %v3404
  %v3766 = vpack.c.bf16 %v3407, %v3406
  %v3767 = vpack.c.bf16 %v3409, %v3408
  %v3768 = vpack.c.bf16 %v3411, %v3410
  %v3769 = vpack.c.bf16 %v3413, %v3412
  %v3770 = vpack.c.bf16 %v3415, %v3414
  %v3771 = vpack.c.bf16 %v3417, %v3416
  %v3772 = vpack.c.bf16 %v3419, %v3418
  %v3773 = vpack.c.bf16 %v3421, %v3420
  %v3774 = vpack.c.bf16 %v3423, %v3422
  %v3775 = vpack.c.bf16 %v3425, %v3424
  %v3776 = vpack.c.bf16 %v3427, %v3426
  %v3777 = vpack.c.bf16 %v3429, %v3428
  %v3778 = vpack.c.bf16 %v3431, %v3430
  %v3779 = vpack.c.bf16 %v3433, %v3432
  %v3780 = vpack.c.bf16 %v3435, %v3434
  %v3781 = vpack.c.bf16 %v3437, %v3436
  %v3782 = vpack.c.bf16 %v3439, %v3438
  %v3783 = vpack.c.bf16 %v3441, %v3440
  %v3784 = vpack.c.bf16 %v3443, %v3442
  %v3785 = vpack.c.bf16 %v3445, %v3444
  %v3786 = vpack.c.bf16 %v3447, %v3446
  %v3787 = vpack.c.bf16 %v3449, %v3448
  %v3788 = vpack.c.bf16 %v3451, %v3450
  %v3789 = vpack.c.bf16 %v3453, %v3452
  %v3790 = vpack.c.bf16 %v3455, %v3454
  %v3791 = vpack.c.bf16 %v3457, %v3456
  %v3792 = vpack.c.bf16 %v3459, %v3458
  %v3793 = vpack.c.bf16 %v3461, %v3460
  %v3794 = vpack.c.bf16 %v3463, %v3462
  %v3795 = vpack.c.bf16 %v3465, %v3464
  %v3796 = vpack.c.bf16 %v3467, %v3466
  %v3797 = vpack.c.bf16 %v3469, %v3468
  %v3798 = vpack.c.bf16 %v3471, %v3470
  %v3799 = vpack.c.bf16 %v3473, %v3472
  %v3800 = vpack.c.bf16 %v3475, %v3474
  %v3801 = vpack.c.bf16 %v3477, %v3476
  %v3802 = vpack.c.bf16 %v3479, %v3478
  %v3803 = vpack.c.bf16 %v3481, %v3480
  %v3804 = vpack.c.bf16 %v3483, %v3482
  %v3805 = vpack.c.bf16 %v3485, %v3484
  %v3806 = vpack.c.bf16 %v3487, %v3486
  %v3807 = vpack.c.bf16 %v3489, %v3488
  %v3808 = vpack.c.bf16 %v3491, %v3490
  %v3809 = vpack.c.bf16 %v3493, %v3492
  %v3810 = vpack.c.bf16 %v3495, %v3494
  %v3811 = vpack.c.bf16 %v3497, %v3496
  %v3812 = vpack.c.bf16 %v3499, %v3498
  %v3813 = vpack.c.bf16 %v3501, %v3500
  %v3814 = vpack.c.bf16 %v3503, %v3502
  %v3815 = vpack.c.bf16 %v3505, %v3504
  %v3816 = vpack.c.bf16 %v3507, %v3506
  %v3817 = vpack.c.bf16 %v3509, %v3508
  %v3818 = vpack.c.bf16 %v3511, %v3510
  %v3819 = vpack.c.bf16 %v3513, %v3512
  %v3820 = vpack.c.bf16 %v3515, %v3514
  %v3821 = vpack.c.bf16 %v3517, %v3516
  %v3822 = vpack.c.bf16 %v3519, %v3518
  %v3823 = vpack.c.bf16 %v3521, %v3520
  %v3824 = vpack.c.bf16 %v3523, %v3522
  %v3825 = vpack.c.bf16 %v3525, %v3524
  %v3826 = vpack.c.bf16 %v3527, %v3526
  %v3827 = vpack.c.bf16 %v3529, %v3528
  %v3828 = vpack.c.bf16 %v3531, %v3530
  %v3829 = vpack.c.bf16 %v3533, %v3532
  %v3830 = vpack.c.bf16 %v3535, %v3534
  %v3831 = vpack.c.bf16 %v3537, %v3536
  %v3832 = vpack.c.bf16 %v3539, %v3538
  %v3833 = vpack.c.bf16 %v3541, %v3540
  %v3834 = vpack.c.bf16 %v3543, %v3542
  %v3835 = vpack.c.bf16 %v3545, %v3544
  %v3836 = vpack.c.bf16 %v3547, %v3546
  %v3837 = vpack.c.bf16 %v3549, %v3548
  %v3838 = vpack.c.bf16 %v3551, %v3550
  %v3839 = vpack.c.bf16 %v3553, %v3552
  %v3840 = vpack.c.bf16 %v3555, %v3554
  %v3841 = vpack.c.bf16 %v3557, %v3556
  %v3842 = vpack.c.bf16 %v3559, %v3558
  %v3843 = vpack.c.bf16 %v3561, %v3560
  %v3844 = vpack.c.bf16 %v3563, %v3562
  %v3845 = vpack.c.bf16 %v3565, %v3564
  %v3846 = vpack.c.bf16 %v3567, %v3566
  %v3847 = vpack.c.bf16 %v3569, %v3568
  %v3848 = vpack.c.bf16 %v3571, %v3570
  %v3849 = vpack.c.bf16 %v3573, %v3572
  %v3850 = vpack.c.bf16 %v3575, %v3574
  %v3851 = vpack.c.bf16 %v3577, %v3576
  %v3852 = vpack.c.bf16 %v3579, %v3578
  %v3853 = vpack.c.bf16 %v3581, %v3580
  %v3854 = vpack.c.bf16 %v3583, %v3582
  %v3855 = vpack.c.bf16 %v3585, %v3584
  %v3856 = vpack.c.bf16 %v3587, %v3586
  %v3857 = vpack.c.bf16 %v3589, %v3588
  %v3858 = vpack.c.bf16 %v3591, %v3590
  %v3859 = vpack.c.bf16 %v3593, %v3592
  %v3860 = vpack.c.bf16 %v3595, %v3594
  %v3861 = vpack.c.bf16 %v3597, %v3596
  %v3862 = vpack.c.bf16 %v3599, %v3598
  %v3863 = vpack.c.bf16 %v3601, %v3600
  %v3864 = vpack.c.bf16 %v3603, %v3602
  %v3865 = vpack.c.bf16 %v3605, %v3604
  %v3866 = vpack.c.bf16 %v3607, %v3606
  %v3867 = vpack.c.bf16 %v3609, %v3608
  %v3868 = vpack.c.bf16 %v3611, %v3610
  %v3869 = vpack.c.bf16 %v3613, %v3612
  %v3870 = vld [vmem:[%s1] sm:$0xff]
  %v3871 = vld [vmem:[%s1 + $0x8] sm:$0xff]
  %v3872 = vld [vmem:[%s1 + $0x10] sm:$0xff]
  %v3873 = vld [vmem:[%s1 + $0x18] sm:$0xff]
  %v3874 = vld [vmem:[%s1 + $0x20] sm:$0xff]
  %v3875 = vld [vmem:[%s1 + $0x28] sm:$0xff]
  %v3876 = vld [vmem:[%s1 + $0x30] sm:$0xff]
  %v3877 = vld [vmem:[%s1 + $0x38] sm:$0xff]
  %v3878 = vld [vmem:[%s1 + $0x40] sm:$0xff]
  %v3879 = vld [vmem:[%s1 + $0x48] sm:$0xff]
  %v3880 = vld [vmem:[%s1 + $0x50] sm:$0xff]
  %v3881 = vld [vmem:[%s1 + $0x58] sm:$0xff]
  %v3882 = vld [vmem:[%s1 + $0x60] sm:$0xff]
  %v3883 = vld [vmem:[%s1 + $0x68] sm:$0xff]
  %v3884 = vld [vmem:[%s1 + $0x70] sm:$0xff]
  %v3885 = vld [vmem:[%s1 + $0x78] sm:$0xff]
  %v3886 = vld [vmem:[%s1 + $0x80] sm:$0xff]
  %v3887 = vld [vmem:[%s1 + $0x88] sm:$0xff]
  %v3888 = vld [vmem:[%s1 + $0x90] sm:$0xff]
  %v3889 = vld [vmem:[%s1 + $0x98] sm:$0xff]
  %v3890 = vld [vmem:[%s1 + $0xa0] sm:$0xff]
  %v3891 = vld [vmem:[%s1 + $0xa8] sm:$0xff]
  %v3892 = vld [vmem:[%s1 + $0xb0] sm:$0xff]
  %v3893 = vld [vmem:[%s1 + $0xb8] sm:$0xff]
  %v3894 = vld [vmem:[%s1 + $0xc0] sm:$0xff]
  %v3895 = vld [vmem:[%s1 + $0xc8] sm:$0xff]
  %v3896 = vld [vmem:[%s1 + $0xd0] sm:$0xff]
  %v3897 = vld [vmem:[%s1 + $0xd8] sm:$0xff]
  %v3898 = vld [vmem:[%s1 + $0xe0] sm:$0xff]
  %v3899 = vld [vmem:[%s1 + $0xe8] sm:$0xff]
  %v3900 = vld [vmem:[%s1 + $0xf0] sm:$0xff]
  %v3901 = vld [vmem:[%s1 + $0xf8] sm:$0xff]
  %v3902 = vld [vmem:[%s1 + $0x100] sm:$0xff]
  %v3903 = vld [vmem:[%s1 + $0x108] sm:$0xff]
  %v3904 = vld [vmem:[%s1 + $0x110] sm:$0xff]
  %v3905 = vld [vmem:[%s1 + $0x118] sm:$0xff]
  %v3906 = vld [vmem:[%s1 + $0x120] sm:$0xff]
  %v3907 = vld [vmem:[%s1 + $0x128] sm:$0xff]
  %v3908 = vld [vmem:[%s1 + $0x130] sm:$0xff]
  %v3909 = vld [vmem:[%s1 + $0x138] sm:$0xff]
  %v3910 = vld [vmem:[%s1 + $0x140] sm:$0xff]
  %v3911 = vld [vmem:[%s1 + $0x148] sm:$0xff]
  %v3912 = vld [vmem:[%s1 + $0x150] sm:$0xff]
  %v3913 = vld [vmem:[%s1 + $0x158] sm:$0xff]
  %v3914 = vld [vmem:[%s1 + $0x160] sm:$0xff]
  %v3915 = vld [vmem:[%s1 + $0x168] sm:$0xff]
  %v3916 = vld [vmem:[%s1 + $0x170] sm:$0xff]
  %v3917 = vld [vmem:[%s1 + $0x178] sm:$0xff]
  %v3918 = vld [vmem:[%s1 + $0x180] sm:$0xff]
  %v3919 = vld [vmem:[%s1 + $0x188] sm:$0xff]
  %v3920 = vld [vmem:[%s1 + $0x190] sm:$0xff]
  %v3921 = vld [vmem:[%s1 + $0x198] sm:$0xff]
  %v3922 = vld [vmem:[%s1 + $0x1a0] sm:$0xff]
  %v3923 = vld [vmem:[%s1 + $0x1a8] sm:$0xff]
  %v3924 = vld [vmem:[%s1 + $0x1b0] sm:$0xff]
  %v3925 = vld [vmem:[%s1 + $0x1b8] sm:$0xff]
  %v3926 = vld [vmem:[%s1 + $0x1c0] sm:$0xff]
  %v3927 = vld [vmem:[%s1 + $0x1c8] sm:$0xff]
  %v3928 = vld [vmem:[%s1 + $0x1d0] sm:$0xff]
  %v3929 = vld [vmem:[%s1 + $0x1d8] sm:$0xff]
  %v3930 = vld [vmem:[%s1 + $0x1e0] sm:$0xff]
  %v3931 = vld [vmem:[%s1 + $0x1e8] sm:$0xff]
  %v3932 = vld [vmem:[%s1 + $0x1f0] sm:$0xff]
  %v3933 = vld [vmem:[%s1 + $0x1f8] sm:$0xff]
  %v3934 = vld [vmem:[%s1 + $0x200] sm:$0xff]
  %v3935 = vld [vmem:[%s1 + $0x208] sm:$0xff]
  %v3936 = vld [vmem:[%s1 + $0x210] sm:$0xff]
  %v3937 = vld [vmem:[%s1 + $0x218] sm:$0xff]
  %v3938 = vld [vmem:[%s1 + $0x220] sm:$0xff]
  %v3939 = vld [vmem:[%s1 + $0x228] sm:$0xff]
  %v3940 = vld [vmem:[%s1 + $0x230] sm:$0xff]
  %v3941 = vld [vmem:[%s1 + $0x238] sm:$0xff]
  %v3942 = vld [vmem:[%s1 + $0x240] sm:$0xff]
  %v3943 = vld [vmem:[%s1 + $0x248] sm:$0xff]
  %v3944 = vld [vmem:[%s1 + $0x250] sm:$0xff]
  %v3945 = vld [vmem:[%s1 + $0x258] sm:$0xff]
  %v3946 = vld [vmem:[%s1 + $0x260] sm:$0xff]
  %v3947 = vld [vmem:[%s1 + $0x268] sm:$0xff]
  %v3948 = vld [vmem:[%s1 + $0x270] sm:$0xff]
  %v3949 = vld [vmem:[%s1 + $0x278] sm:$0xff]
  %v3950 = vld [vmem:[%s1 + $0x280] sm:$0xff]
  %v3951 = vld [vmem:[%s1 + $0x288] sm:$0xff]
  %v3952 = vld [vmem:[%s1 + $0x290] sm:$0xff]
  %v3953 = vld [vmem:[%s1 + $0x298] sm:$0xff]
  %v3954 = vld [vmem:[%s1 + $0x2a0] sm:$0xff]
  %v3955 = vld [vmem:[%s1 + $0x2a8] sm:$0xff]
  %v3956 = vld [vmem:[%s1 + $0x2b0] sm:$0xff]
  %v3957 = vld [vmem:[%s1 + $0x2b8] sm:$0xff]
  %v3958 = vld [vmem:[%s1 + $0x2c0] sm:$0xff]
  %v3959 = vld [vmem:[%s1 + $0x2c8] sm:$0xff]
  %v3960 = vld [vmem:[%s1 + $0x2d0] sm:$0xff]
  %v3961 = vld [vmem:[%s1 + $0x2d8] sm:$0xff]
  %v3962 = vld [vmem:[%s1 + $0x2e0] sm:$0xff]
  %v3963 = vld [vmem:[%s1 + $0x2e8] sm:$0xff]
  %v3964 = vld [vmem:[%s1 + $0x2f0] sm:$0xff]
  %v3965 = vld [vmem:[%s1 + $0x2f8] sm:$0xff]
  %v3966 = vld [vmem:[%s1 + $0x300] sm:$0xff]
  %v3967 = vld [vmem:[%s1 + $0x308] sm:$0xff]
  %v3968 = vld [vmem:[%s1 + $0x310] sm:$0xff]
  %v3969 = vld [vmem:[%s1 + $0x318] sm:$0xff]
  %v3970 = vld [vmem:[%s1 + $0x320] sm:$0xff]
  %v3971 = vld [vmem:[%s1 + $0x328] sm:$0xff]
  %v3972 = vld [vmem:[%s1 + $0x330] sm:$0xff]
  %v3973 = vld [vmem:[%s1 + $0x338] sm:$0xff]
  %v3974 = vld [vmem:[%s1 + $0x340] sm:$0xff]
  %v3975 = vld [vmem:[%s1 + $0x348] sm:$0xff]
  %v3976 = vld [vmem:[%s1 + $0x350] sm:$0xff]
  %v3977 = vld [vmem:[%s1 + $0x358] sm:$0xff]
  %v3978 = vld [vmem:[%s1 + $0x360] sm:$0xff]
  %v3979 = vld [vmem:[%s1 + $0x368] sm:$0xff]
  %v3980 = vld [vmem:[%s1 + $0x370] sm:$0xff]
  %v3981 = vld [vmem:[%s1 + $0x378] sm:$0xff]
  %v3982 = vld [vmem:[%s1 + $0x380] sm:$0xff]
  %v3983 = vld [vmem:[%s1 + $0x388] sm:$0xff]
  %v3984 = vld [vmem:[%s1 + $0x390] sm:$0xff]
  %v3985 = vld [vmem:[%s1 + $0x398] sm:$0xff]
  %v3986 = vld [vmem:[%s1 + $0x3a0] sm:$0xff]
  %v3987 = vld [vmem:[%s1 + $0x3a8] sm:$0xff]
  %v3988 = vld [vmem:[%s1 + $0x3b0] sm:$0xff]
  %v3989 = vld [vmem:[%s1 + $0x3b8] sm:$0xff]
  %v3990 = vld [vmem:[%s1 + $0x3c0] sm:$0xff]
  %v3991 = vld [vmem:[%s1 + $0x3c8] sm:$0xff]
  %v3992 = vld [vmem:[%s1 + $0x3d0] sm:$0xff]
  %v3993 = vld [vmem:[%s1 + $0x3d8] sm:$0xff]
  %v3994 = vld [vmem:[%s1 + $0x3e0] sm:$0xff]
  %v3995 = vld [vmem:[%s1 + $0x3e8] sm:$0xff]
  %v3996 = vld [vmem:[%s1 + $0x3f0] sm:$0xff]
  %v3997 = vld [vmem:[%s1 + $0x3f8] sm:$0xff]
  %v3998 = vld [vmem:[%s1 + $0x400] sm:$0xff]
  %v3999 = vld [vmem:[%s1 + $0x408] sm:$0xff]
  %v4000 = vld [vmem:[%s1 + $0x410] sm:$0xff]
  %v4001 = vld [vmem:[%s1 + $0x418] sm:$0xff]
  %v4002 = vld [vmem:[%s1 + $0x420] sm:$0xff]
  %v4003 = vld [vmem:[%s1 + $0x428] sm:$0xff]
  %v4004 = vld [vmem:[%s1 + $0x430] sm:$0xff]
  %v4005 = vld [vmem:[%s1 + $0x438] sm:$0xff]
  %v4006 = vld [vmem:[%s1 + $0x440] sm:$0xff]
  %v4007 = vld [vmem:[%s1 + $0x448] sm:$0xff]
  %v4008 = vld [vmem:[%s1 + $0x450] sm:$0xff]
  %v4009 = vld [vmem:[%s1 + $0x458] sm:$0xff]
  %v4010 = vld [vmem:[%s1 + $0x460] sm:$0xff]
  %v4011 = vld [vmem:[%s1 + $0x468] sm:$0xff]
  %v4012 = vld [vmem:[%s1 + $0x470] sm:$0xff]
  %v4013 = vld [vmem:[%s1 + $0x478] sm:$0xff]
  %v4014 = vld [vmem:[%s1 + $0x480] sm:$0xff]
  %v4015 = vld [vmem:[%s1 + $0x488] sm:$0xff]
  %v4016 = vld [vmem:[%s1 + $0x490] sm:$0xff]
  %v4017 = vld [vmem:[%s1 + $0x498] sm:$0xff]
  %v4018 = vld [vmem:[%s1 + $0x4a0] sm:$0xff]
  %v4019 = vld [vmem:[%s1 + $0x4a8] sm:$0xff]
  %v4020 = vld [vmem:[%s1 + $0x4b0] sm:$0xff]
  %v4021 = vld [vmem:[%s1 + $0x4b8] sm:$0xff]
  %v4022 = vld [vmem:[%s1 + $0x4c0] sm:$0xff]
  %v4023 = vld [vmem:[%s1 + $0x4c8] sm:$0xff]
  %v4024 = vld [vmem:[%s1 + $0x4d0] sm:$0xff]
  %v4025 = vld [vmem:[%s1 + $0x4d8] sm:$0xff]
  %v4026 = vld [vmem:[%s1 + $0x4e0] sm:$0xff]
  %v4027 = vld [vmem:[%s1 + $0x4e8] sm:$0xff]
  %v4028 = vld [vmem:[%s1 + $0x4f0] sm:$0xff]
  %v4029 = vld [vmem:[%s1 + $0x4f8] sm:$0xff]
  %v4030 = vld [vmem:[%s1 + $0x500] sm:$0xff]
  %v4031 = vld [vmem:[%s1 + $0x508] sm:$0xff]
  %v4032 = vld [vmem:[%s1 + $0x510] sm:$0xff]
  %v4033 = vld [vmem:[%s1 + $0x518] sm:$0xff]
  %v4034 = vld [vmem:[%s1 + $0x520] sm:$0xff]
  %v4035 = vld [vmem:[%s1 + $0x528] sm:$0xff]
  %v4036 = vld [vmem:[%s1 + $0x530] sm:$0xff]
  %v4037 = vld [vmem:[%s1 + $0x538] sm:$0xff]
  %v4038 = vld [vmem:[%s1 + $0x540] sm:$0xff]
  %v4039 = vld [vmem:[%s1 + $0x548] sm:$0xff]
  %v4040 = vld [vmem:[%s1 + $0x550] sm:$0xff]
  %v4041 = vld [vmem:[%s1 + $0x558] sm:$0xff]
  %v4042 = vld [vmem:[%s1 + $0x560] sm:$0xff]
  %v4043 = vld [vmem:[%s1 + $0x568] sm:$0xff]
  %v4044 = vld [vmem:[%s1 + $0x570] sm:$0xff]
  %v4045 = vld [vmem:[%s1 + $0x578] sm:$0xff]
  %v4046 = vld [vmem:[%s1 + $0x580] sm:$0xff]
  %v4047 = vld [vmem:[%s1 + $0x588] sm:$0xff]
  %v4048 = vld [vmem:[%s1 + $0x590] sm:$0xff]
  %v4049 = vld [vmem:[%s1 + $0x598] sm:$0xff]
  %v4050 = vld [vmem:[%s1 + $0x5a0] sm:$0xff]
  %v4051 = vld [vmem:[%s1 + $0x5a8] sm:$0xff]
  %v4052 = vld [vmem:[%s1 + $0x5b0] sm:$0xff]
  %v4053 = vld [vmem:[%s1 + $0x5b8] sm:$0xff]
  %v4054 = vld [vmem:[%s1 + $0x5c0] sm:$0xff]
  %v4055 = vld [vmem:[%s1 + $0x5c8] sm:$0xff]
  %v4056 = vld [vmem:[%s1 + $0x5d0] sm:$0xff]
  %v4057 = vld [vmem:[%s1 + $0x5d8] sm:$0xff]
  %v4058 = vld [vmem:[%s1 + $0x5e0] sm:$0xff]
  %v4059 = vld [vmem:[%s1 + $0x5e8] sm:$0xff]
  %v4060 = vld [vmem:[%s1 + $0x5f0] sm:$0xff]
  %v4061 = vld [vmem:[%s1 + $0x5f8] sm:$0xff]
  %v4062 = vld [vmem:[%s1 + $0x600] sm:$0xff]
  %v4063 = vld [vmem:[%s1 + $0x608] sm:$0xff]
  %v4064 = vld [vmem:[%s1 + $0x610] sm:$0xff]
  %v4065 = vld [vmem:[%s1 + $0x618] sm:$0xff]
  %v4066 = vld [vmem:[%s1 + $0x620] sm:$0xff]
  %v4067 = vld [vmem:[%s1 + $0x628] sm:$0xff]
  %v4068 = vld [vmem:[%s1 + $0x630] sm:$0xff]
  %v4069 = vld [vmem:[%s1 + $0x638] sm:$0xff]
  %v4070 = vld [vmem:[%s1 + $0x640] sm:$0xff]
  %v4071 = vld [vmem:[%s1 + $0x648] sm:$0xff]
  %v4072 = vld [vmem:[%s1 + $0x650] sm:$0xff]
  %v4073 = vld [vmem:[%s1 + $0x658] sm:$0xff]
  %v4074 = vld [vmem:[%s1 + $0x660] sm:$0xff]
  %v4075 = vld [vmem:[%s1 + $0x668] sm:$0xff]
  %v4076 = vld [vmem:[%s1 + $0x670] sm:$0xff]
  %v4077 = vld [vmem:[%s1 + $0x678] sm:$0xff]
  %v4078 = vld [vmem:[%s1 + $0x680] sm:$0xff]
  %v4079 = vld [vmem:[%s1 + $0x688] sm:$0xff]
  %v4080 = vld [vmem:[%s1 + $0x690] sm:$0xff]
  %v4081 = vld [vmem:[%s1 + $0x698] sm:$0xff]
  %v4082 = vld [vmem:[%s1 + $0x6a0] sm:$0xff]
  %v4083 = vld [vmem:[%s1 + $0x6a8] sm:$0xff]
  %v4084 = vld [vmem:[%s1 + $0x6b0] sm:$0xff]
  %v4085 = vld [vmem:[%s1 + $0x6b8] sm:$0xff]
  %v4086 = vld [vmem:[%s1 + $0x6c0] sm:$0xff]
  %v4087 = vld [vmem:[%s1 + $0x6c8] sm:$0xff]
  %v4088 = vld [vmem:[%s1 + $0x6d0] sm:$0xff]
  %v4089 = vld [vmem:[%s1 + $0x6d8] sm:$0xff]
  %v4090 = vld [vmem:[%s1 + $0x6e0] sm:$0xff]
  %v4091 = vld [vmem:[%s1 + $0x6e8] sm:$0xff]
  %v4092 = vld [vmem:[%s1 + $0x6f0] sm:$0xff]
  %v4093 = vld [vmem:[%s1 + $0x6f8] sm:$0xff]
  %v4094 = vld [vmem:[%s1 + $0x700] sm:$0xff]
  %v4095 = vld [vmem:[%s1 + $0x708] sm:$0xff]
  %v4096 = vld [vmem:[%s1 + $0x710] sm:$0xff]
  %v4097 = vld [vmem:[%s1 + $0x718] sm:$0xff]
  %v4098 = vld [vmem:[%s1 + $0x720] sm:$0xff]
  %v4099 = vld [vmem:[%s1 + $0x728] sm:$0xff]
  %v4100 = vld [vmem:[%s1 + $0x730] sm:$0xff]
  %v4101 = vld [vmem:[%s1 + $0x738] sm:$0xff]
  %v4102 = vld [vmem:[%s1 + $0x740] sm:$0xff]
  %v4103 = vld [vmem:[%s1 + $0x748] sm:$0xff]
  %v4104 = vld [vmem:[%s1 + $0x750] sm:$0xff]
  %v4105 = vld [vmem:[%s1 + $0x758] sm:$0xff]
  %v4106 = vld [vmem:[%s1 + $0x760] sm:$0xff]
  %v4107 = vld [vmem:[%s1 + $0x768] sm:$0xff]
  %v4108 = vld [vmem:[%s1 + $0x770] sm:$0xff]
  %v4109 = vld [vmem:[%s1 + $0x778] sm:$0xff]
  %v4110 = vld [vmem:[%s1 + $0x780] sm:$0xff]
  %v4111 = vld [vmem:[%s1 + $0x788] sm:$0xff]
  %v4112 = vld [vmem:[%s1 + $0x790] sm:$0xff]
  %v4113 = vld [vmem:[%s1 + $0x798] sm:$0xff]
  %v4114 = vld [vmem:[%s1 + $0x7a0] sm:$0xff]
  %v4115 = vld [vmem:[%s1 + $0x7a8] sm:$0xff]
  %v4116 = vld [vmem:[%s1 + $0x7b0] sm:$0xff]
  %v4117 = vld [vmem:[%s1 + $0x7b8] sm:$0xff]
  %v4118 = vld [vmem:[%s1 + $0x7c0] sm:$0xff]
  %v4119 = vld [vmem:[%s1 + $0x7c8] sm:$0xff]
  %v4120 = vld [vmem:[%s1 + $0x7d0] sm:$0xff]
  %v4121 = vld [vmem:[%s1 + $0x7d8] sm:$0xff]
  %v4122 = vld [vmem:[%s1 + $0x7e0] sm:$0xff]
  %v4123 = vld [vmem:[%s1 + $0x7e8] sm:$0xff]
  %v4124 = vld [vmem:[%s1 + $0x7f0] sm:$0xff]
  %v4125 = vld [vmem:[%s1 + $0x7f8] sm:$0xff]
  %v4126 = vld [vmem:[%s1 + $0x800] sm:$0xff]
  %v4127 = vld [vmem:[%s1 + $0x808] sm:$0xff]
  %v4128 = vld [vmem:[%s1 + $0x810] sm:$0xff]
  %v4129 = vld [vmem:[%s1 + $0x818] sm:$0xff]
  %v4130 = vld [vmem:[%s1 + $0x820] sm:$0xff]
  %v4131 = vld [vmem:[%s1 + $0x828] sm:$0xff]
  %v4132 = vld [vmem:[%s1 + $0x830] sm:$0xff]
  %v4133 = vld [vmem:[%s1 + $0x838] sm:$0xff]
  %v4134 = vld [vmem:[%s1 + $0x840] sm:$0xff]
  %v4135 = vld [vmem:[%s1 + $0x848] sm:$0xff]
  %v4136 = vld [vmem:[%s1 + $0x850] sm:$0xff]
  %v4137 = vld [vmem:[%s1 + $0x858] sm:$0xff]
  %v4138 = vld [vmem:[%s1 + $0x860] sm:$0xff]
  %v4139 = vld [vmem:[%s1 + $0x868] sm:$0xff]
  %v4140 = vld [vmem:[%s1 + $0x870] sm:$0xff]
  %v4141 = vld [vmem:[%s1 + $0x878] sm:$0xff]
  %v4142 = vld [vmem:[%s1 + $0x880] sm:$0xff]
  %v4143 = vld [vmem:[%s1 + $0x888] sm:$0xff]
  %v4144 = vld [vmem:[%s1 + $0x890] sm:$0xff]
  %v4145 = vld [vmem:[%s1 + $0x898] sm:$0xff]
  %v4146 = vld [vmem:[%s1 + $0x8a0] sm:$0xff]
  %v4147 = vld [vmem:[%s1 + $0x8a8] sm:$0xff]
  %v4148 = vld [vmem:[%s1 + $0x8b0] sm:$0xff]
  %v4149 = vld [vmem:[%s1 + $0x8b8] sm:$0xff]
  %v4150 = vld [vmem:[%s1 + $0x8c0] sm:$0xff]
  %v4151 = vld [vmem:[%s1 + $0x8c8] sm:$0xff]
  %v4152 = vld [vmem:[%s1 + $0x8d0] sm:$0xff]
  %v4153 = vld [vmem:[%s1 + $0x8d8] sm:$0xff]
  %v4154 = vld [vmem:[%s1 + $0x8e0] sm:$0xff]
  %v4155 = vld [vmem:[%s1 + $0x8e8] sm:$0xff]
  %v4156 = vld [vmem:[%s1 + $0x8f0] sm:$0xff]
  %v4157 = vld [vmem:[%s1 + $0x8f8] sm:$0xff]
  %v4158 = vld [vmem:[%s1 + $0x900] sm:$0xff]
  %v4159 = vld [vmem:[%s1 + $0x908] sm:$0xff]
  %v4160 = vld [vmem:[%s1 + $0x910] sm:$0xff]
  %v4161 = vld [vmem:[%s1 + $0x918] sm:$0xff]
  %v4162 = vld [vmem:[%s1 + $0x920] sm:$0xff]
  %v4163 = vld [vmem:[%s1 + $0x928] sm:$0xff]
  %v4164 = vld [vmem:[%s1 + $0x930] sm:$0xff]
  %v4165 = vld [vmem:[%s1 + $0x938] sm:$0xff]
  %v4166 = vld [vmem:[%s1 + $0x940] sm:$0xff]
  %v4167 = vld [vmem:[%s1 + $0x948] sm:$0xff]
  %v4168 = vld [vmem:[%s1 + $0x950] sm:$0xff]
  %v4169 = vld [vmem:[%s1 + $0x958] sm:$0xff]
  %v4170 = vld [vmem:[%s1 + $0x960] sm:$0xff]
  %v4171 = vld [vmem:[%s1 + $0x968] sm:$0xff]
  %v4172 = vld [vmem:[%s1 + $0x970] sm:$0xff]
  %v4173 = vld [vmem:[%s1 + $0x978] sm:$0xff]
  %v4174 = vld [vmem:[%s1 + $0x980] sm:$0xff]
  %v4175 = vld [vmem:[%s1 + $0x988] sm:$0xff]
  %v4176 = vld [vmem:[%s1 + $0x990] sm:$0xff]
  %v4177 = vld [vmem:[%s1 + $0x998] sm:$0xff]
  %v4178 = vld [vmem:[%s1 + $0x9a0] sm:$0xff]
  %v4179 = vld [vmem:[%s1 + $0x9a8] sm:$0xff]
  %v4180 = vld [vmem:[%s1 + $0x9b0] sm:$0xff]
  %v4181 = vld [vmem:[%s1 + $0x9b8] sm:$0xff]
  %v4182 = vld [vmem:[%s1 + $0x9c0] sm:$0xff]
  %v4183 = vld [vmem:[%s1 + $0x9c8] sm:$0xff]
  %v4184 = vld [vmem:[%s1 + $0x9d0] sm:$0xff]
  %v4185 = vld [vmem:[%s1 + $0x9d8] sm:$0xff]
  %v4186 = vld [vmem:[%s1 + $0x9e0] sm:$0xff]
  %v4187 = vld [vmem:[%s1 + $0x9e8] sm:$0xff]
  %v4188 = vld [vmem:[%s1 + $0x9f0] sm:$0xff]
  %v4189 = vld [vmem:[%s1 + $0x9f8] sm:$0xff]
  %v4190 = vld [vmem:[%s1 + $0xa00] sm:$0xff]
  %v4191 = vld [vmem:[%s1 + $0xa08] sm:$0xff]
  %v4192 = vld [vmem:[%s1 + $0xa10] sm:$0xff]
  %v4193 = vld [vmem:[%s1 + $0xa18] sm:$0xff]
  %v4194 = vld [vmem:[%s1 + $0xa20] sm:$0xff]
  %v4195 = vld [vmem:[%s1 + $0xa28] sm:$0xff]
  %v4196 = vld [vmem:[%s1 + $0xa30] sm:$0xff]
  %v4197 = vld [vmem:[%s1 + $0xa38] sm:$0xff]
  %v4198 = vld [vmem:[%s1 + $0xa40] sm:$0xff]
  %v4199 = vld [vmem:[%s1 + $0xa48] sm:$0xff]
  %v4200 = vld [vmem:[%s1 + $0xa50] sm:$0xff]
  %v4201 = vld [vmem:[%s1 + $0xa58] sm:$0xff]
  %v4202 = vld [vmem:[%s1 + $0xa60] sm:$0xff]
  %v4203 = vld [vmem:[%s1 + $0xa68] sm:$0xff]
  %v4204 = vld [vmem:[%s1 + $0xa70] sm:$0xff]
  %v4205 = vld [vmem:[%s1 + $0xa78] sm:$0xff]
  %v4206 = vld [vmem:[%s1 + $0xa80] sm:$0xff]
  %v4207 = vld [vmem:[%s1 + $0xa88] sm:$0xff]
  %v4208 = vld [vmem:[%s1 + $0xa90] sm:$0xff]
  %v4209 = vld [vmem:[%s1 + $0xa98] sm:$0xff]
  %v4210 = vld [vmem:[%s1 + $0xaa0] sm:$0xff]
  %v4211 = vld [vmem:[%s1 + $0xaa8] sm:$0xff]
  %v4212 = vld [vmem:[%s1 + $0xab0] sm:$0xff]
  %v4213 = vld [vmem:[%s1 + $0xab8] sm:$0xff]
  %v4214 = vld [vmem:[%s1 + $0xac0] sm:$0xff]
  %v4215 = vld [vmem:[%s1 + $0xac8] sm:$0xff]
  %v4216 = vld [vmem:[%s1 + $0xad0] sm:$0xff]
  %v4217 = vld [vmem:[%s1 + $0xad8] sm:$0xff]
  %v4218 = vld [vmem:[%s1 + $0xae0] sm:$0xff]
  %v4219 = vld [vmem:[%s1 + $0xae8] sm:$0xff]
  %v4220 = vld [vmem:[%s1 + $0xaf0] sm:$0xff]
  %v4221 = vld [vmem:[%s1 + $0xaf8] sm:$0xff]
  %v4222 = vld [vmem:[%s1 + $0xb00] sm:$0xff]
  %v4223 = vld [vmem:[%s1 + $0xb08] sm:$0xff]
  %v4224 = vld [vmem:[%s1 + $0xb10] sm:$0xff]
  %v4225 = vld [vmem:[%s1 + $0xb18] sm:$0xff]
  %v4226 = vld [vmem:[%s1 + $0xb20] sm:$0xff]
  %v4227 = vld [vmem:[%s1 + $0xb28] sm:$0xff]
  %v4228 = vld [vmem:[%s1 + $0xb30] sm:$0xff]
  %v4229 = vld [vmem:[%s1 + $0xb38] sm:$0xff]
  %v4230 = vld [vmem:[%s1 + $0xb40] sm:$0xff]
  %v4231 = vld [vmem:[%s1 + $0xb48] sm:$0xff]
  %v4232 = vld [vmem:[%s1 + $0xb50] sm:$0xff]
  %v4233 = vld [vmem:[%s1 + $0xb58] sm:$0xff]
  %v4234 = vld [vmem:[%s1 + $0xb60] sm:$0xff]
  %v4235 = vld [vmem:[%s1 + $0xb68] sm:$0xff]
  %v4236 = vld [vmem:[%s1 + $0xb70] sm:$0xff]
  %v4237 = vld [vmem:[%s1 + $0xb78] sm:$0xff]
  %v4238 = vld [vmem:[%s1 + $0xb80] sm:$0xff]
  %v4239 = vld [vmem:[%s1 + $0xb88] sm:$0xff]
  %v4240 = vld [vmem:[%s1 + $0xb90] sm:$0xff]
  %v4241 = vld [vmem:[%s1 + $0xb98] sm:$0xff]
  %v4242 = vld [vmem:[%s1 + $0xba0] sm:$0xff]
  %v4243 = vld [vmem:[%s1 + $0xba8] sm:$0xff]
  %v4244 = vld [vmem:[%s1 + $0xbb0] sm:$0xff]
  %v4245 = vld [vmem:[%s1 + $0xbb8] sm:$0xff]
  %v4246 = vld [vmem:[%s1 + $0xbc0] sm:$0xff]
  %v4247 = vld [vmem:[%s1 + $0xbc8] sm:$0xff]
  %v4248 = vld [vmem:[%s1 + $0xbd0] sm:$0xff]
  %v4249 = vld [vmem:[%s1 + $0xbd8] sm:$0xff]
  %v4250 = vld [vmem:[%s1 + $0xbe0] sm:$0xff]
  %v4251 = vld [vmem:[%s1 + $0xbe8] sm:$0xff]
  %v4252 = vld [vmem:[%s1 + $0xbf0] sm:$0xff]
  %v4253 = vld [vmem:[%s1 + $0xbf8] sm:$0xff]
  %v4254 = vld [vmem:[%s1 + $0xc00] sm:$0xff]
  %v4255 = vld [vmem:[%s1 + $0xc08] sm:$0xff]
  %v4256 = vld [vmem:[%s1 + $0xc10] sm:$0xff]
  %v4257 = vld [vmem:[%s1 + $0xc18] sm:$0xff]
  %v4258 = vld [vmem:[%s1 + $0xc20] sm:$0xff]
  %v4259 = vld [vmem:[%s1 + $0xc28] sm:$0xff]
  %v4260 = vld [vmem:[%s1 + $0xc30] sm:$0xff]
  %v4261 = vld [vmem:[%s1 + $0xc38] sm:$0xff]
  %v4262 = vld [vmem:[%s1 + $0xc40] sm:$0xff]
  %v4263 = vld [vmem:[%s1 + $0xc48] sm:$0xff]
  %v4264 = vld [vmem:[%s1 + $0xc50] sm:$0xff]
  %v4265 = vld [vmem:[%s1 + $0xc58] sm:$0xff]
  %v4266 = vld [vmem:[%s1 + $0xc60] sm:$0xff]
  %v4267 = vld [vmem:[%s1 + $0xc68] sm:$0xff]
  %v4268 = vld [vmem:[%s1 + $0xc70] sm:$0xff]
  %v4269 = vld [vmem:[%s1 + $0xc78] sm:$0xff]
  %v4270 = vld [vmem:[%s1 + $0xc80] sm:$0xff]
  %v4271 = vld [vmem:[%s1 + $0xc88] sm:$0xff]
  %v4272 = vld [vmem:[%s1 + $0xc90] sm:$0xff]
  %v4273 = vld [vmem:[%s1 + $0xc98] sm:$0xff]
  %v4274 = vld [vmem:[%s1 + $0xca0] sm:$0xff]
  %v4275 = vld [vmem:[%s1 + $0xca8] sm:$0xff]
  %v4276 = vld [vmem:[%s1 + $0xcb0] sm:$0xff]
  %v4277 = vld [vmem:[%s1 + $0xcb8] sm:$0xff]
  %v4278 = vld [vmem:[%s1 + $0xcc0] sm:$0xff]
  %v4279 = vld [vmem:[%s1 + $0xcc8] sm:$0xff]
  %v4280 = vld [vmem:[%s1 + $0xcd0] sm:$0xff]
  %v4281 = vld [vmem:[%s1 + $0xcd8] sm:$0xff]
  %v4282 = vld [vmem:[%s1 + $0xce0] sm:$0xff]
  %v4283 = vld [vmem:[%s1 + $0xce8] sm:$0xff]
  %v4284 = vld [vmem:[%s1 + $0xcf0] sm:$0xff]
  %v4285 = vld [vmem:[%s1 + $0xcf8] sm:$0xff]
  %v4286 = vld [vmem:[%s1 + $0xd00] sm:$0xff]
  %v4287 = vld [vmem:[%s1 + $0xd08] sm:$0xff]
  %v4288 = vld [vmem:[%s1 + $0xd10] sm:$0xff]
  %v4289 = vld [vmem:[%s1 + $0xd18] sm:$0xff]
  %v4290 = vld [vmem:[%s1 + $0xd20] sm:$0xff]
  %v4291 = vld [vmem:[%s1 + $0xd28] sm:$0xff]
  %v4292 = vld [vmem:[%s1 + $0xd30] sm:$0xff]
  %v4293 = vld [vmem:[%s1 + $0xd38] sm:$0xff]
  %v4294 = vld [vmem:[%s1 + $0xd40] sm:$0xff]
  %v4295 = vld [vmem:[%s1 + $0xd48] sm:$0xff]
  %v4296 = vld [vmem:[%s1 + $0xd50] sm:$0xff]
  %v4297 = vld [vmem:[%s1 + $0xd58] sm:$0xff]
  %v4298 = vld [vmem:[%s1 + $0xd60] sm:$0xff]
  %v4299 = vld [vmem:[%s1 + $0xd68] sm:$0xff]
  %v4300 = vld [vmem:[%s1 + $0xd70] sm:$0xff]
  %v4301 = vld [vmem:[%s1 + $0xd78] sm:$0xff]
  %v4302 = vld [vmem:[%s1 + $0xd80] sm:$0xff]
  %v4303 = vld [vmem:[%s1 + $0xd88] sm:$0xff]
  %v4304 = vld [vmem:[%s1 + $0xd90] sm:$0xff]
  %v4305 = vld [vmem:[%s1 + $0xd98] sm:$0xff]
  %v4306 = vld [vmem:[%s1 + $0xda0] sm:$0xff]
  %v4307 = vld [vmem:[%s1 + $0xda8] sm:$0xff]
  %v4308 = vld [vmem:[%s1 + $0xdb0] sm:$0xff]
  %v4309 = vld [vmem:[%s1 + $0xdb8] sm:$0xff]
  %v4310 = vld [vmem:[%s1 + $0xdc0] sm:$0xff]
  %v4311 = vld [vmem:[%s1 + $0xdc8] sm:$0xff]
  %v4312 = vld [vmem:[%s1 + $0xdd0] sm:$0xff]
  %v4313 = vld [vmem:[%s1 + $0xdd8] sm:$0xff]
  %v4314 = vld [vmem:[%s1 + $0xde0] sm:$0xff]
  %v4315 = vld [vmem:[%s1 + $0xde8] sm:$0xff]
  %v4316 = vld [vmem:[%s1 + $0xdf0] sm:$0xff]
  %v4317 = vld [vmem:[%s1 + $0xdf8] sm:$0xff]
  %v4318 = vld [vmem:[%s1 + $0xe00] sm:$0xff]
  %v4319 = vld [vmem:[%s1 + $0xe08] sm:$0xff]
  %v4320 = vld [vmem:[%s1 + $0xe10] sm:$0xff]
  %v4321 = vld [vmem:[%s1 + $0xe18] sm:$0xff]
  %v4322 = vld [vmem:[%s1 + $0xe20] sm:$0xff]
  %v4323 = vld [vmem:[%s1 + $0xe28] sm:$0xff]
  %v4324 = vld [vmem:[%s1 + $0xe30] sm:$0xff]
  %v4325 = vld [vmem:[%s1 + $0xe38] sm:$0xff]
  %v4326 = vld [vmem:[%s1 + $0xe40] sm:$0xff]
  %v4327 = vld [vmem:[%s1 + $0xe48] sm:$0xff]
  %v4328 = vld [vmem:[%s1 + $0xe50] sm:$0xff]
  %v4329 = vld [vmem:[%s1 + $0xe58] sm:$0xff]
  %v4330 = vld [vmem:[%s1 + $0xe60] sm:$0xff]
  %v4331 = vld [vmem:[%s1 + $0xe68] sm:$0xff]
  %v4332 = vld [vmem:[%s1 + $0xe70] sm:$0xff]
  %v4333 = vld [vmem:[%s1 + $0xe78] sm:$0xff]
  %v4334 = vld [vmem:[%s1 + $0xe80] sm:$0xff]
  %v4335 = vld [vmem:[%s1 + $0xe88] sm:$0xff]
  %v4336 = vld [vmem:[%s1 + $0xe90] sm:$0xff]
  %v4337 = vld [vmem:[%s1 + $0xe98] sm:$0xff]
  %v4338 = vld [vmem:[%s1 + $0xea0] sm:$0xff]
  %v4339 = vld [vmem:[%s1 + $0xea8] sm:$0xff]
  %v4340 = vld [vmem:[%s1 + $0xeb0] sm:$0xff]
  %v4341 = vld [vmem:[%s1 + $0xeb8] sm:$0xff]
  %v4342 = vld [vmem:[%s1 + $0xec0] sm:$0xff]
  %v4343 = vld [vmem:[%s1 + $0xec8] sm:$0xff]
  %v4344 = vld [vmem:[%s1 + $0xed0] sm:$0xff]
  %v4345 = vld [vmem:[%s1 + $0xed8] sm:$0xff]
  %v4346 = vld [vmem:[%s1 + $0xee0] sm:$0xff]
  %v4347 = vld [vmem:[%s1 + $0xee8] sm:$0xff]
  %v4348 = vld [vmem:[%s1 + $0xef0] sm:$0xff]
  %v4349 = vld [vmem:[%s1 + $0xef8] sm:$0xff]
  %v4350 = vld [vmem:[%s1 + $0xf00] sm:$0xff]
  %v4351 = vld [vmem:[%s1 + $0xf08] sm:$0xff]
  %v4352 = vld [vmem:[%s1 + $0xf10] sm:$0xff]
  %v4353 = vld [vmem:[%s1 + $0xf18] sm:$0xff]
  %v4354 = vld [vmem:[%s1 + $0xf20] sm:$0xff]
  %v4355 = vld [vmem:[%s1 + $0xf28] sm:$0xff]
  %v4356 = vld [vmem:[%s1 + $0xf30] sm:$0xff]
  %v4357 = vld [vmem:[%s1 + $0xf38] sm:$0xff]
  %v4358 = vld [vmem:[%s1 + $0xf40] sm:$0xff]
  %v4359 = vld [vmem:[%s1 + $0xf48] sm:$0xff]
  %v4360 = vld [vmem:[%s1 + $0xf50] sm:$0xff]
  %v4361 = vld [vmem:[%s1 + $0xf58] sm:$0xff]
  %v4362 = vld [vmem:[%s1 + $0xf60] sm:$0xff]
  %v4363 = vld [vmem:[%s1 + $0xf68] sm:$0xff]
  %v4364 = vld [vmem:[%s1 + $0xf70] sm:$0xff]
  %v4365 = vld [vmem:[%s1 + $0xf78] sm:$0xff]
  %v4366 = vld [vmem:[%s1 + $0xf80] sm:$0xff]
  %v4367 = vld [vmem:[%s1 + $0xf88] sm:$0xff]
  %v4368 = vld [vmem:[%s1 + $0xf90] sm:$0xff]
  %v4369 = vld [vmem:[%s1 + $0xf98] sm:$0xff]
  %v4370 = vld [vmem:[%s1 + $0xfa0] sm:$0xff]
  %v4371 = vld [vmem:[%s1 + $0xfa8] sm:$0xff]
  %v4372 = vld [vmem:[%s1 + $0xfb0] sm:$0xff]
  %v4373 = vld [vmem:[%s1 + $0xfb8] sm:$0xff]
  %v4374 = vld [vmem:[%s1 + $0xfc0] sm:$0xff]
  %v4375 = vld [vmem:[%s1 + $0xfc8] sm:$0xff]
  %v4376 = vld [vmem:[%s1 + $0xfd0] sm:$0xff]
  %v4377 = vld [vmem:[%s1 + $0xfd8] sm:$0xff]
  %v4378 = vld [vmem:[%s1 + $0xfe0] sm:$0xff]
  %v4379 = vld [vmem:[%s1 + $0xfe8] sm:$0xff]
  %v4380 = vld [vmem:[%s1 + $0xff0] sm:$0xff]
  %v4381 = vld [vmem:[%s1 + $0xff8] sm:$0xff]
  %v4382 = vld [vmem:[%s1 + $0x1000] sm:$0xff]
  %v4383 = vld [vmem:[%s1 + $0x1008] sm:$0xff]
  %v4384 = vld [vmem:[%s1 + $0x1010] sm:$0xff]
  %v4385 = vld [vmem:[%s1 + $0x1018] sm:$0xff]
  %v4386 = vld [vmem:[%s1 + $0x1020] sm:$0xff]
  %v4387 = vld [vmem:[%s1 + $0x1028] sm:$0xff]
  %v4388 = vld [vmem:[%s1 + $0x1030] sm:$0xff]
  %v4389 = vld [vmem:[%s1 + $0x1038] sm:$0xff]
  %v4390 = vld [vmem:[%s1 + $0x1040] sm:$0xff]
  %v4391 = vld [vmem:[%s1 + $0x1048] sm:$0xff]
  %v4392 = vld [vmem:[%s1 + $0x1050] sm:$0xff]
  %v4393 = vld [vmem:[%s1 + $0x1058] sm:$0xff]
  %v4394 = vld [vmem:[%s1 + $0x1060] sm:$0xff]
  %v4395 = vld [vmem:[%s1 + $0x1068] sm:$0xff]
  %v4396 = vld [vmem:[%s1 + $0x1070] sm:$0xff]
  %v4397 = vld [vmem:[%s1 + $0x1078] sm:$0xff]
  %v4398 = vld [vmem:[%s1 + $0x1080] sm:$0xff]
  %v4399 = vld [vmem:[%s1 + $0x1088] sm:$0xff]
  %v4400 = vld [vmem:[%s1 + $0x1090] sm:$0xff]
  %v4401 = vld [vmem:[%s1 + $0x1098] sm:$0xff]
  %v4402 = vld [vmem:[%s1 + $0x10a0] sm:$0xff]
  %v4403 = vld [vmem:[%s1 + $0x10a8] sm:$0xff]
  %v4404 = vld [vmem:[%s1 + $0x10b0] sm:$0xff]
  %v4405 = vld [vmem:[%s1 + $0x10b8] sm:$0xff]
  %v4406 = vld [vmem:[%s1 + $0x10c0] sm:$0xff]
  %v4407 = vld [vmem:[%s1 + $0x10c8] sm:$0xff]
  %v4408 = vld [vmem:[%s1 + $0x10d0] sm:$0xff]
  %v4409 = vld [vmem:[%s1 + $0x10d8] sm:$0xff]
  %v4410 = vld [vmem:[%s1 + $0x10e0] sm:$0xff]
  %v4411 = vld [vmem:[%s1 + $0x10e8] sm:$0xff]
  %v4412 = vld [vmem:[%s1 + $0x10f0] sm:$0xff]
  %v4413 = vld [vmem:[%s1 + $0x10f8] sm:$0xff]
  %v4414 = vld [vmem:[%s1 + $0x1100] sm:$0xff]
  %v4415 = vld [vmem:[%s1 + $0x1108] sm:$0xff]
  %v4416 = vld [vmem:[%s1 + $0x1110] sm:$0xff]
  %v4417 = vld [vmem:[%s1 + $0x1118] sm:$0xff]
  %v4418 = vld [vmem:[%s1 + $0x1120] sm:$0xff]
  %v4419 = vld [vmem:[%s1 + $0x1128] sm:$0xff]
  %v4420 = vld [vmem:[%s1 + $0x1130] sm:$0xff]
  %v4421 = vld [vmem:[%s1 + $0x1138] sm:$0xff]
  %v4422 = vld [vmem:[%s1 + $0x1140] sm:$0xff]
  %v4423 = vld [vmem:[%s1 + $0x1148] sm:$0xff]
  %v4424 = vld [vmem:[%s1 + $0x1150] sm:$0xff]
  %v4425 = vld [vmem:[%s1 + $0x1158] sm:$0xff]
  %v4426 = vld [vmem:[%s1 + $0x1160] sm:$0xff]
  %v4427 = vld [vmem:[%s1 + $0x1168] sm:$0xff]
  %v4428 = vld [vmem:[%s1 + $0x1170] sm:$0xff]
  %v4429 = vld [vmem:[%s1 + $0x1178] sm:$0xff]
  %v4430 = vld [vmem:[%s1 + $0x1180] sm:$0xff]
  %v4431 = vld [vmem:[%s1 + $0x1188] sm:$0xff]
  %v4432 = vld [vmem:[%s1 + $0x1190] sm:$0xff]
  %v4433 = vld [vmem:[%s1 + $0x1198] sm:$0xff]
  %v4434 = vld [vmem:[%s1 + $0x11a0] sm:$0xff]
  %v4435 = vld [vmem:[%s1 + $0x11a8] sm:$0xff]
  %v4436 = vld [vmem:[%s1 + $0x11b0] sm:$0xff]
  %v4437 = vld [vmem:[%s1 + $0x11b8] sm:$0xff]
  %v4438 = vld [vmem:[%s1 + $0x11c0] sm:$0xff]
  %v4439 = vld [vmem:[%s1 + $0x11c8] sm:$0xff]
  %v4440 = vld [vmem:[%s1 + $0x11d0] sm:$0xff]
  %v4441 = vld [vmem:[%s1 + $0x11d8] sm:$0xff]
  %v4442 = vld [vmem:[%s1 + $0x11e0] sm:$0xff]
  %v4443 = vld [vmem:[%s1 + $0x11e8] sm:$0xff]
  %v4444 = vld [vmem:[%s1 + $0x11f0] sm:$0xff]
  %v4445 = vld [vmem:[%s1 + $0x11f8] sm:$0xff]
  %v4446 = vld [vmem:[%s1 + $0x1200] sm:$0xff]
  %v4447 = vld [vmem:[%s1 + $0x1208] sm:$0xff]
  %v4448 = vld [vmem:[%s1 + $0x1210] sm:$0xff]
  %v4449 = vld [vmem:[%s1 + $0x1218] sm:$0xff]
  %v4450 = vld [vmem:[%s1 + $0x1220] sm:$0xff]
  %v4451 = vld [vmem:[%s1 + $0x1228] sm:$0xff]
  %v4452 = vld [vmem:[%s1 + $0x1230] sm:$0xff]
  %v4453 = vld [vmem:[%s1 + $0x1238] sm:$0xff]
  %v4454 = vld [vmem:[%s1 + $0x1240] sm:$0xff]
  %v4455 = vld [vmem:[%s1 + $0x1248] sm:$0xff]
  %v4456 = vld [vmem:[%s1 + $0x1250] sm:$0xff]
  %v4457 = vld [vmem:[%s1 + $0x1258] sm:$0xff]
  %v4458 = vld [vmem:[%s1 + $0x1260] sm:$0xff]
  %v4459 = vld [vmem:[%s1 + $0x1268] sm:$0xff]
  %v4460 = vld [vmem:[%s1 + $0x1270] sm:$0xff]
  %v4461 = vld [vmem:[%s1 + $0x1278] sm:$0xff]
  %v4462 = vld [vmem:[%s1 + $0x1280] sm:$0xff]
  %v4463 = vld [vmem:[%s1 + $0x1288] sm:$0xff]
  %v4464 = vld [vmem:[%s1 + $0x1290] sm:$0xff]
  %v4465 = vld [vmem:[%s1 + $0x1298] sm:$0xff]
  %v4466 = vld [vmem:[%s1 + $0x12a0] sm:$0xff]
  %v4467 = vld [vmem:[%s1 + $0x12a8] sm:$0xff]
  %v4468 = vld [vmem:[%s1 + $0x12b0] sm:$0xff]
  %v4469 = vld [vmem:[%s1 + $0x12b8] sm:$0xff]
  %v4470 = vld [vmem:[%s1 + $0x12c0] sm:$0xff]
  %v4471 = vld [vmem:[%s1 + $0x12c8] sm:$0xff]
  %v4472 = vld [vmem:[%s1 + $0x12d0] sm:$0xff]
  %v4473 = vld [vmem:[%s1 + $0x12d8] sm:$0xff]
  %v4474 = vld [vmem:[%s1 + $0x12e0] sm:$0xff]
  %v4475 = vld [vmem:[%s1 + $0x12e8] sm:$0xff]
  %v4476 = vld [vmem:[%s1 + $0x12f0] sm:$0xff]
  %v4477 = vld [vmem:[%s1 + $0x12f8] sm:$0xff]
  %v4478 = vld [vmem:[%s1 + $0x1300] sm:$0xff]
  %v4479 = vld [vmem:[%s1 + $0x1308] sm:$0xff]
  %v4480 = vld [vmem:[%s1 + $0x1310] sm:$0xff]
  %v4481 = vld [vmem:[%s1 + $0x1318] sm:$0xff]
  %v4482 = vld [vmem:[%s1 + $0x1320] sm:$0xff]
  %v4483 = vld [vmem:[%s1 + $0x1328] sm:$0xff]
  %v4484 = vld [vmem:[%s1 + $0x1330] sm:$0xff]
  %v4485 = vld [vmem:[%s1 + $0x1338] sm:$0xff]
  %v4486 = vld [vmem:[%s1 + $0x1340] sm:$0xff]
  %v4487 = vld [vmem:[%s1 + $0x1348] sm:$0xff]
  %v4488 = vld [vmem:[%s1 + $0x1350] sm:$0xff]
  %v4489 = vld [vmem:[%s1 + $0x1358] sm:$0xff]
  %v4490 = vld [vmem:[%s1 + $0x1360] sm:$0xff]
  %v4491 = vld [vmem:[%s1 + $0x1368] sm:$0xff]
  %v4492 = vld [vmem:[%s1 + $0x1370] sm:$0xff]
  %v4493 = vld [vmem:[%s1 + $0x1378] sm:$0xff]
  %v4494 = vld [vmem:[%s1 + $0x1380] sm:$0xff]
  %v4495 = vld [vmem:[%s1 + $0x1388] sm:$0xff]
  %v4496 = vld [vmem:[%s1 + $0x1390] sm:$0xff]
  %v4497 = vld [vmem:[%s1 + $0x1398] sm:$0xff]
  %v4498 = vld [vmem:[%s1 + $0x13a0] sm:$0xff]
  %v4499 = vld [vmem:[%s1 + $0x13a8] sm:$0xff]
  %v4500 = vld [vmem:[%s1 + $0x13b0] sm:$0xff]
  %v4501 = vld [vmem:[%s1 + $0x13b8] sm:$0xff]
  %v4502 = vld [vmem:[%s1 + $0x13c0] sm:$0xff]
  %v4503 = vld [vmem:[%s1 + $0x13c8] sm:$0xff]
  %v4504 = vld [vmem:[%s1 + $0x13d0] sm:$0xff]
  %v4505 = vld [vmem:[%s1 + $0x13d8] sm:$0xff]
  %v4506 = vld [vmem:[%s1 + $0x13e0] sm:$0xff]
  %v4507 = vld [vmem:[%s1 + $0x13e8] sm:$0xff]
  %v4508 = vld [vmem:[%s1 + $0x13f0] sm:$0xff]
  %v4509 = vld [vmem:[%s1 + $0x13f8] sm:$0xff]
  %v4510 = vld [vmem:[%s1 + $0x1400] sm:$0xff]
  %v4511 = vld [vmem:[%s1 + $0x1408] sm:$0xff]
  %v4512 = vld [vmem:[%s1 + $0x1410] sm:$0xff]
  %v4513 = vld [vmem:[%s1 + $0x1418] sm:$0xff]
  %v4514 = vld [vmem:[%s1 + $0x1420] sm:$0xff]
  %v4515 = vld [vmem:[%s1 + $0x1428] sm:$0xff]
  %v4516 = vld [vmem:[%s1 + $0x1430] sm:$0xff]
  %v4517 = vld [vmem:[%s1 + $0x1438] sm:$0xff]
  %v4518 = vld [vmem:[%s1 + $0x1440] sm:$0xff]
  %v4519 = vld [vmem:[%s1 + $0x1448] sm:$0xff]
  %v4520 = vld [vmem:[%s1 + $0x1450] sm:$0xff]
  %v4521 = vld [vmem:[%s1 + $0x1458] sm:$0xff]
  %v4522 = vld [vmem:[%s1 + $0x1460] sm:$0xff]
  %v4523 = vld [vmem:[%s1 + $0x1468] sm:$0xff]
  %v4524 = vld [vmem:[%s1 + $0x1470] sm:$0xff]
  %v4525 = vld [vmem:[%s1 + $0x1478] sm:$0xff]
  %v4526 = vld [vmem:[%s1 + $0x1480] sm:$0xff]
  %v4527 = vld [vmem:[%s1 + $0x1488] sm:$0xff]
  %v4528 = vld [vmem:[%s1 + $0x1490] sm:$0xff]
  %v4529 = vld [vmem:[%s1 + $0x1498] sm:$0xff]
  %v4530 = vld [vmem:[%s1 + $0x14a0] sm:$0xff]
  %v4531 = vld [vmem:[%s1 + $0x14a8] sm:$0xff]
  %v4532 = vld [vmem:[%s1 + $0x14b0] sm:$0xff]
  %v4533 = vld [vmem:[%s1 + $0x14b8] sm:$0xff]
  %v4534 = vld [vmem:[%s1 + $0x14c0] sm:$0xff]
  %v4535 = vld [vmem:[%s1 + $0x14c8] sm:$0xff]
  %v4536 = vld [vmem:[%s1 + $0x14d0] sm:$0xff]
  %v4537 = vld [vmem:[%s1 + $0x14d8] sm:$0xff]
  %v4538 = vld [vmem:[%s1 + $0x14e0] sm:$0xff]
  %v4539 = vld [vmem:[%s1 + $0x14e8] sm:$0xff]
  %v4540 = vld [vmem:[%s1 + $0x14f0] sm:$0xff]
  %v4541 = vld [vmem:[%s1 + $0x14f8] sm:$0xff]
  %v4542 = vld [vmem:[%s1 + $0x1500] sm:$0xff]
  %v4543 = vld [vmem:[%s1 + $0x1508] sm:$0xff]
  %v4544 = vld [vmem:[%s1 + $0x1510] sm:$0xff]
  %v4545 = vld [vmem:[%s1 + $0x1518] sm:$0xff]
  %v4546 = vld [vmem:[%s1 + $0x1520] sm:$0xff]
  %v4547 = vld [vmem:[%s1 + $0x1528] sm:$0xff]
  %v4548 = vld [vmem:[%s1 + $0x1530] sm:$0xff]
  %v4549 = vld [vmem:[%s1 + $0x1538] sm:$0xff]
  %v4550 = vld [vmem:[%s1 + $0x1540] sm:$0xff]
  %v4551 = vld [vmem:[%s1 + $0x1548] sm:$0xff]
  %v4552 = vld [vmem:[%s1 + $0x1550] sm:$0xff]
  %v4553 = vld [vmem:[%s1 + $0x1558] sm:$0xff]
  %v4554 = vld [vmem:[%s1 + $0x1560] sm:$0xff]
  %v4555 = vld [vmem:[%s1 + $0x1568] sm:$0xff]
  %v4556 = vld [vmem:[%s1 + $0x1570] sm:$0xff]
  %v4557 = vld [vmem:[%s1 + $0x1578] sm:$0xff]
  %v4558 = vld [vmem:[%s1 + $0x1580] sm:$0xff]
  %v4559 = vld [vmem:[%s1 + $0x1588] sm:$0xff]
  %v4560 = vld [vmem:[%s1 + $0x1590] sm:$0xff]
  %v4561 = vld [vmem:[%s1 + $0x1598] sm:$0xff]
  %v4562 = vld [vmem:[%s1 + $0x15a0] sm:$0xff]
  %v4563 = vld [vmem:[%s1 + $0x15a8] sm:$0xff]
  %v4564 = vld [vmem:[%s1 + $0x15b0] sm:$0xff]
  %v4565 = vld [vmem:[%s1 + $0x15b8] sm:$0xff]
  %v4566 = vld [vmem:[%s1 + $0x15c0] sm:$0xff]
  %v4567 = vld [vmem:[%s1 + $0x15c8] sm:$0xff]
  %v4568 = vld [vmem:[%s1 + $0x15d0] sm:$0xff]
  %v4569 = vld [vmem:[%s1 + $0x15d8] sm:$0xff]
  %v4570 = vld [vmem:[%s1 + $0x15e0] sm:$0xff]
  %v4571 = vld [vmem:[%s1 + $0x15e8] sm:$0xff]
  %v4572 = vld [vmem:[%s1 + $0x15f0] sm:$0xff]
  %v4573 = vld [vmem:[%s1 + $0x15f8] sm:$0xff]
  %v4574 = vld [vmem:[%s1 + $0x1600] sm:$0xff]
  %v4575 = vld [vmem:[%s1 + $0x1608] sm:$0xff]
  %v4576 = vld [vmem:[%s1 + $0x1610] sm:$0xff]
  %v4577 = vld [vmem:[%s1 + $0x1618] sm:$0xff]
  %v4578 = vld [vmem:[%s1 + $0x1620] sm:$0xff]
  %v4579 = vld [vmem:[%s1 + $0x1628] sm:$0xff]
  %v4580 = vld [vmem:[%s1 + $0x1630] sm:$0xff]
  %v4581 = vld [vmem:[%s1 + $0x1638] sm:$0xff]
  %v4582 = vld [vmem:[%s1 + $0x1640] sm:$0xff]
  %v4583 = vld [vmem:[%s1 + $0x1648] sm:$0xff]
  %v4584 = vld [vmem:[%s1 + $0x1650] sm:$0xff]
  %v4585 = vld [vmem:[%s1 + $0x1658] sm:$0xff]
  %v4586 = vld [vmem:[%s1 + $0x1660] sm:$0xff]
  %v4587 = vld [vmem:[%s1 + $0x1668] sm:$0xff]
  %v4588 = vld [vmem:[%s1 + $0x1670] sm:$0xff]
  %v4589 = vld [vmem:[%s1 + $0x1678] sm:$0xff]
  %v4590 = vld [vmem:[%s1 + $0x1680] sm:$0xff]
  %v4591 = vld [vmem:[%s1 + $0x1688] sm:$0xff]
  %v4592 = vld [vmem:[%s1 + $0x1690] sm:$0xff]
  %v4593 = vld [vmem:[%s1 + $0x1698] sm:$0xff]
  %v4594 = vld [vmem:[%s1 + $0x16a0] sm:$0xff]
  %v4595 = vld [vmem:[%s1 + $0x16a8] sm:$0xff]
  %v4596 = vld [vmem:[%s1 + $0x16b0] sm:$0xff]
  %v4597 = vld [vmem:[%s1 + $0x16b8] sm:$0xff]
  %v4598 = vld [vmem:[%s1 + $0x16c0] sm:$0xff]
  %v4599 = vld [vmem:[%s1 + $0x16c8] sm:$0xff]
  %v4600 = vld [vmem:[%s1 + $0x16d0] sm:$0xff]
  %v4601 = vld [vmem:[%s1 + $0x16d8] sm:$0xff]
  %v4602 = vld [vmem:[%s1 + $0x16e0] sm:$0xff]
  %v4603 = vld [vmem:[%s1 + $0x16e8] sm:$0xff]
  %v4604 = vld [vmem:[%s1 + $0x16f0] sm:$0xff]
  %v4605 = vld [vmem:[%s1 + $0x16f8] sm:$0xff]
  %v4606 = vld [vmem:[%s1 + $0x1700] sm:$0xff]
  %v4607 = vld [vmem:[%s1 + $0x1708] sm:$0xff]
  %v4608 = vld [vmem:[%s1 + $0x1710] sm:$0xff]
  %v4609 = vld [vmem:[%s1 + $0x1718] sm:$0xff]
  %v4610 = vld [vmem:[%s1 + $0x1720] sm:$0xff]
  %v4611 = vld [vmem:[%s1 + $0x1728] sm:$0xff]
  %v4612 = vld [vmem:[%s1 + $0x1730] sm:$0xff]
  %v4613 = vld [vmem:[%s1 + $0x1738] sm:$0xff]
  %v4614 = vld [vmem:[%s1 + $0x1740] sm:$0xff]
  %v4615 = vld [vmem:[%s1 + $0x1748] sm:$0xff]
  %v4616 = vld [vmem:[%s1 + $0x1750] sm:$0xff]
  %v4617 = vld [vmem:[%s1 + $0x1758] sm:$0xff]
  %v4618 = vld [vmem:[%s1 + $0x1760] sm:$0xff]
  %v4619 = vld [vmem:[%s1 + $0x1768] sm:$0xff]
  %v4620 = vld [vmem:[%s1 + $0x1770] sm:$0xff]
  %v4621 = vld [vmem:[%s1 + $0x1778] sm:$0xff]
  %v4622 = vld [vmem:[%s1 + $0x1780] sm:$0xff]
  %v4623 = vld [vmem:[%s1 + $0x1788] sm:$0xff]
  %v4624 = vld [vmem:[%s1 + $0x1790] sm:$0xff]
  %v4625 = vld [vmem:[%s1 + $0x1798] sm:$0xff]
  %v4626 = vld [vmem:[%s1 + $0x17a0] sm:$0xff]
  %v4627 = vld [vmem:[%s1 + $0x17a8] sm:$0xff]
  %v4628 = vld [vmem:[%s1 + $0x17b0] sm:$0xff]
  %v4629 = vld [vmem:[%s1 + $0x17b8] sm:$0xff]
  %v4630 = vld [vmem:[%s1 + $0x17c0] sm:$0xff]
  %v4631 = vld [vmem:[%s1 + $0x17c8] sm:$0xff]
  %v4632 = vld [vmem:[%s1 + $0x17d0] sm:$0xff]
  %v4633 = vld [vmem:[%s1 + $0x17d8] sm:$0xff]
  %v4634 = vld [vmem:[%s1 + $0x17e0] sm:$0xff]
  %v4635 = vld [vmem:[%s1 + $0x17e8] sm:$0xff]
  %v4636 = vld [vmem:[%s1 + $0x17f0] sm:$0xff]
  %v4637 = vld [vmem:[%s1 + $0x17f8] sm:$0xff]
  %v4638 = vld [vmem:[%s2] sm:$0x3f]
  %v4640 = vperm.slane %v4638, 0
  %v4641 = vperm.slane %v4638, 1
  %v4642 = vperm.slane %v4638, 2
  %v4643 = vperm.slane %v4638, 3
  %v4644 = vperm.slane %v4638, 4
  %v4645 = vperm.slane %v4638, 5
  %v4908 = vunpack.c.l.b16 %v3614
  %v4909 = vunpack.c.h.b16 %v3614
  %v4910 = vunpack.c.l.b16 %v3615
  %v4911 = vunpack.c.h.b16 %v3615
  %v4912 = vunpack.c.l.b16 %v3616
  %v4913 = vunpack.c.h.b16 %v3616
  %v4914 = vunpack.c.l.b16 %v3617
  %v4915 = vunpack.c.h.b16 %v3617
  %v4916 = vunpack.c.l.b16 %v3618
  %v4917 = vunpack.c.h.b16 %v3618
  %v4918 = vunpack.c.l.b16 %v3619
  %v4919 = vunpack.c.h.b16 %v3619
  %v4920 = vunpack.c.l.b16 %v3620
  %v4921 = vunpack.c.h.b16 %v3620
  %v4922 = vunpack.c.l.b16 %v3621
  %v4923 = vunpack.c.h.b16 %v3621
  %v4924 = vunpack.c.l.b16 %v3622
  %v4925 = vunpack.c.h.b16 %v3622
  %v4926 = vunpack.c.l.b16 %v3623
  %v4927 = vunpack.c.h.b16 %v3623
  %v4928 = vunpack.c.l.b16 %v3624
  %v4929 = vunpack.c.h.b16 %v3624
  %v4930 = vunpack.c.l.b16 %v3625
  %v4931 = vunpack.c.h.b16 %v3625
  %v4932 = vunpack.c.l.b16 %v3626
  %v4933 = vunpack.c.h.b16 %v3626
  %v4934 = vunpack.c.l.b16 %v3627
  %v4935 = vunpack.c.h.b16 %v3627
  %v4936 = vunpack.c.l.b16 %v3628
  %v4937 = vunpack.c.h.b16 %v3628
  %v4938 = vunpack.c.l.b16 %v3629
  %v4939 = vunpack.c.h.b16 %v3629
  %v4940 = vunpack.c.l.b16 %v3630
  %v4941 = vunpack.c.h.b16 %v3630
  %v4942 = vunpack.c.l.b16 %v3631
  %v4943 = vunpack.c.h.b16 %v3631
  %v4944 = vunpack.c.l.b16 %v3632
  %v4945 = vunpack.c.h.b16 %v3632
  %v4946 = vunpack.c.l.b16 %v3633
  %v4947 = vunpack.c.h.b16 %v3633
  %v4948 = vunpack.c.l.b16 %v3634
  %v4949 = vunpack.c.h.b16 %v3634
  %v4950 = vunpack.c.l.b16 %v3635
  %v4951 = vunpack.c.h.b16 %v3635
  %v4952 = vunpack.c.l.b16 %v3636
  %v4953 = vunpack.c.h.b16 %v3636
  %v4954 = vunpack.c.l.b16 %v3637
  %v4955 = vunpack.c.h.b16 %v3637
  %v4956 = vunpack.c.l.b16 %v3638
  %v4957 = vunpack.c.h.b16 %v3638
  %v4958 = vunpack.c.l.b16 %v3639
  %v4959 = vunpack.c.h.b16 %v3639
  %v4960 = vunpack.c.l.b16 %v3640
  %v4961 = vunpack.c.h.b16 %v3640
  %v4962 = vunpack.c.l.b16 %v3641
  %v4963 = vunpack.c.h.b16 %v3641
  %v4964 = vunpack.c.l.b16 %v3642
  %v4965 = vunpack.c.h.b16 %v3642
  %v4966 = vunpack.c.l.b16 %v3643
  %v4967 = vunpack.c.h.b16 %v3643
  %v4968 = vunpack.c.l.b16 %v3644
  %v4969 = vunpack.c.h.b16 %v3644
  %v4970 = vunpack.c.l.b16 %v3645
  %v4971 = vunpack.c.h.b16 %v3645
  %v4972 = vunpack.c.l.b16 %v3646
  %v4973 = vunpack.c.h.b16 %v3646
  %v4974 = vunpack.c.l.b16 %v3647
  %v4975 = vunpack.c.h.b16 %v3647
  %v4976 = vunpack.c.l.b16 %v3648
  %v4977 = vunpack.c.h.b16 %v3648
  %v4978 = vunpack.c.l.b16 %v3649
  %v4979 = vunpack.c.h.b16 %v3649
  %v4980 = vunpack.c.l.b16 %v3650
  %v4981 = vunpack.c.h.b16 %v3650
  %v4982 = vunpack.c.l.b16 %v3651
  %v4983 = vunpack.c.h.b16 %v3651
  %v4984 = vunpack.c.l.b16 %v3652
  %v4985 = vunpack.c.h.b16 %v3652
  %v4986 = vunpack.c.l.b16 %v3653
  %v4987 = vunpack.c.h.b16 %v3653
  %v4988 = vunpack.c.l.b16 %v3654
  %v4989 = vunpack.c.h.b16 %v3654
  %v4990 = vunpack.c.l.b16 %v3655
  %v4991 = vunpack.c.h.b16 %v3655
  %v4992 = vunpack.c.l.b16 %v3656
  %v4993 = vunpack.c.h.b16 %v3656
  %v4994 = vunpack.c.l.b16 %v3657
  %v4995 = vunpack.c.h.b16 %v3657
  %v4996 = vunpack.c.l.b16 %v3658
  %v4997 = vunpack.c.h.b16 %v3658
  %v4998 = vunpack.c.l.b16 %v3659
  %v4999 = vunpack.c.h.b16 %v3659
  %v5000 = vunpack.c.l.b16 %v3660
  %v5001 = vunpack.c.h.b16 %v3660
  %v5002 = vunpack.c.l.b16 %v3661
  %v5003 = vunpack.c.h.b16 %v3661
  %v5004 = vunpack.c.l.b16 %v3662
  %v5005 = vunpack.c.h.b16 %v3662
  %v5006 = vunpack.c.l.b16 %v3663
  %v5007 = vunpack.c.h.b16 %v3663
  %v5008 = vunpack.c.l.b16 %v3664
  %v5009 = vunpack.c.h.b16 %v3664
  %v5010 = vunpack.c.l.b16 %v3665
  %v5011 = vunpack.c.h.b16 %v3665
  %v5012 = vunpack.c.l.b16 %v3666
  %v5013 = vunpack.c.h.b16 %v3666
  %v5014 = vunpack.c.l.b16 %v3667
  %v5015 = vunpack.c.h.b16 %v3667
  %v5016 = vunpack.c.l.b16 %v3668
  %v5017 = vunpack.c.h.b16 %v3668
  %v5018 = vunpack.c.l.b16 %v3669
  %v5019 = vunpack.c.h.b16 %v3669
  %v5020 = vunpack.c.l.b16 %v3670
  %v5021 = vunpack.c.h.b16 %v3670
  %v5022 = vunpack.c.l.b16 %v3671
  %v5023 = vunpack.c.h.b16 %v3671
  %v5024 = vunpack.c.l.b16 %v3672
  %v5025 = vunpack.c.h.b16 %v3672
  %v5026 = vunpack.c.l.b16 %v3673
  %v5027 = vunpack.c.h.b16 %v3673
  %v5028 = vunpack.c.l.b16 %v3674
  %v5029 = vunpack.c.h.b16 %v3674
  %v5030 = vunpack.c.l.b16 %v3675
  %v5031 = vunpack.c.h.b16 %v3675
  %v5032 = vunpack.c.l.b16 %v3676
  %v5033 = vunpack.c.h.b16 %v3676
  %v5034 = vunpack.c.l.b16 %v3677
  %v5035 = vunpack.c.h.b16 %v3677
  %v5036 = vunpack.c.l.b16 %v3678
  %v5037 = vunpack.c.h.b16 %v3678
  %v5038 = vunpack.c.l.b16 %v3679
  %v5039 = vunpack.c.h.b16 %v3679
  %v5040 = vunpack.c.l.b16 %v3680
  %v5041 = vunpack.c.h.b16 %v3680
  %v5042 = vunpack.c.l.b16 %v3681
  %v5043 = vunpack.c.h.b16 %v3681
  %v5044 = vunpack.c.l.b16 %v3682
  %v5045 = vunpack.c.h.b16 %v3682
  %v5046 = vunpack.c.l.b16 %v3683
  %v5047 = vunpack.c.h.b16 %v3683
  %v5048 = vunpack.c.l.b16 %v3684
  %v5049 = vunpack.c.h.b16 %v3684
  %v5050 = vunpack.c.l.b16 %v3685
  %v5051 = vunpack.c.h.b16 %v3685
  %v5052 = vunpack.c.l.b16 %v3686
  %v5053 = vunpack.c.h.b16 %v3686
  %v5054 = vunpack.c.l.b16 %v3687
  %v5055 = vunpack.c.h.b16 %v3687
  %v5056 = vunpack.c.l.b16 %v3688
  %v5057 = vunpack.c.h.b16 %v3688
  %v5058 = vunpack.c.l.b16 %v3689
  %v5059 = vunpack.c.h.b16 %v3689
  %v5060 = vunpack.c.l.b16 %v3690
  %v5061 = vunpack.c.h.b16 %v3690
  %v5062 = vunpack.c.l.b16 %v3691
  %v5063 = vunpack.c.h.b16 %v3691
  %v5064 = vunpack.c.l.b16 %v3692
  %v5065 = vunpack.c.h.b16 %v3692
  %v5066 = vunpack.c.l.b16 %v3693
  %v5067 = vunpack.c.h.b16 %v3693
  %v5068 = vunpack.c.l.b16 %v3694
  %v5069 = vunpack.c.h.b16 %v3694
  %v5070 = vunpack.c.l.b16 %v3695
  %v5071 = vunpack.c.h.b16 %v3695
  %v5072 = vunpack.c.l.b16 %v3696
  %v5073 = vunpack.c.h.b16 %v3696
  %v5074 = vunpack.c.l.b16 %v3697
  %v5075 = vunpack.c.h.b16 %v3697
  %v5076 = vunpack.c.l.b16 %v3698
  %v5077 = vunpack.c.h.b16 %v3698
  %v5078 = vunpack.c.l.b16 %v3699
  %v5079 = vunpack.c.h.b16 %v3699
  %v5080 = vunpack.c.l.b16 %v3700
  %v5081 = vunpack.c.h.b16 %v3700
  %v5082 = vunpack.c.l.b16 %v3701
  %v5083 = vunpack.c.h.b16 %v3701
  %v5084 = vunpack.c.l.b16 %v3702
  %v5085 = vunpack.c.h.b16 %v3702
  %v5086 = vunpack.c.l.b16 %v3703
  %v5087 = vunpack.c.h.b16 %v3703
  %v5088 = vunpack.c.l.b16 %v3704
  %v5089 = vunpack.c.h.b16 %v3704
  %v5090 = vunpack.c.l.b16 %v3705
  %v5091 = vunpack.c.h.b16 %v3705
  %v5092 = vunpack.c.l.b16 %v3706
  %v5093 = vunpack.c.h.b16 %v3706
  %v5094 = vunpack.c.l.b16 %v3707
  %v5095 = vunpack.c.h.b16 %v3707
  %v5096 = vunpack.c.l.b16 %v3708
  %v5097 = vunpack.c.h.b16 %v3708
  %v5098 = vunpack.c.l.b16 %v3709
  %v5099 = vunpack.c.h.b16 %v3709
  %v5100 = vunpack.c.l.b16 %v3710
  %v5101 = vunpack.c.h.b16 %v3710
  %v5102 = vunpack.c.l.b16 %v3711
  %v5103 = vunpack.c.h.b16 %v3711
  %v5104 = vunpack.c.l.b16 %v3712
  %v5105 = vunpack.c.h.b16 %v3712
  %v5106 = vunpack.c.l.b16 %v3713
  %v5107 = vunpack.c.h.b16 %v3713
  %v5108 = vunpack.c.l.b16 %v3714
  %v5109 = vunpack.c.h.b16 %v3714
  %v5110 = vunpack.c.l.b16 %v3715
  %v5111 = vunpack.c.h.b16 %v3715
  %v5112 = vunpack.c.l.b16 %v3716
  %v5113 = vunpack.c.h.b16 %v3716
  %v5114 = vunpack.c.l.b16 %v3717
  %v5115 = vunpack.c.h.b16 %v3717
  %v5116 = vunpack.c.l.b16 %v3718
  %v5117 = vunpack.c.h.b16 %v3718
  %v5118 = vunpack.c.l.b16 %v3719
  %v5119 = vunpack.c.h.b16 %v3719
  %v5120 = vunpack.c.l.b16 %v3720
  %v5121 = vunpack.c.h.b16 %v3720
  %v5122 = vunpack.c.l.b16 %v3721
  %v5123 = vunpack.c.h.b16 %v3721
  %v5124 = vunpack.c.l.b16 %v3722
  %v5125 = vunpack.c.h.b16 %v3722
  %v5126 = vunpack.c.l.b16 %v3723
  %v5127 = vunpack.c.h.b16 %v3723
  %v5128 = vunpack.c.l.b16 %v3724
  %v5129 = vunpack.c.h.b16 %v3724
  %v5130 = vunpack.c.l.b16 %v3725
  %v5131 = vunpack.c.h.b16 %v3725
  %v5132 = vunpack.c.l.b16 %v3726
  %v5133 = vunpack.c.h.b16 %v3726
  %v5134 = vunpack.c.l.b16 %v3727
  %v5135 = vunpack.c.h.b16 %v3727
  %v5136 = vunpack.c.l.b16 %v3728
  %v5137 = vunpack.c.h.b16 %v3728
  %v5138 = vunpack.c.l.b16 %v3729
  %v5139 = vunpack.c.h.b16 %v3729
  %v5140 = vunpack.c.l.b16 %v3730
  %v5141 = vunpack.c.h.b16 %v3730
  %v5142 = vunpack.c.l.b16 %v3731
  %v5143 = vunpack.c.h.b16 %v3731
  %v5144 = vunpack.c.l.b16 %v3732
  %v5145 = vunpack.c.h.b16 %v3732
  %v5146 = vunpack.c.l.b16 %v3733
  %v5147 = vunpack.c.h.b16 %v3733
  %v5148 = vunpack.c.l.b16 %v3734
  %v5149 = vunpack.c.h.b16 %v3734
  %v5150 = vunpack.c.l.b16 %v3735
  %v5151 = vunpack.c.h.b16 %v3735
  %v5152 = vunpack.c.l.b16 %v3736
  %v5153 = vunpack.c.h.b16 %v3736
  %v5154 = vunpack.c.l.b16 %v3737
  %v5155 = vunpack.c.h.b16 %v3737
  %v5156 = vunpack.c.l.b16 %v3738
  %v5157 = vunpack.c.h.b16 %v3738
  %v5158 = vunpack.c.l.b16 %v3739
  %v5159 = vunpack.c.h.b16 %v3739
  %v5160 = vunpack.c.l.b16 %v3740
  %v5161 = vunpack.c.h.b16 %v3740
  %v5162 = vunpack.c.l.b16 %v3741
  %v5163 = vunpack.c.h.b16 %v3741
  %v5164 = vunpack.c.l.b16 %v3742
  %v5165 = vunpack.c.h.b16 %v3742
  %v5166 = vunpack.c.l.b16 %v3743
  %v5167 = vunpack.c.h.b16 %v3743
  %v5168 = vunpack.c.l.b16 %v3744
  %v5169 = vunpack.c.h.b16 %v3744
  %v5170 = vunpack.c.l.b16 %v3745
  %v5171 = vunpack.c.h.b16 %v3745
  %v5172 = vunpack.c.l.b16 %v3746
  %v5173 = vunpack.c.h.b16 %v3746
  %v5174 = vunpack.c.l.b16 %v3747
  %v5175 = vunpack.c.h.b16 %v3747
  %v5176 = vunpack.c.l.b16 %v3748
  %v5177 = vunpack.c.h.b16 %v3748
  %v5178 = vunpack.c.l.b16 %v3749
  %v5179 = vunpack.c.h.b16 %v3749
  %v5180 = vunpack.c.l.b16 %v3750
  %v5181 = vunpack.c.h.b16 %v3750
  %v5182 = vunpack.c.l.b16 %v3751
  %v5183 = vunpack.c.h.b16 %v3751
  %v5184 = vunpack.c.l.b16 %v3752
  %v5185 = vunpack.c.h.b16 %v3752
  %v5186 = vunpack.c.l.b16 %v3753
  %v5187 = vunpack.c.h.b16 %v3753
  %v5188 = vunpack.c.l.b16 %v3754
  %v5189 = vunpack.c.h.b16 %v3754
  %v5190 = vunpack.c.l.b16 %v3755
  %v5191 = vunpack.c.h.b16 %v3755
  %v5192 = vunpack.c.l.b16 %v3756
  %v5193 = vunpack.c.h.b16 %v3756
  %v5194 = vunpack.c.l.b16 %v3757
  %v5195 = vunpack.c.h.b16 %v3757
  %v5196 = vunpack.c.l.b16 %v3758
  %v5197 = vunpack.c.h.b16 %v3758
  %v5198 = vunpack.c.l.b16 %v3759
  %v5199 = vunpack.c.h.b16 %v3759
  %v5200 = vunpack.c.l.b16 %v3760
  %v5201 = vunpack.c.h.b16 %v3760
  %v5202 = vunpack.c.l.b16 %v3761
  %v5203 = vunpack.c.h.b16 %v3761
  %v5204 = vunpack.c.l.b16 %v3762
  %v5205 = vunpack.c.h.b16 %v3762
  %v5206 = vunpack.c.l.b16 %v3763
  %v5207 = vunpack.c.h.b16 %v3763
  %v5208 = vunpack.c.l.b16 %v3764
  %v5209 = vunpack.c.h.b16 %v3764
  %v5210 = vunpack.c.l.b16 %v3765
  %v5211 = vunpack.c.h.b16 %v3765
  %v5212 = vunpack.c.l.b16 %v3766
  %v5213 = vunpack.c.h.b16 %v3766
  %v5214 = vunpack.c.l.b16 %v3767
  %v5215 = vunpack.c.h.b16 %v3767
  %v5216 = vunpack.c.l.b16 %v3768
  %v5217 = vunpack.c.h.b16 %v3768
  %v5218 = vunpack.c.l.b16 %v3769
  %v5219 = vunpack.c.h.b16 %v3769
  %v5220 = vunpack.c.l.b16 %v3770
  %v5221 = vunpack.c.h.b16 %v3770
  %v5222 = vunpack.c.l.b16 %v3771
  %v5223 = vunpack.c.h.b16 %v3771
  %v5224 = vunpack.c.l.b16 %v3772
  %v5225 = vunpack.c.h.b16 %v3772
  %v5226 = vunpack.c.l.b16 %v3773
  %v5227 = vunpack.c.h.b16 %v3773
  %v5228 = vunpack.c.l.b16 %v3774
  %v5229 = vunpack.c.h.b16 %v3774
  %v5230 = vunpack.c.l.b16 %v3775
  %v5231 = vunpack.c.h.b16 %v3775
  %v5232 = vunpack.c.l.b16 %v3776
  %v5233 = vunpack.c.h.b16 %v3776
  %v5234 = vunpack.c.l.b16 %v3777
  %v5235 = vunpack.c.h.b16 %v3777
  %v5236 = vunpack.c.l.b16 %v3778
  %v5237 = vunpack.c.h.b16 %v3778
  %v5238 = vunpack.c.l.b16 %v3779
  %v5239 = vunpack.c.h.b16 %v3779
  %v5240 = vunpack.c.l.b16 %v3780
  %v5241 = vunpack.c.h.b16 %v3780
  %v5242 = vunpack.c.l.b16 %v3781
  %v5243 = vunpack.c.h.b16 %v3781
  %v5244 = vunpack.c.l.b16 %v3782
  %v5245 = vunpack.c.h.b16 %v3782
  %v5246 = vunpack.c.l.b16 %v3783
  %v5247 = vunpack.c.h.b16 %v3783
  %v5248 = vunpack.c.l.b16 %v3784
  %v5249 = vunpack.c.h.b16 %v3784
  %v5250 = vunpack.c.l.b16 %v3785
  %v5251 = vunpack.c.h.b16 %v3785
  %v5252 = vunpack.c.l.b16 %v3786
  %v5253 = vunpack.c.h.b16 %v3786
  %v5254 = vunpack.c.l.b16 %v3787
  %v5255 = vunpack.c.h.b16 %v3787
  %v5256 = vunpack.c.l.b16 %v3788
  %v5257 = vunpack.c.h.b16 %v3788
  %v5258 = vunpack.c.l.b16 %v3789
  %v5259 = vunpack.c.h.b16 %v3789
  %v5260 = vunpack.c.l.b16 %v3790
  %v5261 = vunpack.c.h.b16 %v3790
  %v5262 = vunpack.c.l.b16 %v3791
  %v5263 = vunpack.c.h.b16 %v3791
  %v5264 = vunpack.c.l.b16 %v3792
  %v5265 = vunpack.c.h.b16 %v3792
  %v5266 = vunpack.c.l.b16 %v3793
  %v5267 = vunpack.c.h.b16 %v3793
  %v5268 = vunpack.c.l.b16 %v3794
  %v5269 = vunpack.c.h.b16 %v3794
  %v5270 = vunpack.c.l.b16 %v3795
  %v5271 = vunpack.c.h.b16 %v3795
  %v5272 = vunpack.c.l.b16 %v3796
  %v5273 = vunpack.c.h.b16 %v3796
  %v5274 = vunpack.c.l.b16 %v3797
  %v5275 = vunpack.c.h.b16 %v3797
  %v5276 = vunpack.c.l.b16 %v3798
  %v5277 = vunpack.c.h.b16 %v3798
  %v5278 = vunpack.c.l.b16 %v3799
  %v5279 = vunpack.c.h.b16 %v3799
  %v5280 = vunpack.c.l.b16 %v3800
  %v5281 = vunpack.c.h.b16 %v3800
  %v5282 = vunpack.c.l.b16 %v3801
  %v5283 = vunpack.c.h.b16 %v3801
  %v5284 = vunpack.c.l.b16 %v3802
  %v5285 = vunpack.c.h.b16 %v3802
  %v5286 = vunpack.c.l.b16 %v3803
  %v5287 = vunpack.c.h.b16 %v3803
  %v5288 = vunpack.c.l.b16 %v3804
  %v5289 = vunpack.c.h.b16 %v3804
  %v5290 = vunpack.c.l.b16 %v3805
  %v5291 = vunpack.c.h.b16 %v3805
  %v5292 = vunpack.c.l.b16 %v3806
  %v5293 = vunpack.c.h.b16 %v3806
  %v5294 = vunpack.c.l.b16 %v3807
  %v5295 = vunpack.c.h.b16 %v3807
  %v5296 = vunpack.c.l.b16 %v3808
  %v5297 = vunpack.c.h.b16 %v3808
  %v5298 = vunpack.c.l.b16 %v3809
  %v5299 = vunpack.c.h.b16 %v3809
  %v5300 = vunpack.c.l.b16 %v3810
  %v5301 = vunpack.c.h.b16 %v3810
  %v5302 = vunpack.c.l.b16 %v3811
  %v5303 = vunpack.c.h.b16 %v3811
  %v5304 = vunpack.c.l.b16 %v3812
  %v5305 = vunpack.c.h.b16 %v3812
  %v5306 = vunpack.c.l.b16 %v3813
  %v5307 = vunpack.c.h.b16 %v3813
  %v5308 = vunpack.c.l.b16 %v3814
  %v5309 = vunpack.c.h.b16 %v3814
  %v5310 = vunpack.c.l.b16 %v3815
  %v5311 = vunpack.c.h.b16 %v3815
  %v5312 = vunpack.c.l.b16 %v3816
  %v5313 = vunpack.c.h.b16 %v3816
  %v5314 = vunpack.c.l.b16 %v3817
  %v5315 = vunpack.c.h.b16 %v3817
  %v5316 = vunpack.c.l.b16 %v3818
  %v5317 = vunpack.c.h.b16 %v3818
  %v5318 = vunpack.c.l.b16 %v3819
  %v5319 = vunpack.c.h.b16 %v3819
  %v5320 = vunpack.c.l.b16 %v3820
  %v5321 = vunpack.c.h.b16 %v3820
  %v5322 = vunpack.c.l.b16 %v3821
  %v5323 = vunpack.c.h.b16 %v3821
  %v5324 = vunpack.c.l.b16 %v3822
  %v5325 = vunpack.c.h.b16 %v3822
  %v5326 = vunpack.c.l.b16 %v3823
  %v5327 = vunpack.c.h.b16 %v3823
  %v5328 = vunpack.c.l.b16 %v3824
  %v5329 = vunpack.c.h.b16 %v3824
  %v5330 = vunpack.c.l.b16 %v3825
  %v5331 = vunpack.c.h.b16 %v3825
  %v5332 = vunpack.c.l.b16 %v3826
  %v5333 = vunpack.c.h.b16 %v3826
  %v5334 = vunpack.c.l.b16 %v3827
  %v5335 = vunpack.c.h.b16 %v3827
  %v5336 = vunpack.c.l.b16 %v3828
  %v5337 = vunpack.c.h.b16 %v3828
  %v5338 = vunpack.c.l.b16 %v3829
  %v5339 = vunpack.c.h.b16 %v3829
  %v5340 = vunpack.c.l.b16 %v3830
  %v5341 = vunpack.c.h.b16 %v3830
  %v5342 = vunpack.c.l.b16 %v3831
  %v5343 = vunpack.c.h.b16 %v3831
  %v5344 = vunpack.c.l.b16 %v3832
  %v5345 = vunpack.c.h.b16 %v3832
  %v5346 = vunpack.c.l.b16 %v3833
  %v5347 = vunpack.c.h.b16 %v3833
  %v5348 = vunpack.c.l.b16 %v3834
  %v5349 = vunpack.c.h.b16 %v3834
  %v5350 = vunpack.c.l.b16 %v3835
  %v5351 = vunpack.c.h.b16 %v3835
  %v5352 = vunpack.c.l.b16 %v3836
  %v5353 = vunpack.c.h.b16 %v3836
  %v5354 = vunpack.c.l.b16 %v3837
  %v5355 = vunpack.c.h.b16 %v3837
  %v5356 = vunpack.c.l.b16 %v3838
  %v5357 = vunpack.c.h.b16 %v3838
  %v5358 = vunpack.c.l.b16 %v3839
  %v5359 = vunpack.c.h.b16 %v3839
  %v5360 = vunpack.c.l.b16 %v3840
  %v5361 = vunpack.c.h.b16 %v3840
  %v5362 = vunpack.c.l.b16 %v3841
  %v5363 = vunpack.c.h.b16 %v3841
  %v5364 = vunpack.c.l.b16 %v3842
  %v5365 = vunpack.c.h.b16 %v3842
  %v5366 = vunpack.c.l.b16 %v3843
  %v5367 = vunpack.c.h.b16 %v3843
  %v5368 = vunpack.c.l.b16 %v3844
  %v5369 = vunpack.c.h.b16 %v3844
  %v5370 = vunpack.c.l.b16 %v3845
  %v5371 = vunpack.c.h.b16 %v3845
  %v5372 = vunpack.c.l.b16 %v3846
  %v5373 = vunpack.c.h.b16 %v3846
  %v5374 = vunpack.c.l.b16 %v3847
  %v5375 = vunpack.c.h.b16 %v3847
  %v5376 = vunpack.c.l.b16 %v3848
  %v5377 = vunpack.c.h.b16 %v3848
  %v5378 = vunpack.c.l.b16 %v3849
  %v5379 = vunpack.c.h.b16 %v3849
  %v5380 = vunpack.c.l.b16 %v3850
  %v5381 = vunpack.c.h.b16 %v3850
  %v5382 = vunpack.c.l.b16 %v3851
  %v5383 = vunpack.c.h.b16 %v3851
  %v5384 = vunpack.c.l.b16 %v3852
  %v5385 = vunpack.c.h.b16 %v3852
  %v5386 = vunpack.c.l.b16 %v3853
  %v5387 = vunpack.c.h.b16 %v3853
  %v5388 = vunpack.c.l.b16 %v3854
  %v5389 = vunpack.c.h.b16 %v3854
  %v5390 = vunpack.c.l.b16 %v3855
  %v5391 = vunpack.c.h.b16 %v3855
  %v5392 = vunpack.c.l.b16 %v3856
  %v5393 = vunpack.c.h.b16 %v3856
  %v5394 = vunpack.c.l.b16 %v3857
  %v5395 = vunpack.c.h.b16 %v3857
  %v5396 = vunpack.c.l.b16 %v3858
  %v5397 = vunpack.c.h.b16 %v3858
  %v5398 = vunpack.c.l.b16 %v3859
  %v5399 = vunpack.c.h.b16 %v3859
  %v5400 = vunpack.c.l.b16 %v3860
  %v5401 = vunpack.c.h.b16 %v3860
  %v5402 = vunpack.c.l.b16 %v3861
  %v5403 = vunpack.c.h.b16 %v3861
  %v5404 = vunpack.c.l.b16 %v3862
  %v5405 = vunpack.c.h.b16 %v3862
  %v5406 = vunpack.c.l.b16 %v3863
  %v5407 = vunpack.c.h.b16 %v3863
  %v5408 = vunpack.c.l.b16 %v3864
  %v5409 = vunpack.c.h.b16 %v3864
  %v5410 = vunpack.c.l.b16 %v3865
  %v5411 = vunpack.c.h.b16 %v3865
  %v5412 = vunpack.c.l.b16 %v3866
  %v5413 = vunpack.c.h.b16 %v3866
  %v5414 = vunpack.c.l.b16 %v3867
  %v5415 = vunpack.c.h.b16 %v3867
  %v5416 = vunpack.c.l.b16 %v3868
  %v5417 = vunpack.c.h.b16 %v3868
  %v5418 = vunpack.c.l.b16 %v3869
  %v5419 = vunpack.c.h.b16 %v3869
  %v5420 = vlaneseq
  %v5421 = vand.u32 %v5420, 127
  %v5422 = vperm.slane %v4908, %v5421
  %v5423 = vadd.s32 %v5421, 4294967288
  %v5424 = vperm.slane %v4909, %v5423
  %vm5425 = vcmask 130112
  %v5426 = vsel %vm5425, %v5424, %v5422
  %v5427 = vadd.s32 %v5421, 4294967280
  %v5428 = vperm.slane %v4910, %v5427
  %vm5429 = vcmask 195712
  %v5430 = vsel %vm5429, %v5428, %v5426
  %v5431 = vadd.s32 %v5421, 4294967272
  %v5432 = vperm.slane %v4911, %v5431
  %vm5433 = vcmask 261312
  %v5434 = vsel %vm5433, %v5432, %v5430
  %v5435 = vadd.s32 %v5421, 4294967264
  %v5436 = vperm.slane %v4912, %v5435
  %vm5437 = vcmask 326912
  %v5438 = vsel %vm5437, %v5436, %v5434
  %v5439 = vadd.s32 %v5421, 4294967256
  %v5440 = vperm.slane %v4913, %v5439
  %vm5441 = vcmask 392512
  %v5442 = vsel %vm5441, %v5440, %v5438
  %v5443 = vadd.s32 %v5421, 4294967248
  %v5444 = vperm.slane %v4914, %v5443
  %vm5445 = vcmask 458112
  %v5446 = vsel %vm5445, %v5444, %v5442
  %v5447 = vadd.s32 %v5421, 4294967240
  %v5448 = vperm.slane %v4915, %v5447
  %vm5449 = vcmask 523712
  %v5450 = vsel %vm5449, %v5448, %v5446
  %v5451 = vadd.s32 %v5421, 4294967232
  %v5452 = vperm.slane %v4916, %v5451
  %vm5453 = vcmask 589312
  %v5454 = vsel %vm5453, %v5452, %v5450
  %v5455 = vadd.s32 %v5421, 4294967224
  %v5456 = vperm.slane %v4917, %v5455
  %vm5457 = vcmask 654912
  %v5458 = vsel %vm5457, %v5456, %v5454
  %v5459 = vadd.s32 %v5421, 4294967216
  %v5460 = vperm.slane %v4918, %v5459
  %vm5461 = vcmask 720512
  %v5462 = vsel %vm5461, %v5460, %v5458
  %v5463 = vadd.s32 %v5421, 4294967208
  %v5464 = vperm.slane %v4919, %v5463
  %vm5465 = vcmask 786112
  %v5466 = vsel %vm5465, %v5464, %v5462
  %v5467 = vadd.s32 %v5421, 4294967200
  %v5468 = vperm.slane %v4920, %v5467
  %vm5469 = vcmask 851712
  %v5470 = vsel %vm5469, %v5468, %v5466
  %v5471 = vadd.s32 %v5421, 4294967192
  %v5472 = vperm.slane %v4921, %v5471
  %vm5473 = vcmask 917312
  %v5474 = vsel %vm5473, %v5472, %v5470
  %v5475 = vadd.s32 %v5421, 4294967184
  %v5476 = vperm.slane %v4922, %v5475
  %vm5477 = vcmask 982912
  %v5478 = vsel %vm5477, %v5476, %v5474
  %v5479 = vadd.s32 %v5421, 4294967176
  %v5480 = vperm.slane %v4923, %v5479
  %vm5481 = vcmask 1048512
  %v5482 = vsel %vm5481, %v5480, %v5478
  %v5483 = vperm.slane %v4924, %v5421
  %v5484 = vperm.slane %v4925, %v5423
  %v5485 = vsel %vm5425, %v5484, %v5483
  %v5486 = vperm.slane %v4926, %v5427
  %v5487 = vsel %vm5429, %v5486, %v5485
  %v5488 = vperm.slane %v4927, %v5431
  %v5489 = vsel %vm5433, %v5488, %v5487
  %v5490 = vperm.slane %v4928, %v5435
  %v5491 = vsel %vm5437, %v5490, %v5489
  %v5492 = vperm.slane %v4929, %v5439
  %v5493 = vsel %vm5441, %v5492, %v5491
  %v5494 = vperm.slane %v4930, %v5443
  %v5495 = vsel %vm5445, %v5494, %v5493
  %v5496 = vperm.slane %v4931, %v5447
  %v5497 = vsel %vm5449, %v5496, %v5495
  %v5498 = vperm.slane %v4932, %v5451
  %v5499 = vsel %vm5453, %v5498, %v5497
  %v5500 = vperm.slane %v4933, %v5455
  %v5501 = vsel %vm5457, %v5500, %v5499
  %v5502 = vperm.slane %v4934, %v5459
  %v5503 = vsel %vm5461, %v5502, %v5501
  %v5504 = vperm.slane %v4935, %v5463
  %v5505 = vsel %vm5465, %v5504, %v5503
  %v5506 = vperm.slane %v4936, %v5467
  %v5507 = vsel %vm5469, %v5506, %v5505
  %v5508 = vperm.slane %v4937, %v5471
  %v5509 = vsel %vm5473, %v5508, %v5507
  %v5510 = vperm.slane %v4938, %v5475
  %v5511 = vsel %vm5477, %v5510, %v5509
  %v5512 = vperm.slane %v4939, %v5479
  %v5513 = vsel %vm5481, %v5512, %v5511
  %v5514 = vperm.slane %v4940, %v5421
  %v5515 = vperm.slane %v4941, %v5423
  %v5516 = vsel %vm5425, %v5515, %v5514
  %v5517 = vperm.slane %v4942, %v5427
  %v5518 = vsel %vm5429, %v5517, %v5516
  %v5519 = vperm.slane %v4943, %v5431
  %v5520 = vsel %vm5433, %v5519, %v5518
  %v5521 = vperm.slane %v4944, %v5435
  %v5522 = vsel %vm5437, %v5521, %v5520
  %v5523 = vperm.slane %v4945, %v5439
  %v5524 = vsel %vm5441, %v5523, %v5522
  %v5525 = vperm.slane %v4946, %v5443
  %v5526 = vsel %vm5445, %v5525, %v5524
  %v5527 = vperm.slane %v4947, %v5447
  %v5528 = vsel %vm5449, %v5527, %v5526
  %v5529 = vperm.slane %v4948, %v5451
  %v5530 = vsel %vm5453, %v5529, %v5528
  %v5531 = vperm.slane %v4949, %v5455
  %v5532 = vsel %vm5457, %v5531, %v5530
  %v5533 = vperm.slane %v4950, %v5459
  %v5534 = vsel %vm5461, %v5533, %v5532
  %v5535 = vperm.slane %v4951, %v5463
  %v5536 = vsel %vm5465, %v5535, %v5534
  %v5537 = vperm.slane %v4952, %v5467
  %v5538 = vsel %vm5469, %v5537, %v5536
  %v5539 = vperm.slane %v4953, %v5471
  %v5540 = vsel %vm5473, %v5539, %v5538
  %v5541 = vperm.slane %v4954, %v5475
  %v5542 = vsel %vm5477, %v5541, %v5540
  %v5543 = vperm.slane %v4955, %v5479
  %v5544 = vsel %vm5481, %v5543, %v5542
  %v5545 = vperm.slane %v4956, %v5421
  %v5546 = vperm.slane %v4957, %v5423
  %v5547 = vsel %vm5425, %v5546, %v5545
  %v5548 = vperm.slane %v4958, %v5427
  %v5549 = vsel %vm5429, %v5548, %v5547
  %v5550 = vperm.slane %v4959, %v5431
  %v5551 = vsel %vm5433, %v5550, %v5549
  %v5552 = vperm.slane %v4960, %v5435
  %v5553 = vsel %vm5437, %v5552, %v5551
  %v5554 = vperm.slane %v4961, %v5439
  %v5555 = vsel %vm5441, %v5554, %v5553
  %v5556 = vperm.slane %v4962, %v5443
  %v5557 = vsel %vm5445, %v5556, %v5555
  %v5558 = vperm.slane %v4963, %v5447
  %v5559 = vsel %vm5449, %v5558, %v5557
  %v5560 = vperm.slane %v4964, %v5451
  %v5561 = vsel %vm5453, %v5560, %v5559
  %v5562 = vperm.slane %v4965, %v5455
  %v5563 = vsel %vm5457, %v5562, %v5561
  %v5564 = vperm.slane %v4966, %v5459
  %v5565 = vsel %vm5461, %v5564, %v5563
  %v5566 = vperm.slane %v4967, %v5463
  %v5567 = vsel %vm5465, %v5566, %v5565
  %v5568 = vperm.slane %v4968, %v5467
  %v5569 = vsel %vm5469, %v5568, %v5567
  %v5570 = vperm.slane %v4969, %v5471
  %v5571 = vsel %vm5473, %v5570, %v5569
  %v5572 = vperm.slane %v4970, %v5475
  %v5573 = vsel %vm5477, %v5572, %v5571
  %v5574 = vperm.slane %v4971, %v5479
  %v5575 = vsel %vm5481, %v5574, %v5573
  %v5576 = vperm.slane %v4972, %v5421
  %v5577 = vperm.slane %v4973, %v5423
  %v5578 = vsel %vm5425, %v5577, %v5576
  %v5579 = vperm.slane %v4974, %v5427
  %v5580 = vsel %vm5429, %v5579, %v5578
  %v5581 = vperm.slane %v4975, %v5431
  %v5582 = vsel %vm5433, %v5581, %v5580
  %v5583 = vperm.slane %v4976, %v5435
  %v5584 = vsel %vm5437, %v5583, %v5582
  %v5585 = vperm.slane %v4977, %v5439
  %v5586 = vsel %vm5441, %v5585, %v5584
  %v5587 = vperm.slane %v4978, %v5443
  %v5588 = vsel %vm5445, %v5587, %v5586
  %v5589 = vperm.slane %v4979, %v5447
  %v5590 = vsel %vm5449, %v5589, %v5588
  %v5591 = vperm.slane %v4980, %v5451
  %v5592 = vsel %vm5453, %v5591, %v5590
  %v5593 = vperm.slane %v4981, %v5455
  %v5594 = vsel %vm5457, %v5593, %v5592
  %v5595 = vperm.slane %v4982, %v5459
  %v5596 = vsel %vm5461, %v5595, %v5594
  %v5597 = vperm.slane %v4983, %v5463
  %v5598 = vsel %vm5465, %v5597, %v5596
  %v5599 = vperm.slane %v4984, %v5467
  %v5600 = vsel %vm5469, %v5599, %v5598
  %v5601 = vperm.slane %v4985, %v5471
  %v5602 = vsel %vm5473, %v5601, %v5600
  %v5603 = vperm.slane %v4986, %v5475
  %v5604 = vsel %vm5477, %v5603, %v5602
  %v5605 = vperm.slane %v4987, %v5479
  %v5606 = vsel %vm5481, %v5605, %v5604
  %v5607 = vperm.slane %v4988, %v5421
  %v5608 = vperm.slane %v4989, %v5423
  %v5609 = vsel %vm5425, %v5608, %v5607
  %v5610 = vperm.slane %v4990, %v5427
  %v5611 = vsel %vm5429, %v5610, %v5609
  %v5612 = vperm.slane %v4991, %v5431
  %v5613 = vsel %vm5433, %v5612, %v5611
  %v5614 = vperm.slane %v4992, %v5435
  %v5615 = vsel %vm5437, %v5614, %v5613
  %v5616 = vperm.slane %v4993, %v5439
  %v5617 = vsel %vm5441, %v5616, %v5615
  %v5618 = vperm.slane %v4994, %v5443
  %v5619 = vsel %vm5445, %v5618, %v5617
  %v5620 = vperm.slane %v4995, %v5447
  %v5621 = vsel %vm5449, %v5620, %v5619
  %v5622 = vperm.slane %v4996, %v5451
  %v5623 = vsel %vm5453, %v5622, %v5621
  %v5624 = vperm.slane %v4997, %v5455
  %v5625 = vsel %vm5457, %v5624, %v5623
  %v5626 = vperm.slane %v4998, %v5459
  %v5627 = vsel %vm5461, %v5626, %v5625
  %v5628 = vperm.slane %v4999, %v5463
  %v5629 = vsel %vm5465, %v5628, %v5627
  %v5630 = vperm.slane %v5000, %v5467
  %v5631 = vsel %vm5469, %v5630, %v5629
  %v5632 = vperm.slane %v5001, %v5471
  %v5633 = vsel %vm5473, %v5632, %v5631
  %v5634 = vperm.slane %v5002, %v5475
  %v5635 = vsel %vm5477, %v5634, %v5633
  %v5636 = vperm.slane %v5003, %v5479
  %v5637 = vsel %vm5481, %v5636, %v5635
  %v5638 = vperm.slane %v5004, %v5421
  %v5639 = vperm.slane %v5005, %v5423
  %v5640 = vsel %vm5425, %v5639, %v5638
  %v5641 = vperm.slane %v5006, %v5427
  %v5642 = vsel %vm5429, %v5641, %v5640
  %v5643 = vperm.slane %v5007, %v5431
  %v5644 = vsel %vm5433, %v5643, %v5642
  %v5645 = vperm.slane %v5008, %v5435
  %v5646 = vsel %vm5437, %v5645, %v5644
  %v5647 = vperm.slane %v5009, %v5439
  %v5648 = vsel %vm5441, %v5647, %v5646
  %v5649 = vperm.slane %v5010, %v5443
  %v5650 = vsel %vm5445, %v5649, %v5648
  %v5651 = vperm.slane %v5011, %v5447
  %v5652 = vsel %vm5449, %v5651, %v5650
  %v5653 = vperm.slane %v5012, %v5451
  %v5654 = vsel %vm5453, %v5653, %v5652
  %v5655 = vperm.slane %v5013, %v5455
  %v5656 = vsel %vm5457, %v5655, %v5654
  %v5657 = vperm.slane %v5014, %v5459
  %v5658 = vsel %vm5461, %v5657, %v5656
  %v5659 = vperm.slane %v5015, %v5463
  %v5660 = vsel %vm5465, %v5659, %v5658
  %v5661 = vperm.slane %v5016, %v5467
  %v5662 = vsel %vm5469, %v5661, %v5660
  %v5663 = vperm.slane %v5017, %v5471
  %v5664 = vsel %vm5473, %v5663, %v5662
  %v5665 = vperm.slane %v5018, %v5475
  %v5666 = vsel %vm5477, %v5665, %v5664
  %v5667 = vperm.slane %v5019, %v5479
  %v5668 = vsel %vm5481, %v5667, %v5666
  %v5669 = vperm.slane %v5020, %v5421
  %v5670 = vperm.slane %v5021, %v5423
  %v5671 = vsel %vm5425, %v5670, %v5669
  %v5672 = vperm.slane %v5022, %v5427
  %v5673 = vsel %vm5429, %v5672, %v5671
  %v5674 = vperm.slane %v5023, %v5431
  %v5675 = vsel %vm5433, %v5674, %v5673
  %v5676 = vperm.slane %v5024, %v5435
  %v5677 = vsel %vm5437, %v5676, %v5675
  %v5678 = vperm.slane %v5025, %v5439
  %v5679 = vsel %vm5441, %v5678, %v5677
  %v5680 = vperm.slane %v5026, %v5443
  %v5681 = vsel %vm5445, %v5680, %v5679
  %v5682 = vperm.slane %v5027, %v5447
  %v5683 = vsel %vm5449, %v5682, %v5681
  %v5684 = vperm.slane %v5028, %v5451
  %v5685 = vsel %vm5453, %v5684, %v5683
  %v5686 = vperm.slane %v5029, %v5455
  %v5687 = vsel %vm5457, %v5686, %v5685
  %v5688 = vperm.slane %v5030, %v5459
  %v5689 = vsel %vm5461, %v5688, %v5687
  %v5690 = vperm.slane %v5031, %v5463
  %v5691 = vsel %vm5465, %v5690, %v5689
  %v5692 = vperm.slane %v5032, %v5467
  %v5693 = vsel %vm5469, %v5692, %v5691
  %v5694 = vperm.slane %v5033, %v5471
  %v5695 = vsel %vm5473, %v5694, %v5693
  %v5696 = vperm.slane %v5034, %v5475
  %v5697 = vsel %vm5477, %v5696, %v5695
  %v5698 = vperm.slane %v5035, %v5479
  %v5699 = vsel %vm5481, %v5698, %v5697
  %v5700 = vperm.slane %v5036, %v5421
  %v5701 = vperm.slane %v5037, %v5423
  %v5702 = vsel %vm5425, %v5701, %v5700
  %v5703 = vperm.slane %v5038, %v5427
  %v5704 = vsel %vm5429, %v5703, %v5702
  %v5705 = vperm.slane %v5039, %v5431
  %v5706 = vsel %vm5433, %v5705, %v5704
  %v5707 = vperm.slane %v5040, %v5435
  %v5708 = vsel %vm5437, %v5707, %v5706
  %v5709 = vperm.slane %v5041, %v5439
  %v5710 = vsel %vm5441, %v5709, %v5708
  %v5711 = vperm.slane %v5042, %v5443
  %v5712 = vsel %vm5445, %v5711, %v5710
  %v5713 = vperm.slane %v5043, %v5447
  %v5714 = vsel %vm5449, %v5713, %v5712
  %v5715 = vperm.slane %v5044, %v5451
  %v5716 = vsel %vm5453, %v5715, %v5714
  %v5717 = vperm.slane %v5045, %v5455
  %v5718 = vsel %vm5457, %v5717, %v5716
  %v5719 = vperm.slane %v5046, %v5459
  %v5720 = vsel %vm5461, %v5719, %v5718
  %v5721 = vperm.slane %v5047, %v5463
  %v5722 = vsel %vm5465, %v5721, %v5720
  %v5723 = vperm.slane %v5048, %v5467
  %v5724 = vsel %vm5469, %v5723, %v5722
  %v5725 = vperm.slane %v5049, %v5471
  %v5726 = vsel %vm5473, %v5725, %v5724
  %v5727 = vperm.slane %v5050, %v5475
  %v5728 = vsel %vm5477, %v5727, %v5726
  %v5729 = vperm.slane %v5051, %v5479
  %v5730 = vsel %vm5481, %v5729, %v5728
  %v5731 = vperm.slane %v5052, %v5421
  %v5732 = vperm.slane %v5053, %v5423
  %v5733 = vsel %vm5425, %v5732, %v5731
  %v5734 = vperm.slane %v5054, %v5427
  %v5735 = vsel %vm5429, %v5734, %v5733
  %v5736 = vperm.slane %v5055, %v5431
  %v5737 = vsel %vm5433, %v5736, %v5735
  %v5738 = vperm.slane %v5056, %v5435
  %v5739 = vsel %vm5437, %v5738, %v5737
  %v5740 = vperm.slane %v5057, %v5439
  %v5741 = vsel %vm5441, %v5740, %v5739
  %v5742 = vperm.slane %v5058, %v5443
  %v5743 = vsel %vm5445, %v5742, %v5741
  %v5744 = vperm.slane %v5059, %v5447
  %v5745 = vsel %vm5449, %v5744, %v5743
  %v5746 = vperm.slane %v5060, %v5451
  %v5747 = vsel %vm5453, %v5746, %v5745
  %v5748 = vperm.slane %v5061, %v5455
  %v5749 = vsel %vm5457, %v5748, %v5747
  %v5750 = vperm.slane %v5062, %v5459
  %v5751 = vsel %vm5461, %v5750, %v5749
  %v5752 = vperm.slane %v5063, %v5463
  %v5753 = vsel %vm5465, %v5752, %v5751
  %v5754 = vperm.slane %v5064, %v5467
  %v5755 = vsel %vm5469, %v5754, %v5753
  %v5756 = vperm.slane %v5065, %v5471
  %v5757 = vsel %vm5473, %v5756, %v5755
  %v5758 = vperm.slane %v5066, %v5475
  %v5759 = vsel %vm5477, %v5758, %v5757
  %v5760 = vperm.slane %v5067, %v5479
  %v5761 = vsel %vm5481, %v5760, %v5759
  %v5762 = vperm.slane %v5068, %v5421
  %v5763 = vperm.slane %v5069, %v5423
  %v5764 = vsel %vm5425, %v5763, %v5762
  %v5765 = vperm.slane %v5070, %v5427
  %v5766 = vsel %vm5429, %v5765, %v5764
  %v5767 = vperm.slane %v5071, %v5431
  %v5768 = vsel %vm5433, %v5767, %v5766
  %v5769 = vperm.slane %v5072, %v5435
  %v5770 = vsel %vm5437, %v5769, %v5768
  %v5771 = vperm.slane %v5073, %v5439
  %v5772 = vsel %vm5441, %v5771, %v5770
  %v5773 = vperm.slane %v5074, %v5443
  %v5774 = vsel %vm5445, %v5773, %v5772
  %v5775 = vperm.slane %v5075, %v5447
  %v5776 = vsel %vm5449, %v5775, %v5774
  %v5777 = vperm.slane %v5076, %v5451
  %v5778 = vsel %vm5453, %v5777, %v5776
  %v5779 = vperm.slane %v5077, %v5455
  %v5780 = vsel %vm5457, %v5779, %v5778
  %v5781 = vperm.slane %v5078, %v5459
  %v5782 = vsel %vm5461, %v5781, %v5780
  %v5783 = vperm.slane %v5079, %v5463
  %v5784 = vsel %vm5465, %v5783, %v5782
  %v5785 = vperm.slane %v5080, %v5467
  %v5786 = vsel %vm5469, %v5785, %v5784
  %v5787 = vperm.slane %v5081, %v5471
  %v5788 = vsel %vm5473, %v5787, %v5786
  %v5789 = vperm.slane %v5082, %v5475
  %v5790 = vsel %vm5477, %v5789, %v5788
  %v5791 = vperm.slane %v5083, %v5479
  %v5792 = vsel %vm5481, %v5791, %v5790
  %v5793 = vperm.slane %v5084, %v5421
  %v5794 = vperm.slane %v5085, %v5423
  %v5795 = vsel %vm5425, %v5794, %v5793
  %v5796 = vperm.slane %v5086, %v5427
  %v5797 = vsel %vm5429, %v5796, %v5795
  %v5798 = vperm.slane %v5087, %v5431
  %v5799 = vsel %vm5433, %v5798, %v5797
  %v5800 = vperm.slane %v5088, %v5435
  %v5801 = vsel %vm5437, %v5800, %v5799
  %v5802 = vperm.slane %v5089, %v5439
  %v5803 = vsel %vm5441, %v5802, %v5801
  %v5804 = vperm.slane %v5090, %v5443
  %v5805 = vsel %vm5445, %v5804, %v5803
  %v5806 = vperm.slane %v5091, %v5447
  %v5807 = vsel %vm5449, %v5806, %v5805
  %v5808 = vperm.slane %v5092, %v5451
  %v5809 = vsel %vm5453, %v5808, %v5807
  %v5810 = vperm.slane %v5093, %v5455
  %v5811 = vsel %vm5457, %v5810, %v5809
  %v5812 = vperm.slane %v5094, %v5459
  %v5813 = vsel %vm5461, %v5812, %v5811
  %v5814 = vperm.slane %v5095, %v5463
  %v5815 = vsel %vm5465, %v5814, %v5813
  %v5816 = vperm.slane %v5096, %v5467
  %v5817 = vsel %vm5469, %v5816, %v5815
  %v5818 = vperm.slane %v5097, %v5471
  %v5819 = vsel %vm5473, %v5818, %v5817
  %v5820 = vperm.slane %v5098, %v5475
  %v5821 = vsel %vm5477, %v5820, %v5819
  %v5822 = vperm.slane %v5099, %v5479
  %v5823 = vsel %vm5481, %v5822, %v5821
  %v5824 = vperm.slane %v5100, %v5421
  %v5825 = vperm.slane %v5101, %v5423
  %v5826 = vsel %vm5425, %v5825, %v5824
  %v5827 = vperm.slane %v5102, %v5427
  %v5828 = vsel %vm5429, %v5827, %v5826
  %v5829 = vperm.slane %v5103, %v5431
  %v5830 = vsel %vm5433, %v5829, %v5828
  %v5831 = vperm.slane %v5104, %v5435
  %v5832 = vsel %vm5437, %v5831, %v5830
  %v5833 = vperm.slane %v5105, %v5439
  %v5834 = vsel %vm5441, %v5833, %v5832
  %v5835 = vperm.slane %v5106, %v5443
  %v5836 = vsel %vm5445, %v5835, %v5834
  %v5837 = vperm.slane %v5107, %v5447
  %v5838 = vsel %vm5449, %v5837, %v5836
  %v5839 = vperm.slane %v5108, %v5451
  %v5840 = vsel %vm5453, %v5839, %v5838
  %v5841 = vperm.slane %v5109, %v5455
  %v5842 = vsel %vm5457, %v5841, %v5840
  %v5843 = vperm.slane %v5110, %v5459
  %v5844 = vsel %vm5461, %v5843, %v5842
  %v5845 = vperm.slane %v5111, %v5463
  %v5846 = vsel %vm5465, %v5845, %v5844
  %v5847 = vperm.slane %v5112, %v5467
  %v5848 = vsel %vm5469, %v5847, %v5846
  %v5849 = vperm.slane %v5113, %v5471
  %v5850 = vsel %vm5473, %v5849, %v5848
  %v5851 = vperm.slane %v5114, %v5475
  %v5852 = vsel %vm5477, %v5851, %v5850
  %v5853 = vperm.slane %v5115, %v5479
  %v5854 = vsel %vm5481, %v5853, %v5852
  %v5855 = vperm.slane %v5116, %v5421
  %v5856 = vperm.slane %v5117, %v5423
  %v5857 = vsel %vm5425, %v5856, %v5855
  %v5858 = vperm.slane %v5118, %v5427
  %v5859 = vsel %vm5429, %v5858, %v5857
  %v5860 = vperm.slane %v5119, %v5431
  %v5861 = vsel %vm5433, %v5860, %v5859
  %v5862 = vperm.slane %v5120, %v5435
  %v5863 = vsel %vm5437, %v5862, %v5861
  %v5864 = vperm.slane %v5121, %v5439
  %v5865 = vsel %vm5441, %v5864, %v5863
  %v5866 = vperm.slane %v5122, %v5443
  %v5867 = vsel %vm5445, %v5866, %v5865
  %v5868 = vperm.slane %v5123, %v5447
  %v5869 = vsel %vm5449, %v5868, %v5867
  %v5870 = vperm.slane %v5124, %v5451
  %v5871 = vsel %vm5453, %v5870, %v5869
  %v5872 = vperm.slane %v5125, %v5455
  %v5873 = vsel %vm5457, %v5872, %v5871
  %v5874 = vperm.slane %v5126, %v5459
  %v5875 = vsel %vm5461, %v5874, %v5873
  %v5876 = vperm.slane %v5127, %v5463
  %v5877 = vsel %vm5465, %v5876, %v5875
  %v5878 = vperm.slane %v5128, %v5467
  %v5879 = vsel %vm5469, %v5878, %v5877
  %v5880 = vperm.slane %v5129, %v5471
  %v5881 = vsel %vm5473, %v5880, %v5879
  %v5882 = vperm.slane %v5130, %v5475
  %v5883 = vsel %vm5477, %v5882, %v5881
  %v5884 = vperm.slane %v5131, %v5479
  %v5885 = vsel %vm5481, %v5884, %v5883
  %v5886 = vperm.slane %v5132, %v5421
  %v5887 = vperm.slane %v5133, %v5423
  %v5888 = vsel %vm5425, %v5887, %v5886
  %v5889 = vperm.slane %v5134, %v5427
  %v5890 = vsel %vm5429, %v5889, %v5888
  %v5891 = vperm.slane %v5135, %v5431
  %v5892 = vsel %vm5433, %v5891, %v5890
  %v5893 = vperm.slane %v5136, %v5435
  %v5894 = vsel %vm5437, %v5893, %v5892
  %v5895 = vperm.slane %v5137, %v5439
  %v5896 = vsel %vm5441, %v5895, %v5894
  %v5897 = vperm.slane %v5138, %v5443
  %v5898 = vsel %vm5445, %v5897, %v5896
  %v5899 = vperm.slane %v5139, %v5447
  %v5900 = vsel %vm5449, %v5899, %v5898
  %v5901 = vperm.slane %v5140, %v5451
  %v5902 = vsel %vm5453, %v5901, %v5900
  %v5903 = vperm.slane %v5141, %v5455
  %v5904 = vsel %vm5457, %v5903, %v5902
  %v5905 = vperm.slane %v5142, %v5459
  %v5906 = vsel %vm5461, %v5905, %v5904
  %v5907 = vperm.slane %v5143, %v5463
  %v5908 = vsel %vm5465, %v5907, %v5906
  %v5909 = vperm.slane %v5144, %v5467
  %v5910 = vsel %vm5469, %v5909, %v5908
  %v5911 = vperm.slane %v5145, %v5471
  %v5912 = vsel %vm5473, %v5911, %v5910
  %v5913 = vperm.slane %v5146, %v5475
  %v5914 = vsel %vm5477, %v5913, %v5912
  %v5915 = vperm.slane %v5147, %v5479
  %v5916 = vsel %vm5481, %v5915, %v5914
  %v5917 = vperm.slane %v5148, %v5421
  %v5918 = vperm.slane %v5149, %v5423
  %v5919 = vsel %vm5425, %v5918, %v5917
  %v5920 = vperm.slane %v5150, %v5427
  %v5921 = vsel %vm5429, %v5920, %v5919
  %v5922 = vperm.slane %v5151, %v5431
  %v5923 = vsel %vm5433, %v5922, %v5921
  %v5924 = vperm.slane %v5152, %v5435
  %v5925 = vsel %vm5437, %v5924, %v5923
  %v5926 = vperm.slane %v5153, %v5439
  %v5927 = vsel %vm5441, %v5926, %v5925
  %v5928 = vperm.slane %v5154, %v5443
  %v5929 = vsel %vm5445, %v5928, %v5927
  %v5930 = vperm.slane %v5155, %v5447
  %v5931 = vsel %vm5449, %v5930, %v5929
  %v5932 = vperm.slane %v5156, %v5451
  %v5933 = vsel %vm5453, %v5932, %v5931
  %v5934 = vperm.slane %v5157, %v5455
  %v5935 = vsel %vm5457, %v5934, %v5933
  %v5936 = vperm.slane %v5158, %v5459
  %v5937 = vsel %vm5461, %v5936, %v5935
  %v5938 = vperm.slane %v5159, %v5463
  %v5939 = vsel %vm5465, %v5938, %v5937
  %v5940 = vperm.slane %v5160, %v5467
  %v5941 = vsel %vm5469, %v5940, %v5939
  %v5942 = vperm.slane %v5161, %v5471
  %v5943 = vsel %vm5473, %v5942, %v5941
  %v5944 = vperm.slane %v5162, %v5475
  %v5945 = vsel %vm5477, %v5944, %v5943
  %v5946 = vperm.slane %v5163, %v5479
  %v5947 = vsel %vm5481, %v5946, %v5945
  %v5948 = vperm.slane %v5164, %v5421
  %v5949 = vperm.slane %v5165, %v5423
  %v5950 = vsel %vm5425, %v5949, %v5948
  %v5951 = vperm.slane %v5166, %v5427
  %v5952 = vsel %vm5429, %v5951, %v5950
  %v5953 = vperm.slane %v5167, %v5431
  %v5954 = vsel %vm5433, %v5953, %v5952
  %v5955 = vperm.slane %v5168, %v5435
  %v5956 = vsel %vm5437, %v5955, %v5954
  %v5957 = vperm.slane %v5169, %v5439
  %v5958 = vsel %vm5441, %v5957, %v5956
  %v5959 = vperm.slane %v5170, %v5443
  %v5960 = vsel %vm5445, %v5959, %v5958
  %v5961 = vperm.slane %v5171, %v5447
  %v5962 = vsel %vm5449, %v5961, %v5960
  %v5963 = vperm.slane %v5172, %v5451
  %v5964 = vsel %vm5453, %v5963, %v5962
  %v5965 = vperm.slane %v5173, %v5455
  %v5966 = vsel %vm5457, %v5965, %v5964
  %v5967 = vperm.slane %v5174, %v5459
  %v5968 = vsel %vm5461, %v5967, %v5966
  %v5969 = vperm.slane %v5175, %v5463
  %v5970 = vsel %vm5465, %v5969, %v5968
  %v5971 = vperm.slane %v5176, %v5467
  %v5972 = vsel %vm5469, %v5971, %v5970
  %v5973 = vperm.slane %v5177, %v5471
  %v5974 = vsel %vm5473, %v5973, %v5972
  %v5975 = vperm.slane %v5178, %v5475
  %v5976 = vsel %vm5477, %v5975, %v5974
  %v5977 = vperm.slane %v5179, %v5479
  %v5978 = vsel %vm5481, %v5977, %v5976
  %v5979 = vperm.slane %v5180, %v5421
  %v5980 = vperm.slane %v5181, %v5423
  %v5981 = vsel %vm5425, %v5980, %v5979
  %v5982 = vperm.slane %v5182, %v5427
  %v5983 = vsel %vm5429, %v5982, %v5981
  %v5984 = vperm.slane %v5183, %v5431
  %v5985 = vsel %vm5433, %v5984, %v5983
  %v5986 = vperm.slane %v5184, %v5435
  %v5987 = vsel %vm5437, %v5986, %v5985
  %v5988 = vperm.slane %v5185, %v5439
  %v5989 = vsel %vm5441, %v5988, %v5987
  %v5990 = vperm.slane %v5186, %v5443
  %v5991 = vsel %vm5445, %v5990, %v5989
  %v5992 = vperm.slane %v5187, %v5447
  %v5993 = vsel %vm5449, %v5992, %v5991
  %v5994 = vperm.slane %v5188, %v5451
  %v5995 = vsel %vm5453, %v5994, %v5993
  %v5996 = vperm.slane %v5189, %v5455
  %v5997 = vsel %vm5457, %v5996, %v5995
  %v5998 = vperm.slane %v5190, %v5459
  %v5999 = vsel %vm5461, %v5998, %v5997
  %v6000 = vperm.slane %v5191, %v5463
  %v6001 = vsel %vm5465, %v6000, %v5999
  %v6002 = vperm.slane %v5192, %v5467
  %v6003 = vsel %vm5469, %v6002, %v6001
  %v6004 = vperm.slane %v5193, %v5471
  %v6005 = vsel %vm5473, %v6004, %v6003
  %v6006 = vperm.slane %v5194, %v5475
  %v6007 = vsel %vm5477, %v6006, %v6005
  %v6008 = vperm.slane %v5195, %v5479
  %v6009 = vsel %vm5481, %v6008, %v6007
  %v6010 = vperm.slane %v5196, %v5421
  %v6011 = vperm.slane %v5197, %v5423
  %v6012 = vsel %vm5425, %v6011, %v6010
  %v6013 = vperm.slane %v5198, %v5427
  %v6014 = vsel %vm5429, %v6013, %v6012
  %v6015 = vperm.slane %v5199, %v5431
  %v6016 = vsel %vm5433, %v6015, %v6014
  %v6017 = vperm.slane %v5200, %v5435
  %v6018 = vsel %vm5437, %v6017, %v6016
  %v6019 = vperm.slane %v5201, %v5439
  %v6020 = vsel %vm5441, %v6019, %v6018
  %v6021 = vperm.slane %v5202, %v5443
  %v6022 = vsel %vm5445, %v6021, %v6020
  %v6023 = vperm.slane %v5203, %v5447
  %v6024 = vsel %vm5449, %v6023, %v6022
  %v6025 = vperm.slane %v5204, %v5451
  %v6026 = vsel %vm5453, %v6025, %v6024
  %v6027 = vperm.slane %v5205, %v5455
  %v6028 = vsel %vm5457, %v6027, %v6026
  %v6029 = vperm.slane %v5206, %v5459
  %v6030 = vsel %vm5461, %v6029, %v6028
  %v6031 = vperm.slane %v5207, %v5463
  %v6032 = vsel %vm5465, %v6031, %v6030
  %v6033 = vperm.slane %v5208, %v5467
  %v6034 = vsel %vm5469, %v6033, %v6032
  %v6035 = vperm.slane %v5209, %v5471
  %v6036 = vsel %vm5473, %v6035, %v6034
  %v6037 = vperm.slane %v5210, %v5475
  %v6038 = vsel %vm5477, %v6037, %v6036
  %v6039 = vperm.slane %v5211, %v5479
  %v6040 = vsel %vm5481, %v6039, %v6038
  %v6041 = vperm.slane %v5212, %v5421
  %v6042 = vperm.slane %v5213, %v5423
  %v6043 = vsel %vm5425, %v6042, %v6041
  %v6044 = vperm.slane %v5214, %v5427
  %v6045 = vsel %vm5429, %v6044, %v6043
  %v6046 = vperm.slane %v5215, %v5431
  %v6047 = vsel %vm5433, %v6046, %v6045
  %v6048 = vperm.slane %v5216, %v5435
  %v6049 = vsel %vm5437, %v6048, %v6047
  %v6050 = vperm.slane %v5217, %v5439
  %v6051 = vsel %vm5441, %v6050, %v6049
  %v6052 = vperm.slane %v5218, %v5443
  %v6053 = vsel %vm5445, %v6052, %v6051
  %v6054 = vperm.slane %v5219, %v5447
  %v6055 = vsel %vm5449, %v6054, %v6053
  %v6056 = vperm.slane %v5220, %v5451
  %v6057 = vsel %vm5453, %v6056, %v6055
  %v6058 = vperm.slane %v5221, %v5455
  %v6059 = vsel %vm5457, %v6058, %v6057
  %v6060 = vperm.slane %v5222, %v5459
  %v6061 = vsel %vm5461, %v6060, %v6059
  %v6062 = vperm.slane %v5223, %v5463
  %v6063 = vsel %vm5465, %v6062, %v6061
  %v6064 = vperm.slane %v5224, %v5467
  %v6065 = vsel %vm5469, %v6064, %v6063
  %v6066 = vperm.slane %v5225, %v5471
  %v6067 = vsel %vm5473, %v6066, %v6065
  %v6068 = vperm.slane %v5226, %v5475
  %v6069 = vsel %vm5477, %v6068, %v6067
  %v6070 = vperm.slane %v5227, %v5479
  %v6071 = vsel %vm5481, %v6070, %v6069
  %v6072 = vperm.slane %v5228, %v5421
  %v6073 = vperm.slane %v5229, %v5423
  %v6074 = vsel %vm5425, %v6073, %v6072
  %v6075 = vperm.slane %v5230, %v5427
  %v6076 = vsel %vm5429, %v6075, %v6074
  %v6077 = vperm.slane %v5231, %v5431
  %v6078 = vsel %vm5433, %v6077, %v6076
  %v6079 = vperm.slane %v5232, %v5435
  %v6080 = vsel %vm5437, %v6079, %v6078
  %v6081 = vperm.slane %v5233, %v5439
  %v6082 = vsel %vm5441, %v6081, %v6080
  %v6083 = vperm.slane %v5234, %v5443
  %v6084 = vsel %vm5445, %v6083, %v6082
  %v6085 = vperm.slane %v5235, %v5447
  %v6086 = vsel %vm5449, %v6085, %v6084
  %v6087 = vperm.slane %v5236, %v5451
  %v6088 = vsel %vm5453, %v6087, %v6086
  %v6089 = vperm.slane %v5237, %v5455
  %v6090 = vsel %vm5457, %v6089, %v6088
  %v6091 = vperm.slane %v5238, %v5459
  %v6092 = vsel %vm5461, %v6091, %v6090
  %v6093 = vperm.slane %v5239, %v5463
  %v6094 = vsel %vm5465, %v6093, %v6092
  %v6095 = vperm.slane %v5240, %v5467
  %v6096 = vsel %vm5469, %v6095, %v6094
  %v6097 = vperm.slane %v5241, %v5471
  %v6098 = vsel %vm5473, %v6097, %v6096
  %v6099 = vperm.slane %v5242, %v5475
  %v6100 = vsel %vm5477, %v6099, %v6098
  %v6101 = vperm.slane %v5243, %v5479
  %v6102 = vsel %vm5481, %v6101, %v6100
  %v6103 = vperm.slane %v5244, %v5421
  %v6104 = vperm.slane %v5245, %v5423
  %v6105 = vsel %vm5425, %v6104, %v6103
  %v6106 = vperm.slane %v5246, %v5427
  %v6107 = vsel %vm5429, %v6106, %v6105
  %v6108 = vperm.slane %v5247, %v5431
  %v6109 = vsel %vm5433, %v6108, %v6107
  %v6110 = vperm.slane %v5248, %v5435
  %v6111 = vsel %vm5437, %v6110, %v6109
  %v6112 = vperm.slane %v5249, %v5439
  %v6113 = vsel %vm5441, %v6112, %v6111
  %v6114 = vperm.slane %v5250, %v5443
  %v6115 = vsel %vm5445, %v6114, %v6113
  %v6116 = vperm.slane %v5251, %v5447
  %v6117 = vsel %vm5449, %v6116, %v6115
  %v6118 = vperm.slane %v5252, %v5451
  %v6119 = vsel %vm5453, %v6118, %v6117
  %v6120 = vperm.slane %v5253, %v5455
  %v6121 = vsel %vm5457, %v6120, %v6119
  %v6122 = vperm.slane %v5254, %v5459
  %v6123 = vsel %vm5461, %v6122, %v6121
  %v6124 = vperm.slane %v5255, %v5463
  %v6125 = vsel %vm5465, %v6124, %v6123
  %v6126 = vperm.slane %v5256, %v5467
  %v6127 = vsel %vm5469, %v6126, %v6125
  %v6128 = vperm.slane %v5257, %v5471
  %v6129 = vsel %vm5473, %v6128, %v6127
  %v6130 = vperm.slane %v5258, %v5475
  %v6131 = vsel %vm5477, %v6130, %v6129
  %v6132 = vperm.slane %v5259, %v5479
  %v6133 = vsel %vm5481, %v6132, %v6131
  %v6134 = vperm.slane %v5260, %v5421
  %v6135 = vperm.slane %v5261, %v5423
  %v6136 = vsel %vm5425, %v6135, %v6134
  %v6137 = vperm.slane %v5262, %v5427
  %v6138 = vsel %vm5429, %v6137, %v6136
  %v6139 = vperm.slane %v5263, %v5431
  %v6140 = vsel %vm5433, %v6139, %v6138
  %v6141 = vperm.slane %v5264, %v5435
  %v6142 = vsel %vm5437, %v6141, %v6140
  %v6143 = vperm.slane %v5265, %v5439
  %v6144 = vsel %vm5441, %v6143, %v6142
  %v6145 = vperm.slane %v5266, %v5443
  %v6146 = vsel %vm5445, %v6145, %v6144
  %v6147 = vperm.slane %v5267, %v5447
  %v6148 = vsel %vm5449, %v6147, %v6146
  %v6149 = vperm.slane %v5268, %v5451
  %v6150 = vsel %vm5453, %v6149, %v6148
  %v6151 = vperm.slane %v5269, %v5455
  %v6152 = vsel %vm5457, %v6151, %v6150
  %v6153 = vperm.slane %v5270, %v5459
  %v6154 = vsel %vm5461, %v6153, %v6152
  %v6155 = vperm.slane %v5271, %v5463
  %v6156 = vsel %vm5465, %v6155, %v6154
  %v6157 = vperm.slane %v5272, %v5467
  %v6158 = vsel %vm5469, %v6157, %v6156
  %v6159 = vperm.slane %v5273, %v5471
  %v6160 = vsel %vm5473, %v6159, %v6158
  %v6161 = vperm.slane %v5274, %v5475
  %v6162 = vsel %vm5477, %v6161, %v6160
  %v6163 = vperm.slane %v5275, %v5479
  %v6164 = vsel %vm5481, %v6163, %v6162
  %v6165 = vperm.slane %v5276, %v5421
  %v6166 = vperm.slane %v5277, %v5423
  %v6167 = vsel %vm5425, %v6166, %v6165
  %v6168 = vperm.slane %v5278, %v5427
  %v6169 = vsel %vm5429, %v6168, %v6167
  %v6170 = vperm.slane %v5279, %v5431
  %v6171 = vsel %vm5433, %v6170, %v6169
  %v6172 = vperm.slane %v5280, %v5435
  %v6173 = vsel %vm5437, %v6172, %v6171
  %v6174 = vperm.slane %v5281, %v5439
  %v6175 = vsel %vm5441, %v6174, %v6173
  %v6176 = vperm.slane %v5282, %v5443
  %v6177 = vsel %vm5445, %v6176, %v6175
  %v6178 = vperm.slane %v5283, %v5447
  %v6179 = vsel %vm5449, %v6178, %v6177
  %v6180 = vperm.slane %v5284, %v5451
  %v6181 = vsel %vm5453, %v6180, %v6179
  %v6182 = vperm.slane %v5285, %v5455
  %v6183 = vsel %vm5457, %v6182, %v6181
  %v6184 = vperm.slane %v5286, %v5459
  %v6185 = vsel %vm5461, %v6184, %v6183
  %v6186 = vperm.slane %v5287, %v5463
  %v6187 = vsel %vm5465, %v6186, %v6185
  %v6188 = vperm.slane %v5288, %v5467
  %v6189 = vsel %vm5469, %v6188, %v6187
  %v6190 = vperm.slane %v5289, %v5471
  %v6191 = vsel %vm5473, %v6190, %v6189
  %v6192 = vperm.slane %v5290, %v5475
  %v6193 = vsel %vm5477, %v6192, %v6191
  %v6194 = vperm.slane %v5291, %v5479
  %v6195 = vsel %vm5481, %v6194, %v6193
  %v6196 = vperm.slane %v5292, %v5421
  %v6197 = vperm.slane %v5293, %v5423
  %v6198 = vsel %vm5425, %v6197, %v6196
  %v6199 = vperm.slane %v5294, %v5427
  %v6200 = vsel %vm5429, %v6199, %v6198
  %v6201 = vperm.slane %v5295, %v5431
  %v6202 = vsel %vm5433, %v6201, %v6200
  %v6203 = vperm.slane %v5296, %v5435
  %v6204 = vsel %vm5437, %v6203, %v6202
  %v6205 = vperm.slane %v5297, %v5439
  %v6206 = vsel %vm5441, %v6205, %v6204
  %v6207 = vperm.slane %v5298, %v5443
  %v6208 = vsel %vm5445, %v6207, %v6206
  %v6209 = vperm.slane %v5299, %v5447
  %v6210 = vsel %vm5449, %v6209, %v6208
  %v6211 = vperm.slane %v5300, %v5451
  %v6212 = vsel %vm5453, %v6211, %v6210
  %v6213 = vperm.slane %v5301, %v5455
  %v6214 = vsel %vm5457, %v6213, %v6212
  %v6215 = vperm.slane %v5302, %v5459
  %v6216 = vsel %vm5461, %v6215, %v6214
  %v6217 = vperm.slane %v5303, %v5463
  %v6218 = vsel %vm5465, %v6217, %v6216
  %v6219 = vperm.slane %v5304, %v5467
  %v6220 = vsel %vm5469, %v6219, %v6218
  %v6221 = vperm.slane %v5305, %v5471
  %v6222 = vsel %vm5473, %v6221, %v6220
  %v6223 = vperm.slane %v5306, %v5475
  %v6224 = vsel %vm5477, %v6223, %v6222
  %v6225 = vperm.slane %v5307, %v5479
  %v6226 = vsel %vm5481, %v6225, %v6224
  %v6227 = vperm.slane %v5308, %v5421
  %v6228 = vperm.slane %v5309, %v5423
  %v6229 = vsel %vm5425, %v6228, %v6227
  %v6230 = vperm.slane %v5310, %v5427
  %v6231 = vsel %vm5429, %v6230, %v6229
  %v6232 = vperm.slane %v5311, %v5431
  %v6233 = vsel %vm5433, %v6232, %v6231
  %v6234 = vperm.slane %v5312, %v5435
  %v6235 = vsel %vm5437, %v6234, %v6233
  %v6236 = vperm.slane %v5313, %v5439
  %v6237 = vsel %vm5441, %v6236, %v6235
  %v6238 = vperm.slane %v5314, %v5443
  %v6239 = vsel %vm5445, %v6238, %v6237
  %v6240 = vperm.slane %v5315, %v5447
  %v6241 = vsel %vm5449, %v6240, %v6239
  %v6242 = vperm.slane %v5316, %v5451
  %v6243 = vsel %vm5453, %v6242, %v6241
  %v6244 = vperm.slane %v5317, %v5455
  %v6245 = vsel %vm5457, %v6244, %v6243
  %v6246 = vperm.slane %v5318, %v5459
  %v6247 = vsel %vm5461, %v6246, %v6245
  %v6248 = vperm.slane %v5319, %v5463
  %v6249 = vsel %vm5465, %v6248, %v6247
  %v6250 = vperm.slane %v5320, %v5467
  %v6251 = vsel %vm5469, %v6250, %v6249
  %v6252 = vperm.slane %v5321, %v5471
  %v6253 = vsel %vm5473, %v6252, %v6251
  %v6254 = vperm.slane %v5322, %v5475
  %v6255 = vsel %vm5477, %v6254, %v6253
  %v6256 = vperm.slane %v5323, %v5479
  %v6257 = vsel %vm5481, %v6256, %v6255
  %v6258 = vperm.slane %v5324, %v5421
  %v6259 = vperm.slane %v5325, %v5423
  %v6260 = vsel %vm5425, %v6259, %v6258
  %v6261 = vperm.slane %v5326, %v5427
  %v6262 = vsel %vm5429, %v6261, %v6260
  %v6263 = vperm.slane %v5327, %v5431
  %v6264 = vsel %vm5433, %v6263, %v6262
  %v6265 = vperm.slane %v5328, %v5435
  %v6266 = vsel %vm5437, %v6265, %v6264
  %v6267 = vperm.slane %v5329, %v5439
  %v6268 = vsel %vm5441, %v6267, %v6266
  %v6269 = vperm.slane %v5330, %v5443
  %v6270 = vsel %vm5445, %v6269, %v6268
  %v6271 = vperm.slane %v5331, %v5447
  %v6272 = vsel %vm5449, %v6271, %v6270
  %v6273 = vperm.slane %v5332, %v5451
  %v6274 = vsel %vm5453, %v6273, %v6272
  %v6275 = vperm.slane %v5333, %v5455
  %v6276 = vsel %vm5457, %v6275, %v6274
  %v6277 = vperm.slane %v5334, %v5459
  %v6278 = vsel %vm5461, %v6277, %v6276
  %v6279 = vperm.slane %v5335, %v5463
  %v6280 = vsel %vm5465, %v6279, %v6278
  %v6281 = vperm.slane %v5336, %v5467
  %v6282 = vsel %vm5469, %v6281, %v6280
  %v6283 = vperm.slane %v5337, %v5471
  %v6284 = vsel %vm5473, %v6283, %v6282
  %v6285 = vperm.slane %v5338, %v5475
  %v6286 = vsel %vm5477, %v6285, %v6284
  %v6287 = vperm.slane %v5339, %v5479
  %v6288 = vsel %vm5481, %v6287, %v6286
  %v6289 = vperm.slane %v5340, %v5421
  %v6290 = vperm.slane %v5341, %v5423
  %v6291 = vsel %vm5425, %v6290, %v6289
  %v6292 = vperm.slane %v5342, %v5427
  %v6293 = vsel %vm5429, %v6292, %v6291
  %v6294 = vperm.slane %v5343, %v5431
  %v6295 = vsel %vm5433, %v6294, %v6293
  %v6296 = vperm.slane %v5344, %v5435
  %v6297 = vsel %vm5437, %v6296, %v6295
  %v6298 = vperm.slane %v5345, %v5439
  %v6299 = vsel %vm5441, %v6298, %v6297
  %v6300 = vperm.slane %v5346, %v5443
  %v6301 = vsel %vm5445, %v6300, %v6299
  %v6302 = vperm.slane %v5347, %v5447
  %v6303 = vsel %vm5449, %v6302, %v6301
  %v6304 = vperm.slane %v5348, %v5451
  %v6305 = vsel %vm5453, %v6304, %v6303
  %v6306 = vperm.slane %v5349, %v5455
  %v6307 = vsel %vm5457, %v6306, %v6305
  %v6308 = vperm.slane %v5350, %v5459
  %v6309 = vsel %vm5461, %v6308, %v6307
  %v6310 = vperm.slane %v5351, %v5463
  %v6311 = vsel %vm5465, %v6310, %v6309
  %v6312 = vperm.slane %v5352, %v5467
  %v6313 = vsel %vm5469, %v6312, %v6311
  %v6314 = vperm.slane %v5353, %v5471
  %v6315 = vsel %vm5473, %v6314, %v6313
  %v6316 = vperm.slane %v5354, %v5475
  %v6317 = vsel %vm5477, %v6316, %v6315
  %v6318 = vperm.slane %v5355, %v5479
  %v6319 = vsel %vm5481, %v6318, %v6317
  %v6320 = vperm.slane %v5356, %v5421
  %v6321 = vperm.slane %v5357, %v5423
  %v6322 = vsel %vm5425, %v6321, %v6320
  %v6323 = vperm.slane %v5358, %v5427
  %v6324 = vsel %vm5429, %v6323, %v6322
  %v6325 = vperm.slane %v5359, %v5431
  %v6326 = vsel %vm5433, %v6325, %v6324
  %v6327 = vperm.slane %v5360, %v5435
  %v6328 = vsel %vm5437, %v6327, %v6326
  %v6329 = vperm.slane %v5361, %v5439
  %v6330 = vsel %vm5441, %v6329, %v6328
  %v6331 = vperm.slane %v5362, %v5443
  %v6332 = vsel %vm5445, %v6331, %v6330
  %v6333 = vperm.slane %v5363, %v5447
  %v6334 = vsel %vm5449, %v6333, %v6332
  %v6335 = vperm.slane %v5364, %v5451
  %v6336 = vsel %vm5453, %v6335, %v6334
  %v6337 = vperm.slane %v5365, %v5455
  %v6338 = vsel %vm5457, %v6337, %v6336
  %v6339 = vperm.slane %v5366, %v5459
  %v6340 = vsel %vm5461, %v6339, %v6338
  %v6341 = vperm.slane %v5367, %v5463
  %v6342 = vsel %vm5465, %v6341, %v6340
  %v6343 = vperm.slane %v5368, %v5467
  %v6344 = vsel %vm5469, %v6343, %v6342
  %v6345 = vperm.slane %v5369, %v5471
  %v6346 = vsel %vm5473, %v6345, %v6344
  %v6347 = vperm.slane %v5370, %v5475
  %v6348 = vsel %vm5477, %v6347, %v6346
  %v6349 = vperm.slane %v5371, %v5479
  %v6350 = vsel %vm5481, %v6349, %v6348
  %v6351 = vperm.slane %v5372, %v5421
  %v6352 = vperm.slane %v5373, %v5423
  %v6353 = vsel %vm5425, %v6352, %v6351
  %v6354 = vperm.slane %v5374, %v5427
  %v6355 = vsel %vm5429, %v6354, %v6353
  %v6356 = vperm.slane %v5375, %v5431
  %v6357 = vsel %vm5433, %v6356, %v6355
  %v6358 = vperm.slane %v5376, %v5435
  %v6359 = vsel %vm5437, %v6358, %v6357
  %v6360 = vperm.slane %v5377, %v5439
  %v6361 = vsel %vm5441, %v6360, %v6359
  %v6362 = vperm.slane %v5378, %v5443
  %v6363 = vsel %vm5445, %v6362, %v6361
  %v6364 = vperm.slane %v5379, %v5447
  %v6365 = vsel %vm5449, %v6364, %v6363
  %v6366 = vperm.slane %v5380, %v5451
  %v6367 = vsel %vm5453, %v6366, %v6365
  %v6368 = vperm.slane %v5381, %v5455
  %v6369 = vsel %vm5457, %v6368, %v6367
  %v6370 = vperm.slane %v5382, %v5459
  %v6371 = vsel %vm5461, %v6370, %v6369
  %v6372 = vperm.slane %v5383, %v5463
  %v6373 = vsel %vm5465, %v6372, %v6371
  %v6374 = vperm.slane %v5384, %v5467
  %v6375 = vsel %vm5469, %v6374, %v6373
  %v6376 = vperm.slane %v5385, %v5471
  %v6377 = vsel %vm5473, %v6376, %v6375
  %v6378 = vperm.slane %v5386, %v5475
  %v6379 = vsel %vm5477, %v6378, %v6377
  %v6380 = vperm.slane %v5387, %v5479
  %v6381 = vsel %vm5481, %v6380, %v6379
  %v6382 = vperm.slane %v5388, %v5421
  %v6383 = vperm.slane %v5389, %v5423
  %v6384 = vsel %vm5425, %v6383, %v6382
  %v6385 = vperm.slane %v5390, %v5427
  %v6386 = vsel %vm5429, %v6385, %v6384
  %v6387 = vperm.slane %v5391, %v5431
  %v6388 = vsel %vm5433, %v6387, %v6386
  %v6389 = vperm.slane %v5392, %v5435
  %v6390 = vsel %vm5437, %v6389, %v6388
  %v6391 = vperm.slane %v5393, %v5439
  %v6392 = vsel %vm5441, %v6391, %v6390
  %v6393 = vperm.slane %v5394, %v5443
  %v6394 = vsel %vm5445, %v6393, %v6392
  %v6395 = vperm.slane %v5395, %v5447
  %v6396 = vsel %vm5449, %v6395, %v6394
  %v6397 = vperm.slane %v5396, %v5451
  %v6398 = vsel %vm5453, %v6397, %v6396
  %v6399 = vperm.slane %v5397, %v5455
  %v6400 = vsel %vm5457, %v6399, %v6398
  %v6401 = vperm.slane %v5398, %v5459
  %v6402 = vsel %vm5461, %v6401, %v6400
  %v6403 = vperm.slane %v5399, %v5463
  %v6404 = vsel %vm5465, %v6403, %v6402
  %v6405 = vperm.slane %v5400, %v5467
  %v6406 = vsel %vm5469, %v6405, %v6404
  %v6407 = vperm.slane %v5401, %v5471
  %v6408 = vsel %vm5473, %v6407, %v6406
  %v6409 = vperm.slane %v5402, %v5475
  %v6410 = vsel %vm5477, %v6409, %v6408
  %v6411 = vperm.slane %v5403, %v5479
  %v6412 = vsel %vm5481, %v6411, %v6410
  %v6413 = vperm.slane %v5404, %v5421
  %v6414 = vperm.slane %v5405, %v5423
  %v6415 = vsel %vm5425, %v6414, %v6413
  %v6416 = vperm.slane %v5406, %v5427
  %v6417 = vsel %vm5429, %v6416, %v6415
  %v6418 = vperm.slane %v5407, %v5431
  %v6419 = vsel %vm5433, %v6418, %v6417
  %v6420 = vperm.slane %v5408, %v5435
  %v6421 = vsel %vm5437, %v6420, %v6419
  %v6422 = vperm.slane %v5409, %v5439
  %v6423 = vsel %vm5441, %v6422, %v6421
  %v6424 = vperm.slane %v5410, %v5443
  %v6425 = vsel %vm5445, %v6424, %v6423
  %v6426 = vperm.slane %v5411, %v5447
  %v6427 = vsel %vm5449, %v6426, %v6425
  %v6428 = vperm.slane %v5412, %v5451
  %v6429 = vsel %vm5453, %v6428, %v6427
  %v6430 = vperm.slane %v5413, %v5455
  %v6431 = vsel %vm5457, %v6430, %v6429
  %v6432 = vperm.slane %v5414, %v5459
  %v6433 = vsel %vm5461, %v6432, %v6431
  %v6434 = vperm.slane %v5415, %v5463
  %v6435 = vsel %vm5465, %v6434, %v6433
  %v6436 = vperm.slane %v5416, %v5467
  %v6437 = vsel %vm5469, %v6436, %v6435
  %v6438 = vperm.slane %v5417, %v5471
  %v6439 = vsel %vm5473, %v6438, %v6437
  %v6440 = vperm.slane %v5418, %v5475
  %v6441 = vsel %vm5477, %v6440, %v6439
  %v6442 = vperm.slane %v5419, %v5479
  %v6443 = vsel %vm5481, %v6442, %v6441
  %vm6444 = vcmask 1041409
  %v6445 = vsel %vm6444, %v5978, %v5482
  %v6446 = vsel %vm6444, %v6009, %v5513
  %v6447 = vsel %vm6444, %v6040, %v5544
  %v6448 = vsel %vm6444, %v6071, %v5575
  %v6449 = vsel %vm6444, %v6102, %v5606
  %v6450 = vsel %vm6444, %v6133, %v5637
  %v6451 = vsel %vm6444, %v6164, %v5668
  %v6452 = vsel %vm6444, %v6195, %v5699
  %v6453 = vsel %vm6444, %v6226, %v5730
  %v6454 = vsel %vm6444, %v6257, %v5761
  %v6455 = vsel %vm6444, %v6288, %v5792
  %v6456 = vsel %vm6444, %v6319, %v5823
  %v6457 = vsel %vm6444, %v6350, %v5854
  %v6458 = vsel %vm6444, %v6381, %v5885
  %v6459 = vsel %vm6444, %v6412, %v5916
  %v6460 = vsel %vm6444, %v6443, %v5947
  %v6461 = vpack.c.b16 %v6445, %v6445
  %v6462 = vpack.c.b16 %v6446, %v6446
  %v6463 = vpack.c.b16 %v6447, %v6447
  %v6464 = vpack.c.b16 %v6448, %v6448
  %v6465 = vpack.c.b16 %v6449, %v6449
  %v6466 = vpack.c.b16 %v6450, %v6450
  %v6467 = vpack.c.b16 %v6451, %v6451
  %v6468 = vpack.c.b16 %v6452, %v6452
  %v6469 = vpack.c.b16 %v6453, %v6453
  %v6470 = vpack.c.b16 %v6454, %v6454
  %v6471 = vpack.c.b16 %v6455, %v6455
  %v6472 = vpack.c.b16 %v6456, %v6456
  %v6473 = vpack.c.b16 %v6457, %v6457
  %v6474 = vpack.c.b16 %v6458, %v6458
  %v6475 = vpack.c.b16 %v6459, %v6459
  %v6476 = vpack.c.b16 %v6460, %v6460
  %v7261 = vunpack.c.l.b16 %v3870
  %v7262 = vunpack.c.h.b16 %v3870
  %v7263 = vunpack.c.l.b16 %v3871
  %v7264 = vunpack.c.h.b16 %v3871
  %v7265 = vunpack.c.l.b16 %v3872
  %v7266 = vunpack.c.h.b16 %v3872
  %v7267 = vunpack.c.l.b16 %v3873
  %v7268 = vunpack.c.h.b16 %v3873
  %v7269 = vunpack.c.l.b16 %v3874
  %v7270 = vunpack.c.h.b16 %v3874
  %v7271 = vunpack.c.l.b16 %v3875
  %v7272 = vunpack.c.h.b16 %v3875
  %v7273 = vunpack.c.l.b16 %v3876
  %v7274 = vunpack.c.h.b16 %v3876
  %v7275 = vunpack.c.l.b16 %v3877
  %v7276 = vunpack.c.h.b16 %v3877
  %v7277 = vunpack.c.l.b16 %v3878
  %v7278 = vunpack.c.h.b16 %v3878
  %v7279 = vunpack.c.l.b16 %v3879
  %v7280 = vunpack.c.h.b16 %v3879
  %v7281 = vunpack.c.l.b16 %v3880
  %v7282 = vunpack.c.h.b16 %v3880
  %v7283 = vunpack.c.l.b16 %v3881
  %v7284 = vunpack.c.h.b16 %v3881
  %v7285 = vunpack.c.l.b16 %v3882
  %v7286 = vunpack.c.h.b16 %v3882
  %v7287 = vunpack.c.l.b16 %v3883
  %v7288 = vunpack.c.h.b16 %v3883
  %v7289 = vunpack.c.l.b16 %v3884
  %v7290 = vunpack.c.h.b16 %v3884
  %v7291 = vunpack.c.l.b16 %v3885
  %v7292 = vunpack.c.h.b16 %v3885
  %v7293 = vunpack.c.l.b16 %v3886
  %v7294 = vunpack.c.h.b16 %v3886
  %v7295 = vunpack.c.l.b16 %v3887
  %v7296 = vunpack.c.h.b16 %v3887
  %v7297 = vunpack.c.l.b16 %v3888
  %v7298 = vunpack.c.h.b16 %v3888
  %v7299 = vunpack.c.l.b16 %v3889
  %v7300 = vunpack.c.h.b16 %v3889
  %v7301 = vunpack.c.l.b16 %v3890
  %v7302 = vunpack.c.h.b16 %v3890
  %v7303 = vunpack.c.l.b16 %v3891
  %v7304 = vunpack.c.h.b16 %v3891
  %v7305 = vunpack.c.l.b16 %v3892
  %v7306 = vunpack.c.h.b16 %v3892
  %v7307 = vunpack.c.l.b16 %v3893
  %v7308 = vunpack.c.h.b16 %v3893
  %v7309 = vunpack.c.l.b16 %v3894
  %v7310 = vunpack.c.h.b16 %v3894
  %v7311 = vunpack.c.l.b16 %v3895
  %v7312 = vunpack.c.h.b16 %v3895
  %v7313 = vunpack.c.l.b16 %v3896
  %v7314 = vunpack.c.h.b16 %v3896
  %v7315 = vunpack.c.l.b16 %v3897
  %v7316 = vunpack.c.h.b16 %v3897
  %v7317 = vunpack.c.l.b16 %v3898
  %v7318 = vunpack.c.h.b16 %v3898
  %v7319 = vunpack.c.l.b16 %v3899
  %v7320 = vunpack.c.h.b16 %v3899
  %v7321 = vunpack.c.l.b16 %v3900
  %v7322 = vunpack.c.h.b16 %v3900
  %v7323 = vunpack.c.l.b16 %v3901
  %v7324 = vunpack.c.h.b16 %v3901
  %v7325 = vunpack.c.l.b16 %v3902
  %v7326 = vunpack.c.h.b16 %v3902
  %v7327 = vunpack.c.l.b16 %v3903
  %v7328 = vunpack.c.h.b16 %v3903
  %v7329 = vunpack.c.l.b16 %v3904
  %v7330 = vunpack.c.h.b16 %v3904
  %v7331 = vunpack.c.l.b16 %v3905
  %v7332 = vunpack.c.h.b16 %v3905
  %v7333 = vunpack.c.l.b16 %v3906
  %v7334 = vunpack.c.h.b16 %v3906
  %v7335 = vunpack.c.l.b16 %v3907
  %v7336 = vunpack.c.h.b16 %v3907
  %v7337 = vunpack.c.l.b16 %v3908
  %v7338 = vunpack.c.h.b16 %v3908
  %v7339 = vunpack.c.l.b16 %v3909
  %v7340 = vunpack.c.h.b16 %v3909
  %v7341 = vunpack.c.l.b16 %v3910
  %v7342 = vunpack.c.h.b16 %v3910
  %v7343 = vunpack.c.l.b16 %v3911
  %v7344 = vunpack.c.h.b16 %v3911
  %v7345 = vunpack.c.l.b16 %v3912
  %v7346 = vunpack.c.h.b16 %v3912
  %v7347 = vunpack.c.l.b16 %v3913
  %v7348 = vunpack.c.h.b16 %v3913
  %v7349 = vunpack.c.l.b16 %v3914
  %v7350 = vunpack.c.h.b16 %v3914
  %v7351 = vunpack.c.l.b16 %v3915
  %v7352 = vunpack.c.h.b16 %v3915
  %v7353 = vunpack.c.l.b16 %v3916
  %v7354 = vunpack.c.h.b16 %v3916
  %v7355 = vunpack.c.l.b16 %v3917
  %v7356 = vunpack.c.h.b16 %v3917
  %v7357 = vunpack.c.l.b16 %v3918
  %v7358 = vunpack.c.h.b16 %v3918
  %v7359 = vunpack.c.l.b16 %v3919
  %v7360 = vunpack.c.h.b16 %v3919
  %v7361 = vunpack.c.l.b16 %v3920
  %v7362 = vunpack.c.h.b16 %v3920
  %v7363 = vunpack.c.l.b16 %v3921
  %v7364 = vunpack.c.h.b16 %v3921
  %v7365 = vunpack.c.l.b16 %v3922
  %v7366 = vunpack.c.h.b16 %v3922
  %v7367 = vunpack.c.l.b16 %v3923
  %v7368 = vunpack.c.h.b16 %v3923
  %v7369 = vunpack.c.l.b16 %v3924
  %v7370 = vunpack.c.h.b16 %v3924
  %v7371 = vunpack.c.l.b16 %v3925
  %v7372 = vunpack.c.h.b16 %v3925
  %v7373 = vunpack.c.l.b16 %v3926
  %v7374 = vunpack.c.h.b16 %v3926
  %v7375 = vunpack.c.l.b16 %v3927
  %v7376 = vunpack.c.h.b16 %v3927
  %v7377 = vunpack.c.l.b16 %v3928
  %v7378 = vunpack.c.h.b16 %v3928
  %v7379 = vunpack.c.l.b16 %v3929
  %v7380 = vunpack.c.h.b16 %v3929
  %v7381 = vunpack.c.l.b16 %v3930
  %v7382 = vunpack.c.h.b16 %v3930
  %v7383 = vunpack.c.l.b16 %v3931
  %v7384 = vunpack.c.h.b16 %v3931
  %v7385 = vunpack.c.l.b16 %v3932
  %v7386 = vunpack.c.h.b16 %v3932
  %v7387 = vunpack.c.l.b16 %v3933
  %v7388 = vunpack.c.h.b16 %v3933
  %v7389 = vunpack.c.l.b16 %v3934
  %v7390 = vunpack.c.h.b16 %v3934
  %v7391 = vunpack.c.l.b16 %v3935
  %v7392 = vunpack.c.h.b16 %v3935
  %v7393 = vunpack.c.l.b16 %v3936
  %v7394 = vunpack.c.h.b16 %v3936
  %v7395 = vunpack.c.l.b16 %v3937
  %v7396 = vunpack.c.h.b16 %v3937
  %v7397 = vunpack.c.l.b16 %v3938
  %v7398 = vunpack.c.h.b16 %v3938
  %v7399 = vunpack.c.l.b16 %v3939
  %v7400 = vunpack.c.h.b16 %v3939
  %v7401 = vunpack.c.l.b16 %v3940
  %v7402 = vunpack.c.h.b16 %v3940
  %v7403 = vunpack.c.l.b16 %v3941
  %v7404 = vunpack.c.h.b16 %v3941
  %v7405 = vunpack.c.l.b16 %v3942
  %v7406 = vunpack.c.h.b16 %v3942
  %v7407 = vunpack.c.l.b16 %v3943
  %v7408 = vunpack.c.h.b16 %v3943
  %v7409 = vunpack.c.l.b16 %v3944
  %v7410 = vunpack.c.h.b16 %v3944
  %v7411 = vunpack.c.l.b16 %v3945
  %v7412 = vunpack.c.h.b16 %v3945
  %v7413 = vunpack.c.l.b16 %v3946
  %v7414 = vunpack.c.h.b16 %v3946
  %v7415 = vunpack.c.l.b16 %v3947
  %v7416 = vunpack.c.h.b16 %v3947
  %v7417 = vunpack.c.l.b16 %v3948
  %v7418 = vunpack.c.h.b16 %v3948
  %v7419 = vunpack.c.l.b16 %v3949
  %v7420 = vunpack.c.h.b16 %v3949
  %v7421 = vunpack.c.l.b16 %v3950
  %v7422 = vunpack.c.h.b16 %v3950
  %v7423 = vunpack.c.l.b16 %v3951
  %v7424 = vunpack.c.h.b16 %v3951
  %v7425 = vunpack.c.l.b16 %v3952
  %v7426 = vunpack.c.h.b16 %v3952
  %v7427 = vunpack.c.l.b16 %v3953
  %v7428 = vunpack.c.h.b16 %v3953
  %v7429 = vunpack.c.l.b16 %v3954
  %v7430 = vunpack.c.h.b16 %v3954
  %v7431 = vunpack.c.l.b16 %v3955
  %v7432 = vunpack.c.h.b16 %v3955
  %v7433 = vunpack.c.l.b16 %v3956
  %v7434 = vunpack.c.h.b16 %v3956
  %v7435 = vunpack.c.l.b16 %v3957
  %v7436 = vunpack.c.h.b16 %v3957
  %v7437 = vunpack.c.l.b16 %v3958
  %v7438 = vunpack.c.h.b16 %v3958
  %v7439 = vunpack.c.l.b16 %v3959
  %v7440 = vunpack.c.h.b16 %v3959
  %v7441 = vunpack.c.l.b16 %v3960
  %v7442 = vunpack.c.h.b16 %v3960
  %v7443 = vunpack.c.l.b16 %v3961
  %v7444 = vunpack.c.h.b16 %v3961
  %v7445 = vunpack.c.l.b16 %v3962
  %v7446 = vunpack.c.h.b16 %v3962
  %v7447 = vunpack.c.l.b16 %v3963
  %v7448 = vunpack.c.h.b16 %v3963
  %v7449 = vunpack.c.l.b16 %v3964
  %v7450 = vunpack.c.h.b16 %v3964
  %v7451 = vunpack.c.l.b16 %v3965
  %v7452 = vunpack.c.h.b16 %v3965
  %v7453 = vunpack.c.l.b16 %v3966
  %v7454 = vunpack.c.h.b16 %v3966
  %v7455 = vunpack.c.l.b16 %v3967
  %v7456 = vunpack.c.h.b16 %v3967
  %v7457 = vunpack.c.l.b16 %v3968
  %v7458 = vunpack.c.h.b16 %v3968
  %v7459 = vunpack.c.l.b16 %v3969
  %v7460 = vunpack.c.h.b16 %v3969
  %v7461 = vunpack.c.l.b16 %v3970
  %v7462 = vunpack.c.h.b16 %v3970
  %v7463 = vunpack.c.l.b16 %v3971
  %v7464 = vunpack.c.h.b16 %v3971
  %v7465 = vunpack.c.l.b16 %v3972
  %v7466 = vunpack.c.h.b16 %v3972
  %v7467 = vunpack.c.l.b16 %v3973
  %v7468 = vunpack.c.h.b16 %v3973
  %v7469 = vunpack.c.l.b16 %v3974
  %v7470 = vunpack.c.h.b16 %v3974
  %v7471 = vunpack.c.l.b16 %v3975
  %v7472 = vunpack.c.h.b16 %v3975
  %v7473 = vunpack.c.l.b16 %v3976
  %v7474 = vunpack.c.h.b16 %v3976
  %v7475 = vunpack.c.l.b16 %v3977
  %v7476 = vunpack.c.h.b16 %v3977
  %v7477 = vunpack.c.l.b16 %v3978
  %v7478 = vunpack.c.h.b16 %v3978
  %v7479 = vunpack.c.l.b16 %v3979
  %v7480 = vunpack.c.h.b16 %v3979
  %v7481 = vunpack.c.l.b16 %v3980
  %v7482 = vunpack.c.h.b16 %v3980
  %v7483 = vunpack.c.l.b16 %v3981
  %v7484 = vunpack.c.h.b16 %v3981
  %v7485 = vunpack.c.l.b16 %v3982
  %v7486 = vunpack.c.h.b16 %v3982
  %v7487 = vunpack.c.l.b16 %v3983
  %v7488 = vunpack.c.h.b16 %v3983
  %v7489 = vunpack.c.l.b16 %v3984
  %v7490 = vunpack.c.h.b16 %v3984
  %v7491 = vunpack.c.l.b16 %v3985
  %v7492 = vunpack.c.h.b16 %v3985
  %v7493 = vunpack.c.l.b16 %v3986
  %v7494 = vunpack.c.h.b16 %v3986
  %v7495 = vunpack.c.l.b16 %v3987
  %v7496 = vunpack.c.h.b16 %v3987
  %v7497 = vunpack.c.l.b16 %v3988
  %v7498 = vunpack.c.h.b16 %v3988
  %v7499 = vunpack.c.l.b16 %v3989
  %v7500 = vunpack.c.h.b16 %v3989
  %v7501 = vunpack.c.l.b16 %v3990
  %v7502 = vunpack.c.h.b16 %v3990
  %v7503 = vunpack.c.l.b16 %v3991
  %v7504 = vunpack.c.h.b16 %v3991
  %v7505 = vunpack.c.l.b16 %v3992
  %v7506 = vunpack.c.h.b16 %v3992
  %v7507 = vunpack.c.l.b16 %v3993
  %v7508 = vunpack.c.h.b16 %v3993
  %v7509 = vunpack.c.l.b16 %v3994
  %v7510 = vunpack.c.h.b16 %v3994
  %v7511 = vunpack.c.l.b16 %v3995
  %v7512 = vunpack.c.h.b16 %v3995
  %v7513 = vunpack.c.l.b16 %v3996
  %v7514 = vunpack.c.h.b16 %v3996
  %v7515 = vunpack.c.l.b16 %v3997
  %v7516 = vunpack.c.h.b16 %v3997
  %v7517 = vunpack.c.l.b16 %v3998
  %v7518 = vunpack.c.h.b16 %v3998
  %v7519 = vunpack.c.l.b16 %v3999
  %v7520 = vunpack.c.h.b16 %v3999
  %v7521 = vunpack.c.l.b16 %v4000
  %v7522 = vunpack.c.h.b16 %v4000
  %v7523 = vunpack.c.l.b16 %v4001
  %v7524 = vunpack.c.h.b16 %v4001
  %v7525 = vunpack.c.l.b16 %v4002
  %v7526 = vunpack.c.h.b16 %v4002
  %v7527 = vunpack.c.l.b16 %v4003
  %v7528 = vunpack.c.h.b16 %v4003
  %v7529 = vunpack.c.l.b16 %v4004
  %v7530 = vunpack.c.h.b16 %v4004
  %v7531 = vunpack.c.l.b16 %v4005
  %v7532 = vunpack.c.h.b16 %v4005
  %v7533 = vunpack.c.l.b16 %v4006
  %v7534 = vunpack.c.h.b16 %v4006
  %v7535 = vunpack.c.l.b16 %v4007
  %v7536 = vunpack.c.h.b16 %v4007
  %v7537 = vunpack.c.l.b16 %v4008
  %v7538 = vunpack.c.h.b16 %v4008
  %v7539 = vunpack.c.l.b16 %v4009
  %v7540 = vunpack.c.h.b16 %v4009
  %v7541 = vunpack.c.l.b16 %v4010
  %v7542 = vunpack.c.h.b16 %v4010
  %v7543 = vunpack.c.l.b16 %v4011
  %v7544 = vunpack.c.h.b16 %v4011
  %v7545 = vunpack.c.l.b16 %v4012
  %v7546 = vunpack.c.h.b16 %v4012
  %v7547 = vunpack.c.l.b16 %v4013
  %v7548 = vunpack.c.h.b16 %v4013
  %v7549 = vunpack.c.l.b16 %v4014
  %v7550 = vunpack.c.h.b16 %v4014
  %v7551 = vunpack.c.l.b16 %v4015
  %v7552 = vunpack.c.h.b16 %v4015
  %v7553 = vunpack.c.l.b16 %v4016
  %v7554 = vunpack.c.h.b16 %v4016
  %v7555 = vunpack.c.l.b16 %v4017
  %v7556 = vunpack.c.h.b16 %v4017
  %v7557 = vunpack.c.l.b16 %v4018
  %v7558 = vunpack.c.h.b16 %v4018
  %v7559 = vunpack.c.l.b16 %v4019
  %v7560 = vunpack.c.h.b16 %v4019
  %v7561 = vunpack.c.l.b16 %v4020
  %v7562 = vunpack.c.h.b16 %v4020
  %v7563 = vunpack.c.l.b16 %v4021
  %v7564 = vunpack.c.h.b16 %v4021
  %v7565 = vunpack.c.l.b16 %v4022
  %v7566 = vunpack.c.h.b16 %v4022
  %v7567 = vunpack.c.l.b16 %v4023
  %v7568 = vunpack.c.h.b16 %v4023
  %v7569 = vunpack.c.l.b16 %v4024
  %v7570 = vunpack.c.h.b16 %v4024
  %v7571 = vunpack.c.l.b16 %v4025
  %v7572 = vunpack.c.h.b16 %v4025
  %v7573 = vunpack.c.l.b16 %v4026
  %v7574 = vunpack.c.h.b16 %v4026
  %v7575 = vunpack.c.l.b16 %v4027
  %v7576 = vunpack.c.h.b16 %v4027
  %v7577 = vunpack.c.l.b16 %v4028
  %v7578 = vunpack.c.h.b16 %v4028
  %v7579 = vunpack.c.l.b16 %v4029
  %v7580 = vunpack.c.h.b16 %v4029
  %v7581 = vunpack.c.l.b16 %v4030
  %v7582 = vunpack.c.h.b16 %v4030
  %v7583 = vunpack.c.l.b16 %v4031
  %v7584 = vunpack.c.h.b16 %v4031
  %v7585 = vunpack.c.l.b16 %v4032
  %v7586 = vunpack.c.h.b16 %v4032
  %v7587 = vunpack.c.l.b16 %v4033
  %v7588 = vunpack.c.h.b16 %v4033
  %v7589 = vunpack.c.l.b16 %v4034
  %v7590 = vunpack.c.h.b16 %v4034
  %v7591 = vunpack.c.l.b16 %v4035
  %v7592 = vunpack.c.h.b16 %v4035
  %v7593 = vunpack.c.l.b16 %v4036
  %v7594 = vunpack.c.h.b16 %v4036
  %v7595 = vunpack.c.l.b16 %v4037
  %v7596 = vunpack.c.h.b16 %v4037
  %v7597 = vunpack.c.l.b16 %v4038
  %v7598 = vunpack.c.h.b16 %v4038
  %v7599 = vunpack.c.l.b16 %v4039
  %v7600 = vunpack.c.h.b16 %v4039
  %v7601 = vunpack.c.l.b16 %v4040
  %v7602 = vunpack.c.h.b16 %v4040
  %v7603 = vunpack.c.l.b16 %v4041
  %v7604 = vunpack.c.h.b16 %v4041
  %v7605 = vunpack.c.l.b16 %v4042
  %v7606 = vunpack.c.h.b16 %v4042
  %v7607 = vunpack.c.l.b16 %v4043
  %v7608 = vunpack.c.h.b16 %v4043
  %v7609 = vunpack.c.l.b16 %v4044
  %v7610 = vunpack.c.h.b16 %v4044
  %v7611 = vunpack.c.l.b16 %v4045
  %v7612 = vunpack.c.h.b16 %v4045
  %v7613 = vunpack.c.l.b16 %v4046
  %v7614 = vunpack.c.h.b16 %v4046
  %v7615 = vunpack.c.l.b16 %v4047
  %v7616 = vunpack.c.h.b16 %v4047
  %v7617 = vunpack.c.l.b16 %v4048
  %v7618 = vunpack.c.h.b16 %v4048
  %v7619 = vunpack.c.l.b16 %v4049
  %v7620 = vunpack.c.h.b16 %v4049
  %v7621 = vunpack.c.l.b16 %v4050
  %v7622 = vunpack.c.h.b16 %v4050
  %v7623 = vunpack.c.l.b16 %v4051
  %v7624 = vunpack.c.h.b16 %v4051
  %v7625 = vunpack.c.l.b16 %v4052
  %v7626 = vunpack.c.h.b16 %v4052
  %v7627 = vunpack.c.l.b16 %v4053
  %v7628 = vunpack.c.h.b16 %v4053
  %v7629 = vunpack.c.l.b16 %v4054
  %v7630 = vunpack.c.h.b16 %v4054
  %v7631 = vunpack.c.l.b16 %v4055
  %v7632 = vunpack.c.h.b16 %v4055
  %v7633 = vunpack.c.l.b16 %v4056
  %v7634 = vunpack.c.h.b16 %v4056
  %v7635 = vunpack.c.l.b16 %v4057
  %v7636 = vunpack.c.h.b16 %v4057
  %v7637 = vunpack.c.l.b16 %v4058
  %v7638 = vunpack.c.h.b16 %v4058
  %v7639 = vunpack.c.l.b16 %v4059
  %v7640 = vunpack.c.h.b16 %v4059
  %v7641 = vunpack.c.l.b16 %v4060
  %v7642 = vunpack.c.h.b16 %v4060
  %v7643 = vunpack.c.l.b16 %v4061
  %v7644 = vunpack.c.h.b16 %v4061
  %v7645 = vunpack.c.l.b16 %v4062
  %v7646 = vunpack.c.h.b16 %v4062
  %v7647 = vunpack.c.l.b16 %v4063
  %v7648 = vunpack.c.h.b16 %v4063
  %v7649 = vunpack.c.l.b16 %v4064
  %v7650 = vunpack.c.h.b16 %v4064
  %v7651 = vunpack.c.l.b16 %v4065
  %v7652 = vunpack.c.h.b16 %v4065
  %v7653 = vunpack.c.l.b16 %v4066
  %v7654 = vunpack.c.h.b16 %v4066
  %v7655 = vunpack.c.l.b16 %v4067
  %v7656 = vunpack.c.h.b16 %v4067
  %v7657 = vunpack.c.l.b16 %v4068
  %v7658 = vunpack.c.h.b16 %v4068
  %v7659 = vunpack.c.l.b16 %v4069
  %v7660 = vunpack.c.h.b16 %v4069
  %v7661 = vunpack.c.l.b16 %v4070
  %v7662 = vunpack.c.h.b16 %v4070
  %v7663 = vunpack.c.l.b16 %v4071
  %v7664 = vunpack.c.h.b16 %v4071
  %v7665 = vunpack.c.l.b16 %v4072
  %v7666 = vunpack.c.h.b16 %v4072
  %v7667 = vunpack.c.l.b16 %v4073
  %v7668 = vunpack.c.h.b16 %v4073
  %v7669 = vunpack.c.l.b16 %v4074
  %v7670 = vunpack.c.h.b16 %v4074
  %v7671 = vunpack.c.l.b16 %v4075
  %v7672 = vunpack.c.h.b16 %v4075
  %v7673 = vunpack.c.l.b16 %v4076
  %v7674 = vunpack.c.h.b16 %v4076
  %v7675 = vunpack.c.l.b16 %v4077
  %v7676 = vunpack.c.h.b16 %v4077
  %v7677 = vunpack.c.l.b16 %v4078
  %v7678 = vunpack.c.h.b16 %v4078
  %v7679 = vunpack.c.l.b16 %v4079
  %v7680 = vunpack.c.h.b16 %v4079
  %v7681 = vunpack.c.l.b16 %v4080
  %v7682 = vunpack.c.h.b16 %v4080
  %v7683 = vunpack.c.l.b16 %v4081
  %v7684 = vunpack.c.h.b16 %v4081
  %v7685 = vunpack.c.l.b16 %v4082
  %v7686 = vunpack.c.h.b16 %v4082
  %v7687 = vunpack.c.l.b16 %v4083
  %v7688 = vunpack.c.h.b16 %v4083
  %v7689 = vunpack.c.l.b16 %v4084
  %v7690 = vunpack.c.h.b16 %v4084
  %v7691 = vunpack.c.l.b16 %v4085
  %v7692 = vunpack.c.h.b16 %v4085
  %v7693 = vunpack.c.l.b16 %v4086
  %v7694 = vunpack.c.h.b16 %v4086
  %v7695 = vunpack.c.l.b16 %v4087
  %v7696 = vunpack.c.h.b16 %v4087
  %v7697 = vunpack.c.l.b16 %v4088
  %v7698 = vunpack.c.h.b16 %v4088
  %v7699 = vunpack.c.l.b16 %v4089
  %v7700 = vunpack.c.h.b16 %v4089
  %v7701 = vunpack.c.l.b16 %v4090
  %v7702 = vunpack.c.h.b16 %v4090
  %v7703 = vunpack.c.l.b16 %v4091
  %v7704 = vunpack.c.h.b16 %v4091
  %v7705 = vunpack.c.l.b16 %v4092
  %v7706 = vunpack.c.h.b16 %v4092
  %v7707 = vunpack.c.l.b16 %v4093
  %v7708 = vunpack.c.h.b16 %v4093
  %v7709 = vunpack.c.l.b16 %v4094
  %v7710 = vunpack.c.h.b16 %v4094
  %v7711 = vunpack.c.l.b16 %v4095
  %v7712 = vunpack.c.h.b16 %v4095
  %v7713 = vunpack.c.l.b16 %v4096
  %v7714 = vunpack.c.h.b16 %v4096
  %v7715 = vunpack.c.l.b16 %v4097
  %v7716 = vunpack.c.h.b16 %v4097
  %v7717 = vunpack.c.l.b16 %v4098
  %v7718 = vunpack.c.h.b16 %v4098
  %v7719 = vunpack.c.l.b16 %v4099
  %v7720 = vunpack.c.h.b16 %v4099
  %v7721 = vunpack.c.l.b16 %v4100
  %v7722 = vunpack.c.h.b16 %v4100
  %v7723 = vunpack.c.l.b16 %v4101
  %v7724 = vunpack.c.h.b16 %v4101
  %v7725 = vunpack.c.l.b16 %v4102
  %v7726 = vunpack.c.h.b16 %v4102
  %v7727 = vunpack.c.l.b16 %v4103
  %v7728 = vunpack.c.h.b16 %v4103
  %v7729 = vunpack.c.l.b16 %v4104
  %v7730 = vunpack.c.h.b16 %v4104
  %v7731 = vunpack.c.l.b16 %v4105
  %v7732 = vunpack.c.h.b16 %v4105
  %v7733 = vunpack.c.l.b16 %v4106
  %v7734 = vunpack.c.h.b16 %v4106
  %v7735 = vunpack.c.l.b16 %v4107
  %v7736 = vunpack.c.h.b16 %v4107
  %v7737 = vunpack.c.l.b16 %v4108
  %v7738 = vunpack.c.h.b16 %v4108
  %v7739 = vunpack.c.l.b16 %v4109
  %v7740 = vunpack.c.h.b16 %v4109
  %v7741 = vunpack.c.l.b16 %v4110
  %v7742 = vunpack.c.h.b16 %v4110
  %v7743 = vunpack.c.l.b16 %v4111
  %v7744 = vunpack.c.h.b16 %v4111
  %v7745 = vunpack.c.l.b16 %v4112
  %v7746 = vunpack.c.h.b16 %v4112
  %v7747 = vunpack.c.l.b16 %v4113
  %v7748 = vunpack.c.h.b16 %v4113
  %v7749 = vunpack.c.l.b16 %v4114
  %v7750 = vunpack.c.h.b16 %v4114
  %v7751 = vunpack.c.l.b16 %v4115
  %v7752 = vunpack.c.h.b16 %v4115
  %v7753 = vunpack.c.l.b16 %v4116
  %v7754 = vunpack.c.h.b16 %v4116
  %v7755 = vunpack.c.l.b16 %v4117
  %v7756 = vunpack.c.h.b16 %v4117
  %v7757 = vunpack.c.l.b16 %v4118
  %v7758 = vunpack.c.h.b16 %v4118
  %v7759 = vunpack.c.l.b16 %v4119
  %v7760 = vunpack.c.h.b16 %v4119
  %v7761 = vunpack.c.l.b16 %v4120
  %v7762 = vunpack.c.h.b16 %v4120
  %v7763 = vunpack.c.l.b16 %v4121
  %v7764 = vunpack.c.h.b16 %v4121
  %v7765 = vunpack.c.l.b16 %v4122
  %v7766 = vunpack.c.h.b16 %v4122
  %v7767 = vunpack.c.l.b16 %v4123
  %v7768 = vunpack.c.h.b16 %v4123
  %v7769 = vunpack.c.l.b16 %v4124
  %v7770 = vunpack.c.h.b16 %v4124
  %v7771 = vunpack.c.l.b16 %v4125
  %v7772 = vunpack.c.h.b16 %v4125
  %v7773 = vunpack.c.l.b16 %v4126
  %v7774 = vunpack.c.h.b16 %v4126
  %v7775 = vunpack.c.l.b16 %v4127
  %v7776 = vunpack.c.h.b16 %v4127
  %v7777 = vunpack.c.l.b16 %v4128
  %v7778 = vunpack.c.h.b16 %v4128
  %v7779 = vunpack.c.l.b16 %v4129
  %v7780 = vunpack.c.h.b16 %v4129
  %v7781 = vunpack.c.l.b16 %v4130
  %v7782 = vunpack.c.h.b16 %v4130
  %v7783 = vunpack.c.l.b16 %v4131
  %v7784 = vunpack.c.h.b16 %v4131
  %v7785 = vunpack.c.l.b16 %v4132
  %v7786 = vunpack.c.h.b16 %v4132
  %v7787 = vunpack.c.l.b16 %v4133
  %v7788 = vunpack.c.h.b16 %v4133
  %v7789 = vunpack.c.l.b16 %v4134
  %v7790 = vunpack.c.h.b16 %v4134
  %v7791 = vunpack.c.l.b16 %v4135
  %v7792 = vunpack.c.h.b16 %v4135
  %v7793 = vunpack.c.l.b16 %v4136
  %v7794 = vunpack.c.h.b16 %v4136
  %v7795 = vunpack.c.l.b16 %v4137
  %v7796 = vunpack.c.h.b16 %v4137
  %v7797 = vunpack.c.l.b16 %v4138
  %v7798 = vunpack.c.h.b16 %v4138
  %v7799 = vunpack.c.l.b16 %v4139
  %v7800 = vunpack.c.h.b16 %v4139
  %v7801 = vunpack.c.l.b16 %v4140
  %v7802 = vunpack.c.h.b16 %v4140
  %v7803 = vunpack.c.l.b16 %v4141
  %v7804 = vunpack.c.h.b16 %v4141
  %v7805 = vunpack.c.l.b16 %v4142
  %v7806 = vunpack.c.h.b16 %v4142
  %v7807 = vunpack.c.l.b16 %v4143
  %v7808 = vunpack.c.h.b16 %v4143
  %v7809 = vunpack.c.l.b16 %v4144
  %v7810 = vunpack.c.h.b16 %v4144
  %v7811 = vunpack.c.l.b16 %v4145
  %v7812 = vunpack.c.h.b16 %v4145
  %v7813 = vunpack.c.l.b16 %v4146
  %v7814 = vunpack.c.h.b16 %v4146
  %v7815 = vunpack.c.l.b16 %v4147
  %v7816 = vunpack.c.h.b16 %v4147
  %v7817 = vunpack.c.l.b16 %v4148
  %v7818 = vunpack.c.h.b16 %v4148
  %v7819 = vunpack.c.l.b16 %v4149
  %v7820 = vunpack.c.h.b16 %v4149
  %v7821 = vunpack.c.l.b16 %v4150
  %v7822 = vunpack.c.h.b16 %v4150
  %v7823 = vunpack.c.l.b16 %v4151
  %v7824 = vunpack.c.h.b16 %v4151
  %v7825 = vunpack.c.l.b16 %v4152
  %v7826 = vunpack.c.h.b16 %v4152
  %v7827 = vunpack.c.l.b16 %v4153
  %v7828 = vunpack.c.h.b16 %v4153
  %v7829 = vunpack.c.l.b16 %v4154
  %v7830 = vunpack.c.h.b16 %v4154
  %v7831 = vunpack.c.l.b16 %v4155
  %v7832 = vunpack.c.h.b16 %v4155
  %v7833 = vunpack.c.l.b16 %v4156
  %v7834 = vunpack.c.h.b16 %v4156
  %v7835 = vunpack.c.l.b16 %v4157
  %v7836 = vunpack.c.h.b16 %v4157
  %v7837 = vunpack.c.l.b16 %v4158
  %v7838 = vunpack.c.h.b16 %v4158
  %v7839 = vunpack.c.l.b16 %v4159
  %v7840 = vunpack.c.h.b16 %v4159
  %v7841 = vunpack.c.l.b16 %v4160
  %v7842 = vunpack.c.h.b16 %v4160
  %v7843 = vunpack.c.l.b16 %v4161
  %v7844 = vunpack.c.h.b16 %v4161
  %v7845 = vunpack.c.l.b16 %v4162
  %v7846 = vunpack.c.h.b16 %v4162
  %v7847 = vunpack.c.l.b16 %v4163
  %v7848 = vunpack.c.h.b16 %v4163
  %v7849 = vunpack.c.l.b16 %v4164
  %v7850 = vunpack.c.h.b16 %v4164
  %v7851 = vunpack.c.l.b16 %v4165
  %v7852 = vunpack.c.h.b16 %v4165
  %v7853 = vunpack.c.l.b16 %v4166
  %v7854 = vunpack.c.h.b16 %v4166
  %v7855 = vunpack.c.l.b16 %v4167
  %v7856 = vunpack.c.h.b16 %v4167
  %v7857 = vunpack.c.l.b16 %v4168
  %v7858 = vunpack.c.h.b16 %v4168
  %v7859 = vunpack.c.l.b16 %v4169
  %v7860 = vunpack.c.h.b16 %v4169
  %v7861 = vunpack.c.l.b16 %v4170
  %v7862 = vunpack.c.h.b16 %v4170
  %v7863 = vunpack.c.l.b16 %v4171
  %v7864 = vunpack.c.h.b16 %v4171
  %v7865 = vunpack.c.l.b16 %v4172
  %v7866 = vunpack.c.h.b16 %v4172
  %v7867 = vunpack.c.l.b16 %v4173
  %v7868 = vunpack.c.h.b16 %v4173
  %v7869 = vunpack.c.l.b16 %v4174
  %v7870 = vunpack.c.h.b16 %v4174
  %v7871 = vunpack.c.l.b16 %v4175
  %v7872 = vunpack.c.h.b16 %v4175
  %v7873 = vunpack.c.l.b16 %v4176
  %v7874 = vunpack.c.h.b16 %v4176
  %v7875 = vunpack.c.l.b16 %v4177
  %v7876 = vunpack.c.h.b16 %v4177
  %v7877 = vunpack.c.l.b16 %v4178
  %v7878 = vunpack.c.h.b16 %v4178
  %v7879 = vunpack.c.l.b16 %v4179
  %v7880 = vunpack.c.h.b16 %v4179
  %v7881 = vunpack.c.l.b16 %v4180
  %v7882 = vunpack.c.h.b16 %v4180
  %v7883 = vunpack.c.l.b16 %v4181
  %v7884 = vunpack.c.h.b16 %v4181
  %v7885 = vunpack.c.l.b16 %v4182
  %v7886 = vunpack.c.h.b16 %v4182
  %v7887 = vunpack.c.l.b16 %v4183
  %v7888 = vunpack.c.h.b16 %v4183
  %v7889 = vunpack.c.l.b16 %v4184
  %v7890 = vunpack.c.h.b16 %v4184
  %v7891 = vunpack.c.l.b16 %v4185
  %v7892 = vunpack.c.h.b16 %v4185
  %v7893 = vunpack.c.l.b16 %v4186
  %v7894 = vunpack.c.h.b16 %v4186
  %v7895 = vunpack.c.l.b16 %v4187
  %v7896 = vunpack.c.h.b16 %v4187
  %v7897 = vunpack.c.l.b16 %v4188
  %v7898 = vunpack.c.h.b16 %v4188
  %v7899 = vunpack.c.l.b16 %v4189
  %v7900 = vunpack.c.h.b16 %v4189
  %v7901 = vunpack.c.l.b16 %v4190
  %v7902 = vunpack.c.h.b16 %v4190
  %v7903 = vunpack.c.l.b16 %v4191
  %v7904 = vunpack.c.h.b16 %v4191
  %v7905 = vunpack.c.l.b16 %v4192
  %v7906 = vunpack.c.h.b16 %v4192
  %v7907 = vunpack.c.l.b16 %v4193
  %v7908 = vunpack.c.h.b16 %v4193
  %v7909 = vunpack.c.l.b16 %v4194
  %v7910 = vunpack.c.h.b16 %v4194
  %v7911 = vunpack.c.l.b16 %v4195
  %v7912 = vunpack.c.h.b16 %v4195
  %v7913 = vunpack.c.l.b16 %v4196
  %v7914 = vunpack.c.h.b16 %v4196
  %v7915 = vunpack.c.l.b16 %v4197
  %v7916 = vunpack.c.h.b16 %v4197
  %v7917 = vunpack.c.l.b16 %v4198
  %v7918 = vunpack.c.h.b16 %v4198
  %v7919 = vunpack.c.l.b16 %v4199
  %v7920 = vunpack.c.h.b16 %v4199
  %v7921 = vunpack.c.l.b16 %v4200
  %v7922 = vunpack.c.h.b16 %v4200
  %v7923 = vunpack.c.l.b16 %v4201
  %v7924 = vunpack.c.h.b16 %v4201
  %v7925 = vunpack.c.l.b16 %v4202
  %v7926 = vunpack.c.h.b16 %v4202
  %v7927 = vunpack.c.l.b16 %v4203
  %v7928 = vunpack.c.h.b16 %v4203
  %v7929 = vunpack.c.l.b16 %v4204
  %v7930 = vunpack.c.h.b16 %v4204
  %v7931 = vunpack.c.l.b16 %v4205
  %v7932 = vunpack.c.h.b16 %v4205
  %v7933 = vunpack.c.l.b16 %v4206
  %v7934 = vunpack.c.h.b16 %v4206
  %v7935 = vunpack.c.l.b16 %v4207
  %v7936 = vunpack.c.h.b16 %v4207
  %v7937 = vunpack.c.l.b16 %v4208
  %v7938 = vunpack.c.h.b16 %v4208
  %v7939 = vunpack.c.l.b16 %v4209
  %v7940 = vunpack.c.h.b16 %v4209
  %v7941 = vunpack.c.l.b16 %v4210
  %v7942 = vunpack.c.h.b16 %v4210
  %v7943 = vunpack.c.l.b16 %v4211
  %v7944 = vunpack.c.h.b16 %v4211
  %v7945 = vunpack.c.l.b16 %v4212
  %v7946 = vunpack.c.h.b16 %v4212
  %v7947 = vunpack.c.l.b16 %v4213
  %v7948 = vunpack.c.h.b16 %v4213
  %v7949 = vunpack.c.l.b16 %v4214
  %v7950 = vunpack.c.h.b16 %v4214
  %v7951 = vunpack.c.l.b16 %v4215
  %v7952 = vunpack.c.h.b16 %v4215
  %v7953 = vunpack.c.l.b16 %v4216
  %v7954 = vunpack.c.h.b16 %v4216
  %v7955 = vunpack.c.l.b16 %v4217
  %v7956 = vunpack.c.h.b16 %v4217
  %v7957 = vunpack.c.l.b16 %v4218
  %v7958 = vunpack.c.h.b16 %v4218
  %v7959 = vunpack.c.l.b16 %v4219
  %v7960 = vunpack.c.h.b16 %v4219
  %v7961 = vunpack.c.l.b16 %v4220
  %v7962 = vunpack.c.h.b16 %v4220
  %v7963 = vunpack.c.l.b16 %v4221
  %v7964 = vunpack.c.h.b16 %v4221
  %v7965 = vunpack.c.l.b16 %v4222
  %v7966 = vunpack.c.h.b16 %v4222
  %v7967 = vunpack.c.l.b16 %v4223
  %v7968 = vunpack.c.h.b16 %v4223
  %v7969 = vunpack.c.l.b16 %v4224
  %v7970 = vunpack.c.h.b16 %v4224
  %v7971 = vunpack.c.l.b16 %v4225
  %v7972 = vunpack.c.h.b16 %v4225
  %v7973 = vunpack.c.l.b16 %v4226
  %v7974 = vunpack.c.h.b16 %v4226
  %v7975 = vunpack.c.l.b16 %v4227
  %v7976 = vunpack.c.h.b16 %v4227
  %v7977 = vunpack.c.l.b16 %v4228
  %v7978 = vunpack.c.h.b16 %v4228
  %v7979 = vunpack.c.l.b16 %v4229
  %v7980 = vunpack.c.h.b16 %v4229
  %v7981 = vunpack.c.l.b16 %v4230
  %v7982 = vunpack.c.h.b16 %v4230
  %v7983 = vunpack.c.l.b16 %v4231
  %v7984 = vunpack.c.h.b16 %v4231
  %v7985 = vunpack.c.l.b16 %v4232
  %v7986 = vunpack.c.h.b16 %v4232
  %v7987 = vunpack.c.l.b16 %v4233
  %v7988 = vunpack.c.h.b16 %v4233
  %v7989 = vunpack.c.l.b16 %v4234
  %v7990 = vunpack.c.h.b16 %v4234
  %v7991 = vunpack.c.l.b16 %v4235
  %v7992 = vunpack.c.h.b16 %v4235
  %v7993 = vunpack.c.l.b16 %v4236
  %v7994 = vunpack.c.h.b16 %v4236
  %v7995 = vunpack.c.l.b16 %v4237
  %v7996 = vunpack.c.h.b16 %v4237
  %v7997 = vunpack.c.l.b16 %v4238
  %v7998 = vunpack.c.h.b16 %v4238
  %v7999 = vunpack.c.l.b16 %v4239
  %v8000 = vunpack.c.h.b16 %v4239
  %v8001 = vunpack.c.l.b16 %v4240
  %v8002 = vunpack.c.h.b16 %v4240
  %v8003 = vunpack.c.l.b16 %v4241
  %v8004 = vunpack.c.h.b16 %v4241
  %v8005 = vunpack.c.l.b16 %v4242
  %v8006 = vunpack.c.h.b16 %v4242
  %v8007 = vunpack.c.l.b16 %v4243
  %v8008 = vunpack.c.h.b16 %v4243
  %v8009 = vunpack.c.l.b16 %v4244
  %v8010 = vunpack.c.h.b16 %v4244
  %v8011 = vunpack.c.l.b16 %v4245
  %v8012 = vunpack.c.h.b16 %v4245
  %v8013 = vunpack.c.l.b16 %v4246
  %v8014 = vunpack.c.h.b16 %v4246
  %v8015 = vunpack.c.l.b16 %v4247
  %v8016 = vunpack.c.h.b16 %v4247
  %v8017 = vunpack.c.l.b16 %v4248
  %v8018 = vunpack.c.h.b16 %v4248
  %v8019 = vunpack.c.l.b16 %v4249
  %v8020 = vunpack.c.h.b16 %v4249
  %v8021 = vunpack.c.l.b16 %v4250
  %v8022 = vunpack.c.h.b16 %v4250
  %v8023 = vunpack.c.l.b16 %v4251
  %v8024 = vunpack.c.h.b16 %v4251
  %v8025 = vunpack.c.l.b16 %v4252
  %v8026 = vunpack.c.h.b16 %v4252
  %v8027 = vunpack.c.l.b16 %v4253
  %v8028 = vunpack.c.h.b16 %v4253
  %v8029 = vunpack.c.l.b16 %v4254
  %v8030 = vunpack.c.h.b16 %v4254
  %v8031 = vunpack.c.l.b16 %v4255
  %v8032 = vunpack.c.h.b16 %v4255
  %v8033 = vunpack.c.l.b16 %v4256
  %v8034 = vunpack.c.h.b16 %v4256
  %v8035 = vunpack.c.l.b16 %v4257
  %v8036 = vunpack.c.h.b16 %v4257
  %v8037 = vunpack.c.l.b16 %v4258
  %v8038 = vunpack.c.h.b16 %v4258
  %v8039 = vunpack.c.l.b16 %v4259
  %v8040 = vunpack.c.h.b16 %v4259
  %v8041 = vunpack.c.l.b16 %v4260
  %v8042 = vunpack.c.h.b16 %v4260
  %v8043 = vunpack.c.l.b16 %v4261
  %v8044 = vunpack.c.h.b16 %v4261
  %v8045 = vunpack.c.l.b16 %v4262
  %v8046 = vunpack.c.h.b16 %v4262
  %v8047 = vunpack.c.l.b16 %v4263
  %v8048 = vunpack.c.h.b16 %v4263
  %v8049 = vunpack.c.l.b16 %v4264
  %v8050 = vunpack.c.h.b16 %v4264
  %v8051 = vunpack.c.l.b16 %v4265
  %v8052 = vunpack.c.h.b16 %v4265
  %v8053 = vunpack.c.l.b16 %v4266
  %v8054 = vunpack.c.h.b16 %v4266
  %v8055 = vunpack.c.l.b16 %v4267
  %v8056 = vunpack.c.h.b16 %v4267
  %v8057 = vunpack.c.l.b16 %v4268
  %v8058 = vunpack.c.h.b16 %v4268
  %v8059 = vunpack.c.l.b16 %v4269
  %v8060 = vunpack.c.h.b16 %v4269
  %v8061 = vunpack.c.l.b16 %v4270
  %v8062 = vunpack.c.h.b16 %v4270
  %v8063 = vunpack.c.l.b16 %v4271
  %v8064 = vunpack.c.h.b16 %v4271
  %v8065 = vunpack.c.l.b16 %v4272
  %v8066 = vunpack.c.h.b16 %v4272
  %v8067 = vunpack.c.l.b16 %v4273
  %v8068 = vunpack.c.h.b16 %v4273
  %v8069 = vunpack.c.l.b16 %v4274
  %v8070 = vunpack.c.h.b16 %v4274
  %v8071 = vunpack.c.l.b16 %v4275
  %v8072 = vunpack.c.h.b16 %v4275
  %v8073 = vunpack.c.l.b16 %v4276
  %v8074 = vunpack.c.h.b16 %v4276
  %v8075 = vunpack.c.l.b16 %v4277
  %v8076 = vunpack.c.h.b16 %v4277
  %v8077 = vunpack.c.l.b16 %v4278
  %v8078 = vunpack.c.h.b16 %v4278
  %v8079 = vunpack.c.l.b16 %v4279
  %v8080 = vunpack.c.h.b16 %v4279
  %v8081 = vunpack.c.l.b16 %v4280
  %v8082 = vunpack.c.h.b16 %v4280
  %v8083 = vunpack.c.l.b16 %v4281
  %v8084 = vunpack.c.h.b16 %v4281
  %v8085 = vunpack.c.l.b16 %v4282
  %v8086 = vunpack.c.h.b16 %v4282
  %v8087 = vunpack.c.l.b16 %v4283
  %v8088 = vunpack.c.h.b16 %v4283
  %v8089 = vunpack.c.l.b16 %v4284
  %v8090 = vunpack.c.h.b16 %v4284
  %v8091 = vunpack.c.l.b16 %v4285
  %v8092 = vunpack.c.h.b16 %v4285
  %v8093 = vunpack.c.l.b16 %v4286
  %v8094 = vunpack.c.h.b16 %v4286
  %v8095 = vunpack.c.l.b16 %v4287
  %v8096 = vunpack.c.h.b16 %v4287
  %v8097 = vunpack.c.l.b16 %v4288
  %v8098 = vunpack.c.h.b16 %v4288
  %v8099 = vunpack.c.l.b16 %v4289
  %v8100 = vunpack.c.h.b16 %v4289
  %v8101 = vunpack.c.l.b16 %v4290
  %v8102 = vunpack.c.h.b16 %v4290
  %v8103 = vunpack.c.l.b16 %v4291
  %v8104 = vunpack.c.h.b16 %v4291
  %v8105 = vunpack.c.l.b16 %v4292
  %v8106 = vunpack.c.h.b16 %v4292
  %v8107 = vunpack.c.l.b16 %v4293
  %v8108 = vunpack.c.h.b16 %v4293
  %v8109 = vunpack.c.l.b16 %v4294
  %v8110 = vunpack.c.h.b16 %v4294
  %v8111 = vunpack.c.l.b16 %v4295
  %v8112 = vunpack.c.h.b16 %v4295
  %v8113 = vunpack.c.l.b16 %v4296
  %v8114 = vunpack.c.h.b16 %v4296
  %v8115 = vunpack.c.l.b16 %v4297
  %v8116 = vunpack.c.h.b16 %v4297
  %v8117 = vunpack.c.l.b16 %v4298
  %v8118 = vunpack.c.h.b16 %v4298
  %v8119 = vunpack.c.l.b16 %v4299
  %v8120 = vunpack.c.h.b16 %v4299
  %v8121 = vunpack.c.l.b16 %v4300
  %v8122 = vunpack.c.h.b16 %v4300
  %v8123 = vunpack.c.l.b16 %v4301
  %v8124 = vunpack.c.h.b16 %v4301
  %v8125 = vunpack.c.l.b16 %v4302
  %v8126 = vunpack.c.h.b16 %v4302
  %v8127 = vunpack.c.l.b16 %v4303
  %v8128 = vunpack.c.h.b16 %v4303
  %v8129 = vunpack.c.l.b16 %v4304
  %v8130 = vunpack.c.h.b16 %v4304
  %v8131 = vunpack.c.l.b16 %v4305
  %v8132 = vunpack.c.h.b16 %v4305
  %v8133 = vunpack.c.l.b16 %v4306
  %v8134 = vunpack.c.h.b16 %v4306
  %v8135 = vunpack.c.l.b16 %v4307
  %v8136 = vunpack.c.h.b16 %v4307
  %v8137 = vunpack.c.l.b16 %v4308
  %v8138 = vunpack.c.h.b16 %v4308
  %v8139 = vunpack.c.l.b16 %v4309
  %v8140 = vunpack.c.h.b16 %v4309
  %v8141 = vunpack.c.l.b16 %v4310
  %v8142 = vunpack.c.h.b16 %v4310
  %v8143 = vunpack.c.l.b16 %v4311
  %v8144 = vunpack.c.h.b16 %v4311
  %v8145 = vunpack.c.l.b16 %v4312
  %v8146 = vunpack.c.h.b16 %v4312
  %v8147 = vunpack.c.l.b16 %v4313
  %v8148 = vunpack.c.h.b16 %v4313
  %v8149 = vunpack.c.l.b16 %v4314
  %v8150 = vunpack.c.h.b16 %v4314
  %v8151 = vunpack.c.l.b16 %v4315
  %v8152 = vunpack.c.h.b16 %v4315
  %v8153 = vunpack.c.l.b16 %v4316
  %v8154 = vunpack.c.h.b16 %v4316
  %v8155 = vunpack.c.l.b16 %v4317
  %v8156 = vunpack.c.h.b16 %v4317
  %v8157 = vunpack.c.l.b16 %v4318
  %v8158 = vunpack.c.h.b16 %v4318
  %v8159 = vunpack.c.l.b16 %v4319
  %v8160 = vunpack.c.h.b16 %v4319
  %v8161 = vunpack.c.l.b16 %v4320
  %v8162 = vunpack.c.h.b16 %v4320
  %v8163 = vunpack.c.l.b16 %v4321
  %v8164 = vunpack.c.h.b16 %v4321
  %v8165 = vunpack.c.l.b16 %v4322
  %v8166 = vunpack.c.h.b16 %v4322
  %v8167 = vunpack.c.l.b16 %v4323
  %v8168 = vunpack.c.h.b16 %v4323
  %v8169 = vunpack.c.l.b16 %v4324
  %v8170 = vunpack.c.h.b16 %v4324
  %v8171 = vunpack.c.l.b16 %v4325
  %v8172 = vunpack.c.h.b16 %v4325
  %v8173 = vunpack.c.l.b16 %v4326
  %v8174 = vunpack.c.h.b16 %v4326
  %v8175 = vunpack.c.l.b16 %v4327
  %v8176 = vunpack.c.h.b16 %v4327
  %v8177 = vunpack.c.l.b16 %v4328
  %v8178 = vunpack.c.h.b16 %v4328
  %v8179 = vunpack.c.l.b16 %v4329
  %v8180 = vunpack.c.h.b16 %v4329
  %v8181 = vunpack.c.l.b16 %v4330
  %v8182 = vunpack.c.h.b16 %v4330
  %v8183 = vunpack.c.l.b16 %v4331
  %v8184 = vunpack.c.h.b16 %v4331
  %v8185 = vunpack.c.l.b16 %v4332
  %v8186 = vunpack.c.h.b16 %v4332
  %v8187 = vunpack.c.l.b16 %v4333
  %v8188 = vunpack.c.h.b16 %v4333
  %v8189 = vunpack.c.l.b16 %v4334
  %v8190 = vunpack.c.h.b16 %v4334
  %v8191 = vunpack.c.l.b16 %v4335
  %v8192 = vunpack.c.h.b16 %v4335
  %v8193 = vunpack.c.l.b16 %v4336
  %v8194 = vunpack.c.h.b16 %v4336
  %v8195 = vunpack.c.l.b16 %v4337
  %v8196 = vunpack.c.h.b16 %v4337
  %v8197 = vunpack.c.l.b16 %v4338
  %v8198 = vunpack.c.h.b16 %v4338
  %v8199 = vunpack.c.l.b16 %v4339
  %v8200 = vunpack.c.h.b16 %v4339
  %v8201 = vunpack.c.l.b16 %v4340
  %v8202 = vunpack.c.h.b16 %v4340
  %v8203 = vunpack.c.l.b16 %v4341
  %v8204 = vunpack.c.h.b16 %v4341
  %v8205 = vunpack.c.l.b16 %v4342
  %v8206 = vunpack.c.h.b16 %v4342
  %v8207 = vunpack.c.l.b16 %v4343
  %v8208 = vunpack.c.h.b16 %v4343
  %v8209 = vunpack.c.l.b16 %v4344
  %v8210 = vunpack.c.h.b16 %v4344
  %v8211 = vunpack.c.l.b16 %v4345
  %v8212 = vunpack.c.h.b16 %v4345
  %v8213 = vunpack.c.l.b16 %v4346
  %v8214 = vunpack.c.h.b16 %v4346
  %v8215 = vunpack.c.l.b16 %v4347
  %v8216 = vunpack.c.h.b16 %v4347
  %v8217 = vunpack.c.l.b16 %v4348
  %v8218 = vunpack.c.h.b16 %v4348
  %v8219 = vunpack.c.l.b16 %v4349
  %v8220 = vunpack.c.h.b16 %v4349
  %v8221 = vunpack.c.l.b16 %v4350
  %v8222 = vunpack.c.h.b16 %v4350
  %v8223 = vunpack.c.l.b16 %v4351
  %v8224 = vunpack.c.h.b16 %v4351
  %v8225 = vunpack.c.l.b16 %v4352
  %v8226 = vunpack.c.h.b16 %v4352
  %v8227 = vunpack.c.l.b16 %v4353
  %v8228 = vunpack.c.h.b16 %v4353
  %v8229 = vunpack.c.l.b16 %v4354
  %v8230 = vunpack.c.h.b16 %v4354
  %v8231 = vunpack.c.l.b16 %v4355
  %v8232 = vunpack.c.h.b16 %v4355
  %v8233 = vunpack.c.l.b16 %v4356
  %v8234 = vunpack.c.h.b16 %v4356
  %v8235 = vunpack.c.l.b16 %v4357
  %v8236 = vunpack.c.h.b16 %v4357
  %v8237 = vunpack.c.l.b16 %v4358
  %v8238 = vunpack.c.h.b16 %v4358
  %v8239 = vunpack.c.l.b16 %v4359
  %v8240 = vunpack.c.h.b16 %v4359
  %v8241 = vunpack.c.l.b16 %v4360
  %v8242 = vunpack.c.h.b16 %v4360
  %v8243 = vunpack.c.l.b16 %v4361
  %v8244 = vunpack.c.h.b16 %v4361
  %v8245 = vunpack.c.l.b16 %v4362
  %v8246 = vunpack.c.h.b16 %v4362
  %v8247 = vunpack.c.l.b16 %v4363
  %v8248 = vunpack.c.h.b16 %v4363
  %v8249 = vunpack.c.l.b16 %v4364
  %v8250 = vunpack.c.h.b16 %v4364
  %v8251 = vunpack.c.l.b16 %v4365
  %v8252 = vunpack.c.h.b16 %v4365
  %v8253 = vunpack.c.l.b16 %v4366
  %v8254 = vunpack.c.h.b16 %v4366
  %v8255 = vunpack.c.l.b16 %v4367
  %v8256 = vunpack.c.h.b16 %v4367
  %v8257 = vunpack.c.l.b16 %v4368
  %v8258 = vunpack.c.h.b16 %v4368
  %v8259 = vunpack.c.l.b16 %v4369
  %v8260 = vunpack.c.h.b16 %v4369
  %v8261 = vunpack.c.l.b16 %v4370
  %v8262 = vunpack.c.h.b16 %v4370
  %v8263 = vunpack.c.l.b16 %v4371
  %v8264 = vunpack.c.h.b16 %v4371
  %v8265 = vunpack.c.l.b16 %v4372
  %v8266 = vunpack.c.h.b16 %v4372
  %v8267 = vunpack.c.l.b16 %v4373
  %v8268 = vunpack.c.h.b16 %v4373
  %v8269 = vunpack.c.l.b16 %v4374
  %v8270 = vunpack.c.h.b16 %v4374
  %v8271 = vunpack.c.l.b16 %v4375
  %v8272 = vunpack.c.h.b16 %v4375
  %v8273 = vunpack.c.l.b16 %v4376
  %v8274 = vunpack.c.h.b16 %v4376
  %v8275 = vunpack.c.l.b16 %v4377
  %v8276 = vunpack.c.h.b16 %v4377
  %v8277 = vunpack.c.l.b16 %v4378
  %v8278 = vunpack.c.h.b16 %v4378
  %v8279 = vunpack.c.l.b16 %v4379
  %v8280 = vunpack.c.h.b16 %v4379
  %v8281 = vunpack.c.l.b16 %v4380
  %v8282 = vunpack.c.h.b16 %v4380
  %v8283 = vunpack.c.l.b16 %v4381
  %v8284 = vunpack.c.h.b16 %v4381
  %v8285 = vunpack.c.l.b16 %v4382
  %v8286 = vunpack.c.h.b16 %v4382
  %v8287 = vunpack.c.l.b16 %v4383
  %v8288 = vunpack.c.h.b16 %v4383
  %v8289 = vunpack.c.l.b16 %v4384
  %v8290 = vunpack.c.h.b16 %v4384
  %v8291 = vunpack.c.l.b16 %v4385
  %v8292 = vunpack.c.h.b16 %v4385
  %v8293 = vunpack.c.l.b16 %v4386
  %v8294 = vunpack.c.h.b16 %v4386
  %v8295 = vunpack.c.l.b16 %v4387
  %v8296 = vunpack.c.h.b16 %v4387
  %v8297 = vunpack.c.l.b16 %v4388
  %v8298 = vunpack.c.h.b16 %v4388
  %v8299 = vunpack.c.l.b16 %v4389
  %v8300 = vunpack.c.h.b16 %v4389
  %v8301 = vunpack.c.l.b16 %v4390
  %v8302 = vunpack.c.h.b16 %v4390
  %v8303 = vunpack.c.l.b16 %v4391
  %v8304 = vunpack.c.h.b16 %v4391
  %v8305 = vunpack.c.l.b16 %v4392
  %v8306 = vunpack.c.h.b16 %v4392
  %v8307 = vunpack.c.l.b16 %v4393
  %v8308 = vunpack.c.h.b16 %v4393
  %v8309 = vunpack.c.l.b16 %v4394
  %v8310 = vunpack.c.h.b16 %v4394
  %v8311 = vunpack.c.l.b16 %v4395
  %v8312 = vunpack.c.h.b16 %v4395
  %v8313 = vunpack.c.l.b16 %v4396
  %v8314 = vunpack.c.h.b16 %v4396
  %v8315 = vunpack.c.l.b16 %v4397
  %v8316 = vunpack.c.h.b16 %v4397
  %v8317 = vunpack.c.l.b16 %v4398
  %v8318 = vunpack.c.h.b16 %v4398
  %v8319 = vunpack.c.l.b16 %v4399
  %v8320 = vunpack.c.h.b16 %v4399
  %v8321 = vunpack.c.l.b16 %v4400
  %v8322 = vunpack.c.h.b16 %v4400
  %v8323 = vunpack.c.l.b16 %v4401
  %v8324 = vunpack.c.h.b16 %v4401
  %v8325 = vunpack.c.l.b16 %v4402
  %v8326 = vunpack.c.h.b16 %v4402
  %v8327 = vunpack.c.l.b16 %v4403
  %v8328 = vunpack.c.h.b16 %v4403
  %v8329 = vunpack.c.l.b16 %v4404
  %v8330 = vunpack.c.h.b16 %v4404
  %v8331 = vunpack.c.l.b16 %v4405
  %v8332 = vunpack.c.h.b16 %v4405
  %v8333 = vunpack.c.l.b16 %v4406
  %v8334 = vunpack.c.h.b16 %v4406
  %v8335 = vunpack.c.l.b16 %v4407
  %v8336 = vunpack.c.h.b16 %v4407
  %v8337 = vunpack.c.l.b16 %v4408
  %v8338 = vunpack.c.h.b16 %v4408
  %v8339 = vunpack.c.l.b16 %v4409
  %v8340 = vunpack.c.h.b16 %v4409
  %v8341 = vunpack.c.l.b16 %v4410
  %v8342 = vunpack.c.h.b16 %v4410
  %v8343 = vunpack.c.l.b16 %v4411
  %v8344 = vunpack.c.h.b16 %v4411
  %v8345 = vunpack.c.l.b16 %v4412
  %v8346 = vunpack.c.h.b16 %v4412
  %v8347 = vunpack.c.l.b16 %v4413
  %v8348 = vunpack.c.h.b16 %v4413
  %v8349 = vunpack.c.l.b16 %v4414
  %v8350 = vunpack.c.h.b16 %v4414
  %v8351 = vunpack.c.l.b16 %v4415
  %v8352 = vunpack.c.h.b16 %v4415
  %v8353 = vunpack.c.l.b16 %v4416
  %v8354 = vunpack.c.h.b16 %v4416
  %v8355 = vunpack.c.l.b16 %v4417
  %v8356 = vunpack.c.h.b16 %v4417
  %v8357 = vunpack.c.l.b16 %v4418
  %v8358 = vunpack.c.h.b16 %v4418
  %v8359 = vunpack.c.l.b16 %v4419
  %v8360 = vunpack.c.h.b16 %v4419
  %v8361 = vunpack.c.l.b16 %v4420
  %v8362 = vunpack.c.h.b16 %v4420
  %v8363 = vunpack.c.l.b16 %v4421
  %v8364 = vunpack.c.h.b16 %v4421
  %v8365 = vunpack.c.l.b16 %v4422
  %v8366 = vunpack.c.h.b16 %v4422
  %v8367 = vunpack.c.l.b16 %v4423
  %v8368 = vunpack.c.h.b16 %v4423
  %v8369 = vunpack.c.l.b16 %v4424
  %v8370 = vunpack.c.h.b16 %v4424
  %v8371 = vunpack.c.l.b16 %v4425
  %v8372 = vunpack.c.h.b16 %v4425
  %v8373 = vunpack.c.l.b16 %v4426
  %v8374 = vunpack.c.h.b16 %v4426
  %v8375 = vunpack.c.l.b16 %v4427
  %v8376 = vunpack.c.h.b16 %v4427
  %v8377 = vunpack.c.l.b16 %v4428
  %v8378 = vunpack.c.h.b16 %v4428
  %v8379 = vunpack.c.l.b16 %v4429
  %v8380 = vunpack.c.h.b16 %v4429
  %v8381 = vunpack.c.l.b16 %v4430
  %v8382 = vunpack.c.h.b16 %v4430
  %v8383 = vunpack.c.l.b16 %v4431
  %v8384 = vunpack.c.h.b16 %v4431
  %v8385 = vunpack.c.l.b16 %v4432
  %v8386 = vunpack.c.h.b16 %v4432
  %v8387 = vunpack.c.l.b16 %v4433
  %v8388 = vunpack.c.h.b16 %v4433
  %v8389 = vunpack.c.l.b16 %v4434
  %v8390 = vunpack.c.h.b16 %v4434
  %v8391 = vunpack.c.l.b16 %v4435
  %v8392 = vunpack.c.h.b16 %v4435
  %v8393 = vunpack.c.l.b16 %v4436
  %v8394 = vunpack.c.h.b16 %v4436
  %v8395 = vunpack.c.l.b16 %v4437
  %v8396 = vunpack.c.h.b16 %v4437
  %v8397 = vunpack.c.l.b16 %v4438
  %v8398 = vunpack.c.h.b16 %v4438
  %v8399 = vunpack.c.l.b16 %v4439
  %v8400 = vunpack.c.h.b16 %v4439
  %v8401 = vunpack.c.l.b16 %v4440
  %v8402 = vunpack.c.h.b16 %v4440
  %v8403 = vunpack.c.l.b16 %v4441
  %v8404 = vunpack.c.h.b16 %v4441
  %v8405 = vunpack.c.l.b16 %v4442
  %v8406 = vunpack.c.h.b16 %v4442
  %v8407 = vunpack.c.l.b16 %v4443
  %v8408 = vunpack.c.h.b16 %v4443
  %v8409 = vunpack.c.l.b16 %v4444
  %v8410 = vunpack.c.h.b16 %v4444
  %v8411 = vunpack.c.l.b16 %v4445
  %v8412 = vunpack.c.h.b16 %v4445
  %v8413 = vunpack.c.l.b16 %v4446
  %v8414 = vunpack.c.h.b16 %v4446
  %v8415 = vunpack.c.l.b16 %v4447
  %v8416 = vunpack.c.h.b16 %v4447
  %v8417 = vunpack.c.l.b16 %v4448
  %v8418 = vunpack.c.h.b16 %v4448
  %v8419 = vunpack.c.l.b16 %v4449
  %v8420 = vunpack.c.h.b16 %v4449
  %v8421 = vunpack.c.l.b16 %v4450
  %v8422 = vunpack.c.h.b16 %v4450
  %v8423 = vunpack.c.l.b16 %v4451
  %v8424 = vunpack.c.h.b16 %v4451
  %v8425 = vunpack.c.l.b16 %v4452
  %v8426 = vunpack.c.h.b16 %v4452
  %v8427 = vunpack.c.l.b16 %v4453
  %v8428 = vunpack.c.h.b16 %v4453
  %v8429 = vunpack.c.l.b16 %v4454
  %v8430 = vunpack.c.h.b16 %v4454
  %v8431 = vunpack.c.l.b16 %v4455
  %v8432 = vunpack.c.h.b16 %v4455
  %v8433 = vunpack.c.l.b16 %v4456
  %v8434 = vunpack.c.h.b16 %v4456
  %v8435 = vunpack.c.l.b16 %v4457
  %v8436 = vunpack.c.h.b16 %v4457
  %v8437 = vunpack.c.l.b16 %v4458
  %v8438 = vunpack.c.h.b16 %v4458
  %v8439 = vunpack.c.l.b16 %v4459
  %v8440 = vunpack.c.h.b16 %v4459
  %v8441 = vunpack.c.l.b16 %v4460
  %v8442 = vunpack.c.h.b16 %v4460
  %v8443 = vunpack.c.l.b16 %v4461
  %v8444 = vunpack.c.h.b16 %v4461
  %v8445 = vunpack.c.l.b16 %v4462
  %v8446 = vunpack.c.h.b16 %v4462
  %v8447 = vunpack.c.l.b16 %v4463
  %v8448 = vunpack.c.h.b16 %v4463
  %v8449 = vunpack.c.l.b16 %v4464
  %v8450 = vunpack.c.h.b16 %v4464
  %v8451 = vunpack.c.l.b16 %v4465
  %v8452 = vunpack.c.h.b16 %v4465
  %v8453 = vunpack.c.l.b16 %v4466
  %v8454 = vunpack.c.h.b16 %v4466
  %v8455 = vunpack.c.l.b16 %v4467
  %v8456 = vunpack.c.h.b16 %v4467
  %v8457 = vunpack.c.l.b16 %v4468
  %v8458 = vunpack.c.h.b16 %v4468
  %v8459 = vunpack.c.l.b16 %v4469
  %v8460 = vunpack.c.h.b16 %v4469
  %v8461 = vunpack.c.l.b16 %v4470
  %v8462 = vunpack.c.h.b16 %v4470
  %v8463 = vunpack.c.l.b16 %v4471
  %v8464 = vunpack.c.h.b16 %v4471
  %v8465 = vunpack.c.l.b16 %v4472
  %v8466 = vunpack.c.h.b16 %v4472
  %v8467 = vunpack.c.l.b16 %v4473
  %v8468 = vunpack.c.h.b16 %v4473
  %v8469 = vunpack.c.l.b16 %v4474
  %v8470 = vunpack.c.h.b16 %v4474
  %v8471 = vunpack.c.l.b16 %v4475
  %v8472 = vunpack.c.h.b16 %v4475
  %v8473 = vunpack.c.l.b16 %v4476
  %v8474 = vunpack.c.h.b16 %v4476
  %v8475 = vunpack.c.l.b16 %v4477
  %v8476 = vunpack.c.h.b16 %v4477
  %v8477 = vunpack.c.l.b16 %v4478
  %v8478 = vunpack.c.h.b16 %v4478
  %v8479 = vunpack.c.l.b16 %v4479
  %v8480 = vunpack.c.h.b16 %v4479
  %v8481 = vunpack.c.l.b16 %v4480
  %v8482 = vunpack.c.h.b16 %v4480
  %v8483 = vunpack.c.l.b16 %v4481
  %v8484 = vunpack.c.h.b16 %v4481
  %v8485 = vunpack.c.l.b16 %v4482
  %v8486 = vunpack.c.h.b16 %v4482
  %v8487 = vunpack.c.l.b16 %v4483
  %v8488 = vunpack.c.h.b16 %v4483
  %v8489 = vunpack.c.l.b16 %v4484
  %v8490 = vunpack.c.h.b16 %v4484
  %v8491 = vunpack.c.l.b16 %v4485
  %v8492 = vunpack.c.h.b16 %v4485
  %v8493 = vunpack.c.l.b16 %v4486
  %v8494 = vunpack.c.h.b16 %v4486
  %v8495 = vunpack.c.l.b16 %v4487
  %v8496 = vunpack.c.h.b16 %v4487
  %v8497 = vunpack.c.l.b16 %v4488
  %v8498 = vunpack.c.h.b16 %v4488
  %v8499 = vunpack.c.l.b16 %v4489
  %v8500 = vunpack.c.h.b16 %v4489
  %v8501 = vunpack.c.l.b16 %v4490
  %v8502 = vunpack.c.h.b16 %v4490
  %v8503 = vunpack.c.l.b16 %v4491
  %v8504 = vunpack.c.h.b16 %v4491
  %v8505 = vunpack.c.l.b16 %v4492
  %v8506 = vunpack.c.h.b16 %v4492
  %v8507 = vunpack.c.l.b16 %v4493
  %v8508 = vunpack.c.h.b16 %v4493
  %v8509 = vunpack.c.l.b16 %v4494
  %v8510 = vunpack.c.h.b16 %v4494
  %v8511 = vunpack.c.l.b16 %v4495
  %v8512 = vunpack.c.h.b16 %v4495
  %v8513 = vunpack.c.l.b16 %v4496
  %v8514 = vunpack.c.h.b16 %v4496
  %v8515 = vunpack.c.l.b16 %v4497
  %v8516 = vunpack.c.h.b16 %v4497
  %v8517 = vunpack.c.l.b16 %v4498
  %v8518 = vunpack.c.h.b16 %v4498
  %v8519 = vunpack.c.l.b16 %v4499
  %v8520 = vunpack.c.h.b16 %v4499
  %v8521 = vunpack.c.l.b16 %v4500
  %v8522 = vunpack.c.h.b16 %v4500
  %v8523 = vunpack.c.l.b16 %v4501
  %v8524 = vunpack.c.h.b16 %v4501
  %v8525 = vunpack.c.l.b16 %v4502
  %v8526 = vunpack.c.h.b16 %v4502
  %v8527 = vunpack.c.l.b16 %v4503
  %v8528 = vunpack.c.h.b16 %v4503
  %v8529 = vunpack.c.l.b16 %v4504
  %v8530 = vunpack.c.h.b16 %v4504
  %v8531 = vunpack.c.l.b16 %v4505
  %v8532 = vunpack.c.h.b16 %v4505
  %v8533 = vunpack.c.l.b16 %v4506
  %v8534 = vunpack.c.h.b16 %v4506
  %v8535 = vunpack.c.l.b16 %v4507
  %v8536 = vunpack.c.h.b16 %v4507
  %v8537 = vunpack.c.l.b16 %v4508
  %v8538 = vunpack.c.h.b16 %v4508
  %v8539 = vunpack.c.l.b16 %v4509
  %v8540 = vunpack.c.h.b16 %v4509
  %v8541 = vunpack.c.l.b16 %v4510
  %v8542 = vunpack.c.h.b16 %v4510
  %v8543 = vunpack.c.l.b16 %v4511
  %v8544 = vunpack.c.h.b16 %v4511
  %v8545 = vunpack.c.l.b16 %v4512
  %v8546 = vunpack.c.h.b16 %v4512
  %v8547 = vunpack.c.l.b16 %v4513
  %v8548 = vunpack.c.h.b16 %v4513
  %v8549 = vunpack.c.l.b16 %v4514
  %v8550 = vunpack.c.h.b16 %v4514
  %v8551 = vunpack.c.l.b16 %v4515
  %v8552 = vunpack.c.h.b16 %v4515
  %v8553 = vunpack.c.l.b16 %v4516
  %v8554 = vunpack.c.h.b16 %v4516
  %v8555 = vunpack.c.l.b16 %v4517
  %v8556 = vunpack.c.h.b16 %v4517
  %v8557 = vunpack.c.l.b16 %v4518
  %v8558 = vunpack.c.h.b16 %v4518
  %v8559 = vunpack.c.l.b16 %v4519
  %v8560 = vunpack.c.h.b16 %v4519
  %v8561 = vunpack.c.l.b16 %v4520
  %v8562 = vunpack.c.h.b16 %v4520
  %v8563 = vunpack.c.l.b16 %v4521
  %v8564 = vunpack.c.h.b16 %v4521
  %v8565 = vunpack.c.l.b16 %v4522
  %v8566 = vunpack.c.h.b16 %v4522
  %v8567 = vunpack.c.l.b16 %v4523
  %v8568 = vunpack.c.h.b16 %v4523
  %v8569 = vunpack.c.l.b16 %v4524
  %v8570 = vunpack.c.h.b16 %v4524
  %v8571 = vunpack.c.l.b16 %v4525
  %v8572 = vunpack.c.h.b16 %v4525
  %v8573 = vunpack.c.l.b16 %v4526
  %v8574 = vunpack.c.h.b16 %v4526
  %v8575 = vunpack.c.l.b16 %v4527
  %v8576 = vunpack.c.h.b16 %v4527
  %v8577 = vunpack.c.l.b16 %v4528
  %v8578 = vunpack.c.h.b16 %v4528
  %v8579 = vunpack.c.l.b16 %v4529
  %v8580 = vunpack.c.h.b16 %v4529
  %v8581 = vunpack.c.l.b16 %v4530
  %v8582 = vunpack.c.h.b16 %v4530
  %v8583 = vunpack.c.l.b16 %v4531
  %v8584 = vunpack.c.h.b16 %v4531
  %v8585 = vunpack.c.l.b16 %v4532
  %v8586 = vunpack.c.h.b16 %v4532
  %v8587 = vunpack.c.l.b16 %v4533
  %v8588 = vunpack.c.h.b16 %v4533
  %v8589 = vunpack.c.l.b16 %v4534
  %v8590 = vunpack.c.h.b16 %v4534
  %v8591 = vunpack.c.l.b16 %v4535
  %v8592 = vunpack.c.h.b16 %v4535
  %v8593 = vunpack.c.l.b16 %v4536
  %v8594 = vunpack.c.h.b16 %v4536
  %v8595 = vunpack.c.l.b16 %v4537
  %v8596 = vunpack.c.h.b16 %v4537
  %v8597 = vunpack.c.l.b16 %v4538
  %v8598 = vunpack.c.h.b16 %v4538
  %v8599 = vunpack.c.l.b16 %v4539
  %v8600 = vunpack.c.h.b16 %v4539
  %v8601 = vunpack.c.l.b16 %v4540
  %v8602 = vunpack.c.h.b16 %v4540
  %v8603 = vunpack.c.l.b16 %v4541
  %v8604 = vunpack.c.h.b16 %v4541
  %v8605 = vunpack.c.l.b16 %v4542
  %v8606 = vunpack.c.h.b16 %v4542
  %v8607 = vunpack.c.l.b16 %v4543
  %v8608 = vunpack.c.h.b16 %v4543
  %v8609 = vunpack.c.l.b16 %v4544
  %v8610 = vunpack.c.h.b16 %v4544
  %v8611 = vunpack.c.l.b16 %v4545
  %v8612 = vunpack.c.h.b16 %v4545
  %v8613 = vunpack.c.l.b16 %v4546
  %v8614 = vunpack.c.h.b16 %v4546
  %v8615 = vunpack.c.l.b16 %v4547
  %v8616 = vunpack.c.h.b16 %v4547
  %v8617 = vunpack.c.l.b16 %v4548
  %v8618 = vunpack.c.h.b16 %v4548
  %v8619 = vunpack.c.l.b16 %v4549
  %v8620 = vunpack.c.h.b16 %v4549
  %v8621 = vunpack.c.l.b16 %v4550
  %v8622 = vunpack.c.h.b16 %v4550
  %v8623 = vunpack.c.l.b16 %v4551
  %v8624 = vunpack.c.h.b16 %v4551
  %v8625 = vunpack.c.l.b16 %v4552
  %v8626 = vunpack.c.h.b16 %v4552
  %v8627 = vunpack.c.l.b16 %v4553
  %v8628 = vunpack.c.h.b16 %v4553
  %v8629 = vunpack.c.l.b16 %v4554
  %v8630 = vunpack.c.h.b16 %v4554
  %v8631 = vunpack.c.l.b16 %v4555
  %v8632 = vunpack.c.h.b16 %v4555
  %v8633 = vunpack.c.l.b16 %v4556
  %v8634 = vunpack.c.h.b16 %v4556
  %v8635 = vunpack.c.l.b16 %v4557
  %v8636 = vunpack.c.h.b16 %v4557
  %v8637 = vunpack.c.l.b16 %v4558
  %v8638 = vunpack.c.h.b16 %v4558
  %v8639 = vunpack.c.l.b16 %v4559
  %v8640 = vunpack.c.h.b16 %v4559
  %v8641 = vunpack.c.l.b16 %v4560
  %v8642 = vunpack.c.h.b16 %v4560
  %v8643 = vunpack.c.l.b16 %v4561
  %v8644 = vunpack.c.h.b16 %v4561
  %v8645 = vunpack.c.l.b16 %v4562
  %v8646 = vunpack.c.h.b16 %v4562
  %v8647 = vunpack.c.l.b16 %v4563
  %v8648 = vunpack.c.h.b16 %v4563
  %v8649 = vunpack.c.l.b16 %v4564
  %v8650 = vunpack.c.h.b16 %v4564
  %v8651 = vunpack.c.l.b16 %v4565
  %v8652 = vunpack.c.h.b16 %v4565
  %v8653 = vunpack.c.l.b16 %v4566
  %v8654 = vunpack.c.h.b16 %v4566
  %v8655 = vunpack.c.l.b16 %v4567
  %v8656 = vunpack.c.h.b16 %v4567
  %v8657 = vunpack.c.l.b16 %v4568
  %v8658 = vunpack.c.h.b16 %v4568
  %v8659 = vunpack.c.l.b16 %v4569
  %v8660 = vunpack.c.h.b16 %v4569
  %v8661 = vunpack.c.l.b16 %v4570
  %v8662 = vunpack.c.h.b16 %v4570
  %v8663 = vunpack.c.l.b16 %v4571
  %v8664 = vunpack.c.h.b16 %v4571
  %v8665 = vunpack.c.l.b16 %v4572
  %v8666 = vunpack.c.h.b16 %v4572
  %v8667 = vunpack.c.l.b16 %v4573
  %v8668 = vunpack.c.h.b16 %v4573
  %v8669 = vunpack.c.l.b16 %v4574
  %v8670 = vunpack.c.h.b16 %v4574
  %v8671 = vunpack.c.l.b16 %v4575
  %v8672 = vunpack.c.h.b16 %v4575
  %v8673 = vunpack.c.l.b16 %v4576
  %v8674 = vunpack.c.h.b16 %v4576
  %v8675 = vunpack.c.l.b16 %v4577
  %v8676 = vunpack.c.h.b16 %v4577
  %v8677 = vunpack.c.l.b16 %v4578
  %v8678 = vunpack.c.h.b16 %v4578
  %v8679 = vunpack.c.l.b16 %v4579
  %v8680 = vunpack.c.h.b16 %v4579
  %v8681 = vunpack.c.l.b16 %v4580
  %v8682 = vunpack.c.h.b16 %v4580
  %v8683 = vunpack.c.l.b16 %v4581
  %v8684 = vunpack.c.h.b16 %v4581
  %v8685 = vunpack.c.l.b16 %v4582
  %v8686 = vunpack.c.h.b16 %v4582
  %v8687 = vunpack.c.l.b16 %v4583
  %v8688 = vunpack.c.h.b16 %v4583
  %v8689 = vunpack.c.l.b16 %v4584
  %v8690 = vunpack.c.h.b16 %v4584
  %v8691 = vunpack.c.l.b16 %v4585
  %v8692 = vunpack.c.h.b16 %v4585
  %v8693 = vunpack.c.l.b16 %v4586
  %v8694 = vunpack.c.h.b16 %v4586
  %v8695 = vunpack.c.l.b16 %v4587
  %v8696 = vunpack.c.h.b16 %v4587
  %v8697 = vunpack.c.l.b16 %v4588
  %v8698 = vunpack.c.h.b16 %v4588
  %v8699 = vunpack.c.l.b16 %v4589
  %v8700 = vunpack.c.h.b16 %v4589
  %v8701 = vunpack.c.l.b16 %v4590
  %v8702 = vunpack.c.h.b16 %v4590
  %v8703 = vunpack.c.l.b16 %v4591
  %v8704 = vunpack.c.h.b16 %v4591
  %v8705 = vunpack.c.l.b16 %v4592
  %v8706 = vunpack.c.h.b16 %v4592
  %v8707 = vunpack.c.l.b16 %v4593
  %v8708 = vunpack.c.h.b16 %v4593
  %v8709 = vunpack.c.l.b16 %v4594
  %v8710 = vunpack.c.h.b16 %v4594
  %v8711 = vunpack.c.l.b16 %v4595
  %v8712 = vunpack.c.h.b16 %v4595
  %v8713 = vunpack.c.l.b16 %v4596
  %v8714 = vunpack.c.h.b16 %v4596
  %v8715 = vunpack.c.l.b16 %v4597
  %v8716 = vunpack.c.h.b16 %v4597
  %v8717 = vunpack.c.l.b16 %v4598
  %v8718 = vunpack.c.h.b16 %v4598
  %v8719 = vunpack.c.l.b16 %v4599
  %v8720 = vunpack.c.h.b16 %v4599
  %v8721 = vunpack.c.l.b16 %v4600
  %v8722 = vunpack.c.h.b16 %v4600
  %v8723 = vunpack.c.l.b16 %v4601
  %v8724 = vunpack.c.h.b16 %v4601
  %v8725 = vunpack.c.l.b16 %v4602
  %v8726 = vunpack.c.h.b16 %v4602
  %v8727 = vunpack.c.l.b16 %v4603
  %v8728 = vunpack.c.h.b16 %v4603
  %v8729 = vunpack.c.l.b16 %v4604
  %v8730 = vunpack.c.h.b16 %v4604
  %v8731 = vunpack.c.l.b16 %v4605
  %v8732 = vunpack.c.h.b16 %v4605
  %v8733 = vunpack.c.l.b16 %v4606
  %v8734 = vunpack.c.h.b16 %v4606
  %v8735 = vunpack.c.l.b16 %v4607
  %v8736 = vunpack.c.h.b16 %v4607
  %v8737 = vunpack.c.l.b16 %v4608
  %v8738 = vunpack.c.h.b16 %v4608
  %v8739 = vunpack.c.l.b16 %v4609
  %v8740 = vunpack.c.h.b16 %v4609
  %v8741 = vunpack.c.l.b16 %v4610
  %v8742 = vunpack.c.h.b16 %v4610
  %v8743 = vunpack.c.l.b16 %v4611
  %v8744 = vunpack.c.h.b16 %v4611
  %v8745 = vunpack.c.l.b16 %v4612
  %v8746 = vunpack.c.h.b16 %v4612
  %v8747 = vunpack.c.l.b16 %v4613
  %v8748 = vunpack.c.h.b16 %v4613
  %v8749 = vunpack.c.l.b16 %v4614
  %v8750 = vunpack.c.h.b16 %v4614
  %v8751 = vunpack.c.l.b16 %v4615
  %v8752 = vunpack.c.h.b16 %v4615
  %v8753 = vunpack.c.l.b16 %v4616
  %v8754 = vunpack.c.h.b16 %v4616
  %v8755 = vunpack.c.l.b16 %v4617
  %v8756 = vunpack.c.h.b16 %v4617
  %v8757 = vunpack.c.l.b16 %v4618
  %v8758 = vunpack.c.h.b16 %v4618
  %v8759 = vunpack.c.l.b16 %v4619
  %v8760 = vunpack.c.h.b16 %v4619
  %v8761 = vunpack.c.l.b16 %v4620
  %v8762 = vunpack.c.h.b16 %v4620
  %v8763 = vunpack.c.l.b16 %v4621
  %v8764 = vunpack.c.h.b16 %v4621
  %v8765 = vunpack.c.l.b16 %v4622
  %v8766 = vunpack.c.h.b16 %v4622
  %v8767 = vunpack.c.l.b16 %v4623
  %v8768 = vunpack.c.h.b16 %v4623
  %v8769 = vunpack.c.l.b16 %v4624
  %v8770 = vunpack.c.h.b16 %v4624
  %v8771 = vunpack.c.l.b16 %v4625
  %v8772 = vunpack.c.h.b16 %v4625
  %v8773 = vunpack.c.l.b16 %v4626
  %v8774 = vunpack.c.h.b16 %v4626
  %v8775 = vunpack.c.l.b16 %v4627
  %v8776 = vunpack.c.h.b16 %v4627
  %v8777 = vunpack.c.l.b16 %v4628
  %v8778 = vunpack.c.h.b16 %v4628
  %v8779 = vunpack.c.l.b16 %v4629
  %v8780 = vunpack.c.h.b16 %v4629
  %v8781 = vunpack.c.l.b16 %v4630
  %v8782 = vunpack.c.h.b16 %v4630
  %v8783 = vunpack.c.l.b16 %v4631
  %v8784 = vunpack.c.h.b16 %v4631
  %v8785 = vunpack.c.l.b16 %v4632
  %v8786 = vunpack.c.h.b16 %v4632
  %v8787 = vunpack.c.l.b16 %v4633
  %v8788 = vunpack.c.h.b16 %v4633
  %v8789 = vunpack.c.l.b16 %v4634
  %v8790 = vunpack.c.h.b16 %v4634
  %v8791 = vunpack.c.l.b16 %v4635
  %v8792 = vunpack.c.h.b16 %v4635
  %v8793 = vunpack.c.l.b16 %v4636
  %v8794 = vunpack.c.h.b16 %v4636
  %v8795 = vunpack.c.l.b16 %v4637
  %v8796 = vunpack.c.h.b16 %v4637
  %v8797 = vpack.c.b16 %v7267, %v7261
  %v8798 = vpack.c.b16 %v7268, %v7262
  %v8799 = vpack.c.b16 %v7269, %v7263
  %v8800 = vpack.c.b16 %v7270, %v7264
  %v8801 = vpack.c.b16 %v7271, %v7265
  %v8802 = vpack.c.b16 %v7272, %v7266
  %v8803 = vpack.c.b16 %v7279, %v7273
  %v8804 = vpack.c.b16 %v7280, %v7274
  %v8805 = vpack.c.b16 %v7281, %v7275
  %v8806 = vpack.c.b16 %v7282, %v7276
  %v8807 = vpack.c.b16 %v7283, %v7277
  %v8808 = vpack.c.b16 %v7284, %v7278
  %v8809 = vpack.c.b16 %v7291, %v7285
  %v8810 = vpack.c.b16 %v7292, %v7286
  %v8811 = vpack.c.b16 %v7293, %v7287
  %v8812 = vpack.c.b16 %v7294, %v7288
  %v8813 = vpack.c.b16 %v7295, %v7289
  %v8814 = vpack.c.b16 %v7296, %v7290
  %v8815 = vpack.c.b16 %v7303, %v7297
  %v8816 = vpack.c.b16 %v7304, %v7298
  %v8817 = vpack.c.b16 %v7305, %v7299
  %v8818 = vpack.c.b16 %v7306, %v7300
  %v8819 = vpack.c.b16 %v7307, %v7301
  %v8820 = vpack.c.b16 %v7308, %v7302
  %v8821 = vpack.c.b16 %v7315, %v7309
  %v8822 = vpack.c.b16 %v7316, %v7310
  %v8823 = vpack.c.b16 %v7317, %v7311
  %v8824 = vpack.c.b16 %v7318, %v7312
  %v8825 = vpack.c.b16 %v7319, %v7313
  %v8826 = vpack.c.b16 %v7320, %v7314
  %v8827 = vpack.c.b16 %v7327, %v7321
  %v8828 = vpack.c.b16 %v7328, %v7322
  %v8829 = vpack.c.b16 %v7329, %v7323
  %v8830 = vpack.c.b16 %v7330, %v7324
  %v8831 = vpack.c.b16 %v7331, %v7325
  %v8832 = vpack.c.b16 %v7332, %v7326
  %v8833 = vpack.c.b16 %v7339, %v7333
  %v8834 = vpack.c.b16 %v7340, %v7334
  %v8835 = vpack.c.b16 %v7341, %v7335
  %v8836 = vpack.c.b16 %v7342, %v7336
  %v8837 = vpack.c.b16 %v7343, %v7337
  %v8838 = vpack.c.b16 %v7344, %v7338
  %v8839 = vpack.c.b16 %v7351, %v7345
  %v8840 = vpack.c.b16 %v7352, %v7346
  %v8841 = vpack.c.b16 %v7353, %v7347
  %v8842 = vpack.c.b16 %v7354, %v7348
  %v8843 = vpack.c.b16 %v7355, %v7349
  %v8844 = vpack.c.b16 %v7356, %v7350
  %v8845 = vpack.c.b16 %v7363, %v7357
  %v8846 = vpack.c.b16 %v7364, %v7358
  %v8847 = vpack.c.b16 %v7365, %v7359
  %v8848 = vpack.c.b16 %v7366, %v7360
  %v8849 = vpack.c.b16 %v7367, %v7361
  %v8850 = vpack.c.b16 %v7368, %v7362
  %v8851 = vpack.c.b16 %v7375, %v7369
  %v8852 = vpack.c.b16 %v7376, %v7370
  %v8853 = vpack.c.b16 %v7377, %v7371
  %v8854 = vpack.c.b16 %v7378, %v7372
  %v8855 = vpack.c.b16 %v7379, %v7373
  %v8856 = vpack.c.b16 %v7380, %v7374
  %v8857 = vpack.c.b16 %v7387, %v7381
  %v8858 = vpack.c.b16 %v7388, %v7382
  %v8859 = vpack.c.b16 %v7389, %v7383
  %v8860 = vpack.c.b16 %v7390, %v7384
  %v8861 = vpack.c.b16 %v7391, %v7385
  %v8862 = vpack.c.b16 %v7392, %v7386
  %v8863 = vpack.c.b16 %v7399, %v7393
  %v8864 = vpack.c.b16 %v7400, %v7394
  %v8865 = vpack.c.b16 %v7401, %v7395
  %v8866 = vpack.c.b16 %v7402, %v7396
  %v8867 = vpack.c.b16 %v7403, %v7397
  %v8868 = vpack.c.b16 %v7404, %v7398
  %v8869 = vpack.c.b16 %v7411, %v7405
  %v8870 = vpack.c.b16 %v7412, %v7406
  %v8871 = vpack.c.b16 %v7413, %v7407
  %v8872 = vpack.c.b16 %v7414, %v7408
  %v8873 = vpack.c.b16 %v7415, %v7409
  %v8874 = vpack.c.b16 %v7416, %v7410
  %v8875 = vpack.c.b16 %v7423, %v7417
  %v8876 = vpack.c.b16 %v7424, %v7418
  %v8877 = vpack.c.b16 %v7425, %v7419
  %v8878 = vpack.c.b16 %v7426, %v7420
  %v8879 = vpack.c.b16 %v7427, %v7421
  %v8880 = vpack.c.b16 %v7428, %v7422
  %v8881 = vpack.c.b16 %v7435, %v7429
  %v8882 = vpack.c.b16 %v7436, %v7430
  %v8883 = vpack.c.b16 %v7437, %v7431
  %v8884 = vpack.c.b16 %v7438, %v7432
  %v8885 = vpack.c.b16 %v7439, %v7433
  %v8886 = vpack.c.b16 %v7440, %v7434
  %v8887 = vpack.c.b16 %v7447, %v7441
  %v8888 = vpack.c.b16 %v7448, %v7442
  %v8889 = vpack.c.b16 %v7449, %v7443
  %v8890 = vpack.c.b16 %v7450, %v7444
  %v8891 = vpack.c.b16 %v7451, %v7445
  %v8892 = vpack.c.b16 %v7452, %v7446
  %v8893 = vpack.c.b16 %v7459, %v7453
  %v8894 = vpack.c.b16 %v7460, %v7454
  %v8895 = vpack.c.b16 %v7461, %v7455
  %v8896 = vpack.c.b16 %v7462, %v7456
  %v8897 = vpack.c.b16 %v7463, %v7457
  %v8898 = vpack.c.b16 %v7464, %v7458
  %v8899 = vpack.c.b16 %v7471, %v7465
  %v8900 = vpack.c.b16 %v7472, %v7466
  %v8901 = vpack.c.b16 %v7473, %v7467
  %v8902 = vpack.c.b16 %v7474, %v7468
  %v8903 = vpack.c.b16 %v7475, %v7469
  %v8904 = vpack.c.b16 %v7476, %v7470
  %v8905 = vpack.c.b16 %v7483, %v7477
  %v8906 = vpack.c.b16 %v7484, %v7478
  %v8907 = vpack.c.b16 %v7485, %v7479
  %v8908 = vpack.c.b16 %v7486, %v7480
  %v8909 = vpack.c.b16 %v7487, %v7481
  %v8910 = vpack.c.b16 %v7488, %v7482
  %v8911 = vpack.c.b16 %v7495, %v7489
  %v8912 = vpack.c.b16 %v7496, %v7490
  %v8913 = vpack.c.b16 %v7497, %v7491
  %v8914 = vpack.c.b16 %v7498, %v7492
  %v8915 = vpack.c.b16 %v7499, %v7493
  %v8916 = vpack.c.b16 %v7500, %v7494
  %v8917 = vpack.c.b16 %v7507, %v7501
  %v8918 = vpack.c.b16 %v7508, %v7502
  %v8919 = vpack.c.b16 %v7509, %v7503
  %v8920 = vpack.c.b16 %v7510, %v7504
  %v8921 = vpack.c.b16 %v7511, %v7505
  %v8922 = vpack.c.b16 %v7512, %v7506
  %v8923 = vpack.c.b16 %v7519, %v7513
  %v8924 = vpack.c.b16 %v7520, %v7514
  %v8925 = vpack.c.b16 %v7521, %v7515
  %v8926 = vpack.c.b16 %v7522, %v7516
  %v8927 = vpack.c.b16 %v7523, %v7517
  %v8928 = vpack.c.b16 %v7524, %v7518
  %v8929 = vpack.c.b16 %v7531, %v7525
  %v8930 = vpack.c.b16 %v7532, %v7526
  %v8931 = vpack.c.b16 %v7533, %v7527
  %v8932 = vpack.c.b16 %v7534, %v7528
  %v8933 = vpack.c.b16 %v7535, %v7529
  %v8934 = vpack.c.b16 %v7536, %v7530
  %v8935 = vpack.c.b16 %v7543, %v7537
  %v8936 = vpack.c.b16 %v7544, %v7538
  %v8937 = vpack.c.b16 %v7545, %v7539
  %v8938 = vpack.c.b16 %v7546, %v7540
  %v8939 = vpack.c.b16 %v7547, %v7541
  %v8940 = vpack.c.b16 %v7548, %v7542
  %v8941 = vpack.c.b16 %v7555, %v7549
  %v8942 = vpack.c.b16 %v7556, %v7550
  %v8943 = vpack.c.b16 %v7557, %v7551
  %v8944 = vpack.c.b16 %v7558, %v7552
  %v8945 = vpack.c.b16 %v7559, %v7553
  %v8946 = vpack.c.b16 %v7560, %v7554
  %v8947 = vpack.c.b16 %v7567, %v7561
  %v8948 = vpack.c.b16 %v7568, %v7562
  %v8949 = vpack.c.b16 %v7569, %v7563
  %v8950 = vpack.c.b16 %v7570, %v7564
  %v8951 = vpack.c.b16 %v7571, %v7565
  %v8952 = vpack.c.b16 %v7572, %v7566
  %v8953 = vpack.c.b16 %v7579, %v7573
  %v8954 = vpack.c.b16 %v7580, %v7574
  %v8955 = vpack.c.b16 %v7581, %v7575
  %v8956 = vpack.c.b16 %v7582, %v7576
  %v8957 = vpack.c.b16 %v7583, %v7577
  %v8958 = vpack.c.b16 %v7584, %v7578
  %v8959 = vpack.c.b16 %v7591, %v7585
  %v8960 = vpack.c.b16 %v7592, %v7586
  %v8961 = vpack.c.b16 %v7593, %v7587
  %v8962 = vpack.c.b16 %v7594, %v7588
  %v8963 = vpack.c.b16 %v7595, %v7589
  %v8964 = vpack.c.b16 %v7596, %v7590
  %v8965 = vpack.c.b16 %v7603, %v7597
  %v8966 = vpack.c.b16 %v7604, %v7598
  %v8967 = vpack.c.b16 %v7605, %v7599
  %v8968 = vpack.c.b16 %v7606, %v7600
  %v8969 = vpack.c.b16 %v7607, %v7601
  %v8970 = vpack.c.b16 %v7608, %v7602
  %v8971 = vpack.c.b16 %v7615, %v7609
  %v8972 = vpack.c.b16 %v7616, %v7610
  %v8973 = vpack.c.b16 %v7617, %v7611
  %v8974 = vpack.c.b16 %v7618, %v7612
  %v8975 = vpack.c.b16 %v7619, %v7613
  %v8976 = vpack.c.b16 %v7620, %v7614
  %v8977 = vpack.c.b16 %v7627, %v7621
  %v8978 = vpack.c.b16 %v7628, %v7622
  %v8979 = vpack.c.b16 %v7629, %v7623
  %v8980 = vpack.c.b16 %v7630, %v7624
  %v8981 = vpack.c.b16 %v7631, %v7625
  %v8982 = vpack.c.b16 %v7632, %v7626
  %v8983 = vpack.c.b16 %v7639, %v7633
  %v8984 = vpack.c.b16 %v7640, %v7634
  %v8985 = vpack.c.b16 %v7641, %v7635
  %v8986 = vpack.c.b16 %v7642, %v7636
  %v8987 = vpack.c.b16 %v7643, %v7637
  %v8988 = vpack.c.b16 %v7644, %v7638
  %v8989 = vpack.c.b16 %v7651, %v7645
  %v8990 = vpack.c.b16 %v7652, %v7646
  %v8991 = vpack.c.b16 %v7653, %v7647
  %v8992 = vpack.c.b16 %v7654, %v7648
  %v8993 = vpack.c.b16 %v7655, %v7649
  %v8994 = vpack.c.b16 %v7656, %v7650
  %v8995 = vpack.c.b16 %v7663, %v7657
  %v8996 = vpack.c.b16 %v7664, %v7658
  %v8997 = vpack.c.b16 %v7665, %v7659
  %v8998 = vpack.c.b16 %v7666, %v7660
  %v8999 = vpack.c.b16 %v7667, %v7661
  %v9000 = vpack.c.b16 %v7668, %v7662
  %v9001 = vpack.c.b16 %v7675, %v7669
  %v9002 = vpack.c.b16 %v7676, %v7670
  %v9003 = vpack.c.b16 %v7677, %v7671
  %v9004 = vpack.c.b16 %v7678, %v7672
  %v9005 = vpack.c.b16 %v7679, %v7673
  %v9006 = vpack.c.b16 %v7680, %v7674
  %v9007 = vpack.c.b16 %v7687, %v7681
  %v9008 = vpack.c.b16 %v7688, %v7682
  %v9009 = vpack.c.b16 %v7689, %v7683
  %v9010 = vpack.c.b16 %v7690, %v7684
  %v9011 = vpack.c.b16 %v7691, %v7685
  %v9012 = vpack.c.b16 %v7692, %v7686
  %v9013 = vpack.c.b16 %v7699, %v7693
  %v9014 = vpack.c.b16 %v7700, %v7694
  %v9015 = vpack.c.b16 %v7701, %v7695
  %v9016 = vpack.c.b16 %v7702, %v7696
  %v9017 = vpack.c.b16 %v7703, %v7697
  %v9018 = vpack.c.b16 %v7704, %v7698
  %v9019 = vpack.c.b16 %v7711, %v7705
  %v9020 = vpack.c.b16 %v7712, %v7706
  %v9021 = vpack.c.b16 %v7713, %v7707
  %v9022 = vpack.c.b16 %v7714, %v7708
  %v9023 = vpack.c.b16 %v7715, %v7709
  %v9024 = vpack.c.b16 %v7716, %v7710
  %v9025 = vpack.c.b16 %v7723, %v7717
  %v9026 = vpack.c.b16 %v7724, %v7718
  %v9027 = vpack.c.b16 %v7725, %v7719
  %v9028 = vpack.c.b16 %v7726, %v7720
  %v9029 = vpack.c.b16 %v7727, %v7721
  %v9030 = vpack.c.b16 %v7728, %v7722
  %v9031 = vpack.c.b16 %v7735, %v7729
  %v9032 = vpack.c.b16 %v7736, %v7730
  %v9033 = vpack.c.b16 %v7737, %v7731
  %v9034 = vpack.c.b16 %v7738, %v7732
  %v9035 = vpack.c.b16 %v7739, %v7733
  %v9036 = vpack.c.b16 %v7740, %v7734
  %v9037 = vpack.c.b16 %v7747, %v7741
  %v9038 = vpack.c.b16 %v7748, %v7742
  %v9039 = vpack.c.b16 %v7749, %v7743
  %v9040 = vpack.c.b16 %v7750, %v7744
  %v9041 = vpack.c.b16 %v7751, %v7745
  %v9042 = vpack.c.b16 %v7752, %v7746
  %v9043 = vpack.c.b16 %v7759, %v7753
  %v9044 = vpack.c.b16 %v7760, %v7754
  %v9045 = vpack.c.b16 %v7761, %v7755
  %v9046 = vpack.c.b16 %v7762, %v7756
  %v9047 = vpack.c.b16 %v7763, %v7757
  %v9048 = vpack.c.b16 %v7764, %v7758
  %v9049 = vpack.c.b16 %v7771, %v7765
  %v9050 = vpack.c.b16 %v7772, %v7766
  %v9051 = vpack.c.b16 %v7773, %v7767
  %v9052 = vpack.c.b16 %v7774, %v7768
  %v9053 = vpack.c.b16 %v7775, %v7769
  %v9054 = vpack.c.b16 %v7776, %v7770
  %v9055 = vpack.c.b16 %v7783, %v7777
  %v9056 = vpack.c.b16 %v7784, %v7778
  %v9057 = vpack.c.b16 %v7785, %v7779
  %v9058 = vpack.c.b16 %v7786, %v7780
  %v9059 = vpack.c.b16 %v7787, %v7781
  %v9060 = vpack.c.b16 %v7788, %v7782
  %v9061 = vpack.c.b16 %v7795, %v7789
  %v9062 = vpack.c.b16 %v7796, %v7790
  %v9063 = vpack.c.b16 %v7797, %v7791
  %v9064 = vpack.c.b16 %v7798, %v7792
  %v9065 = vpack.c.b16 %v7799, %v7793
  %v9066 = vpack.c.b16 %v7800, %v7794
  %v9067 = vpack.c.b16 %v7807, %v7801
  %v9068 = vpack.c.b16 %v7808, %v7802
  %v9069 = vpack.c.b16 %v7809, %v7803
  %v9070 = vpack.c.b16 %v7810, %v7804
  %v9071 = vpack.c.b16 %v7811, %v7805
  %v9072 = vpack.c.b16 %v7812, %v7806
  %v9073 = vpack.c.b16 %v7819, %v7813
  %v9074 = vpack.c.b16 %v7820, %v7814
  %v9075 = vpack.c.b16 %v7821, %v7815
  %v9076 = vpack.c.b16 %v7822, %v7816
  %v9077 = vpack.c.b16 %v7823, %v7817
  %v9078 = vpack.c.b16 %v7824, %v7818
  %v9079 = vpack.c.b16 %v7831, %v7825
  %v9080 = vpack.c.b16 %v7832, %v7826
  %v9081 = vpack.c.b16 %v7833, %v7827
  %v9082 = vpack.c.b16 %v7834, %v7828
  %v9083 = vpack.c.b16 %v7835, %v7829
  %v9084 = vpack.c.b16 %v7836, %v7830
  %v9085 = vpack.c.b16 %v7843, %v7837
  %v9086 = vpack.c.b16 %v7844, %v7838
  %v9087 = vpack.c.b16 %v7845, %v7839
  %v9088 = vpack.c.b16 %v7846, %v7840
  %v9089 = vpack.c.b16 %v7847, %v7841
  %v9090 = vpack.c.b16 %v7848, %v7842
  %v9091 = vpack.c.b16 %v7855, %v7849
  %v9092 = vpack.c.b16 %v7856, %v7850
  %v9093 = vpack.c.b16 %v7857, %v7851
  %v9094 = vpack.c.b16 %v7858, %v7852
  %v9095 = vpack.c.b16 %v7859, %v7853
  %v9096 = vpack.c.b16 %v7860, %v7854
  %v9097 = vpack.c.b16 %v7867, %v7861
  %v9098 = vpack.c.b16 %v7868, %v7862
  %v9099 = vpack.c.b16 %v7869, %v7863
  %v9100 = vpack.c.b16 %v7870, %v7864
  %v9101 = vpack.c.b16 %v7871, %v7865
  %v9102 = vpack.c.b16 %v7872, %v7866
  %v9103 = vpack.c.b16 %v7879, %v7873
  %v9104 = vpack.c.b16 %v7880, %v7874
  %v9105 = vpack.c.b16 %v7881, %v7875
  %v9106 = vpack.c.b16 %v7882, %v7876
  %v9107 = vpack.c.b16 %v7883, %v7877
  %v9108 = vpack.c.b16 %v7884, %v7878
  %v9109 = vpack.c.b16 %v7891, %v7885
  %v9110 = vpack.c.b16 %v7892, %v7886
  %v9111 = vpack.c.b16 %v7893, %v7887
  %v9112 = vpack.c.b16 %v7894, %v7888
  %v9113 = vpack.c.b16 %v7895, %v7889
  %v9114 = vpack.c.b16 %v7896, %v7890
  %v9115 = vpack.c.b16 %v7903, %v7897
  %v9116 = vpack.c.b16 %v7904, %v7898
  %v9117 = vpack.c.b16 %v7905, %v7899
  %v9118 = vpack.c.b16 %v7906, %v7900
  %v9119 = vpack.c.b16 %v7907, %v7901
  %v9120 = vpack.c.b16 %v7908, %v7902
  %v9121 = vpack.c.b16 %v7915, %v7909
  %v9122 = vpack.c.b16 %v7916, %v7910
  %v9123 = vpack.c.b16 %v7917, %v7911
  %v9124 = vpack.c.b16 %v7918, %v7912
  %v9125 = vpack.c.b16 %v7919, %v7913
  %v9126 = vpack.c.b16 %v7920, %v7914
  %v9127 = vpack.c.b16 %v7927, %v7921
  %v9128 = vpack.c.b16 %v7928, %v7922
  %v9129 = vpack.c.b16 %v7929, %v7923
  %v9130 = vpack.c.b16 %v7930, %v7924
  %v9131 = vpack.c.b16 %v7931, %v7925
  %v9132 = vpack.c.b16 %v7932, %v7926
  %v9133 = vpack.c.b16 %v7939, %v7933
  %v9134 = vpack.c.b16 %v7940, %v7934
  %v9135 = vpack.c.b16 %v7941, %v7935
  %v9136 = vpack.c.b16 %v7942, %v7936
  %v9137 = vpack.c.b16 %v7943, %v7937
  %v9138 = vpack.c.b16 %v7944, %v7938
  %v9139 = vpack.c.b16 %v7951, %v7945
  %v9140 = vpack.c.b16 %v7952, %v7946
  %v9141 = vpack.c.b16 %v7953, %v7947
  %v9142 = vpack.c.b16 %v7954, %v7948
  %v9143 = vpack.c.b16 %v7955, %v7949
  %v9144 = vpack.c.b16 %v7956, %v7950
  %v9145 = vpack.c.b16 %v7963, %v7957
  %v9146 = vpack.c.b16 %v7964, %v7958
  %v9147 = vpack.c.b16 %v7965, %v7959
  %v9148 = vpack.c.b16 %v7966, %v7960
  %v9149 = vpack.c.b16 %v7967, %v7961
  %v9150 = vpack.c.b16 %v7968, %v7962
  %v9151 = vpack.c.b16 %v7975, %v7969
  %v9152 = vpack.c.b16 %v7976, %v7970
  %v9153 = vpack.c.b16 %v7977, %v7971
  %v9154 = vpack.c.b16 %v7978, %v7972
  %v9155 = vpack.c.b16 %v7979, %v7973
  %v9156 = vpack.c.b16 %v7980, %v7974
  %v9157 = vpack.c.b16 %v7987, %v7981
  %v9158 = vpack.c.b16 %v7988, %v7982
  %v9159 = vpack.c.b16 %v7989, %v7983
  %v9160 = vpack.c.b16 %v7990, %v7984
  %v9161 = vpack.c.b16 %v7991, %v7985
  %v9162 = vpack.c.b16 %v7992, %v7986
  %v9163 = vpack.c.b16 %v7999, %v7993
  %v9164 = vpack.c.b16 %v8000, %v7994
  %v9165 = vpack.c.b16 %v8001, %v7995
  %v9166 = vpack.c.b16 %v8002, %v7996
  %v9167 = vpack.c.b16 %v8003, %v7997
  %v9168 = vpack.c.b16 %v8004, %v7998
  %v9169 = vpack.c.b16 %v8011, %v8005
  %v9170 = vpack.c.b16 %v8012, %v8006
  %v9171 = vpack.c.b16 %v8013, %v8007
  %v9172 = vpack.c.b16 %v8014, %v8008
  %v9173 = vpack.c.b16 %v8015, %v8009
  %v9174 = vpack.c.b16 %v8016, %v8010
  %v9175 = vpack.c.b16 %v8023, %v8017
  %v9176 = vpack.c.b16 %v8024, %v8018
  %v9177 = vpack.c.b16 %v8025, %v8019
  %v9178 = vpack.c.b16 %v8026, %v8020
  %v9179 = vpack.c.b16 %v8027, %v8021
  %v9180 = vpack.c.b16 %v8028, %v8022
  %v9181 = vpack.c.b16 %v8035, %v8029
  %v9182 = vpack.c.b16 %v8036, %v8030
  %v9183 = vpack.c.b16 %v8037, %v8031
  %v9184 = vpack.c.b16 %v8038, %v8032
  %v9185 = vpack.c.b16 %v8039, %v8033
  %v9186 = vpack.c.b16 %v8040, %v8034
  %v9187 = vpack.c.b16 %v8047, %v8041
  %v9188 = vpack.c.b16 %v8048, %v8042
  %v9189 = vpack.c.b16 %v8049, %v8043
  %v9190 = vpack.c.b16 %v8050, %v8044
  %v9191 = vpack.c.b16 %v8051, %v8045
  %v9192 = vpack.c.b16 %v8052, %v8046
  %v9193 = vpack.c.b16 %v8059, %v8053
  %v9194 = vpack.c.b16 %v8060, %v8054
  %v9195 = vpack.c.b16 %v8061, %v8055
  %v9196 = vpack.c.b16 %v8062, %v8056
  %v9197 = vpack.c.b16 %v8063, %v8057
  %v9198 = vpack.c.b16 %v8064, %v8058
  %v9199 = vpack.c.b16 %v8071, %v8065
  %v9200 = vpack.c.b16 %v8072, %v8066
  %v9201 = vpack.c.b16 %v8073, %v8067
  %v9202 = vpack.c.b16 %v8074, %v8068
  %v9203 = vpack.c.b16 %v8075, %v8069
  %v9204 = vpack.c.b16 %v8076, %v8070
  %v9205 = vpack.c.b16 %v8083, %v8077
  %v9206 = vpack.c.b16 %v8084, %v8078
  %v9207 = vpack.c.b16 %v8085, %v8079
  %v9208 = vpack.c.b16 %v8086, %v8080
  %v9209 = vpack.c.b16 %v8087, %v8081
  %v9210 = vpack.c.b16 %v8088, %v8082
  %v9211 = vpack.c.b16 %v8095, %v8089
  %v9212 = vpack.c.b16 %v8096, %v8090
  %v9213 = vpack.c.b16 %v8097, %v8091
  %v9214 = vpack.c.b16 %v8098, %v8092
  %v9215 = vpack.c.b16 %v8099, %v8093
  %v9216 = vpack.c.b16 %v8100, %v8094
  %v9217 = vpack.c.b16 %v8107, %v8101
  %v9218 = vpack.c.b16 %v8108, %v8102
  %v9219 = vpack.c.b16 %v8109, %v8103
  %v9220 = vpack.c.b16 %v8110, %v8104
  %v9221 = vpack.c.b16 %v8111, %v8105
  %v9222 = vpack.c.b16 %v8112, %v8106
  %v9223 = vpack.c.b16 %v8119, %v8113
  %v9224 = vpack.c.b16 %v8120, %v8114
  %v9225 = vpack.c.b16 %v8121, %v8115
  %v9226 = vpack.c.b16 %v8122, %v8116
  %v9227 = vpack.c.b16 %v8123, %v8117
  %v9228 = vpack.c.b16 %v8124, %v8118
  %v9229 = vpack.c.b16 %v8131, %v8125
  %v9230 = vpack.c.b16 %v8132, %v8126
  %v9231 = vpack.c.b16 %v8133, %v8127
  %v9232 = vpack.c.b16 %v8134, %v8128
  %v9233 = vpack.c.b16 %v8135, %v8129
  %v9234 = vpack.c.b16 %v8136, %v8130
  %v9235 = vpack.c.b16 %v8143, %v8137
  %v9236 = vpack.c.b16 %v8144, %v8138
  %v9237 = vpack.c.b16 %v8145, %v8139
  %v9238 = vpack.c.b16 %v8146, %v8140
  %v9239 = vpack.c.b16 %v8147, %v8141
  %v9240 = vpack.c.b16 %v8148, %v8142
  %v9241 = vpack.c.b16 %v8155, %v8149
  %v9242 = vpack.c.b16 %v8156, %v8150
  %v9243 = vpack.c.b16 %v8157, %v8151
  %v9244 = vpack.c.b16 %v8158, %v8152
  %v9245 = vpack.c.b16 %v8159, %v8153
  %v9246 = vpack.c.b16 %v8160, %v8154
  %v9247 = vpack.c.b16 %v8167, %v8161
  %v9248 = vpack.c.b16 %v8168, %v8162
  %v9249 = vpack.c.b16 %v8169, %v8163
  %v9250 = vpack.c.b16 %v8170, %v8164
  %v9251 = vpack.c.b16 %v8171, %v8165
  %v9252 = vpack.c.b16 %v8172, %v8166
  %v9253 = vpack.c.b16 %v8179, %v8173
  %v9254 = vpack.c.b16 %v8180, %v8174
  %v9255 = vpack.c.b16 %v8181, %v8175
  %v9256 = vpack.c.b16 %v8182, %v8176
  %v9257 = vpack.c.b16 %v8183, %v8177
  %v9258 = vpack.c.b16 %v8184, %v8178
  %v9259 = vpack.c.b16 %v8191, %v8185
  %v9260 = vpack.c.b16 %v8192, %v8186
  %v9261 = vpack.c.b16 %v8193, %v8187
  %v9262 = vpack.c.b16 %v8194, %v8188
  %v9263 = vpack.c.b16 %v8195, %v8189
  %v9264 = vpack.c.b16 %v8196, %v8190
  %v9265 = vpack.c.b16 %v8203, %v8197
  %v9266 = vpack.c.b16 %v8204, %v8198
  %v9267 = vpack.c.b16 %v8205, %v8199
  %v9268 = vpack.c.b16 %v8206, %v8200
  %v9269 = vpack.c.b16 %v8207, %v8201
  %v9270 = vpack.c.b16 %v8208, %v8202
  %v9271 = vpack.c.b16 %v8215, %v8209
  %v9272 = vpack.c.b16 %v8216, %v8210
  %v9273 = vpack.c.b16 %v8217, %v8211
  %v9274 = vpack.c.b16 %v8218, %v8212
  %v9275 = vpack.c.b16 %v8219, %v8213
  %v9276 = vpack.c.b16 %v8220, %v8214
  %v9277 = vpack.c.b16 %v8227, %v8221
  %v9278 = vpack.c.b16 %v8228, %v8222
  %v9279 = vpack.c.b16 %v8229, %v8223
  %v9280 = vpack.c.b16 %v8230, %v8224
  %v9281 = vpack.c.b16 %v8231, %v8225
  %v9282 = vpack.c.b16 %v8232, %v8226
  %v9283 = vpack.c.b16 %v8239, %v8233
  %v9284 = vpack.c.b16 %v8240, %v8234
  %v9285 = vpack.c.b16 %v8241, %v8235
  %v9286 = vpack.c.b16 %v8242, %v8236
  %v9287 = vpack.c.b16 %v8243, %v8237
  %v9288 = vpack.c.b16 %v8244, %v8238
  %v9289 = vpack.c.b16 %v8251, %v8245
  %v9290 = vpack.c.b16 %v8252, %v8246
  %v9291 = vpack.c.b16 %v8253, %v8247
  %v9292 = vpack.c.b16 %v8254, %v8248
  %v9293 = vpack.c.b16 %v8255, %v8249
  %v9294 = vpack.c.b16 %v8256, %v8250
  %v9295 = vpack.c.b16 %v8263, %v8257
  %v9296 = vpack.c.b16 %v8264, %v8258
  %v9297 = vpack.c.b16 %v8265, %v8259
  %v9298 = vpack.c.b16 %v8266, %v8260
  %v9299 = vpack.c.b16 %v8267, %v8261
  %v9300 = vpack.c.b16 %v8268, %v8262
  %v9301 = vpack.c.b16 %v8275, %v8269
  %v9302 = vpack.c.b16 %v8276, %v8270
  %v9303 = vpack.c.b16 %v8277, %v8271
  %v9304 = vpack.c.b16 %v8278, %v8272
  %v9305 = vpack.c.b16 %v8279, %v8273
  %v9306 = vpack.c.b16 %v8280, %v8274
  %v9307 = vpack.c.b16 %v8287, %v8281
  %v9308 = vpack.c.b16 %v8288, %v8282
  %v9309 = vpack.c.b16 %v8289, %v8283
  %v9310 = vpack.c.b16 %v8290, %v8284
  %v9311 = vpack.c.b16 %v8291, %v8285
  %v9312 = vpack.c.b16 %v8292, %v8286
  %v9313 = vpack.c.b16 %v8299, %v8293
  %v9314 = vpack.c.b16 %v8300, %v8294
  %v9315 = vpack.c.b16 %v8301, %v8295
  %v9316 = vpack.c.b16 %v8302, %v8296
  %v9317 = vpack.c.b16 %v8303, %v8297
  %v9318 = vpack.c.b16 %v8304, %v8298
  %v9319 = vpack.c.b16 %v8311, %v8305
  %v9320 = vpack.c.b16 %v8312, %v8306
  %v9321 = vpack.c.b16 %v8313, %v8307
  %v9322 = vpack.c.b16 %v8314, %v8308
  %v9323 = vpack.c.b16 %v8315, %v8309
  %v9324 = vpack.c.b16 %v8316, %v8310
  %v9325 = vpack.c.b16 %v8323, %v8317
  %v9326 = vpack.c.b16 %v8324, %v8318
  %v9327 = vpack.c.b16 %v8325, %v8319
  %v9328 = vpack.c.b16 %v8326, %v8320
  %v9329 = vpack.c.b16 %v8327, %v8321
  %v9330 = vpack.c.b16 %v8328, %v8322
  %v9331 = vpack.c.b16 %v8335, %v8329
  %v9332 = vpack.c.b16 %v8336, %v8330
  %v9333 = vpack.c.b16 %v8337, %v8331
  %v9334 = vpack.c.b16 %v8338, %v8332
  %v9335 = vpack.c.b16 %v8339, %v8333
  %v9336 = vpack.c.b16 %v8340, %v8334
  %v9337 = vpack.c.b16 %v8347, %v8341
  %v9338 = vpack.c.b16 %v8348, %v8342
  %v9339 = vpack.c.b16 %v8349, %v8343
  %v9340 = vpack.c.b16 %v8350, %v8344
  %v9341 = vpack.c.b16 %v8351, %v8345
  %v9342 = vpack.c.b16 %v8352, %v8346
  %v9343 = vpack.c.b16 %v8359, %v8353
  %v9344 = vpack.c.b16 %v8360, %v8354
  %v9345 = vpack.c.b16 %v8361, %v8355
  %v9346 = vpack.c.b16 %v8362, %v8356
  %v9347 = vpack.c.b16 %v8363, %v8357
  %v9348 = vpack.c.b16 %v8364, %v8358
  %v9349 = vpack.c.b16 %v8371, %v8365
  %v9350 = vpack.c.b16 %v8372, %v8366
  %v9351 = vpack.c.b16 %v8373, %v8367
  %v9352 = vpack.c.b16 %v8374, %v8368
  %v9353 = vpack.c.b16 %v8375, %v8369
  %v9354 = vpack.c.b16 %v8376, %v8370
  %v9355 = vpack.c.b16 %v8383, %v8377
  %v9356 = vpack.c.b16 %v8384, %v8378
  %v9357 = vpack.c.b16 %v8385, %v8379
  %v9358 = vpack.c.b16 %v8386, %v8380
  %v9359 = vpack.c.b16 %v8387, %v8381
  %v9360 = vpack.c.b16 %v8388, %v8382
  %v9361 = vpack.c.b16 %v8395, %v8389
  %v9362 = vpack.c.b16 %v8396, %v8390
  %v9363 = vpack.c.b16 %v8397, %v8391
  %v9364 = vpack.c.b16 %v8398, %v8392
  %v9365 = vpack.c.b16 %v8399, %v8393
  %v9366 = vpack.c.b16 %v8400, %v8394
  %v9367 = vpack.c.b16 %v8407, %v8401
  %v9368 = vpack.c.b16 %v8408, %v8402
  %v9369 = vpack.c.b16 %v8409, %v8403
  %v9370 = vpack.c.b16 %v8410, %v8404
  %v9371 = vpack.c.b16 %v8411, %v8405
  %v9372 = vpack.c.b16 %v8412, %v8406
  %v9373 = vpack.c.b16 %v8419, %v8413
  %v9374 = vpack.c.b16 %v8420, %v8414
  %v9375 = vpack.c.b16 %v8421, %v8415
  %v9376 = vpack.c.b16 %v8422, %v8416
  %v9377 = vpack.c.b16 %v8423, %v8417
  %v9378 = vpack.c.b16 %v8424, %v8418
  %v9379 = vpack.c.b16 %v8431, %v8425
  %v9380 = vpack.c.b16 %v8432, %v8426
  %v9381 = vpack.c.b16 %v8433, %v8427
  %v9382 = vpack.c.b16 %v8434, %v8428
  %v9383 = vpack.c.b16 %v8435, %v8429
  %v9384 = vpack.c.b16 %v8436, %v8430
  %v9385 = vpack.c.b16 %v8443, %v8437
  %v9386 = vpack.c.b16 %v8444, %v8438
  %v9387 = vpack.c.b16 %v8445, %v8439
  %v9388 = vpack.c.b16 %v8446, %v8440
  %v9389 = vpack.c.b16 %v8447, %v8441
  %v9390 = vpack.c.b16 %v8448, %v8442
  %v9391 = vpack.c.b16 %v8455, %v8449
  %v9392 = vpack.c.b16 %v8456, %v8450
  %v9393 = vpack.c.b16 %v8457, %v8451
  %v9394 = vpack.c.b16 %v8458, %v8452
  %v9395 = vpack.c.b16 %v8459, %v8453
  %v9396 = vpack.c.b16 %v8460, %v8454
  %v9397 = vpack.c.b16 %v8467, %v8461
  %v9398 = vpack.c.b16 %v8468, %v8462
  %v9399 = vpack.c.b16 %v8469, %v8463
  %v9400 = vpack.c.b16 %v8470, %v8464
  %v9401 = vpack.c.b16 %v8471, %v8465
  %v9402 = vpack.c.b16 %v8472, %v8466
  %v9403 = vpack.c.b16 %v8479, %v8473
  %v9404 = vpack.c.b16 %v8480, %v8474
  %v9405 = vpack.c.b16 %v8481, %v8475
  %v9406 = vpack.c.b16 %v8482, %v8476
  %v9407 = vpack.c.b16 %v8483, %v8477
  %v9408 = vpack.c.b16 %v8484, %v8478
  %v9409 = vpack.c.b16 %v8491, %v8485
  %v9410 = vpack.c.b16 %v8492, %v8486
  %v9411 = vpack.c.b16 %v8493, %v8487
  %v9412 = vpack.c.b16 %v8494, %v8488
  %v9413 = vpack.c.b16 %v8495, %v8489
  %v9414 = vpack.c.b16 %v8496, %v8490
  %v9415 = vpack.c.b16 %v8503, %v8497
  %v9416 = vpack.c.b16 %v8504, %v8498
  %v9417 = vpack.c.b16 %v8505, %v8499
  %v9418 = vpack.c.b16 %v8506, %v8500
  %v9419 = vpack.c.b16 %v8507, %v8501
  %v9420 = vpack.c.b16 %v8508, %v8502
  %v9421 = vpack.c.b16 %v8515, %v8509
  %v9422 = vpack.c.b16 %v8516, %v8510
  %v9423 = vpack.c.b16 %v8517, %v8511
  %v9424 = vpack.c.b16 %v8518, %v8512
  %v9425 = vpack.c.b16 %v8519, %v8513
  %v9426 = vpack.c.b16 %v8520, %v8514
  %v9427 = vpack.c.b16 %v8527, %v8521
  %v9428 = vpack.c.b16 %v8528, %v8522
  %v9429 = vpack.c.b16 %v8529, %v8523
  %v9430 = vpack.c.b16 %v8530, %v8524
  %v9431 = vpack.c.b16 %v8531, %v8525
  %v9432 = vpack.c.b16 %v8532, %v8526
  %v9433 = vpack.c.b16 %v8539, %v8533
  %v9434 = vpack.c.b16 %v8540, %v8534
  %v9435 = vpack.c.b16 %v8541, %v8535
  %v9436 = vpack.c.b16 %v8542, %v8536
  %v9437 = vpack.c.b16 %v8543, %v8537
  %v9438 = vpack.c.b16 %v8544, %v8538
  %v9439 = vpack.c.b16 %v8551, %v8545
  %v9440 = vpack.c.b16 %v8552, %v8546
  %v9441 = vpack.c.b16 %v8553, %v8547
  %v9442 = vpack.c.b16 %v8554, %v8548
  %v9443 = vpack.c.b16 %v8555, %v8549
  %v9444 = vpack.c.b16 %v8556, %v8550
  %v9445 = vpack.c.b16 %v8563, %v8557
  %v9446 = vpack.c.b16 %v8564, %v8558
  %v9447 = vpack.c.b16 %v8565, %v8559
  %v9448 = vpack.c.b16 %v8566, %v8560
  %v9449 = vpack.c.b16 %v8567, %v8561
  %v9450 = vpack.c.b16 %v8568, %v8562
  %v9451 = vpack.c.b16 %v8575, %v8569
  %v9452 = vpack.c.b16 %v8576, %v8570
  %v9453 = vpack.c.b16 %v8577, %v8571
  %v9454 = vpack.c.b16 %v8578, %v8572
  %v9455 = vpack.c.b16 %v8579, %v8573
  %v9456 = vpack.c.b16 %v8580, %v8574
  %v9457 = vpack.c.b16 %v8587, %v8581
  %v9458 = vpack.c.b16 %v8588, %v8582
  %v9459 = vpack.c.b16 %v8589, %v8583
  %v9460 = vpack.c.b16 %v8590, %v8584
  %v9461 = vpack.c.b16 %v8591, %v8585
  %v9462 = vpack.c.b16 %v8592, %v8586
  %v9463 = vpack.c.b16 %v8599, %v8593
  %v9464 = vpack.c.b16 %v8600, %v8594
  %v9465 = vpack.c.b16 %v8601, %v8595
  %v9466 = vpack.c.b16 %v8602, %v8596
  %v9467 = vpack.c.b16 %v8603, %v8597
  %v9468 = vpack.c.b16 %v8604, %v8598
  %v9469 = vpack.c.b16 %v8611, %v8605
  %v9470 = vpack.c.b16 %v8612, %v8606
  %v9471 = vpack.c.b16 %v8613, %v8607
  %v9472 = vpack.c.b16 %v8614, %v8608
  %v9473 = vpack.c.b16 %v8615, %v8609
  %v9474 = vpack.c.b16 %v8616, %v8610
  %v9475 = vpack.c.b16 %v8623, %v8617
  %v9476 = vpack.c.b16 %v8624, %v8618
  %v9477 = vpack.c.b16 %v8625, %v8619
  %v9478 = vpack.c.b16 %v8626, %v8620
  %v9479 = vpack.c.b16 %v8627, %v8621
  %v9480 = vpack.c.b16 %v8628, %v8622
  %v9481 = vpack.c.b16 %v8635, %v8629
  %v9482 = vpack.c.b16 %v8636, %v8630
  %v9483 = vpack.c.b16 %v8637, %v8631
  %v9484 = vpack.c.b16 %v8638, %v8632
  %v9485 = vpack.c.b16 %v8639, %v8633
  %v9486 = vpack.c.b16 %v8640, %v8634
  %v9487 = vpack.c.b16 %v8647, %v8641
  %v9488 = vpack.c.b16 %v8648, %v8642
  %v9489 = vpack.c.b16 %v8649, %v8643
  %v9490 = vpack.c.b16 %v8650, %v8644
  %v9491 = vpack.c.b16 %v8651, %v8645
  %v9492 = vpack.c.b16 %v8652, %v8646
  %v9493 = vpack.c.b16 %v8659, %v8653
  %v9494 = vpack.c.b16 %v8660, %v8654
  %v9495 = vpack.c.b16 %v8661, %v8655
  %v9496 = vpack.c.b16 %v8662, %v8656
  %v9497 = vpack.c.b16 %v8663, %v8657
  %v9498 = vpack.c.b16 %v8664, %v8658
  %v9499 = vpack.c.b16 %v8671, %v8665
  %v9500 = vpack.c.b16 %v8672, %v8666
  %v9501 = vpack.c.b16 %v8673, %v8667
  %v9502 = vpack.c.b16 %v8674, %v8668
  %v9503 = vpack.c.b16 %v8675, %v8669
  %v9504 = vpack.c.b16 %v8676, %v8670
  %v9505 = vpack.c.b16 %v8683, %v8677
  %v9506 = vpack.c.b16 %v8684, %v8678
  %v9507 = vpack.c.b16 %v8685, %v8679
  %v9508 = vpack.c.b16 %v8686, %v8680
  %v9509 = vpack.c.b16 %v8687, %v8681
  %v9510 = vpack.c.b16 %v8688, %v8682
  %v9511 = vpack.c.b16 %v8695, %v8689
  %v9512 = vpack.c.b16 %v8696, %v8690
  %v9513 = vpack.c.b16 %v8697, %v8691
  %v9514 = vpack.c.b16 %v8698, %v8692
  %v9515 = vpack.c.b16 %v8699, %v8693
  %v9516 = vpack.c.b16 %v8700, %v8694
  %v9517 = vpack.c.b16 %v8707, %v8701
  %v9518 = vpack.c.b16 %v8708, %v8702
  %v9519 = vpack.c.b16 %v8709, %v8703
  %v9520 = vpack.c.b16 %v8710, %v8704
  %v9521 = vpack.c.b16 %v8711, %v8705
  %v9522 = vpack.c.b16 %v8712, %v8706
  %v9523 = vpack.c.b16 %v8719, %v8713
  %v9524 = vpack.c.b16 %v8720, %v8714
  %v9525 = vpack.c.b16 %v8721, %v8715
  %v9526 = vpack.c.b16 %v8722, %v8716
  %v9527 = vpack.c.b16 %v8723, %v8717
  %v9528 = vpack.c.b16 %v8724, %v8718
  %v9529 = vpack.c.b16 %v8731, %v8725
  %v9530 = vpack.c.b16 %v8732, %v8726
  %v9531 = vpack.c.b16 %v8733, %v8727
  %v9532 = vpack.c.b16 %v8734, %v8728
  %v9533 = vpack.c.b16 %v8735, %v8729
  %v9534 = vpack.c.b16 %v8736, %v8730
  %v9535 = vpack.c.b16 %v8743, %v8737
  %v9536 = vpack.c.b16 %v8744, %v8738
  %v9537 = vpack.c.b16 %v8745, %v8739
  %v9538 = vpack.c.b16 %v8746, %v8740
  %v9539 = vpack.c.b16 %v8747, %v8741
  %v9540 = vpack.c.b16 %v8748, %v8742
  %v9541 = vpack.c.b16 %v8755, %v8749
  %v9542 = vpack.c.b16 %v8756, %v8750
  %v9543 = vpack.c.b16 %v8757, %v8751
  %v9544 = vpack.c.b16 %v8758, %v8752
  %v9545 = vpack.c.b16 %v8759, %v8753
  %v9546 = vpack.c.b16 %v8760, %v8754
  %v9547 = vpack.c.b16 %v8767, %v8761
  %v9548 = vpack.c.b16 %v8768, %v8762
  %v9549 = vpack.c.b16 %v8769, %v8763
  %v9550 = vpack.c.b16 %v8770, %v8764
  %v9551 = vpack.c.b16 %v8771, %v8765
  %v9552 = vpack.c.b16 %v8772, %v8766
  %v9553 = vpack.c.b16 %v8779, %v8773
  %v9554 = vpack.c.b16 %v8780, %v8774
  %v9555 = vpack.c.b16 %v8781, %v8775
  %v9556 = vpack.c.b16 %v8782, %v8776
  %v9557 = vpack.c.b16 %v8783, %v8777
  %v9558 = vpack.c.b16 %v8784, %v8778
  %v9559 = vpack.c.b16 %v8791, %v8785
  %v9560 = vpack.c.b16 %v8792, %v8786
  %v9561 = vpack.c.b16 %v8793, %v8787
  %v9562 = vpack.c.b16 %v8794, %v8788
  %v9563 = vpack.c.b16 %v8795, %v8789
  %v9564 = vpack.c.b16 %v8796, %v8790
  %10333 = vmatpush.bf16.msra.mxu0 %v8839
  %10334 = vmatpush.bf16.msra.mxu0 %v8833
  %10335 = vmatpush.bf16.msra.mxu0 %v8827
  %10336 = vmatpush.bf16.msra.mxu0 %v8821
  %10337 = vmatpush.bf16.msra.mxu0 %v8815
  %10338 = vmatpush.bf16.msra.mxu0 %v8809
  %10339 = vmatpush.bf16.msra.mxu0 %v8803
  %10340 = vmatpush.bf16.msra.mxu0 %v8797
  %10341 = vmatmul.bf16.gmra.mxu0 %v6461
  %v10342 = vpop.f32.mrf.mxu0
  %v10343 = vadd.f32 %v4640, %v10342
  %v10344 = vpop.f32.mrf.mxu0
  %10345 = vdwg.mxu0
  %10346 = vmatpush.bf16.msra.mxu0 %v8887
  %10347 = vmatpush.bf16.msra.mxu0 %v8881
  %10348 = vmatpush.bf16.msra.mxu0 %v8875
  %10349 = vmatpush.bf16.msra.mxu0 %v8869
  %10350 = vmatpush.bf16.msra.mxu0 %v8863
  %10351 = vmatpush.bf16.msra.mxu0 %v8857
  %10352 = vmatpush.bf16.msra.mxu0 %v8851
  %10353 = vmatpush.bf16.msra.mxu0 %v8845
  %10354 = vmatmul.bf16.gmra.mxu0 %v6462
  %v10355 = vpop.f32.mrf.mxu0
  %v10356 = vadd.f32 %v10343, %v10355
  %v10357 = vpop.f32.mrf.mxu0
  %10358 = vdwg.mxu0
  %10359 = vmatpush.bf16.msra.mxu0 %v8935
  %10360 = vmatpush.bf16.msra.mxu0 %v8929
  %10361 = vmatpush.bf16.msra.mxu0 %v8923
  %10362 = vmatpush.bf16.msra.mxu0 %v8917
  %10363 = vmatpush.bf16.msra.mxu0 %v8911
  %10364 = vmatpush.bf16.msra.mxu0 %v8905
  %10365 = vmatpush.bf16.msra.mxu0 %v8899
  %10366 = vmatpush.bf16.msra.mxu0 %v8893
  %10367 = vmatmul.bf16.gmra.mxu0 %v6463
  %v10368 = vpop.f32.mrf.mxu0
  %v10369 = vadd.f32 %v10356, %v10368
  %v10370 = vpop.f32.mrf.mxu0
  %10371 = vdwg.mxu0
  %10372 = vmatpush.bf16.msra.mxu0 %v8983
  %10373 = vmatpush.bf16.msra.mxu0 %v8977
  %10374 = vmatpush.bf16.msra.mxu0 %v8971
  %10375 = vmatpush.bf16.msra.mxu0 %v8965
  %10376 = vmatpush.bf16.msra.mxu0 %v8959
  %10377 = vmatpush.bf16.msra.mxu0 %v8953
  %10378 = vmatpush.bf16.msra.mxu0 %v8947
  %10379 = vmatpush.bf16.msra.mxu0 %v8941
  %10380 = vmatmul.bf16.gmra.mxu0 %v6464
  %v10381 = vpop.f32.mrf.mxu0
  %v10382 = vadd.f32 %v10369, %v10381
  %v10383 = vpop.f32.mrf.mxu0
  %10384 = vdwg.mxu0
  %10385 = vmatpush.bf16.msra.mxu0 %v9031
  %10386 = vmatpush.bf16.msra.mxu0 %v9025
  %10387 = vmatpush.bf16.msra.mxu0 %v9019
  %10388 = vmatpush.bf16.msra.mxu0 %v9013
  %10389 = vmatpush.bf16.msra.mxu0 %v9007
  %10390 = vmatpush.bf16.msra.mxu0 %v9001
  %10391 = vmatpush.bf16.msra.mxu0 %v8995
  %10392 = vmatpush.bf16.msra.mxu0 %v8989
  %10393 = vmatmul.bf16.gmra.mxu0 %v6465
  %v10394 = vpop.f32.mrf.mxu0
  %v10395 = vadd.f32 %v10382, %v10394
  %v10396 = vpop.f32.mrf.mxu0
  %10397 = vdwg.mxu0
  %10398 = vmatpush.bf16.msra.mxu0 %v9079
  %10399 = vmatpush.bf16.msra.mxu0 %v9073
  %10400 = vmatpush.bf16.msra.mxu0 %v9067
  %10401 = vmatpush.bf16.msra.mxu0 %v9061
  %10402 = vmatpush.bf16.msra.mxu0 %v9055
  %10403 = vmatpush.bf16.msra.mxu0 %v9049
  %10404 = vmatpush.bf16.msra.mxu0 %v9043
  %10405 = vmatpush.bf16.msra.mxu0 %v9037
  %10406 = vmatmul.bf16.gmra.mxu0 %v6466
  %v10407 = vpop.f32.mrf.mxu0
  %v10408 = vadd.f32 %v10395, %v10407
  %v10409 = vpop.f32.mrf.mxu0
  %10410 = vdwg.mxu0
  %10411 = vmatpush.bf16.msra.mxu0 %v9127
  %10412 = vmatpush.bf16.msra.mxu0 %v9121
  %10413 = vmatpush.bf16.msra.mxu0 %v9115
  %10414 = vmatpush.bf16.msra.mxu0 %v9109
  %10415 = vmatpush.bf16.msra.mxu0 %v9103
  %10416 = vmatpush.bf16.msra.mxu0 %v9097
  %10417 = vmatpush.bf16.msra.mxu0 %v9091
  %10418 = vmatpush.bf16.msra.mxu0 %v9085
  %10419 = vmatmul.bf16.gmra.mxu0 %v6467
  %v10420 = vpop.f32.mrf.mxu0
  %v10421 = vadd.f32 %v10408, %v10420
  %v10422 = vpop.f32.mrf.mxu0
  %10423 = vdwg.mxu0
  %10424 = vmatpush.bf16.msra.mxu0 %v9175
  %10425 = vmatpush.bf16.msra.mxu0 %v9169
  %10426 = vmatpush.bf16.msra.mxu0 %v9163
  %10427 = vmatpush.bf16.msra.mxu0 %v9157
  %10428 = vmatpush.bf16.msra.mxu0 %v9151
  %10429 = vmatpush.bf16.msra.mxu0 %v9145
  %10430 = vmatpush.bf16.msra.mxu0 %v9139
  %10431 = vmatpush.bf16.msra.mxu0 %v9133
  %10432 = vmatmul.bf16.gmra.mxu0 %v6468
  %v10433 = vpop.f32.mrf.mxu0
  %v10434 = vadd.f32 %v10421, %v10433
  %v10435 = vpop.f32.mrf.mxu0
  %10436 = vdwg.mxu0
  %10437 = vmatpush.bf16.msra.mxu0 %v9223
  %10438 = vmatpush.bf16.msra.mxu0 %v9217
  %10439 = vmatpush.bf16.msra.mxu0 %v9211
  %10440 = vmatpush.bf16.msra.mxu0 %v9205
  %10441 = vmatpush.bf16.msra.mxu0 %v9199
  %10442 = vmatpush.bf16.msra.mxu0 %v9193
  %10443 = vmatpush.bf16.msra.mxu0 %v9187
  %10444 = vmatpush.bf16.msra.mxu0 %v9181
  %10445 = vmatmul.bf16.gmra.mxu0 %v6469
  %v10446 = vpop.f32.mrf.mxu0
  %v10447 = vadd.f32 %v10434, %v10446
  %v10448 = vpop.f32.mrf.mxu0
  %10449 = vdwg.mxu0
  %10450 = vmatpush.bf16.msra.mxu0 %v9271
  %10451 = vmatpush.bf16.msra.mxu0 %v9265
  %10452 = vmatpush.bf16.msra.mxu0 %v9259
  %10453 = vmatpush.bf16.msra.mxu0 %v9253
  %10454 = vmatpush.bf16.msra.mxu0 %v9247
  %10455 = vmatpush.bf16.msra.mxu0 %v9241
  %10456 = vmatpush.bf16.msra.mxu0 %v9235
  %10457 = vmatpush.bf16.msra.mxu0 %v9229
  %10458 = vmatmul.bf16.gmra.mxu0 %v6470
  %v10459 = vpop.f32.mrf.mxu0
  %v10460 = vadd.f32 %v10447, %v10459
  %v10461 = vpop.f32.mrf.mxu0
  %10462 = vdwg.mxu0
  %10463 = vmatpush.bf16.msra.mxu0 %v9319
  %10464 = vmatpush.bf16.msra.mxu0 %v9313
  %10465 = vmatpush.bf16.msra.mxu0 %v9307
  %10466 = vmatpush.bf16.msra.mxu0 %v9301
  %10467 = vmatpush.bf16.msra.mxu0 %v9295
  %10468 = vmatpush.bf16.msra.mxu0 %v9289
  %10469 = vmatpush.bf16.msra.mxu0 %v9283
  %10470 = vmatpush.bf16.msra.mxu0 %v9277
  %10471 = vmatmul.bf16.gmra.mxu0 %v6471
  %v10472 = vpop.f32.mrf.mxu0
  %v10473 = vadd.f32 %v10460, %v10472
  %v10474 = vpop.f32.mrf.mxu0
  %10475 = vdwg.mxu0
  %10476 = vmatpush.bf16.msra.mxu0 %v9367
  %10477 = vmatpush.bf16.msra.mxu0 %v9361
  %10478 = vmatpush.bf16.msra.mxu0 %v9355
  %10479 = vmatpush.bf16.msra.mxu0 %v9349
  %10480 = vmatpush.bf16.msra.mxu0 %v9343
  %10481 = vmatpush.bf16.msra.mxu0 %v9337
  %10482 = vmatpush.bf16.msra.mxu0 %v9331
  %10483 = vmatpush.bf16.msra.mxu0 %v9325
  %10484 = vmatmul.bf16.gmra.mxu0 %v6472
  %v10485 = vpop.f32.mrf.mxu0
  %v10486 = vadd.f32 %v10473, %v10485
  %v10487 = vpop.f32.mrf.mxu0
  %10488 = vdwg.mxu0
  %10489 = vmatpush.bf16.msra.mxu0 %v9415
  %10490 = vmatpush.bf16.msra.mxu0 %v9409
  %10491 = vmatpush.bf16.msra.mxu0 %v9403
  %10492 = vmatpush.bf16.msra.mxu0 %v9397
  %10493 = vmatpush.bf16.msra.mxu0 %v9391
  %10494 = vmatpush.bf16.msra.mxu0 %v9385
  %10495 = vmatpush.bf16.msra.mxu0 %v9379
  %10496 = vmatpush.bf16.msra.mxu0 %v9373
  %10497 = vmatmul.bf16.gmra.mxu0 %v6473
  %v10498 = vpop.f32.mrf.mxu0
  %v10499 = vadd.f32 %v10486, %v10498
  %v10500 = vpop.f32.mrf.mxu0
  %10501 = vdwg.mxu0
  %10502 = vmatpush.bf16.msra.mxu0 %v9463
  %10503 = vmatpush.bf16.msra.mxu0 %v9457
  %10504 = vmatpush.bf16.msra.mxu0 %v9451
  %10505 = vmatpush.bf16.msra.mxu0 %v9445
  %10506 = vmatpush.bf16.msra.mxu0 %v9439
  %10507 = vmatpush.bf16.msra.mxu0 %v9433
  %10508 = vmatpush.bf16.msra.mxu0 %v9427
  %10509 = vmatpush.bf16.msra.mxu0 %v9421
  %10510 = vmatmul.bf16.gmra.mxu0 %v6474
  %v10511 = vpop.f32.mrf.mxu0
  %v10512 = vadd.f32 %v10499, %v10511
  %v10513 = vpop.f32.mrf.mxu0
  %10514 = vdwg.mxu0
  %10515 = vmatpush.bf16.msra.mxu0 %v9511
  %10516 = vmatpush.bf16.msra.mxu0 %v9505
  %10517 = vmatpush.bf16.msra.mxu0 %v9499
  %10518 = vmatpush.bf16.msra.mxu0 %v9493
  %10519 = vmatpush.bf16.msra.mxu0 %v9487
  %10520 = vmatpush.bf16.msra.mxu0 %v9481
  %10521 = vmatpush.bf16.msra.mxu0 %v9475
  %10522 = vmatpush.bf16.msra.mxu0 %v9469
  %10523 = vmatmul.bf16.gmra.mxu0 %v6475
  %v10524 = vpop.f32.mrf.mxu0
  %v10525 = vadd.f32 %v10512, %v10524
  %v10526 = vpop.f32.mrf.mxu0
  %10527 = vdwg.mxu0
  %10528 = vmatpush.bf16.msra.mxu0 %v9559
  %10529 = vmatpush.bf16.msra.mxu0 %v9553
  %10530 = vmatpush.bf16.msra.mxu0 %v9547
  %10531 = vmatpush.bf16.msra.mxu0 %v9541
  %10532 = vmatpush.bf16.msra.mxu0 %v9535
  %10533 = vmatpush.bf16.msra.mxu0 %v9529
  %10534 = vmatpush.bf16.msra.mxu0 %v9523
  %10535 = vmatpush.bf16.msra.mxu0 %v9517
  %10536 = vmatmul.bf16.gmra.mxu0 %v6476
  %v10537 = vpop.f32.mrf.mxu0
  %v10538 = vadd.f32 %v10525, %v10537
  %v10539 = vpop.f32.mrf.mxu0
  %10540 = vdwg.mxu0
  %10541 = vmatpush.bf16.msra.mxu0 %v8840
  %10542 = vmatpush.bf16.msra.mxu0 %v8834
  %10543 = vmatpush.bf16.msra.mxu0 %v8828
  %10544 = vmatpush.bf16.msra.mxu0 %v8822
  %10545 = vmatpush.bf16.msra.mxu0 %v8816
  %10546 = vmatpush.bf16.msra.mxu0 %v8810
  %10547 = vmatpush.bf16.msra.mxu0 %v8804
  %10548 = vmatpush.bf16.msra.mxu0 %v8798
  %10549 = vmatmul.bf16.gmra.mxu0 %v6461
  %v10550 = vpop.f32.mrf.mxu0
  %v10551 = vadd.f32 %v4641, %v10550
  %v10552 = vpop.f32.mrf.mxu0
  %10553 = vdwg.mxu0
  %10554 = vmatpush.bf16.msra.mxu0 %v8888
  %10555 = vmatpush.bf16.msra.mxu0 %v8882
  %10556 = vmatpush.bf16.msra.mxu0 %v8876
  %10557 = vmatpush.bf16.msra.mxu0 %v8870
  %10558 = vmatpush.bf16.msra.mxu0 %v8864
  %10559 = vmatpush.bf16.msra.mxu0 %v8858
  %10560 = vmatpush.bf16.msra.mxu0 %v8852
  %10561 = vmatpush.bf16.msra.mxu0 %v8846
  %10562 = vmatmul.bf16.gmra.mxu0 %v6462
  %v10563 = vpop.f32.mrf.mxu0
  %v10564 = vadd.f32 %v10551, %v10563
  %v10565 = vpop.f32.mrf.mxu0
  %10566 = vdwg.mxu0
  %10567 = vmatpush.bf16.msra.mxu0 %v8936
  %10568 = vmatpush.bf16.msra.mxu0 %v8930
  %10569 = vmatpush.bf16.msra.mxu0 %v8924
  %10570 = vmatpush.bf16.msra.mxu0 %v8918
  %10571 = vmatpush.bf16.msra.mxu0 %v8912
  %10572 = vmatpush.bf16.msra.mxu0 %v8906
  %10573 = vmatpush.bf16.msra.mxu0 %v8900
  %10574 = vmatpush.bf16.msra.mxu0 %v8894
  %10575 = vmatmul.bf16.gmra.mxu0 %v6463
  %v10576 = vpop.f32.mrf.mxu0
  %v10577 = vadd.f32 %v10564, %v10576
  %v10578 = vpop.f32.mrf.mxu0
  %10579 = vdwg.mxu0
  %10580 = vmatpush.bf16.msra.mxu0 %v8984
  %10581 = vmatpush.bf16.msra.mxu0 %v8978
  %10582 = vmatpush.bf16.msra.mxu0 %v8972
  %10583 = vmatpush.bf16.msra.mxu0 %v8966
  %10584 = vmatpush.bf16.msra.mxu0 %v8960
  %10585 = vmatpush.bf16.msra.mxu0 %v8954
  %10586 = vmatpush.bf16.msra.mxu0 %v8948
  %10587 = vmatpush.bf16.msra.mxu0 %v8942
  %10588 = vmatmul.bf16.gmra.mxu0 %v6464
  %v10589 = vpop.f32.mrf.mxu0
  %v10590 = vadd.f32 %v10577, %v10589
  %v10591 = vpop.f32.mrf.mxu0
  %10592 = vdwg.mxu0
  %10593 = vmatpush.bf16.msra.mxu0 %v9032
  %10594 = vmatpush.bf16.msra.mxu0 %v9026
  %10595 = vmatpush.bf16.msra.mxu0 %v9020
  %10596 = vmatpush.bf16.msra.mxu0 %v9014
  %10597 = vmatpush.bf16.msra.mxu0 %v9008
  %10598 = vmatpush.bf16.msra.mxu0 %v9002
  %10599 = vmatpush.bf16.msra.mxu0 %v8996
  %10600 = vmatpush.bf16.msra.mxu0 %v8990
  %10601 = vmatmul.bf16.gmra.mxu0 %v6465
  %v10602 = vpop.f32.mrf.mxu0
  %v10603 = vadd.f32 %v10590, %v10602
  %v10604 = vpop.f32.mrf.mxu0
  %10605 = vdwg.mxu0
  %10606 = vmatpush.bf16.msra.mxu0 %v9080
  %10607 = vmatpush.bf16.msra.mxu0 %v9074
  %10608 = vmatpush.bf16.msra.mxu0 %v9068
  %10609 = vmatpush.bf16.msra.mxu0 %v9062
  %10610 = vmatpush.bf16.msra.mxu0 %v9056
  %10611 = vmatpush.bf16.msra.mxu0 %v9050
  %10612 = vmatpush.bf16.msra.mxu0 %v9044
  %10613 = vmatpush.bf16.msra.mxu0 %v9038
  %10614 = vmatmul.bf16.gmra.mxu0 %v6466
  %v10615 = vpop.f32.mrf.mxu0
  %v10616 = vadd.f32 %v10603, %v10615
  %v10617 = vpop.f32.mrf.mxu0
  %10618 = vdwg.mxu0
  %10619 = vmatpush.bf16.msra.mxu0 %v9128
  %10620 = vmatpush.bf16.msra.mxu0 %v9122
  %10621 = vmatpush.bf16.msra.mxu0 %v9116
  %10622 = vmatpush.bf16.msra.mxu0 %v9110
  %10623 = vmatpush.bf16.msra.mxu0 %v9104
  %10624 = vmatpush.bf16.msra.mxu0 %v9098
  %10625 = vmatpush.bf16.msra.mxu0 %v9092
  %10626 = vmatpush.bf16.msra.mxu0 %v9086
  %10627 = vmatmul.bf16.gmra.mxu0 %v6467
  %v10628 = vpop.f32.mrf.mxu0
  %v10629 = vadd.f32 %v10616, %v10628
  %v10630 = vpop.f32.mrf.mxu0
  %10631 = vdwg.mxu0
  %10632 = vmatpush.bf16.msra.mxu0 %v9176
  %10633 = vmatpush.bf16.msra.mxu0 %v9170
  %10634 = vmatpush.bf16.msra.mxu0 %v9164
  %10635 = vmatpush.bf16.msra.mxu0 %v9158
  %10636 = vmatpush.bf16.msra.mxu0 %v9152
  %10637 = vmatpush.bf16.msra.mxu0 %v9146
  %10638 = vmatpush.bf16.msra.mxu0 %v9140
  %10639 = vmatpush.bf16.msra.mxu0 %v9134
  %10640 = vmatmul.bf16.gmra.mxu0 %v6468
  %v10641 = vpop.f32.mrf.mxu0
  %v10642 = vadd.f32 %v10629, %v10641
  %v10643 = vpop.f32.mrf.mxu0
  %10644 = vdwg.mxu0
  %10645 = vmatpush.bf16.msra.mxu0 %v9224
  %10646 = vmatpush.bf16.msra.mxu0 %v9218
  %10647 = vmatpush.bf16.msra.mxu0 %v9212
  %10648 = vmatpush.bf16.msra.mxu0 %v9206
  %10649 = vmatpush.bf16.msra.mxu0 %v9200
  %10650 = vmatpush.bf16.msra.mxu0 %v9194
  %10651 = vmatpush.bf16.msra.mxu0 %v9188
  %10652 = vmatpush.bf16.msra.mxu0 %v9182
  %10653 = vmatmul.bf16.gmra.mxu0 %v6469
  %v10654 = vpop.f32.mrf.mxu0
  %v10655 = vadd.f32 %v10642, %v10654
  %v10656 = vpop.f32.mrf.mxu0
  %10657 = vdwg.mxu0
  %10658 = vmatpush.bf16.msra.mxu0 %v9272
  %10659 = vmatpush.bf16.msra.mxu0 %v9266
  %10660 = vmatpush.bf16.msra.mxu0 %v9260
  %10661 = vmatpush.bf16.msra.mxu0 %v9254
  %10662 = vmatpush.bf16.msra.mxu0 %v9248
  %10663 = vmatpush.bf16.msra.mxu0 %v9242
  %10664 = vmatpush.bf16.msra.mxu0 %v9236
  %10665 = vmatpush.bf16.msra.mxu0 %v9230
  %10666 = vmatmul.bf16.gmra.mxu0 %v6470
  %v10667 = vpop.f32.mrf.mxu0
  %v10668 = vadd.f32 %v10655, %v10667
  %v10669 = vpop.f32.mrf.mxu0
  %10670 = vdwg.mxu0
  %10671 = vmatpush.bf16.msra.mxu0 %v9320
  %10672 = vmatpush.bf16.msra.mxu0 %v9314
  %10673 = vmatpush.bf16.msra.mxu0 %v9308
  %10674 = vmatpush.bf16.msra.mxu0 %v9302
  %10675 = vmatpush.bf16.msra.mxu0 %v9296
  %10676 = vmatpush.bf16.msra.mxu0 %v9290
  %10677 = vmatpush.bf16.msra.mxu0 %v9284
  %10678 = vmatpush.bf16.msra.mxu0 %v9278
  %10679 = vmatmul.bf16.gmra.mxu0 %v6471
  %v10680 = vpop.f32.mrf.mxu0
  %v10681 = vadd.f32 %v10668, %v10680
  %v10682 = vpop.f32.mrf.mxu0
  %10683 = vdwg.mxu0
  %10684 = vmatpush.bf16.msra.mxu0 %v9368
  %10685 = vmatpush.bf16.msra.mxu0 %v9362
  %10686 = vmatpush.bf16.msra.mxu0 %v9356
  %10687 = vmatpush.bf16.msra.mxu0 %v9350
  %10688 = vmatpush.bf16.msra.mxu0 %v9344
  %10689 = vmatpush.bf16.msra.mxu0 %v9338
  %10690 = vmatpush.bf16.msra.mxu0 %v9332
  %10691 = vmatpush.bf16.msra.mxu0 %v9326
  %10692 = vmatmul.bf16.gmra.mxu0 %v6472
  %v10693 = vpop.f32.mrf.mxu0
  %v10694 = vadd.f32 %v10681, %v10693
  %v10695 = vpop.f32.mrf.mxu0
  %10696 = vdwg.mxu0
  %10697 = vmatpush.bf16.msra.mxu0 %v9416
  %10698 = vmatpush.bf16.msra.mxu0 %v9410
  %10699 = vmatpush.bf16.msra.mxu0 %v9404
  %10700 = vmatpush.bf16.msra.mxu0 %v9398
  %10701 = vmatpush.bf16.msra.mxu0 %v9392
  %10702 = vmatpush.bf16.msra.mxu0 %v9386
  %10703 = vmatpush.bf16.msra.mxu0 %v9380
  %10704 = vmatpush.bf16.msra.mxu0 %v9374
  %10705 = vmatmul.bf16.gmra.mxu0 %v6473
  %v10706 = vpop.f32.mrf.mxu0
  %v10707 = vadd.f32 %v10694, %v10706
  %v10708 = vpop.f32.mrf.mxu0
  %10709 = vdwg.mxu0
  %10710 = vmatpush.bf16.msra.mxu0 %v9464
  %10711 = vmatpush.bf16.msra.mxu0 %v9458
  %10712 = vmatpush.bf16.msra.mxu0 %v9452
  %10713 = vmatpush.bf16.msra.mxu0 %v9446
  %10714 = vmatpush.bf16.msra.mxu0 %v9440
  %10715 = vmatpush.bf16.msra.mxu0 %v9434
  %10716 = vmatpush.bf16.msra.mxu0 %v9428
  %10717 = vmatpush.bf16.msra.mxu0 %v9422
  %10718 = vmatmul.bf16.gmra.mxu0 %v6474
  %v10719 = vpop.f32.mrf.mxu0
  %v10720 = vadd.f32 %v10707, %v10719
  %v10721 = vpop.f32.mrf.mxu0
  %10722 = vdwg.mxu0
  %10723 = vmatpush.bf16.msra.mxu0 %v9512
  %10724 = vmatpush.bf16.msra.mxu0 %v9506
  %10725 = vmatpush.bf16.msra.mxu0 %v9500
  %10726 = vmatpush.bf16.msra.mxu0 %v9494
  %10727 = vmatpush.bf16.msra.mxu0 %v9488
  %10728 = vmatpush.bf16.msra.mxu0 %v9482
  %10729 = vmatpush.bf16.msra.mxu0 %v9476
  %10730 = vmatpush.bf16.msra.mxu0 %v9470
  %10731 = vmatmul.bf16.gmra.mxu0 %v6475
  %v10732 = vpop.f32.mrf.mxu0
  %v10733 = vadd.f32 %v10720, %v10732
  %v10734 = vpop.f32.mrf.mxu0
  %10735 = vdwg.mxu0
  %10736 = vmatpush.bf16.msra.mxu0 %v9560
  %10737 = vmatpush.bf16.msra.mxu0 %v9554
  %10738 = vmatpush.bf16.msra.mxu0 %v9548
  %10739 = vmatpush.bf16.msra.mxu0 %v9542
  %10740 = vmatpush.bf16.msra.mxu0 %v9536
  %10741 = vmatpush.bf16.msra.mxu0 %v9530
  %10742 = vmatpush.bf16.msra.mxu0 %v9524
  %10743 = vmatpush.bf16.msra.mxu0 %v9518
  %10744 = vmatmul.bf16.gmra.mxu0 %v6476
  %v10745 = vpop.f32.mrf.mxu0
  %v10746 = vadd.f32 %v10733, %v10745
  %v10747 = vpop.f32.mrf.mxu0
  %10748 = vdwg.mxu0
  %10749 = vmatpush.bf16.msra.mxu0 %v8841
  %10750 = vmatpush.bf16.msra.mxu0 %v8835
  %10751 = vmatpush.bf16.msra.mxu0 %v8829
  %10752 = vmatpush.bf16.msra.mxu0 %v8823
  %10753 = vmatpush.bf16.msra.mxu0 %v8817
  %10754 = vmatpush.bf16.msra.mxu0 %v8811
  %10755 = vmatpush.bf16.msra.mxu0 %v8805
  %10756 = vmatpush.bf16.msra.mxu0 %v8799
  %10757 = vmatmul.bf16.gmra.mxu0 %v6461
  %v10758 = vpop.f32.mrf.mxu0
  %v10759 = vadd.f32 %v4642, %v10758
  %v10760 = vpop.f32.mrf.mxu0
  %10761 = vdwg.mxu0
  %10762 = vmatpush.bf16.msra.mxu0 %v8889
  %10763 = vmatpush.bf16.msra.mxu0 %v8883
  %10764 = vmatpush.bf16.msra.mxu0 %v8877
  %10765 = vmatpush.bf16.msra.mxu0 %v8871
  %10766 = vmatpush.bf16.msra.mxu0 %v8865
  %10767 = vmatpush.bf16.msra.mxu0 %v8859
  %10768 = vmatpush.bf16.msra.mxu0 %v8853
  %10769 = vmatpush.bf16.msra.mxu0 %v8847
  %10770 = vmatmul.bf16.gmra.mxu0 %v6462
  %v10771 = vpop.f32.mrf.mxu0
  %v10772 = vadd.f32 %v10759, %v10771
  %v10773 = vpop.f32.mrf.mxu0
  %10774 = vdwg.mxu0
  %10775 = vmatpush.bf16.msra.mxu0 %v8937
  %10776 = vmatpush.bf16.msra.mxu0 %v8931
  %10777 = vmatpush.bf16.msra.mxu0 %v8925
  %10778 = vmatpush.bf16.msra.mxu0 %v8919
  %10779 = vmatpush.bf16.msra.mxu0 %v8913
  %10780 = vmatpush.bf16.msra.mxu0 %v8907
  %10781 = vmatpush.bf16.msra.mxu0 %v8901
  %10782 = vmatpush.bf16.msra.mxu0 %v8895
  %10783 = vmatmul.bf16.gmra.mxu0 %v6463
  %v10784 = vpop.f32.mrf.mxu0
  %v10785 = vadd.f32 %v10772, %v10784
  %v10786 = vpop.f32.mrf.mxu0
  %10787 = vdwg.mxu0
  %10788 = vmatpush.bf16.msra.mxu0 %v8985
  %10789 = vmatpush.bf16.msra.mxu0 %v8979
  %10790 = vmatpush.bf16.msra.mxu0 %v8973
  %10791 = vmatpush.bf16.msra.mxu0 %v8967
  %10792 = vmatpush.bf16.msra.mxu0 %v8961
  %10793 = vmatpush.bf16.msra.mxu0 %v8955
  %10794 = vmatpush.bf16.msra.mxu0 %v8949
  %10795 = vmatpush.bf16.msra.mxu0 %v8943
  %10796 = vmatmul.bf16.gmra.mxu0 %v6464
  %v10797 = vpop.f32.mrf.mxu0
  %v10798 = vadd.f32 %v10785, %v10797
  %v10799 = vpop.f32.mrf.mxu0
  %10800 = vdwg.mxu0
  %10801 = vmatpush.bf16.msra.mxu0 %v9033
  %10802 = vmatpush.bf16.msra.mxu0 %v9027
  %10803 = vmatpush.bf16.msra.mxu0 %v9021
  %10804 = vmatpush.bf16.msra.mxu0 %v9015
  %10805 = vmatpush.bf16.msra.mxu0 %v9009
  %10806 = vmatpush.bf16.msra.mxu0 %v9003
  %10807 = vmatpush.bf16.msra.mxu0 %v8997
  %10808 = vmatpush.bf16.msra.mxu0 %v8991
  %10809 = vmatmul.bf16.gmra.mxu0 %v6465
  %v10810 = vpop.f32.mrf.mxu0
  %v10811 = vadd.f32 %v10798, %v10810
  %v10812 = vpop.f32.mrf.mxu0
  %10813 = vdwg.mxu0
  %10814 = vmatpush.bf16.msra.mxu0 %v9081
  %10815 = vmatpush.bf16.msra.mxu0 %v9075
  %10816 = vmatpush.bf16.msra.mxu0 %v9069
  %10817 = vmatpush.bf16.msra.mxu0 %v9063
  %10818 = vmatpush.bf16.msra.mxu0 %v9057
  %10819 = vmatpush.bf16.msra.mxu0 %v9051
  %10820 = vmatpush.bf16.msra.mxu0 %v9045
  %10821 = vmatpush.bf16.msra.mxu0 %v9039
  %10822 = vmatmul.bf16.gmra.mxu0 %v6466
  %v10823 = vpop.f32.mrf.mxu0
  %v10824 = vadd.f32 %v10811, %v10823
  %v10825 = vpop.f32.mrf.mxu0
  %10826 = vdwg.mxu0
  %10827 = vmatpush.bf16.msra.mxu0 %v9129
  %10828 = vmatpush.bf16.msra.mxu0 %v9123
  %10829 = vmatpush.bf16.msra.mxu0 %v9117
  %10830 = vmatpush.bf16.msra.mxu0 %v9111
  %10831 = vmatpush.bf16.msra.mxu0 %v9105
  %10832 = vmatpush.bf16.msra.mxu0 %v9099
  %10833 = vmatpush.bf16.msra.mxu0 %v9093
  %10834 = vmatpush.bf16.msra.mxu0 %v9087
  %10835 = vmatmul.bf16.gmra.mxu0 %v6467
  %v10836 = vpop.f32.mrf.mxu0
  %v10837 = vadd.f32 %v10824, %v10836
  %v10838 = vpop.f32.mrf.mxu0
  %10839 = vdwg.mxu0
  %10840 = vmatpush.bf16.msra.mxu0 %v9177
  %10841 = vmatpush.bf16.msra.mxu0 %v9171
  %10842 = vmatpush.bf16.msra.mxu0 %v9165
  %10843 = vmatpush.bf16.msra.mxu0 %v9159
  %10844 = vmatpush.bf16.msra.mxu0 %v9153
  %10845 = vmatpush.bf16.msra.mxu0 %v9147
  %10846 = vmatpush.bf16.msra.mxu0 %v9141
  %10847 = vmatpush.bf16.msra.mxu0 %v9135
  %10848 = vmatmul.bf16.gmra.mxu0 %v6468
  %v10849 = vpop.f32.mrf.mxu0
  %v10850 = vadd.f32 %v10837, %v10849
  %v10851 = vpop.f32.mrf.mxu0
  %10852 = vdwg.mxu0
  %10853 = vmatpush.bf16.msra.mxu0 %v9225
  %10854 = vmatpush.bf16.msra.mxu0 %v9219
  %10855 = vmatpush.bf16.msra.mxu0 %v9213
  %10856 = vmatpush.bf16.msra.mxu0 %v9207
  %10857 = vmatpush.bf16.msra.mxu0 %v9201
  %10858 = vmatpush.bf16.msra.mxu0 %v9195
  %10859 = vmatpush.bf16.msra.mxu0 %v9189
  %10860 = vmatpush.bf16.msra.mxu0 %v9183
  %10861 = vmatmul.bf16.gmra.mxu0 %v6469
  %v10862 = vpop.f32.mrf.mxu0
  %v10863 = vadd.f32 %v10850, %v10862
  %v10864 = vpop.f32.mrf.mxu0
  %10865 = vdwg.mxu0
  %10866 = vmatpush.bf16.msra.mxu0 %v9273
  %10867 = vmatpush.bf16.msra.mxu0 %v9267
  %10868 = vmatpush.bf16.msra.mxu0 %v9261
  %10869 = vmatpush.bf16.msra.mxu0 %v9255
  %10870 = vmatpush.bf16.msra.mxu0 %v9249
  %10871 = vmatpush.bf16.msra.mxu0 %v9243
  %10872 = vmatpush.bf16.msra.mxu0 %v9237
  %10873 = vmatpush.bf16.msra.mxu0 %v9231
  %10874 = vmatmul.bf16.gmra.mxu0 %v6470
  %v10875 = vpop.f32.mrf.mxu0
  %v10876 = vadd.f32 %v10863, %v10875
  %v10877 = vpop.f32.mrf.mxu0
  %10878 = vdwg.mxu0
  %10879 = vmatpush.bf16.msra.mxu0 %v9321
  %10880 = vmatpush.bf16.msra.mxu0 %v9315
  %10881 = vmatpush.bf16.msra.mxu0 %v9309
  %10882 = vmatpush.bf16.msra.mxu0 %v9303
  %10883 = vmatpush.bf16.msra.mxu0 %v9297
  %10884 = vmatpush.bf16.msra.mxu0 %v9291
  %10885 = vmatpush.bf16.msra.mxu0 %v9285
  %10886 = vmatpush.bf16.msra.mxu0 %v9279
  %10887 = vmatmul.bf16.gmra.mxu0 %v6471
  %v10888 = vpop.f32.mrf.mxu0
  %v10889 = vadd.f32 %v10876, %v10888
  %v10890 = vpop.f32.mrf.mxu0
  %10891 = vdwg.mxu0
  %10892 = vmatpush.bf16.msra.mxu0 %v9369
  %10893 = vmatpush.bf16.msra.mxu0 %v9363
  %10894 = vmatpush.bf16.msra.mxu0 %v9357
  %10895 = vmatpush.bf16.msra.mxu0 %v9351
  %10896 = vmatpush.bf16.msra.mxu0 %v9345
  %10897 = vmatpush.bf16.msra.mxu0 %v9339
  %10898 = vmatpush.bf16.msra.mxu0 %v9333
  %10899 = vmatpush.bf16.msra.mxu0 %v9327
  %10900 = vmatmul.bf16.gmra.mxu0 %v6472
  %v10901 = vpop.f32.mrf.mxu0
  %v10902 = vadd.f32 %v10889, %v10901
  %v10903 = vpop.f32.mrf.mxu0
  %10904 = vdwg.mxu0
  %10905 = vmatpush.bf16.msra.mxu0 %v9417
  %10906 = vmatpush.bf16.msra.mxu0 %v9411
  %10907 = vmatpush.bf16.msra.mxu0 %v9405
  %10908 = vmatpush.bf16.msra.mxu0 %v9399
  %10909 = vmatpush.bf16.msra.mxu0 %v9393
  %10910 = vmatpush.bf16.msra.mxu0 %v9387
  %10911 = vmatpush.bf16.msra.mxu0 %v9381
  %10912 = vmatpush.bf16.msra.mxu0 %v9375
  %10913 = vmatmul.bf16.gmra.mxu0 %v6473
  %v10914 = vpop.f32.mrf.mxu0
  %v10915 = vadd.f32 %v10902, %v10914
  %v10916 = vpop.f32.mrf.mxu0
  %10917 = vdwg.mxu0
  %10918 = vmatpush.bf16.msra.mxu0 %v9465
  %10919 = vmatpush.bf16.msra.mxu0 %v9459
  %10920 = vmatpush.bf16.msra.mxu0 %v9453
  %10921 = vmatpush.bf16.msra.mxu0 %v9447
  %10922 = vmatpush.bf16.msra.mxu0 %v9441
  %10923 = vmatpush.bf16.msra.mxu0 %v9435
  %10924 = vmatpush.bf16.msra.mxu0 %v9429
  %10925 = vmatpush.bf16.msra.mxu0 %v9423
  %10926 = vmatmul.bf16.gmra.mxu0 %v6474
  %v10927 = vpop.f32.mrf.mxu0
  %v10928 = vadd.f32 %v10915, %v10927
  %v10929 = vpop.f32.mrf.mxu0
  %10930 = vdwg.mxu0
  %10931 = vmatpush.bf16.msra.mxu0 %v9513
  %10932 = vmatpush.bf16.msra.mxu0 %v9507
  %10933 = vmatpush.bf16.msra.mxu0 %v9501
  %10934 = vmatpush.bf16.msra.mxu0 %v9495
  %10935 = vmatpush.bf16.msra.mxu0 %v9489
  %10936 = vmatpush.bf16.msra.mxu0 %v9483
  %10937 = vmatpush.bf16.msra.mxu0 %v9477
  %10938 = vmatpush.bf16.msra.mxu0 %v9471
  %10939 = vmatmul.bf16.gmra.mxu0 %v6475
  %v10940 = vpop.f32.mrf.mxu0
  %v10941 = vadd.f32 %v10928, %v10940
  %v10942 = vpop.f32.mrf.mxu0
  %10943 = vdwg.mxu0
  %10944 = vmatpush.bf16.msra.mxu0 %v9561
  %10945 = vmatpush.bf16.msra.mxu0 %v9555
  %10946 = vmatpush.bf16.msra.mxu0 %v9549
  %10947 = vmatpush.bf16.msra.mxu0 %v9543
  %10948 = vmatpush.bf16.msra.mxu0 %v9537
  %10949 = vmatpush.bf16.msra.mxu0 %v9531
  %10950 = vmatpush.bf16.msra.mxu0 %v9525
  %10951 = vmatpush.bf16.msra.mxu0 %v9519
  %10952 = vmatmul.bf16.gmra.mxu0 %v6476
  %v10953 = vpop.f32.mrf.mxu0
  %v10954 = vadd.f32 %v10941, %v10953
  %v10955 = vpop.f32.mrf.mxu0
  %10956 = vdwg.mxu0
  %10957 = vmatpush.bf16.msra.mxu0 %v8842
  %10958 = vmatpush.bf16.msra.mxu0 %v8836
  %10959 = vmatpush.bf16.msra.mxu0 %v8830
  %10960 = vmatpush.bf16.msra.mxu0 %v8824
  %10961 = vmatpush.bf16.msra.mxu0 %v8818
  %10962 = vmatpush.bf16.msra.mxu0 %v8812
  %10963 = vmatpush.bf16.msra.mxu0 %v8806
  %10964 = vmatpush.bf16.msra.mxu0 %v8800
  %10965 = vmatmul.bf16.gmra.mxu0 %v6461
  %v10966 = vpop.f32.mrf.mxu0
  %v10967 = vadd.f32 %v4643, %v10966
  %v10968 = vpop.f32.mrf.mxu0
  %10969 = vdwg.mxu0
  %10970 = vmatpush.bf16.msra.mxu0 %v8890
  %10971 = vmatpush.bf16.msra.mxu0 %v8884
  %10972 = vmatpush.bf16.msra.mxu0 %v8878
  %10973 = vmatpush.bf16.msra.mxu0 %v8872
  %10974 = vmatpush.bf16.msra.mxu0 %v8866
  %10975 = vmatpush.bf16.msra.mxu0 %v8860
  %10976 = vmatpush.bf16.msra.mxu0 %v8854
  %10977 = vmatpush.bf16.msra.mxu0 %v8848
  %10978 = vmatmul.bf16.gmra.mxu0 %v6462
  %v10979 = vpop.f32.mrf.mxu0
  %v10980 = vadd.f32 %v10967, %v10979
  %v10981 = vpop.f32.mrf.mxu0
  %10982 = vdwg.mxu0
  %10983 = vmatpush.bf16.msra.mxu0 %v8938
  %10984 = vmatpush.bf16.msra.mxu0 %v8932
  %10985 = vmatpush.bf16.msra.mxu0 %v8926
  %10986 = vmatpush.bf16.msra.mxu0 %v8920
  %10987 = vmatpush.bf16.msra.mxu0 %v8914
  %10988 = vmatpush.bf16.msra.mxu0 %v8908
  %10989 = vmatpush.bf16.msra.mxu0 %v8902
  %10990 = vmatpush.bf16.msra.mxu0 %v8896
  %10991 = vmatmul.bf16.gmra.mxu0 %v6463
  %v10992 = vpop.f32.mrf.mxu0
  %v10993 = vadd.f32 %v10980, %v10992
  %v10994 = vpop.f32.mrf.mxu0
  %10995 = vdwg.mxu0
  %10996 = vmatpush.bf16.msra.mxu0 %v8986
  %10997 = vmatpush.bf16.msra.mxu0 %v8980
  %10998 = vmatpush.bf16.msra.mxu0 %v8974
  %10999 = vmatpush.bf16.msra.mxu0 %v8968
  %11000 = vmatpush.bf16.msra.mxu0 %v8962
  %11001 = vmatpush.bf16.msra.mxu0 %v8956
  %11002 = vmatpush.bf16.msra.mxu0 %v8950
  %11003 = vmatpush.bf16.msra.mxu0 %v8944
  %11004 = vmatmul.bf16.gmra.mxu0 %v6464
  %v11005 = vpop.f32.mrf.mxu0
  %v11006 = vadd.f32 %v10993, %v11005
  %v11007 = vpop.f32.mrf.mxu0
  %11008 = vdwg.mxu0
  %11009 = vmatpush.bf16.msra.mxu0 %v9034
  %11010 = vmatpush.bf16.msra.mxu0 %v9028
  %11011 = vmatpush.bf16.msra.mxu0 %v9022
  %11012 = vmatpush.bf16.msra.mxu0 %v9016
  %11013 = vmatpush.bf16.msra.mxu0 %v9010
  %11014 = vmatpush.bf16.msra.mxu0 %v9004
  %11015 = vmatpush.bf16.msra.mxu0 %v8998
  %11016 = vmatpush.bf16.msra.mxu0 %v8992
  %11017 = vmatmul.bf16.gmra.mxu0 %v6465
  %v11018 = vpop.f32.mrf.mxu0
  %v11019 = vadd.f32 %v11006, %v11018
  %v11020 = vpop.f32.mrf.mxu0
  %11021 = vdwg.mxu0
  %11022 = vmatpush.bf16.msra.mxu0 %v9082
  %11023 = vmatpush.bf16.msra.mxu0 %v9076
  %11024 = vmatpush.bf16.msra.mxu0 %v9070
  %11025 = vmatpush.bf16.msra.mxu0 %v9064
  %11026 = vmatpush.bf16.msra.mxu0 %v9058
  %11027 = vmatpush.bf16.msra.mxu0 %v9052
  %11028 = vmatpush.bf16.msra.mxu0 %v9046
  %11029 = vmatpush.bf16.msra.mxu0 %v9040
  %11030 = vmatmul.bf16.gmra.mxu0 %v6466
  %v11031 = vpop.f32.mrf.mxu0
  %v11032 = vadd.f32 %v11019, %v11031
  %v11033 = vpop.f32.mrf.mxu0
  %11034 = vdwg.mxu0
  %11035 = vmatpush.bf16.msra.mxu0 %v9130
  %11036 = vmatpush.bf16.msra.mxu0 %v9124
  %11037 = vmatpush.bf16.msra.mxu0 %v9118
  %11038 = vmatpush.bf16.msra.mxu0 %v9112
  %11039 = vmatpush.bf16.msra.mxu0 %v9106
  %11040 = vmatpush.bf16.msra.mxu0 %v9100
  %11041 = vmatpush.bf16.msra.mxu0 %v9094
  %11042 = vmatpush.bf16.msra.mxu0 %v9088
  %11043 = vmatmul.bf16.gmra.mxu0 %v6467
  %v11044 = vpop.f32.mrf.mxu0
  %v11045 = vadd.f32 %v11032, %v11044
  %v11046 = vpop.f32.mrf.mxu0
  %11047 = vdwg.mxu0
  %11048 = vmatpush.bf16.msra.mxu0 %v9178
  %11049 = vmatpush.bf16.msra.mxu0 %v9172
  %11050 = vmatpush.bf16.msra.mxu0 %v9166
  %11051 = vmatpush.bf16.msra.mxu0 %v9160
  %11052 = vmatpush.bf16.msra.mxu0 %v9154
  %11053 = vmatpush.bf16.msra.mxu0 %v9148
  %11054 = vmatpush.bf16.msra.mxu0 %v9142
  %11055 = vmatpush.bf16.msra.mxu0 %v9136
  %11056 = vmatmul.bf16.gmra.mxu0 %v6468
  %v11057 = vpop.f32.mrf.mxu0
  %v11058 = vadd.f32 %v11045, %v11057
  %v11059 = vpop.f32.mrf.mxu0
  %11060 = vdwg.mxu0
  %11061 = vmatpush.bf16.msra.mxu0 %v9226
  %11062 = vmatpush.bf16.msra.mxu0 %v9220
  %11063 = vmatpush.bf16.msra.mxu0 %v9214
  %11064 = vmatpush.bf16.msra.mxu0 %v9208
  %11065 = vmatpush.bf16.msra.mxu0 %v9202
  %11066 = vmatpush.bf16.msra.mxu0 %v9196
  %11067 = vmatpush.bf16.msra.mxu0 %v9190
  %11068 = vmatpush.bf16.msra.mxu0 %v9184
  %11069 = vmatmul.bf16.gmra.mxu0 %v6469
  %v11070 = vpop.f32.mrf.mxu0
  %v11071 = vadd.f32 %v11058, %v11070
  %v11072 = vpop.f32.mrf.mxu0
  %11073 = vdwg.mxu0
  %11074 = vmatpush.bf16.msra.mxu0 %v9274
  %11075 = vmatpush.bf16.msra.mxu0 %v9268
  %11076 = vmatpush.bf16.msra.mxu0 %v9262
  %11077 = vmatpush.bf16.msra.mxu0 %v9256
  %11078 = vmatpush.bf16.msra.mxu0 %v9250
  %11079 = vmatpush.bf16.msra.mxu0 %v9244
  %11080 = vmatpush.bf16.msra.mxu0 %v9238
  %11081 = vmatpush.bf16.msra.mxu0 %v9232
  %11082 = vmatmul.bf16.gmra.mxu0 %v6470
  %v11083 = vpop.f32.mrf.mxu0
  %v11084 = vadd.f32 %v11071, %v11083
  %v11085 = vpop.f32.mrf.mxu0
  %11086 = vdwg.mxu0
  %11087 = vmatpush.bf16.msra.mxu0 %v9322
  %11088 = vmatpush.bf16.msra.mxu0 %v9316
  %11089 = vmatpush.bf16.msra.mxu0 %v9310
  %11090 = vmatpush.bf16.msra.mxu0 %v9304
  %11091 = vmatpush.bf16.msra.mxu0 %v9298
  %11092 = vmatpush.bf16.msra.mxu0 %v9292
  %11093 = vmatpush.bf16.msra.mxu0 %v9286
  %11094 = vmatpush.bf16.msra.mxu0 %v9280
  %11095 = vmatmul.bf16.gmra.mxu0 %v6471
  %v11096 = vpop.f32.mrf.mxu0
  %v11097 = vadd.f32 %v11084, %v11096
  %v11098 = vpop.f32.mrf.mxu0
  %11099 = vdwg.mxu0
  %11100 = vmatpush.bf16.msra.mxu0 %v9370
  %11101 = vmatpush.bf16.msra.mxu0 %v9364
  %11102 = vmatpush.bf16.msra.mxu0 %v9358
  %11103 = vmatpush.bf16.msra.mxu0 %v9352
  %11104 = vmatpush.bf16.msra.mxu0 %v9346
  %11105 = vmatpush.bf16.msra.mxu0 %v9340
  %11106 = vmatpush.bf16.msra.mxu0 %v9334
  %11107 = vmatpush.bf16.msra.mxu0 %v9328
  %11108 = vmatmul.bf16.gmra.mxu0 %v6472
  %v11109 = vpop.f32.mrf.mxu0
  %v11110 = vadd.f32 %v11097, %v11109
  %v11111 = vpop.f32.mrf.mxu0
  %11112 = vdwg.mxu0
  %11113 = vmatpush.bf16.msra.mxu0 %v9418
  %11114 = vmatpush.bf16.msra.mxu0 %v9412
  %11115 = vmatpush.bf16.msra.mxu0 %v9406
  %11116 = vmatpush.bf16.msra.mxu0 %v9400
  %11117 = vmatpush.bf16.msra.mxu0 %v9394
  %11118 = vmatpush.bf16.msra.mxu0 %v9388
  %11119 = vmatpush.bf16.msra.mxu0 %v9382
  %11120 = vmatpush.bf16.msra.mxu0 %v9376
  %11121 = vmatmul.bf16.gmra.mxu0 %v6473
  %v11122 = vpop.f32.mrf.mxu0
  %v11123 = vadd.f32 %v11110, %v11122
  %v11124 = vpop.f32.mrf.mxu0
  %11125 = vdwg.mxu0
  %11126 = vmatpush.bf16.msra.mxu0 %v9466
  %11127 = vmatpush.bf16.msra.mxu0 %v9460
  %11128 = vmatpush.bf16.msra.mxu0 %v9454
  %11129 = vmatpush.bf16.msra.mxu0 %v9448
  %11130 = vmatpush.bf16.msra.mxu0 %v9442
  %11131 = vmatpush.bf16.msra.mxu0 %v9436
  %11132 = vmatpush.bf16.msra.mxu0 %v9430
  %11133 = vmatpush.bf16.msra.mxu0 %v9424
  %11134 = vmatmul.bf16.gmra.mxu0 %v6474
  %v11135 = vpop.f32.mrf.mxu0
  %v11136 = vadd.f32 %v11123, %v11135
  %v11137 = vpop.f32.mrf.mxu0
  %11138 = vdwg.mxu0
  %11139 = vmatpush.bf16.msra.mxu0 %v9514
  %11140 = vmatpush.bf16.msra.mxu0 %v9508
  %11141 = vmatpush.bf16.msra.mxu0 %v9502
  %11142 = vmatpush.bf16.msra.mxu0 %v9496
  %11143 = vmatpush.bf16.msra.mxu0 %v9490
  %11144 = vmatpush.bf16.msra.mxu0 %v9484
  %11145 = vmatpush.bf16.msra.mxu0 %v9478
  %11146 = vmatpush.bf16.msra.mxu0 %v9472
  %11147 = vmatmul.bf16.gmra.mxu0 %v6475
  %v11148 = vpop.f32.mrf.mxu0
  %v11149 = vadd.f32 %v11136, %v11148
  %v11150 = vpop.f32.mrf.mxu0
  %11151 = vdwg.mxu0
  %11152 = vmatpush.bf16.msra.mxu0 %v9562
  %11153 = vmatpush.bf16.msra.mxu0 %v9556
  %11154 = vmatpush.bf16.msra.mxu0 %v9550
  %11155 = vmatpush.bf16.msra.mxu0 %v9544
  %11156 = vmatpush.bf16.msra.mxu0 %v9538
  %11157 = vmatpush.bf16.msra.mxu0 %v9532
  %11158 = vmatpush.bf16.msra.mxu0 %v9526
  %11159 = vmatpush.bf16.msra.mxu0 %v9520
  %11160 = vmatmul.bf16.gmra.mxu0 %v6476
  %v11161 = vpop.f32.mrf.mxu0
  %v11162 = vadd.f32 %v11149, %v11161
  %v11163 = vpop.f32.mrf.mxu0
  %11164 = vdwg.mxu0
  %11165 = vmatpush.bf16.msra.mxu0 %v8843
  %11166 = vmatpush.bf16.msra.mxu0 %v8837
  %11167 = vmatpush.bf16.msra.mxu0 %v8831
  %11168 = vmatpush.bf16.msra.mxu0 %v8825
  %11169 = vmatpush.bf16.msra.mxu0 %v8819
  %11170 = vmatpush.bf16.msra.mxu0 %v8813
  %11171 = vmatpush.bf16.msra.mxu0 %v8807
  %11172 = vmatpush.bf16.msra.mxu0 %v8801
  %11173 = vmatmul.bf16.gmra.mxu0 %v6461
  %v11174 = vpop.f32.mrf.mxu0
  %v11175 = vadd.f32 %v4644, %v11174
  %v11176 = vpop.f32.mrf.mxu0
  %11177 = vdwg.mxu0
  %11178 = vmatpush.bf16.msra.mxu0 %v8891
  %11179 = vmatpush.bf16.msra.mxu0 %v8885
  %11180 = vmatpush.bf16.msra.mxu0 %v8879
  %11181 = vmatpush.bf16.msra.mxu0 %v8873
  %11182 = vmatpush.bf16.msra.mxu0 %v8867
  %11183 = vmatpush.bf16.msra.mxu0 %v8861
  %11184 = vmatpush.bf16.msra.mxu0 %v8855
  %11185 = vmatpush.bf16.msra.mxu0 %v8849
  %11186 = vmatmul.bf16.gmra.mxu0 %v6462
  %v11187 = vpop.f32.mrf.mxu0
  %v11188 = vadd.f32 %v11175, %v11187
  %v11189 = vpop.f32.mrf.mxu0
  %11190 = vdwg.mxu0
  %11191 = vmatpush.bf16.msra.mxu0 %v8939
  %11192 = vmatpush.bf16.msra.mxu0 %v8933
  %11193 = vmatpush.bf16.msra.mxu0 %v8927
  %11194 = vmatpush.bf16.msra.mxu0 %v8921
  %11195 = vmatpush.bf16.msra.mxu0 %v8915
  %11196 = vmatpush.bf16.msra.mxu0 %v8909
  %11197 = vmatpush.bf16.msra.mxu0 %v8903
  %11198 = vmatpush.bf16.msra.mxu0 %v8897
  %11199 = vmatmul.bf16.gmra.mxu0 %v6463
  %v11200 = vpop.f32.mrf.mxu0
  %v11201 = vadd.f32 %v11188, %v11200
  %v11202 = vpop.f32.mrf.mxu0
  %11203 = vdwg.mxu0
  %11204 = vmatpush.bf16.msra.mxu0 %v8987
  %11205 = vmatpush.bf16.msra.mxu0 %v8981
  %11206 = vmatpush.bf16.msra.mxu0 %v8975
  %11207 = vmatpush.bf16.msra.mxu0 %v8969
  %11208 = vmatpush.bf16.msra.mxu0 %v8963
  %11209 = vmatpush.bf16.msra.mxu0 %v8957
  %11210 = vmatpush.bf16.msra.mxu0 %v8951
  %11211 = vmatpush.bf16.msra.mxu0 %v8945
  %11212 = vmatmul.bf16.gmra.mxu0 %v6464
  %v11213 = vpop.f32.mrf.mxu0
  %v11214 = vadd.f32 %v11201, %v11213
  %v11215 = vpop.f32.mrf.mxu0
  %11216 = vdwg.mxu0
  %11217 = vmatpush.bf16.msra.mxu0 %v9035
  %11218 = vmatpush.bf16.msra.mxu0 %v9029
  %11219 = vmatpush.bf16.msra.mxu0 %v9023
  %11220 = vmatpush.bf16.msra.mxu0 %v9017
  %11221 = vmatpush.bf16.msra.mxu0 %v9011
  %11222 = vmatpush.bf16.msra.mxu0 %v9005
  %11223 = vmatpush.bf16.msra.mxu0 %v8999
  %11224 = vmatpush.bf16.msra.mxu0 %v8993
  %11225 = vmatmul.bf16.gmra.mxu0 %v6465
  %v11226 = vpop.f32.mrf.mxu0
  %v11227 = vadd.f32 %v11214, %v11226
  %v11228 = vpop.f32.mrf.mxu0
  %11229 = vdwg.mxu0
  %11230 = vmatpush.bf16.msra.mxu0 %v9083
  %11231 = vmatpush.bf16.msra.mxu0 %v9077
  %11232 = vmatpush.bf16.msra.mxu0 %v9071
  %11233 = vmatpush.bf16.msra.mxu0 %v9065
  %11234 = vmatpush.bf16.msra.mxu0 %v9059
  %11235 = vmatpush.bf16.msra.mxu0 %v9053
  %11236 = vmatpush.bf16.msra.mxu0 %v9047
  %11237 = vmatpush.bf16.msra.mxu0 %v9041
  %11238 = vmatmul.bf16.gmra.mxu0 %v6466
  %v11239 = vpop.f32.mrf.mxu0
  %v11240 = vadd.f32 %v11227, %v11239
  %v11241 = vpop.f32.mrf.mxu0
  %11242 = vdwg.mxu0
  %11243 = vmatpush.bf16.msra.mxu0 %v9131
  %11244 = vmatpush.bf16.msra.mxu0 %v9125
  %11245 = vmatpush.bf16.msra.mxu0 %v9119
  %11246 = vmatpush.bf16.msra.mxu0 %v9113
  %11247 = vmatpush.bf16.msra.mxu0 %v9107
  %11248 = vmatpush.bf16.msra.mxu0 %v9101
  %11249 = vmatpush.bf16.msra.mxu0 %v9095
  %11250 = vmatpush.bf16.msra.mxu0 %v9089
  %11251 = vmatmul.bf16.gmra.mxu0 %v6467
  %v11252 = vpop.f32.mrf.mxu0
  %v11253 = vadd.f32 %v11240, %v11252
  %v11254 = vpop.f32.mrf.mxu0
  %11255 = vdwg.mxu0
  %11256 = vmatpush.bf16.msra.mxu0 %v9179
  %11257 = vmatpush.bf16.msra.mxu0 %v9173
  %11258 = vmatpush.bf16.msra.mxu0 %v9167
  %11259 = vmatpush.bf16.msra.mxu0 %v9161
  %11260 = vmatpush.bf16.msra.mxu0 %v9155
  %11261 = vmatpush.bf16.msra.mxu0 %v9149
  %11262 = vmatpush.bf16.msra.mxu0 %v9143
  %11263 = vmatpush.bf16.msra.mxu0 %v9137
  %11264 = vmatmul.bf16.gmra.mxu0 %v6468
  %v11265 = vpop.f32.mrf.mxu0
  %v11266 = vadd.f32 %v11253, %v11265
  %v11267 = vpop.f32.mrf.mxu0
  %11268 = vdwg.mxu0
  %11269 = vmatpush.bf16.msra.mxu0 %v9227
  %11270 = vmatpush.bf16.msra.mxu0 %v9221
  %11271 = vmatpush.bf16.msra.mxu0 %v9215
  %11272 = vmatpush.bf16.msra.mxu0 %v9209
  %11273 = vmatpush.bf16.msra.mxu0 %v9203
  %11274 = vmatpush.bf16.msra.mxu0 %v9197
  %11275 = vmatpush.bf16.msra.mxu0 %v9191
  %11276 = vmatpush.bf16.msra.mxu0 %v9185
  %11277 = vmatmul.bf16.gmra.mxu0 %v6469
  %v11278 = vpop.f32.mrf.mxu0
  %v11279 = vadd.f32 %v11266, %v11278
  %v11280 = vpop.f32.mrf.mxu0
  %11281 = vdwg.mxu0
  %11282 = vmatpush.bf16.msra.mxu0 %v9275
  %11283 = vmatpush.bf16.msra.mxu0 %v9269
  %11284 = vmatpush.bf16.msra.mxu0 %v9263
  %11285 = vmatpush.bf16.msra.mxu0 %v9257
  %11286 = vmatpush.bf16.msra.mxu0 %v9251
  %11287 = vmatpush.bf16.msra.mxu0 %v9245
  %11288 = vmatpush.bf16.msra.mxu0 %v9239
  %11289 = vmatpush.bf16.msra.mxu0 %v9233
  %11290 = vmatmul.bf16.gmra.mxu0 %v6470
  %v11291 = vpop.f32.mrf.mxu0
  %v11292 = vadd.f32 %v11279, %v11291
  %v11293 = vpop.f32.mrf.mxu0
  %11294 = vdwg.mxu0
  %11295 = vmatpush.bf16.msra.mxu0 %v9323
  %11296 = vmatpush.bf16.msra.mxu0 %v9317
  %11297 = vmatpush.bf16.msra.mxu0 %v9311
  %11298 = vmatpush.bf16.msra.mxu0 %v9305
  %11299 = vmatpush.bf16.msra.mxu0 %v9299
  %11300 = vmatpush.bf16.msra.mxu0 %v9293
  %11301 = vmatpush.bf16.msra.mxu0 %v9287
  %11302 = vmatpush.bf16.msra.mxu0 %v9281
  %11303 = vmatmul.bf16.gmra.mxu0 %v6471
  %v11304 = vpop.f32.mrf.mxu0
  %v11305 = vadd.f32 %v11292, %v11304
  %v11306 = vpop.f32.mrf.mxu0
  %11307 = vdwg.mxu0
  %11308 = vmatpush.bf16.msra.mxu0 %v9371
  %11309 = vmatpush.bf16.msra.mxu0 %v9365
  %11310 = vmatpush.bf16.msra.mxu0 %v9359
  %11311 = vmatpush.bf16.msra.mxu0 %v9353
  %11312 = vmatpush.bf16.msra.mxu0 %v9347
  %11313 = vmatpush.bf16.msra.mxu0 %v9341
  %11314 = vmatpush.bf16.msra.mxu0 %v9335
  %11315 = vmatpush.bf16.msra.mxu0 %v9329
  %11316 = vmatmul.bf16.gmra.mxu0 %v6472
  %v11317 = vpop.f32.mrf.mxu0
  %v11318 = vadd.f32 %v11305, %v11317
  %v11319 = vpop.f32.mrf.mxu0
  %11320 = vdwg.mxu0
  %11321 = vmatpush.bf16.msra.mxu0 %v9419
  %11322 = vmatpush.bf16.msra.mxu0 %v9413
  %11323 = vmatpush.bf16.msra.mxu0 %v9407
  %11324 = vmatpush.bf16.msra.mxu0 %v9401
  %11325 = vmatpush.bf16.msra.mxu0 %v9395
  %11326 = vmatpush.bf16.msra.mxu0 %v9389
  %11327 = vmatpush.bf16.msra.mxu0 %v9383
  %11328 = vmatpush.bf16.msra.mxu0 %v9377
  %11329 = vmatmul.bf16.gmra.mxu0 %v6473
  %v11330 = vpop.f32.mrf.mxu0
  %v11331 = vadd.f32 %v11318, %v11330
  %v11332 = vpop.f32.mrf.mxu0
  %11333 = vdwg.mxu0
  %11334 = vmatpush.bf16.msra.mxu0 %v9467
  %11335 = vmatpush.bf16.msra.mxu0 %v9461
  %11336 = vmatpush.bf16.msra.mxu0 %v9455
  %11337 = vmatpush.bf16.msra.mxu0 %v9449
  %11338 = vmatpush.bf16.msra.mxu0 %v9443
  %11339 = vmatpush.bf16.msra.mxu0 %v9437
  %11340 = vmatpush.bf16.msra.mxu0 %v9431
  %11341 = vmatpush.bf16.msra.mxu0 %v9425
  %11342 = vmatmul.bf16.gmra.mxu0 %v6474
  %v11343 = vpop.f32.mrf.mxu0
  %v11344 = vadd.f32 %v11331, %v11343
  %v11345 = vpop.f32.mrf.mxu0
  %11346 = vdwg.mxu0
  %11347 = vmatpush.bf16.msra.mxu0 %v9515
  %11348 = vmatpush.bf16.msra.mxu0 %v9509
  %11349 = vmatpush.bf16.msra.mxu0 %v9503
  %11350 = vmatpush.bf16.msra.mxu0 %v9497
  %11351 = vmatpush.bf16.msra.mxu0 %v9491
  %11352 = vmatpush.bf16.msra.mxu0 %v9485
  %11353 = vmatpush.bf16.msra.mxu0 %v9479
  %11354 = vmatpush.bf16.msra.mxu0 %v9473
  %11355 = vmatmul.bf16.gmra.mxu0 %v6475
  %v11356 = vpop.f32.mrf.mxu0
  %v11357 = vadd.f32 %v11344, %v11356
  %v11358 = vpop.f32.mrf.mxu0
  %11359 = vdwg.mxu0
  %11360 = vmatpush.bf16.msra.mxu0 %v9563
  %11361 = vmatpush.bf16.msra.mxu0 %v9557
  %11362 = vmatpush.bf16.msra.mxu0 %v9551
  %11363 = vmatpush.bf16.msra.mxu0 %v9545
  %11364 = vmatpush.bf16.msra.mxu0 %v9539
  %11365 = vmatpush.bf16.msra.mxu0 %v9533
  %11366 = vmatpush.bf16.msra.mxu0 %v9527
  %11367 = vmatpush.bf16.msra.mxu0 %v9521
  %11368 = vmatmul.bf16.gmra.mxu0 %v6476
  %v11369 = vpop.f32.mrf.mxu0
  %v11370 = vadd.f32 %v11357, %v11369
  %v11371 = vpop.f32.mrf.mxu0
  %11372 = vdwg.mxu0
  %11373 = vmatpush.bf16.msra.mxu0 %v8844
  %11374 = vmatpush.bf16.msra.mxu0 %v8838
  %11375 = vmatpush.bf16.msra.mxu0 %v8832
  %11376 = vmatpush.bf16.msra.mxu0 %v8826
  %11377 = vmatpush.bf16.msra.mxu0 %v8820
  %11378 = vmatpush.bf16.msra.mxu0 %v8814
  %11379 = vmatpush.bf16.msra.mxu0 %v8808
  %11380 = vmatpush.bf16.msra.mxu0 %v8802
  %11381 = vmatmul.bf16.gmra.mxu0 %v6461
  %v11382 = vpop.f32.mrf.mxu0
  %v11383 = vadd.f32 %v4645, %v11382
  %v11384 = vpop.f32.mrf.mxu0
  %11385 = vdwg.mxu0
  %11386 = vmatpush.bf16.msra.mxu0 %v8892
  %11387 = vmatpush.bf16.msra.mxu0 %v8886
  %11388 = vmatpush.bf16.msra.mxu0 %v8880
  %11389 = vmatpush.bf16.msra.mxu0 %v8874
  %11390 = vmatpush.bf16.msra.mxu0 %v8868
  %11391 = vmatpush.bf16.msra.mxu0 %v8862
  %11392 = vmatpush.bf16.msra.mxu0 %v8856
  %11393 = vmatpush.bf16.msra.mxu0 %v8850
  %11394 = vmatmul.bf16.gmra.mxu0 %v6462
  %v11395 = vpop.f32.mrf.mxu0
  %v11396 = vadd.f32 %v11383, %v11395
  %v11397 = vpop.f32.mrf.mxu0
  %11398 = vdwg.mxu0
  %11399 = vmatpush.bf16.msra.mxu0 %v8940
  %11400 = vmatpush.bf16.msra.mxu0 %v8934
  %11401 = vmatpush.bf16.msra.mxu0 %v8928
  %11402 = vmatpush.bf16.msra.mxu0 %v8922
  %11403 = vmatpush.bf16.msra.mxu0 %v8916
  %11404 = vmatpush.bf16.msra.mxu0 %v8910
  %11405 = vmatpush.bf16.msra.mxu0 %v8904
  %11406 = vmatpush.bf16.msra.mxu0 %v8898
  %11407 = vmatmul.bf16.gmra.mxu0 %v6463
  %v11408 = vpop.f32.mrf.mxu0
  %v11409 = vadd.f32 %v11396, %v11408
  %v11410 = vpop.f32.mrf.mxu0
  %11411 = vdwg.mxu0
  %11412 = vmatpush.bf16.msra.mxu0 %v8988
  %11413 = vmatpush.bf16.msra.mxu0 %v8982
  %11414 = vmatpush.bf16.msra.mxu0 %v8976
  %11415 = vmatpush.bf16.msra.mxu0 %v8970
  %11416 = vmatpush.bf16.msra.mxu0 %v8964
  %11417 = vmatpush.bf16.msra.mxu0 %v8958
  %11418 = vmatpush.bf16.msra.mxu0 %v8952
  %11419 = vmatpush.bf16.msra.mxu0 %v8946
  %11420 = vmatmul.bf16.gmra.mxu0 %v6464
  %v11421 = vpop.f32.mrf.mxu0
  %v11422 = vadd.f32 %v11409, %v11421
  %v11423 = vpop.f32.mrf.mxu0
  %11424 = vdwg.mxu0
  %11425 = vmatpush.bf16.msra.mxu0 %v9036
  %11426 = vmatpush.bf16.msra.mxu0 %v9030
  %11427 = vmatpush.bf16.msra.mxu0 %v9024
  %11428 = vmatpush.bf16.msra.mxu0 %v9018
  %11429 = vmatpush.bf16.msra.mxu0 %v9012
  %11430 = vmatpush.bf16.msra.mxu0 %v9006
  %11431 = vmatpush.bf16.msra.mxu0 %v9000
  %11432 = vmatpush.bf16.msra.mxu0 %v8994
  %11433 = vmatmul.bf16.gmra.mxu0 %v6465
  %v11434 = vpop.f32.mrf.mxu0
  %v11435 = vadd.f32 %v11422, %v11434
  %v11436 = vpop.f32.mrf.mxu0
  %11437 = vdwg.mxu0
  %11438 = vmatpush.bf16.msra.mxu0 %v9084
  %11439 = vmatpush.bf16.msra.mxu0 %v9078
  %11440 = vmatpush.bf16.msra.mxu0 %v9072
  %11441 = vmatpush.bf16.msra.mxu0 %v9066
  %11442 = vmatpush.bf16.msra.mxu0 %v9060
  %11443 = vmatpush.bf16.msra.mxu0 %v9054
  %11444 = vmatpush.bf16.msra.mxu0 %v9048
  %11445 = vmatpush.bf16.msra.mxu0 %v9042
  %11446 = vmatmul.bf16.gmra.mxu0 %v6466
  %v11447 = vpop.f32.mrf.mxu0
  %v11448 = vadd.f32 %v11435, %v11447
  %v11449 = vpop.f32.mrf.mxu0
  %11450 = vdwg.mxu0
  %11451 = vmatpush.bf16.msra.mxu0 %v9132
  %11452 = vmatpush.bf16.msra.mxu0 %v9126
  %11453 = vmatpush.bf16.msra.mxu0 %v9120
  %11454 = vmatpush.bf16.msra.mxu0 %v9114
  %11455 = vmatpush.bf16.msra.mxu0 %v9108
  %11456 = vmatpush.bf16.msra.mxu0 %v9102
  %11457 = vmatpush.bf16.msra.mxu0 %v9096
  %11458 = vmatpush.bf16.msra.mxu0 %v9090
  %11459 = vmatmul.bf16.gmra.mxu0 %v6467
  %v11460 = vpop.f32.mrf.mxu0
  %v11461 = vadd.f32 %v11448, %v11460
  %v11462 = vpop.f32.mrf.mxu0
  %11463 = vdwg.mxu0
  %11464 = vmatpush.bf16.msra.mxu0 %v9180
  %11465 = vmatpush.bf16.msra.mxu0 %v9174
  %11466 = vmatpush.bf16.msra.mxu0 %v9168
  %11467 = vmatpush.bf16.msra.mxu0 %v9162
  %11468 = vmatpush.bf16.msra.mxu0 %v9156
  %11469 = vmatpush.bf16.msra.mxu0 %v9150
  %11470 = vmatpush.bf16.msra.mxu0 %v9144
  %11471 = vmatpush.bf16.msra.mxu0 %v9138
  %11472 = vmatmul.bf16.gmra.mxu0 %v6468
  %v11473 = vpop.f32.mrf.mxu0
  %v11474 = vadd.f32 %v11461, %v11473
  %v11475 = vpop.f32.mrf.mxu0
  %11476 = vdwg.mxu0
  %11477 = vmatpush.bf16.msra.mxu0 %v9228
  %11478 = vmatpush.bf16.msra.mxu0 %v9222
  %11479 = vmatpush.bf16.msra.mxu0 %v9216
  %11480 = vmatpush.bf16.msra.mxu0 %v9210
  %11481 = vmatpush.bf16.msra.mxu0 %v9204
  %11482 = vmatpush.bf16.msra.mxu0 %v9198
  %11483 = vmatpush.bf16.msra.mxu0 %v9192
  %11484 = vmatpush.bf16.msra.mxu0 %v9186
  %11485 = vmatmul.bf16.gmra.mxu0 %v6469
  %v11486 = vpop.f32.mrf.mxu0
  %v11487 = vadd.f32 %v11474, %v11486
  %v11488 = vpop.f32.mrf.mxu0
  %11489 = vdwg.mxu0
  %11490 = vmatpush.bf16.msra.mxu0 %v9276
  %11491 = vmatpush.bf16.msra.mxu0 %v9270
  %11492 = vmatpush.bf16.msra.mxu0 %v9264
  %11493 = vmatpush.bf16.msra.mxu0 %v9258
  %11494 = vmatpush.bf16.msra.mxu0 %v9252
  %11495 = vmatpush.bf16.msra.mxu0 %v9246
  %11496 = vmatpush.bf16.msra.mxu0 %v9240
  %11497 = vmatpush.bf16.msra.mxu0 %v9234
  %11498 = vmatmul.bf16.gmra.mxu0 %v6470
  %v11499 = vpop.f32.mrf.mxu0
  %v11500 = vadd.f32 %v11487, %v11499
  %v11501 = vpop.f32.mrf.mxu0
  %11502 = vdwg.mxu0
  %11503 = vmatpush.bf16.msra.mxu0 %v9324
  %11504 = vmatpush.bf16.msra.mxu0 %v9318
  %11505 = vmatpush.bf16.msra.mxu0 %v9312
  %11506 = vmatpush.bf16.msra.mxu0 %v9306
  %11507 = vmatpush.bf16.msra.mxu0 %v9300
  %11508 = vmatpush.bf16.msra.mxu0 %v9294
  %11509 = vmatpush.bf16.msra.mxu0 %v9288
  %11510 = vmatpush.bf16.msra.mxu0 %v9282
  %11511 = vmatmul.bf16.gmra.mxu0 %v6471
  %v11512 = vpop.f32.mrf.mxu0
  %v11513 = vadd.f32 %v11500, %v11512
  %v11514 = vpop.f32.mrf.mxu0
  %11515 = vdwg.mxu0
  %11516 = vmatpush.bf16.msra.mxu0 %v9372
  %11517 = vmatpush.bf16.msra.mxu0 %v9366
  %11518 = vmatpush.bf16.msra.mxu0 %v9360
  %11519 = vmatpush.bf16.msra.mxu0 %v9354
  %11520 = vmatpush.bf16.msra.mxu0 %v9348
  %11521 = vmatpush.bf16.msra.mxu0 %v9342
  %11522 = vmatpush.bf16.msra.mxu0 %v9336
  %11523 = vmatpush.bf16.msra.mxu0 %v9330
  %11524 = vmatmul.bf16.gmra.mxu0 %v6472
  %v11525 = vpop.f32.mrf.mxu0
  %v11526 = vadd.f32 %v11513, %v11525
  %v11527 = vpop.f32.mrf.mxu0
  %11528 = vdwg.mxu0
  %11529 = vmatpush.bf16.msra.mxu0 %v9420
  %11530 = vmatpush.bf16.msra.mxu0 %v9414
  %11531 = vmatpush.bf16.msra.mxu0 %v9408
  %11532 = vmatpush.bf16.msra.mxu0 %v9402
  %11533 = vmatpush.bf16.msra.mxu0 %v9396
  %11534 = vmatpush.bf16.msra.mxu0 %v9390
  %11535 = vmatpush.bf16.msra.mxu0 %v9384
  %11536 = vmatpush.bf16.msra.mxu0 %v9378
  %11537 = vmatmul.bf16.gmra.mxu0 %v6473
  %v11538 = vpop.f32.mrf.mxu0
  %v11539 = vadd.f32 %v11526, %v11538
  %v11540 = vpop.f32.mrf.mxu0
  %11541 = vdwg.mxu0
  %11542 = vmatpush.bf16.msra.mxu0 %v9468
  %11543 = vmatpush.bf16.msra.mxu0 %v9462
  %11544 = vmatpush.bf16.msra.mxu0 %v9456
  %11545 = vmatpush.bf16.msra.mxu0 %v9450
  %11546 = vmatpush.bf16.msra.mxu0 %v9444
  %11547 = vmatpush.bf16.msra.mxu0 %v9438
  %11548 = vmatpush.bf16.msra.mxu0 %v9432
  %11549 = vmatpush.bf16.msra.mxu0 %v9426
  %11550 = vmatmul.bf16.gmra.mxu0 %v6474
  %v11551 = vpop.f32.mrf.mxu0
  %v11552 = vadd.f32 %v11539, %v11551
  %v11553 = vpop.f32.mrf.mxu0
  %11554 = vdwg.mxu0
  %11555 = vmatpush.bf16.msra.mxu0 %v9516
  %11556 = vmatpush.bf16.msra.mxu0 %v9510
  %11557 = vmatpush.bf16.msra.mxu0 %v9504
  %11558 = vmatpush.bf16.msra.mxu0 %v9498
  %11559 = vmatpush.bf16.msra.mxu0 %v9492
  %11560 = vmatpush.bf16.msra.mxu0 %v9486
  %11561 = vmatpush.bf16.msra.mxu0 %v9480
  %11562 = vmatpush.bf16.msra.mxu0 %v9474
  %11563 = vmatmul.bf16.gmra.mxu0 %v6475
  %v11564 = vpop.f32.mrf.mxu0
  %v11565 = vadd.f32 %v11552, %v11564
  %v11566 = vpop.f32.mrf.mxu0
  %11567 = vdwg.mxu0
  %11568 = vmatpush.bf16.msra.mxu0 %v9564
  %11569 = vmatpush.bf16.msra.mxu0 %v9558
  %11570 = vmatpush.bf16.msra.mxu0 %v9552
  %11571 = vmatpush.bf16.msra.mxu0 %v9546
  %11572 = vmatpush.bf16.msra.mxu0 %v9540
  %11573 = vmatpush.bf16.msra.mxu0 %v9534
  %11574 = vmatpush.bf16.msra.mxu0 %v9528
  %11575 = vmatpush.bf16.msra.mxu0 %v9522
  %11576 = vmatmul.bf16.gmra.mxu0 %v6476
  %v11577 = vpop.f32.mrf.mxu0
  %v11578 = vadd.f32 %v11565, %v11577
  %v11579 = vpop.f32.mrf.mxu0
  %11580 = vdwg.mxu0
  %v11581 = vpack.c.bf16 %v10538, %v10538
  %v11582 = vpack.c.bf16 %v10746, %v10746
  %v11583 = vpack.c.bf16 %v10954, %v10954
  %v11584 = vpack.c.bf16 %v11162, %v11162
  %v11585 = vpack.c.bf16 %v11370, %v11370
  %v11586 = vpack.c.bf16 %v11578, %v11578
  %v11587 = vld [vmem:[%s3] sm:$0xff]
  %v11588 = vld [vmem:[%s3 + $0x8] sm:$0xf]
  %v11589 = vld [vmem:[%s3 + $0xc] sm:$0xff]
  %v11590 = vld [vmem:[%s3 + $0x14] sm:$0xf]
  %v11591 = vld [vmem:[%s3 + $0x18] sm:$0xff]
  %v11592 = vld [vmem:[%s3 + $0x20] sm:$0xf]
  %v11593 = vld [vmem:[%s3 + $0x24] sm:$0xff]
  %v11594 = vld [vmem:[%s3 + $0x2c] sm:$0xf]
  %v11595 = vld [vmem:[%s3 + $0x30] sm:$0xff]
  %v11596 = vld [vmem:[%s3 + $0x38] sm:$0xf]
  %v11597 = vld [vmem:[%s3 + $0x3c] sm:$0xff]
  %v11598 = vld [vmem:[%s3 + $0x44] sm:$0xf]
  %v11599 = vld [vmem:[%s3 + $0x48] sm:$0xff]
  %v11600 = vld [vmem:[%s3 + $0x50] sm:$0xf]
  %v11601 = vld [vmem:[%s3 + $0x54] sm:$0xff]
  %v11602 = vld [vmem:[%s3 + $0x5c] sm:$0xf]
  %v11603 = vld [vmem:[%s3 + $0x60] sm:$0xff]
  %v11604 = vld [vmem:[%s3 + $0x68] sm:$0xf]
  %v11605 = vld [vmem:[%s3 + $0x6c] sm:$0xff]
  %v11606 = vld [vmem:[%s3 + $0x74] sm:$0xf]
  %v11607 = vld [vmem:[%s3 + $0x78] sm:$0xff]
  %v11608 = vld [vmem:[%s3 + $0x80] sm:$0xf]
  %v11609 = vld [vmem:[%s3 + $0x84] sm:$0xff]
  %v11610 = vld [vmem:[%s3 + $0x8c] sm:$0xf]
  %v11611 = vld [vmem:[%s3 + $0x90] sm:$0xff]
  %v11612 = vld [vmem:[%s3 + $0x98] sm:$0xf]
  %v11613 = vld [vmem:[%s3 + $0x9c] sm:$0xff]
  %v11614 = vld [vmem:[%s3 + $0xa4] sm:$0xf]
  %v11615 = vld [vmem:[%s3 + $0xa8] sm:$0xff]
  %v11616 = vld [vmem:[%s3 + $0xb0] sm:$0xf]
  %v11617 = vld [vmem:[%s3 + $0xb4] sm:$0xff]
  %v11618 = vld [vmem:[%s3 + $0xbc] sm:$0xf]
  %v11619 = vld [vmem:[%s3 + $0xc0] sm:$0xff]
  %v11620 = vld [vmem:[%s3 + $0xc8] sm:$0xf]
  %v11621 = vld [vmem:[%s3 + $0xcc] sm:$0xff]
  %v11622 = vld [vmem:[%s3 + $0xd4] sm:$0xf]
  %v11623 = vld [vmem:[%s3 + $0xd8] sm:$0xff]
  %v11624 = vld [vmem:[%s3 + $0xe0] sm:$0xf]
  %v11625 = vld [vmem:[%s3 + $0xe4] sm:$0xff]
  %v11626 = vld [vmem:[%s3 + $0xec] sm:$0xf]
  %v11627 = vld [vmem:[%s3 + $0xf0] sm:$0xff]
  %v11628 = vld [vmem:[%s3 + $0xf8] sm:$0xf]
  %v11629 = vld [vmem:[%s3 + $0xfc] sm:$0xff]
  %v11630 = vld [vmem:[%s3 + $0x104] sm:$0xf]
  %v11631 = vld [vmem:[%s3 + $0x108] sm:$0xff]
  %v11632 = vld [vmem:[%s3 + $0x110] sm:$0xf]
  %v11633 = vld [vmem:[%s3 + $0x114] sm:$0xff]
  %v11634 = vld [vmem:[%s3 + $0x11c] sm:$0xf]
  %v11635 = vld [vmem:[%s3 + $0x120] sm:$0xff]
  %v11636 = vld [vmem:[%s3 + $0x128] sm:$0xf]
  %v11637 = vld [vmem:[%s3 + $0x12c] sm:$0xff]
  %v11638 = vld [vmem:[%s3 + $0x134] sm:$0xf]
  %v11639 = vld [vmem:[%s3 + $0x138] sm:$0xff]
  %v11640 = vld [vmem:[%s3 + $0x140] sm:$0xf]
  %v11641 = vld [vmem:[%s3 + $0x144] sm:$0xff]
  %v11642 = vld [vmem:[%s3 + $0x14c] sm:$0xf]
  %v11643 = vld [vmem:[%s3 + $0x150] sm:$0xff]
  %v11644 = vld [vmem:[%s3 + $0x158] sm:$0xf]
  %v11645 = vld [vmem:[%s3 + $0x15c] sm:$0xff]
  %v11646 = vld [vmem:[%s3 + $0x164] sm:$0xf]
  %v11647 = vld [vmem:[%s3 + $0x168] sm:$0xff]
  %v11648 = vld [vmem:[%s3 + $0x170] sm:$0xf]
  %v11649 = vld [vmem:[%s3 + $0x174] sm:$0xff]
  %v11650 = vld [vmem:[%s3 + $0x17c] sm:$0xf]
  %v11651 = vld [vmem:[%s3 + $0x180] sm:$0xff]
  %v11652 = vld [vmem:[%s3 + $0x188] sm:$0xf]
  %v11653 = vld [vmem:[%s3 + $0x18c] sm:$0xff]
  %v11654 = vld [vmem:[%s3 + $0x194] sm:$0xf]
  %v11655 = vld [vmem:[%s3 + $0x198] sm:$0xff]
  %v11656 = vld [vmem:[%s3 + $0x1a0] sm:$0xf]
  %v11657 = vld [vmem:[%s3 + $0x1a4] sm:$0xff]
  %v11658 = vld [vmem:[%s3 + $0x1ac] sm:$0xf]
  %v11659 = vld [vmem:[%s3 + $0x1b0] sm:$0xff]
  %v11660 = vld [vmem:[%s3 + $0x1b8] sm:$0xf]
  %v11661 = vld [vmem:[%s3 + $0x1bc] sm:$0xff]
  %v11662 = vld [vmem:[%s3 + $0x1c4] sm:$0xf]
  %v11663 = vld [vmem:[%s3 + $0x1c8] sm:$0xff]
  %v11664 = vld [vmem:[%s3 + $0x1d0] sm:$0xf]
  %v11665 = vld [vmem:[%s3 + $0x1d4] sm:$0xff]
  %v11666 = vld [vmem:[%s3 + $0x1dc] sm:$0xf]
  %v11667 = vld [vmem:[%s3 + $0x1e0] sm:$0xff]
  %v11668 = vld [vmem:[%s3 + $0x1e8] sm:$0xf]
  %v11669 = vld [vmem:[%s3 + $0x1ec] sm:$0xff]
  %v11670 = vld [vmem:[%s3 + $0x1f4] sm:$0xf]
  %v11671 = vld [vmem:[%s3 + $0x1f8] sm:$0xff]
  %v11672 = vld [vmem:[%s3 + $0x200] sm:$0xf]
  %v11673 = vld [vmem:[%s3 + $0x204] sm:$0xff]
  %v11674 = vld [vmem:[%s3 + $0x20c] sm:$0xf]
  %v11675 = vld [vmem:[%s3 + $0x210] sm:$0xff]
  %v11676 = vld [vmem:[%s3 + $0x218] sm:$0xf]
  %v11677 = vld [vmem:[%s3 + $0x21c] sm:$0xff]
  %v11678 = vld [vmem:[%s3 + $0x224] sm:$0xf]
  %v11679 = vld [vmem:[%s3 + $0x228] sm:$0xff]
  %v11680 = vld [vmem:[%s3 + $0x230] sm:$0xf]
  %v11681 = vld [vmem:[%s3 + $0x234] sm:$0xff]
  %v11682 = vld [vmem:[%s3 + $0x23c] sm:$0xf]
  %v11683 = vld [vmem:[%s3 + $0x240] sm:$0xff]
  %v11684 = vld [vmem:[%s3 + $0x248] sm:$0xf]
  %v11685 = vld [vmem:[%s3 + $0x24c] sm:$0xff]
  %v11686 = vld [vmem:[%s3 + $0x254] sm:$0xf]
  %v11687 = vld [vmem:[%s3 + $0x258] sm:$0xff]
  %v11688 = vld [vmem:[%s3 + $0x260] sm:$0xf]
  %v11689 = vld [vmem:[%s3 + $0x264] sm:$0xff]
  %v11690 = vld [vmem:[%s3 + $0x26c] sm:$0xf]
  %v11691 = vld [vmem:[%s3 + $0x270] sm:$0xff]
  %v11692 = vld [vmem:[%s3 + $0x278] sm:$0xf]
  %v11693 = vld [vmem:[%s3 + $0x27c] sm:$0xff]
  %v11694 = vld [vmem:[%s3 + $0x284] sm:$0xf]
  %v11695 = vld [vmem:[%s3 + $0x288] sm:$0xff]
  %v11696 = vld [vmem:[%s3 + $0x290] sm:$0xf]
  %v11697 = vld [vmem:[%s3 + $0x294] sm:$0xff]
  %v11698 = vld [vmem:[%s3 + $0x29c] sm:$0xf]
  %v11699 = vld [vmem:[%s3 + $0x2a0] sm:$0xff]
  %v11700 = vld [vmem:[%s3 + $0x2a8] sm:$0xf]
  %v11701 = vld [vmem:[%s3 + $0x2ac] sm:$0xff]
  %v11702 = vld [vmem:[%s3 + $0x2b4] sm:$0xf]
  %v11703 = vld [vmem:[%s3 + $0x2b8] sm:$0xff]
  %v11704 = vld [vmem:[%s3 + $0x2c0] sm:$0xf]
  %v11705 = vld [vmem:[%s3 + $0x2c4] sm:$0xff]
  %v11706 = vld [vmem:[%s3 + $0x2cc] sm:$0xf]
  %v11707 = vld [vmem:[%s3 + $0x2d0] sm:$0xff]
  %v11708 = vld [vmem:[%s3 + $0x2d8] sm:$0xf]
  %v11709 = vld [vmem:[%s3 + $0x2dc] sm:$0xff]
  %v11710 = vld [vmem:[%s3 + $0x2e4] sm:$0xf]
  %v11711 = vld [vmem:[%s3 + $0x2e8] sm:$0xff]
  %v11712 = vld [vmem:[%s3 + $0x2f0] sm:$0xf]
  %v11713 = vld [vmem:[%s3 + $0x2f4] sm:$0xff]
  %v11714 = vld [vmem:[%s3 + $0x2fc] sm:$0xf]
  %v11715 = vld [vmem:[%s3 + $0x300] sm:$0xff]
  %v11716 = vld [vmem:[%s3 + $0x308] sm:$0xf]
  %v11717 = vld [vmem:[%s3 + $0x30c] sm:$0xff]
  %v11718 = vld [vmem:[%s3 + $0x314] sm:$0xf]
  %v11719 = vld [vmem:[%s3 + $0x318] sm:$0xff]
  %v11720 = vld [vmem:[%s3 + $0x320] sm:$0xf]
  %v11721 = vld [vmem:[%s3 + $0x324] sm:$0xff]
  %v11722 = vld [vmem:[%s3 + $0x32c] sm:$0xf]
  %v11723 = vld [vmem:[%s3 + $0x330] sm:$0xff]
  %v11724 = vld [vmem:[%s3 + $0x338] sm:$0xf]
  %v11725 = vld [vmem:[%s3 + $0x33c] sm:$0xff]
  %v11726 = vld [vmem:[%s3 + $0x344] sm:$0xf]
  %v11727 = vld [vmem:[%s3 + $0x348] sm:$0xff]
  %v11728 = vld [vmem:[%s3 + $0x350] sm:$0xf]
  %v11729 = vld [vmem:[%s3 + $0x354] sm:$0xff]
  %v11730 = vld [vmem:[%s3 + $0x35c] sm:$0xf]
  %v11731 = vld [vmem:[%s3 + $0x360] sm:$0xff]
  %v11732 = vld [vmem:[%s3 + $0x368] sm:$0xf]
  %v11733 = vld [vmem:[%s3 + $0x36c] sm:$0xff]
  %v11734 = vld [vmem:[%s3 + $0x374] sm:$0xf]
  %v11735 = vld [vmem:[%s3 + $0x378] sm:$0xff]
  %v11736 = vld [vmem:[%s3 + $0x380] sm:$0xf]
  %v11737 = vld [vmem:[%s3 + $0x384] sm:$0xff]
  %v11738 = vld [vmem:[%s3 + $0x38c] sm:$0xf]
  %v11739 = vld [vmem:[%s3 + $0x390] sm:$0xff]
  %v11740 = vld [vmem:[%s3 + $0x398] sm:$0xf]
  %v11741 = vld [vmem:[%s3 + $0x39c] sm:$0xff]
  %v11742 = vld [vmem:[%s3 + $0x3a4] sm:$0xf]
  %v11743 = vld [vmem:[%s3 + $0x3a8] sm:$0xff]
  %v11744 = vld [vmem:[%s3 + $0x3b0] sm:$0xf]
  %v11745 = vld [vmem:[%s3 + $0x3b4] sm:$0xff]
  %v11746 = vld [vmem:[%s3 + $0x3bc] sm:$0xf]
  %v11747 = vld [vmem:[%s3 + $0x3c0] sm:$0xff]
  %v11748 = vld [vmem:[%s3 + $0x3c8] sm:$0xf]
  %v11749 = vld [vmem:[%s3 + $0x3cc] sm:$0xff]
  %v11750 = vld [vmem:[%s3 + $0x3d4] sm:$0xf]
  %v11751 = vld [vmem:[%s3 + $0x3d8] sm:$0xff]
  %v11752 = vld [vmem:[%s3 + $0x3e0] sm:$0xf]
  %v11753 = vld [vmem:[%s3 + $0x3e4] sm:$0xff]
  %v11754 = vld [vmem:[%s3 + $0x3ec] sm:$0xf]
  %v11755 = vld [vmem:[%s3 + $0x3f0] sm:$0xff]
  %v11756 = vld [vmem:[%s3 + $0x3f8] sm:$0xf]
  %v11757 = vld [vmem:[%s3 + $0x3fc] sm:$0xff]
  %v11758 = vld [vmem:[%s3 + $0x404] sm:$0xf]
  %v11759 = vld [vmem:[%s3 + $0x408] sm:$0xff]
  %v11760 = vld [vmem:[%s3 + $0x410] sm:$0xf]
  %v11761 = vld [vmem:[%s3 + $0x414] sm:$0xff]
  %v11762 = vld [vmem:[%s3 + $0x41c] sm:$0xf]
  %v11763 = vld [vmem:[%s3 + $0x420] sm:$0xff]
  %v11764 = vld [vmem:[%s3 + $0x428] sm:$0xf]
  %v11765 = vld [vmem:[%s3 + $0x42c] sm:$0xff]
  %v11766 = vld [vmem:[%s3 + $0x434] sm:$0xf]
  %v11767 = vld [vmem:[%s3 + $0x438] sm:$0xff]
  %v11768 = vld [vmem:[%s3 + $0x440] sm:$0xf]
  %v11769 = vld [vmem:[%s3 + $0x444] sm:$0xff]
  %v11770 = vld [vmem:[%s3 + $0x44c] sm:$0xf]
  %v11771 = vld [vmem:[%s3 + $0x450] sm:$0xff]
  %v11772 = vld [vmem:[%s3 + $0x458] sm:$0xf]
  %v11773 = vld [vmem:[%s3 + $0x45c] sm:$0xff]
  %v11774 = vld [vmem:[%s3 + $0x464] sm:$0xf]
  %v11775 = vld [vmem:[%s3 + $0x468] sm:$0xff]
  %v11776 = vld [vmem:[%s3 + $0x470] sm:$0xf]
  %v11777 = vld [vmem:[%s3 + $0x474] sm:$0xff]
  %v11778 = vld [vmem:[%s3 + $0x47c] sm:$0xf]
  %v11779 = vld [vmem:[%s4] sm:$0x7]
  %v11781 = vperm.slane %v11779, 0
  %v11782 = vperm.slane %v11779, 1
  %v11783 = vperm.slane %v11779, 2
  %v11979 = vunpack.c.l.b16 %v11587
  %v11980 = vunpack.c.h.b16 %v11587
  %v11981 = vunpack.c.l.b16 %v11588
  %v11982 = vunpack.c.l.b16 %v11589
  %v11983 = vunpack.c.h.b16 %v11589
  %v11984 = vunpack.c.l.b16 %v11590
  %v11985 = vunpack.c.l.b16 %v11591
  %v11986 = vunpack.c.h.b16 %v11591
  %v11987 = vunpack.c.l.b16 %v11592
  %v11988 = vunpack.c.l.b16 %v11593
  %v11989 = vunpack.c.h.b16 %v11593
  %v11990 = vunpack.c.l.b16 %v11594
  %v11991 = vunpack.c.l.b16 %v11595
  %v11992 = vunpack.c.h.b16 %v11595
  %v11993 = vunpack.c.l.b16 %v11596
  %v11994 = vunpack.c.l.b16 %v11597
  %v11995 = vunpack.c.h.b16 %v11597
  %v11996 = vunpack.c.l.b16 %v11598
  %v11997 = vunpack.c.l.b16 %v11599
  %v11998 = vunpack.c.h.b16 %v11599
  %v11999 = vunpack.c.l.b16 %v11600
  %v12000 = vunpack.c.l.b16 %v11601
  %v12001 = vunpack.c.h.b16 %v11601
  %v12002 = vunpack.c.l.b16 %v11602
  %v12003 = vunpack.c.l.b16 %v11603
  %v12004 = vunpack.c.h.b16 %v11603
  %v12005 = vunpack.c.l.b16 %v11604
  %v12006 = vunpack.c.l.b16 %v11605
  %v12007 = vunpack.c.h.b16 %v11605
  %v12008 = vunpack.c.l.b16 %v11606
  %v12009 = vunpack.c.l.b16 %v11607
  %v12010 = vunpack.c.h.b16 %v11607
  %v12011 = vunpack.c.l.b16 %v11608
  %v12012 = vunpack.c.l.b16 %v11609
  %v12013 = vunpack.c.h.b16 %v11609
  %v12014 = vunpack.c.l.b16 %v11610
  %v12015 = vunpack.c.l.b16 %v11611
  %v12016 = vunpack.c.h.b16 %v11611
  %v12017 = vunpack.c.l.b16 %v11612
  %v12018 = vunpack.c.l.b16 %v11613
  %v12019 = vunpack.c.h.b16 %v11613
  %v12020 = vunpack.c.l.b16 %v11614
  %v12021 = vunpack.c.l.b16 %v11615
  %v12022 = vunpack.c.h.b16 %v11615
  %v12023 = vunpack.c.l.b16 %v11616
  %v12024 = vunpack.c.l.b16 %v11617
  %v12025 = vunpack.c.h.b16 %v11617
  %v12026 = vunpack.c.l.b16 %v11618
  %v12027 = vunpack.c.l.b16 %v11619
  %v12028 = vunpack.c.h.b16 %v11619
  %v12029 = vunpack.c.l.b16 %v11620
  %v12030 = vunpack.c.l.b16 %v11621
  %v12031 = vunpack.c.h.b16 %v11621
  %v12032 = vunpack.c.l.b16 %v11622
  %v12033 = vunpack.c.l.b16 %v11623
  %v12034 = vunpack.c.h.b16 %v11623
  %v12035 = vunpack.c.l.b16 %v11624
  %v12036 = vunpack.c.l.b16 %v11625
  %v12037 = vunpack.c.h.b16 %v11625
  %v12038 = vunpack.c.l.b16 %v11626
  %v12039 = vunpack.c.l.b16 %v11627
  %v12040 = vunpack.c.h.b16 %v11627
  %v12041 = vunpack.c.l.b16 %v11628
  %v12042 = vunpack.c.l.b16 %v11629
  %v12043 = vunpack.c.h.b16 %v11629
  %v12044 = vunpack.c.l.b16 %v11630
  %v12045 = vunpack.c.l.b16 %v11631
  %v12046 = vunpack.c.h.b16 %v11631
  %v12047 = vunpack.c.l.b16 %v11632
  %v12048 = vunpack.c.l.b16 %v11633
  %v12049 = vunpack.c.h.b16 %v11633
  %v12050 = vunpack.c.l.b16 %v11634
  %v12051 = vunpack.c.l.b16 %v11635
  %v12052 = vunpack.c.h.b16 %v11635
  %v12053 = vunpack.c.l.b16 %v11636
  %v12054 = vunpack.c.l.b16 %v11637
  %v12055 = vunpack.c.h.b16 %v11637
  %v12056 = vunpack.c.l.b16 %v11638
  %v12057 = vunpack.c.l.b16 %v11639
  %v12058 = vunpack.c.h.b16 %v11639
  %v12059 = vunpack.c.l.b16 %v11640
  %v12060 = vunpack.c.l.b16 %v11641
  %v12061 = vunpack.c.h.b16 %v11641
  %v12062 = vunpack.c.l.b16 %v11642
  %v12063 = vunpack.c.l.b16 %v11643
  %v12064 = vunpack.c.h.b16 %v11643
  %v12065 = vunpack.c.l.b16 %v11644
  %v12066 = vunpack.c.l.b16 %v11645
  %v12067 = vunpack.c.h.b16 %v11645
  %v12068 = vunpack.c.l.b16 %v11646
  %v12069 = vunpack.c.l.b16 %v11647
  %v12070 = vunpack.c.h.b16 %v11647
  %v12071 = vunpack.c.l.b16 %v11648
  %v12072 = vunpack.c.l.b16 %v11649
  %v12073 = vunpack.c.h.b16 %v11649
  %v12074 = vunpack.c.l.b16 %v11650
  %v12075 = vunpack.c.l.b16 %v11651
  %v12076 = vunpack.c.h.b16 %v11651
  %v12077 = vunpack.c.l.b16 %v11652
  %v12078 = vunpack.c.l.b16 %v11653
  %v12079 = vunpack.c.h.b16 %v11653
  %v12080 = vunpack.c.l.b16 %v11654
  %v12081 = vunpack.c.l.b16 %v11655
  %v12082 = vunpack.c.h.b16 %v11655
  %v12083 = vunpack.c.l.b16 %v11656
  %v12084 = vunpack.c.l.b16 %v11657
  %v12085 = vunpack.c.h.b16 %v11657
  %v12086 = vunpack.c.l.b16 %v11658
  %v12087 = vunpack.c.l.b16 %v11659
  %v12088 = vunpack.c.h.b16 %v11659
  %v12089 = vunpack.c.l.b16 %v11660
  %v12090 = vunpack.c.l.b16 %v11661
  %v12091 = vunpack.c.h.b16 %v11661
  %v12092 = vunpack.c.l.b16 %v11662
  %v12093 = vunpack.c.l.b16 %v11663
  %v12094 = vunpack.c.h.b16 %v11663
  %v12095 = vunpack.c.l.b16 %v11664
  %v12096 = vunpack.c.l.b16 %v11665
  %v12097 = vunpack.c.h.b16 %v11665
  %v12098 = vunpack.c.l.b16 %v11666
  %v12099 = vunpack.c.l.b16 %v11667
  %v12100 = vunpack.c.h.b16 %v11667
  %v12101 = vunpack.c.l.b16 %v11668
  %v12102 = vunpack.c.l.b16 %v11669
  %v12103 = vunpack.c.h.b16 %v11669
  %v12104 = vunpack.c.l.b16 %v11670
  %v12105 = vunpack.c.l.b16 %v11671
  %v12106 = vunpack.c.h.b16 %v11671
  %v12107 = vunpack.c.l.b16 %v11672
  %v12108 = vunpack.c.l.b16 %v11673
  %v12109 = vunpack.c.h.b16 %v11673
  %v12110 = vunpack.c.l.b16 %v11674
  %v12111 = vunpack.c.l.b16 %v11675
  %v12112 = vunpack.c.h.b16 %v11675
  %v12113 = vunpack.c.l.b16 %v11676
  %v12114 = vunpack.c.l.b16 %v11677
  %v12115 = vunpack.c.h.b16 %v11677
  %v12116 = vunpack.c.l.b16 %v11678
  %v12117 = vunpack.c.l.b16 %v11679
  %v12118 = vunpack.c.h.b16 %v11679
  %v12119 = vunpack.c.l.b16 %v11680
  %v12120 = vunpack.c.l.b16 %v11681
  %v12121 = vunpack.c.h.b16 %v11681
  %v12122 = vunpack.c.l.b16 %v11682
  %v12123 = vunpack.c.l.b16 %v11683
  %v12124 = vunpack.c.h.b16 %v11683
  %v12125 = vunpack.c.l.b16 %v11684
  %v12126 = vunpack.c.l.b16 %v11685
  %v12127 = vunpack.c.h.b16 %v11685
  %v12128 = vunpack.c.l.b16 %v11686
  %v12129 = vunpack.c.l.b16 %v11687
  %v12130 = vunpack.c.h.b16 %v11687
  %v12131 = vunpack.c.l.b16 %v11688
  %v12132 = vunpack.c.l.b16 %v11689
  %v12133 = vunpack.c.h.b16 %v11689
  %v12134 = vunpack.c.l.b16 %v11690
  %v12135 = vunpack.c.l.b16 %v11691
  %v12136 = vunpack.c.h.b16 %v11691
  %v12137 = vunpack.c.l.b16 %v11692
  %v12138 = vunpack.c.l.b16 %v11693
  %v12139 = vunpack.c.h.b16 %v11693
  %v12140 = vunpack.c.l.b16 %v11694
  %v12141 = vunpack.c.l.b16 %v11695
  %v12142 = vunpack.c.h.b16 %v11695
  %v12143 = vunpack.c.l.b16 %v11696
  %v12144 = vunpack.c.l.b16 %v11697
  %v12145 = vunpack.c.h.b16 %v11697
  %v12146 = vunpack.c.l.b16 %v11698
  %v12147 = vunpack.c.l.b16 %v11699
  %v12148 = vunpack.c.h.b16 %v11699
  %v12149 = vunpack.c.l.b16 %v11700
  %v12150 = vunpack.c.l.b16 %v11701
  %v12151 = vunpack.c.h.b16 %v11701
  %v12152 = vunpack.c.l.b16 %v11702
  %v12153 = vunpack.c.l.b16 %v11703
  %v12154 = vunpack.c.h.b16 %v11703
  %v12155 = vunpack.c.l.b16 %v11704
  %v12156 = vunpack.c.l.b16 %v11705
  %v12157 = vunpack.c.h.b16 %v11705
  %v12158 = vunpack.c.l.b16 %v11706
  %v12159 = vunpack.c.l.b16 %v11707
  %v12160 = vunpack.c.h.b16 %v11707
  %v12161 = vunpack.c.l.b16 %v11708
  %v12162 = vunpack.c.l.b16 %v11709
  %v12163 = vunpack.c.h.b16 %v11709
  %v12164 = vunpack.c.l.b16 %v11710
  %v12165 = vunpack.c.l.b16 %v11711
  %v12166 = vunpack.c.h.b16 %v11711
  %v12167 = vunpack.c.l.b16 %v11712
  %v12168 = vunpack.c.l.b16 %v11713
  %v12169 = vunpack.c.h.b16 %v11713
  %v12170 = vunpack.c.l.b16 %v11714
  %v12171 = vunpack.c.l.b16 %v11715
  %v12172 = vunpack.c.h.b16 %v11715
  %v12173 = vunpack.c.l.b16 %v11716
  %v12174 = vunpack.c.l.b16 %v11717
  %v12175 = vunpack.c.h.b16 %v11717
  %v12176 = vunpack.c.l.b16 %v11718
  %v12177 = vunpack.c.l.b16 %v11719
  %v12178 = vunpack.c.h.b16 %v11719
  %v12179 = vunpack.c.l.b16 %v11720
  %v12180 = vunpack.c.l.b16 %v11721
  %v12181 = vunpack.c.h.b16 %v11721
  %v12182 = vunpack.c.l.b16 %v11722
  %v12183 = vunpack.c.l.b16 %v11723
  %v12184 = vunpack.c.h.b16 %v11723
  %v12185 = vunpack.c.l.b16 %v11724
  %v12186 = vunpack.c.l.b16 %v11725
  %v12187 = vunpack.c.h.b16 %v11725
  %v12188 = vunpack.c.l.b16 %v11726
  %v12189 = vunpack.c.l.b16 %v11727
  %v12190 = vunpack.c.h.b16 %v11727
  %v12191 = vunpack.c.l.b16 %v11728
  %v12192 = vunpack.c.l.b16 %v11729
  %v12193 = vunpack.c.h.b16 %v11729
  %v12194 = vunpack.c.l.b16 %v11730
  %v12195 = vunpack.c.l.b16 %v11731
  %v12196 = vunpack.c.h.b16 %v11731
  %v12197 = vunpack.c.l.b16 %v11732
  %v12198 = vunpack.c.l.b16 %v11733
  %v12199 = vunpack.c.h.b16 %v11733
  %v12200 = vunpack.c.l.b16 %v11734
  %v12201 = vunpack.c.l.b16 %v11735
  %v12202 = vunpack.c.h.b16 %v11735
  %v12203 = vunpack.c.l.b16 %v11736
  %v12204 = vunpack.c.l.b16 %v11737
  %v12205 = vunpack.c.h.b16 %v11737
  %v12206 = vunpack.c.l.b16 %v11738
  %v12207 = vunpack.c.l.b16 %v11739
  %v12208 = vunpack.c.h.b16 %v11739
  %v12209 = vunpack.c.l.b16 %v11740
  %v12210 = vunpack.c.l.b16 %v11741
  %v12211 = vunpack.c.h.b16 %v11741
  %v12212 = vunpack.c.l.b16 %v11742
  %v12213 = vunpack.c.l.b16 %v11743
  %v12214 = vunpack.c.h.b16 %v11743
  %v12215 = vunpack.c.l.b16 %v11744
  %v12216 = vunpack.c.l.b16 %v11745
  %v12217 = vunpack.c.h.b16 %v11745
  %v12218 = vunpack.c.l.b16 %v11746
  %v12219 = vunpack.c.l.b16 %v11747
  %v12220 = vunpack.c.h.b16 %v11747
  %v12221 = vunpack.c.l.b16 %v11748
  %v12222 = vunpack.c.l.b16 %v11749
  %v12223 = vunpack.c.h.b16 %v11749
  %v12224 = vunpack.c.l.b16 %v11750
  %v12225 = vunpack.c.l.b16 %v11751
  %v12226 = vunpack.c.h.b16 %v11751
  %v12227 = vunpack.c.l.b16 %v11752
  %v12228 = vunpack.c.l.b16 %v11753
  %v12229 = vunpack.c.h.b16 %v11753
  %v12230 = vunpack.c.l.b16 %v11754
  %v12231 = vunpack.c.l.b16 %v11755
  %v12232 = vunpack.c.h.b16 %v11755
  %v12233 = vunpack.c.l.b16 %v11756
  %v12234 = vunpack.c.l.b16 %v11757
  %v12235 = vunpack.c.h.b16 %v11757
  %v12236 = vunpack.c.l.b16 %v11758
  %v12237 = vunpack.c.l.b16 %v11759
  %v12238 = vunpack.c.h.b16 %v11759
  %v12239 = vunpack.c.l.b16 %v11760
  %v12240 = vunpack.c.l.b16 %v11761
  %v12241 = vunpack.c.h.b16 %v11761
  %v12242 = vunpack.c.l.b16 %v11762
  %v12243 = vunpack.c.l.b16 %v11763
  %v12244 = vunpack.c.h.b16 %v11763
  %v12245 = vunpack.c.l.b16 %v11764
  %v12246 = vunpack.c.l.b16 %v11765
  %v12247 = vunpack.c.h.b16 %v11765
  %v12248 = vunpack.c.l.b16 %v11766
  %v12249 = vunpack.c.l.b16 %v11767
  %v12250 = vunpack.c.h.b16 %v11767
  %v12251 = vunpack.c.l.b16 %v11768
  %v12252 = vunpack.c.l.b16 %v11769
  %v12253 = vunpack.c.h.b16 %v11769
  %v12254 = vunpack.c.l.b16 %v11770
  %v12255 = vunpack.c.l.b16 %v11771
  %v12256 = vunpack.c.h.b16 %v11771
  %v12257 = vunpack.c.l.b16 %v11772
  %v12258 = vunpack.c.l.b16 %v11773
  %v12259 = vunpack.c.h.b16 %v11773
  %v12260 = vunpack.c.l.b16 %v11774
  %v12261 = vunpack.c.l.b16 %v11775
  %v12262 = vunpack.c.h.b16 %v11775
  %v12263 = vunpack.c.l.b16 %v11776
  %v12264 = vunpack.c.l.b16 %v11777
  %v12265 = vunpack.c.h.b16 %v11777
  %v12266 = vunpack.c.l.b16 %v11778
  %v12267 = vpack.c.b16 %v11982, %v11979
  %v12268 = vpack.c.b16 %v11983, %v11980
  %v12269 = vpack.c.b16 %v11984, %v11981
  %v12270 = vpack.c.b16 %v11988, %v11985
  %v12271 = vpack.c.b16 %v11989, %v11986
  %v12272 = vpack.c.b16 %v11990, %v11987
  %v12273 = vpack.c.b16 %v11994, %v11991
  %v12274 = vpack.c.b16 %v11995, %v11992
  %v12275 = vpack.c.b16 %v11996, %v11993
  %v12276 = vpack.c.b16 %v12000, %v11997
  %v12277 = vpack.c.b16 %v12001, %v11998
  %v12278 = vpack.c.b16 %v12002, %v11999
  %v12279 = vpack.c.b16 %v12006, %v12003
  %v12280 = vpack.c.b16 %v12007, %v12004
  %v12281 = vpack.c.b16 %v12008, %v12005
  %v12282 = vpack.c.b16 %v12012, %v12009
  %v12283 = vpack.c.b16 %v12013, %v12010
  %v12284 = vpack.c.b16 %v12014, %v12011
  %v12285 = vpack.c.b16 %v12018, %v12015
  %v12286 = vpack.c.b16 %v12019, %v12016
  %v12287 = vpack.c.b16 %v12020, %v12017
  %v12288 = vpack.c.b16 %v12024, %v12021
  %v12289 = vpack.c.b16 %v12025, %v12022
  %v12290 = vpack.c.b16 %v12026, %v12023
  %v12291 = vpack.c.b16 %v12030, %v12027
  %v12292 = vpack.c.b16 %v12031, %v12028
  %v12293 = vpack.c.b16 %v12032, %v12029
  %v12294 = vpack.c.b16 %v12036, %v12033
  %v12295 = vpack.c.b16 %v12037, %v12034
  %v12296 = vpack.c.b16 %v12038, %v12035
  %v12297 = vpack.c.b16 %v12042, %v12039
  %v12298 = vpack.c.b16 %v12043, %v12040
  %v12299 = vpack.c.b16 %v12044, %v12041
  %v12300 = vpack.c.b16 %v12048, %v12045
  %v12301 = vpack.c.b16 %v12049, %v12046
  %v12302 = vpack.c.b16 %v12050, %v12047
  %v12303 = vpack.c.b16 %v12054, %v12051
  %v12304 = vpack.c.b16 %v12055, %v12052
  %v12305 = vpack.c.b16 %v12056, %v12053
  %v12306 = vpack.c.b16 %v12060, %v12057
  %v12307 = vpack.c.b16 %v12061, %v12058
  %v12308 = vpack.c.b16 %v12062, %v12059
  %v12309 = vpack.c.b16 %v12066, %v12063
  %v12310 = vpack.c.b16 %v12067, %v12064
  %v12311 = vpack.c.b16 %v12068, %v12065
  %v12312 = vpack.c.b16 %v12072, %v12069
  %v12313 = vpack.c.b16 %v12073, %v12070
  %v12314 = vpack.c.b16 %v12074, %v12071
  %v12315 = vpack.c.b16 %v12078, %v12075
  %v12316 = vpack.c.b16 %v12079, %v12076
  %v12317 = vpack.c.b16 %v12080, %v12077
  %v12318 = vpack.c.b16 %v12084, %v12081
  %v12319 = vpack.c.b16 %v12085, %v12082
  %v12320 = vpack.c.b16 %v12086, %v12083
  %v12321 = vpack.c.b16 %v12090, %v12087
  %v12322 = vpack.c.b16 %v12091, %v12088
  %v12323 = vpack.c.b16 %v12092, %v12089
  %v12324 = vpack.c.b16 %v12096, %v12093
  %v12325 = vpack.c.b16 %v12097, %v12094
  %v12326 = vpack.c.b16 %v12098, %v12095
  %v12327 = vpack.c.b16 %v12102, %v12099
  %v12328 = vpack.c.b16 %v12103, %v12100
  %v12329 = vpack.c.b16 %v12104, %v12101
  %v12330 = vpack.c.b16 %v12108, %v12105
  %v12331 = vpack.c.b16 %v12109, %v12106
  %v12332 = vpack.c.b16 %v12110, %v12107
  %v12333 = vpack.c.b16 %v12114, %v12111
  %v12334 = vpack.c.b16 %v12115, %v12112
  %v12335 = vpack.c.b16 %v12116, %v12113
  %v12336 = vpack.c.b16 %v12120, %v12117
  %v12337 = vpack.c.b16 %v12121, %v12118
  %v12338 = vpack.c.b16 %v12122, %v12119
  %v12339 = vpack.c.b16 %v12126, %v12123
  %v12340 = vpack.c.b16 %v12127, %v12124
  %v12341 = vpack.c.b16 %v12128, %v12125
  %v12342 = vpack.c.b16 %v12132, %v12129
  %v12343 = vpack.c.b16 %v12133, %v12130
  %v12344 = vpack.c.b16 %v12134, %v12131
  %v12345 = vpack.c.b16 %v12138, %v12135
  %v12346 = vpack.c.b16 %v12139, %v12136
  %v12347 = vpack.c.b16 %v12140, %v12137
  %v12348 = vpack.c.b16 %v12144, %v12141
  %v12349 = vpack.c.b16 %v12145, %v12142
  %v12350 = vpack.c.b16 %v12146, %v12143
  %v12351 = vpack.c.b16 %v12150, %v12147
  %v12352 = vpack.c.b16 %v12151, %v12148
  %v12353 = vpack.c.b16 %v12152, %v12149
  %v12354 = vpack.c.b16 %v12156, %v12153
  %v12355 = vpack.c.b16 %v12157, %v12154
  %v12356 = vpack.c.b16 %v12158, %v12155
  %v12357 = vpack.c.b16 %v12162, %v12159
  %v12358 = vpack.c.b16 %v12163, %v12160
  %v12359 = vpack.c.b16 %v12164, %v12161
  %v12360 = vpack.c.b16 %v12168, %v12165
  %v12361 = vpack.c.b16 %v12169, %v12166
  %v12362 = vpack.c.b16 %v12170, %v12167
  %v12363 = vpack.c.b16 %v12174, %v12171
  %v12364 = vpack.c.b16 %v12175, %v12172
  %v12365 = vpack.c.b16 %v12176, %v12173
  %v12366 = vpack.c.b16 %v12180, %v12177
  %v12367 = vpack.c.b16 %v12181, %v12178
  %v12368 = vpack.c.b16 %v12182, %v12179
  %v12369 = vpack.c.b16 %v12186, %v12183
  %v12370 = vpack.c.b16 %v12187, %v12184
  %v12371 = vpack.c.b16 %v12188, %v12185
  %v12372 = vpack.c.b16 %v12192, %v12189
  %v12373 = vpack.c.b16 %v12193, %v12190
  %v12374 = vpack.c.b16 %v12194, %v12191
  %v12375 = vpack.c.b16 %v12198, %v12195
  %v12376 = vpack.c.b16 %v12199, %v12196
  %v12377 = vpack.c.b16 %v12200, %v12197
  %v12378 = vpack.c.b16 %v12204, %v12201
  %v12379 = vpack.c.b16 %v12205, %v12202
  %v12380 = vpack.c.b16 %v12206, %v12203
  %v12381 = vpack.c.b16 %v12210, %v12207
  %v12382 = vpack.c.b16 %v12211, %v12208
  %v12383 = vpack.c.b16 %v12212, %v12209
  %v12384 = vpack.c.b16 %v12216, %v12213
  %v12385 = vpack.c.b16 %v12217, %v12214
  %v12386 = vpack.c.b16 %v12218, %v12215
  %v12387 = vpack.c.b16 %v12222, %v12219
  %v12388 = vpack.c.b16 %v12223, %v12220
  %v12389 = vpack.c.b16 %v12224, %v12221
  %v12390 = vpack.c.b16 %v12228, %v12225
  %v12391 = vpack.c.b16 %v12229, %v12226
  %v12392 = vpack.c.b16 %v12230, %v12227
  %v12393 = vpack.c.b16 %v12234, %v12231
  %v12394 = vpack.c.b16 %v12235, %v12232
  %v12395 = vpack.c.b16 %v12236, %v12233
  %v12396 = vpack.c.b16 %v12240, %v12237
  %v12397 = vpack.c.b16 %v12241, %v12238
  %v12398 = vpack.c.b16 %v12242, %v12239
  %v12399 = vpack.c.b16 %v12246, %v12243
  %v12400 = vpack.c.b16 %v12247, %v12244
  %v12401 = vpack.c.b16 %v12248, %v12245
  %v12402 = vpack.c.b16 %v12252, %v12249
  %v12403 = vpack.c.b16 %v12253, %v12250
  %v12404 = vpack.c.b16 %v12254, %v12251
  %v12405 = vpack.c.b16 %v12258, %v12255
  %v12406 = vpack.c.b16 %v12259, %v12256
  %v12407 = vpack.c.b16 %v12260, %v12257
  %v12408 = vpack.c.b16 %v12264, %v12261
  %v12409 = vpack.c.b16 %v12265, %v12262
  %v12410 = vpack.c.b16 %v12266, %v12263
  %12555 = vmatpush.bf16.msra.mxu0 %v12288
  %12556 = vmatpush.bf16.msra.mxu0 %v12285
  %12557 = vmatpush.bf16.msra.mxu0 %v12282
  %12558 = vmatpush.bf16.msra.mxu0 %v12279
  %12559 = vmatpush.bf16.msra.mxu0 %v12276
  %12560 = vmatpush.bf16.msra.mxu0 %v12273
  %12561 = vmatpush.bf16.msra.mxu0 %v12270
  %12562 = vmatpush.bf16.msra.mxu0 %v12267
  %12563 = vmatmul.bf16.gmra.mxu0 %v11581
  %v12564 = vpop.f32.mrf.mxu0
  %v12565 = vadd.f32 %v11781, %v12564
  %v12566 = vpop.f32.mrf.mxu0
  %12567 = vdwg.mxu0
  %12568 = vmatpush.bf16.msra.mxu0 %v12312
  %12569 = vmatpush.bf16.msra.mxu0 %v12309
  %12570 = vmatpush.bf16.msra.mxu0 %v12306
  %12571 = vmatpush.bf16.msra.mxu0 %v12303
  %12572 = vmatpush.bf16.msra.mxu0 %v12300
  %12573 = vmatpush.bf16.msra.mxu0 %v12297
  %12574 = vmatpush.bf16.msra.mxu0 %v12294
  %12575 = vmatpush.bf16.msra.mxu0 %v12291
  %12576 = vmatmul.bf16.gmra.mxu0 %v11582
  %v12577 = vpop.f32.mrf.mxu0
  %v12578 = vadd.f32 %v12565, %v12577
  %v12579 = vpop.f32.mrf.mxu0
  %12580 = vdwg.mxu0
  %12581 = vmatpush.bf16.msra.mxu0 %v12336
  %12582 = vmatpush.bf16.msra.mxu0 %v12333
  %12583 = vmatpush.bf16.msra.mxu0 %v12330
  %12584 = vmatpush.bf16.msra.mxu0 %v12327
  %12585 = vmatpush.bf16.msra.mxu0 %v12324
  %12586 = vmatpush.bf16.msra.mxu0 %v12321
  %12587 = vmatpush.bf16.msra.mxu0 %v12318
  %12588 = vmatpush.bf16.msra.mxu0 %v12315
  %12589 = vmatmul.bf16.gmra.mxu0 %v11583
  %v12590 = vpop.f32.mrf.mxu0
  %v12591 = vadd.f32 %v12578, %v12590
  %v12592 = vpop.f32.mrf.mxu0
  %12593 = vdwg.mxu0
  %12594 = vmatpush.bf16.msra.mxu0 %v12360
  %12595 = vmatpush.bf16.msra.mxu0 %v12357
  %12596 = vmatpush.bf16.msra.mxu0 %v12354
  %12597 = vmatpush.bf16.msra.mxu0 %v12351
  %12598 = vmatpush.bf16.msra.mxu0 %v12348
  %12599 = vmatpush.bf16.msra.mxu0 %v12345
  %12600 = vmatpush.bf16.msra.mxu0 %v12342
  %12601 = vmatpush.bf16.msra.mxu0 %v12339
  %12602 = vmatmul.bf16.gmra.mxu0 %v11584
  %v12603 = vpop.f32.mrf.mxu0
  %v12604 = vadd.f32 %v12591, %v12603
  %v12605 = vpop.f32.mrf.mxu0
  %12606 = vdwg.mxu0
  %12607 = vmatpush.bf16.msra.mxu0 %v12384
  %12608 = vmatpush.bf16.msra.mxu0 %v12381
  %12609 = vmatpush.bf16.msra.mxu0 %v12378
  %12610 = vmatpush.bf16.msra.mxu0 %v12375
  %12611 = vmatpush.bf16.msra.mxu0 %v12372
  %12612 = vmatpush.bf16.msra.mxu0 %v12369
  %12613 = vmatpush.bf16.msra.mxu0 %v12366
  %12614 = vmatpush.bf16.msra.mxu0 %v12363
  %12615 = vmatmul.bf16.gmra.mxu0 %v11585
  %v12616 = vpop.f32.mrf.mxu0
  %v12617 = vadd.f32 %v12604, %v12616
  %v12618 = vpop.f32.mrf.mxu0
  %12619 = vdwg.mxu0
  %12620 = vmatpush.bf16.msra.mxu0 %v12408
  %12621 = vmatpush.bf16.msra.mxu0 %v12405
  %12622 = vmatpush.bf16.msra.mxu0 %v12402
  %12623 = vmatpush.bf16.msra.mxu0 %v12399
  %12624 = vmatpush.bf16.msra.mxu0 %v12396
  %12625 = vmatpush.bf16.msra.mxu0 %v12393
  %12626 = vmatpush.bf16.msra.mxu0 %v12390
  %12627 = vmatpush.bf16.msra.mxu0 %v12387
  %12628 = vmatmul.bf16.gmra.mxu0 %v11586
  %v12629 = vpop.f32.mrf.mxu0
  %v12630 = vadd.f32 %v12617, %v12629
  %v12631 = vpop.f32.mrf.mxu0
  %12632 = vdwg.mxu0
  %12633 = vmatpush.bf16.msra.mxu0 %v12289
  %12634 = vmatpush.bf16.msra.mxu0 %v12286
  %12635 = vmatpush.bf16.msra.mxu0 %v12283
  %12636 = vmatpush.bf16.msra.mxu0 %v12280
  %12637 = vmatpush.bf16.msra.mxu0 %v12277
  %12638 = vmatpush.bf16.msra.mxu0 %v12274
  %12639 = vmatpush.bf16.msra.mxu0 %v12271
  %12640 = vmatpush.bf16.msra.mxu0 %v12268
  %12641 = vmatmul.bf16.gmra.mxu0 %v11581
  %v12642 = vpop.f32.mrf.mxu0
  %v12643 = vadd.f32 %v11782, %v12642
  %v12644 = vpop.f32.mrf.mxu0
  %12645 = vdwg.mxu0
  %12646 = vmatpush.bf16.msra.mxu0 %v12313
  %12647 = vmatpush.bf16.msra.mxu0 %v12310
  %12648 = vmatpush.bf16.msra.mxu0 %v12307
  %12649 = vmatpush.bf16.msra.mxu0 %v12304
  %12650 = vmatpush.bf16.msra.mxu0 %v12301
  %12651 = vmatpush.bf16.msra.mxu0 %v12298
  %12652 = vmatpush.bf16.msra.mxu0 %v12295
  %12653 = vmatpush.bf16.msra.mxu0 %v12292
  %12654 = vmatmul.bf16.gmra.mxu0 %v11582
  %v12655 = vpop.f32.mrf.mxu0
  %v12656 = vadd.f32 %v12643, %v12655
  %v12657 = vpop.f32.mrf.mxu0
  %12658 = vdwg.mxu0
  %12659 = vmatpush.bf16.msra.mxu0 %v12337
  %12660 = vmatpush.bf16.msra.mxu0 %v12334
  %12661 = vmatpush.bf16.msra.mxu0 %v12331
  %12662 = vmatpush.bf16.msra.mxu0 %v12328
  %12663 = vmatpush.bf16.msra.mxu0 %v12325
  %12664 = vmatpush.bf16.msra.mxu0 %v12322
  %12665 = vmatpush.bf16.msra.mxu0 %v12319
  %12666 = vmatpush.bf16.msra.mxu0 %v12316
  %12667 = vmatmul.bf16.gmra.mxu0 %v11583
  %v12668 = vpop.f32.mrf.mxu0
  %v12669 = vadd.f32 %v12656, %v12668
  %v12670 = vpop.f32.mrf.mxu0
  %12671 = vdwg.mxu0
  %12672 = vmatpush.bf16.msra.mxu0 %v12361
  %12673 = vmatpush.bf16.msra.mxu0 %v12358
  %12674 = vmatpush.bf16.msra.mxu0 %v12355
  %12675 = vmatpush.bf16.msra.mxu0 %v12352
  %12676 = vmatpush.bf16.msra.mxu0 %v12349
  %12677 = vmatpush.bf16.msra.mxu0 %v12346
  %12678 = vmatpush.bf16.msra.mxu0 %v12343
  %12679 = vmatpush.bf16.msra.mxu0 %v12340
  %12680 = vmatmul.bf16.gmra.mxu0 %v11584
  %v12681 = vpop.f32.mrf.mxu0
  %v12682 = vadd.f32 %v12669, %v12681
  %v12683 = vpop.f32.mrf.mxu0
  %12684 = vdwg.mxu0
  %12685 = vmatpush.bf16.msra.mxu0 %v12385
  %12686 = vmatpush.bf16.msra.mxu0 %v12382
  %12687 = vmatpush.bf16.msra.mxu0 %v12379
  %12688 = vmatpush.bf16.msra.mxu0 %v12376
  %12689 = vmatpush.bf16.msra.mxu0 %v12373
  %12690 = vmatpush.bf16.msra.mxu0 %v12370
  %12691 = vmatpush.bf16.msra.mxu0 %v12367
  %12692 = vmatpush.bf16.msra.mxu0 %v12364
  %12693 = vmatmul.bf16.gmra.mxu0 %v11585
  %v12694 = vpop.f32.mrf.mxu0
  %v12695 = vadd.f32 %v12682, %v12694
  %v12696 = vpop.f32.mrf.mxu0
  %12697 = vdwg.mxu0
  %12698 = vmatpush.bf16.msra.mxu0 %v12409
  %12699 = vmatpush.bf16.msra.mxu0 %v12406
  %12700 = vmatpush.bf16.msra.mxu0 %v12403
  %12701 = vmatpush.bf16.msra.mxu0 %v12400
  %12702 = vmatpush.bf16.msra.mxu0 %v12397
  %12703 = vmatpush.bf16.msra.mxu0 %v12394
  %12704 = vmatpush.bf16.msra.mxu0 %v12391
  %12705 = vmatpush.bf16.msra.mxu0 %v12388
  %12706 = vmatmul.bf16.gmra.mxu0 %v11586
  %v12707 = vpop.f32.mrf.mxu0
  %v12708 = vadd.f32 %v12695, %v12707
  %v12709 = vpop.f32.mrf.mxu0
  %12710 = vdwg.mxu0
  %12711 = vmatpush.bf16.msra.mxu0 %v12290
  %12712 = vmatpush.bf16.msra.mxu0 %v12287
  %12713 = vmatpush.bf16.msra.mxu0 %v12284
  %12714 = vmatpush.bf16.msra.mxu0 %v12281
  %12715 = vmatpush.bf16.msra.mxu0 %v12278
  %12716 = vmatpush.bf16.msra.mxu0 %v12275
  %12717 = vmatpush.bf16.msra.mxu0 %v12272
  %12718 = vmatpush.bf16.msra.mxu0 %v12269
  %12719 = vmatmul.bf16.gmra.mxu0 %v11581
  %v12720 = vpop.f32.mrf.mxu0
  %v12721 = vadd.f32 %v11783, %v12720
  %v12722 = vpop.f32.mrf.mxu0
  %12723 = vdwg.mxu0
  %12724 = vmatpush.bf16.msra.mxu0 %v12314
  %12725 = vmatpush.bf16.msra.mxu0 %v12311
  %12726 = vmatpush.bf16.msra.mxu0 %v12308
  %12727 = vmatpush.bf16.msra.mxu0 %v12305
  %12728 = vmatpush.bf16.msra.mxu0 %v12302
  %12729 = vmatpush.bf16.msra.mxu0 %v12299
  %12730 = vmatpush.bf16.msra.mxu0 %v12296
  %12731 = vmatpush.bf16.msra.mxu0 %v12293
  %12732 = vmatmul.bf16.gmra.mxu0 %v11582
  %v12733 = vpop.f32.mrf.mxu0
  %v12734 = vadd.f32 %v12721, %v12733
  %v12735 = vpop.f32.mrf.mxu0
  %12736 = vdwg.mxu0
  %12737 = vmatpush.bf16.msra.mxu0 %v12338
  %12738 = vmatpush.bf16.msra.mxu0 %v12335
  %12739 = vmatpush.bf16.msra.mxu0 %v12332
  %12740 = vmatpush.bf16.msra.mxu0 %v12329
  %12741 = vmatpush.bf16.msra.mxu0 %v12326
  %12742 = vmatpush.bf16.msra.mxu0 %v12323
  %12743 = vmatpush.bf16.msra.mxu0 %v12320
  %12744 = vmatpush.bf16.msra.mxu0 %v12317
  %12745 = vmatmul.bf16.gmra.mxu0 %v11583
  %v12746 = vpop.f32.mrf.mxu0
  %v12747 = vadd.f32 %v12734, %v12746
  %v12748 = vpop.f32.mrf.mxu0
  %12749 = vdwg.mxu0
  %12750 = vmatpush.bf16.msra.mxu0 %v12362
  %12751 = vmatpush.bf16.msra.mxu0 %v12359
  %12752 = vmatpush.bf16.msra.mxu0 %v12356
  %12753 = vmatpush.bf16.msra.mxu0 %v12353
  %12754 = vmatpush.bf16.msra.mxu0 %v12350
  %12755 = vmatpush.bf16.msra.mxu0 %v12347
  %12756 = vmatpush.bf16.msra.mxu0 %v12344
  %12757 = vmatpush.bf16.msra.mxu0 %v12341
  %12758 = vmatmul.bf16.gmra.mxu0 %v11584
  %v12759 = vpop.f32.mrf.mxu0
  %v12760 = vadd.f32 %v12747, %v12759
  %v12761 = vpop.f32.mrf.mxu0
  %12762 = vdwg.mxu0
  %12763 = vmatpush.bf16.msra.mxu0 %v12386
  %12764 = vmatpush.bf16.msra.mxu0 %v12383
  %12765 = vmatpush.bf16.msra.mxu0 %v12380
  %12766 = vmatpush.bf16.msra.mxu0 %v12377
  %12767 = vmatpush.bf16.msra.mxu0 %v12374
  %12768 = vmatpush.bf16.msra.mxu0 %v12371
  %12769 = vmatpush.bf16.msra.mxu0 %v12368
  %12770 = vmatpush.bf16.msra.mxu0 %v12365
  %12771 = vmatmul.bf16.gmra.mxu0 %v11585
  %v12772 = vpop.f32.mrf.mxu0
  %v12773 = vadd.f32 %v12760, %v12772
  %v12774 = vpop.f32.mrf.mxu0
  %12775 = vdwg.mxu0
  %12776 = vmatpush.bf16.msra.mxu0 %v12410
  %12777 = vmatpush.bf16.msra.mxu0 %v12407
  %12778 = vmatpush.bf16.msra.mxu0 %v12404
  %12779 = vmatpush.bf16.msra.mxu0 %v12401
  %12780 = vmatpush.bf16.msra.mxu0 %v12398
  %12781 = vmatpush.bf16.msra.mxu0 %v12395
  %12782 = vmatpush.bf16.msra.mxu0 %v12392
  %12783 = vmatpush.bf16.msra.mxu0 %v12389
  %12784 = vmatmul.bf16.gmra.mxu0 %v11586
  %v12785 = vpop.f32.mrf.mxu0
  %v12786 = vadd.f32 %v12773, %v12785
  %v12787 = vpop.f32.mrf.mxu0
  %12788 = vdwg.mxu0
  %v12789 = vsub.f32 0.0, %v12630
  %v12790 = vsub.f32 0.0, %v12708
  %v12791 = vsub.f32 0.0, %v12786
  %v12792 = vmul.f32 %v12789, 1.442695
  %v12793 = vpow.pop %v12792
  %v12794 = vmul.f32 %v12790, 1.442695
  %v12795 = vpow.pop %v12794
  %v12796 = vmul.f32 %v12791, 1.442695
  %v12797 = vpow.pop %v12796
  %v12798 = vadd.f32 %v12793, 1.0
  %v12799 = vadd.f32 %v12795, 1.0
  %v12800 = vadd.f32 %v12797, 1.0
  %v12801 = vrcp.pop %v12798
  %v12802 = vmul.f32 %v12798, %v12801
  %v12803 = vsub.f32 1.0, %v12802
  %v12804 = vmul.f32 %v12801, %v12803
  %v12805 = vadd.f32 %v12801, %v12804
  %vm12806 = vweird.f32 %v12798
  %vm12807 = vweird.f32 %v12801
  %vm12808 = vmor %vm12806, %vm12807
  %v12809 = vsel %vm12808, %v12801, %v12805
  %v12810 = vand.u32 2147483647, %v12798
  %vm12811 = vcmp.eq.f32.partialorder %v12810, 8.507059e+37
  %v12812 = vand.u32 %v12798, 2147483648
  %v12813 = vor.u32 1.1754944e-38, %v12812
  %v12814 = vsel %vm12811, %v12813, %v12809
  %v12815 = vmul.f32 1.0, %v12814
  %v12816 = vrcp.pop %v12799
  %v12817 = vmul.f32 %v12799, %v12816
  %v12818 = vsub.f32 1.0, %v12817
  %v12819 = vmul.f32 %v12816, %v12818
  %v12820 = vadd.f32 %v12816, %v12819
  %vm12821 = vweird.f32 %v12799
  %vm12822 = vweird.f32 %v12816
  %vm12823 = vmor %vm12821, %vm12822
  %v12824 = vsel %vm12823, %v12816, %v12820
  %v12825 = vand.u32 2147483647, %v12799
  %vm12826 = vcmp.eq.f32.partialorder %v12825, 8.507059e+37
  %v12827 = vand.u32 %v12799, 2147483648
  %v12828 = vor.u32 1.1754944e-38, %v12827
  %v12829 = vsel %vm12826, %v12828, %v12824
  %v12830 = vmul.f32 1.0, %v12829
  %v12831 = vrcp.pop %v12800
  %v12832 = vmul.f32 %v12800, %v12831
  %v12833 = vsub.f32 1.0, %v12832
  %v12834 = vmul.f32 %v12831, %v12833
  %v12835 = vadd.f32 %v12831, %v12834
  %vm12836 = vweird.f32 %v12800
  %vm12837 = vweird.f32 %v12831
  %vm12838 = vmor %vm12836, %vm12837
  %v12839 = vsel %vm12838, %v12831, %v12835
  %v12840 = vand.u32 2147483647, %v12800
  %vm12841 = vcmp.eq.f32.partialorder %v12840, 8.507059e+37
  %v12842 = vand.u32 %v12800, 2147483648
  %v12843 = vor.u32 1.1754944e-38, %v12842
  %v12844 = vsel %vm12841, %v12843, %v12839
  %v12845 = vmul.f32 1.0, %v12844
  %v12846 = vpack.c.bf16 %v12815, %v12815
  %v12847 = vpack.c.bf16 %v12830, %v12830
  %v12848 = vpack.c.bf16 %v12845, %v12845
  %v12849 = vld [vmem:[%s5] sm:$0xf]
  %v12850 = vld [vmem:[%s5 + $0x4] sm:$0xf]
  %v12851 = vld [vmem:[%s5 + $0x8] sm:$0xf]
  %v12852 = vld [vmem:[%s5 + $0xc] sm:$0xf]
  %v12853 = vld [vmem:[%s5 + $0x10] sm:$0xf]
  %v12854 = vld [vmem:[%s5 + $0x14] sm:$0xf]
  %v12855 = vld [vmem:[%s5 + $0x18] sm:$0xf]
  %v12856 = vld [vmem:[%s5 + $0x1c] sm:$0xf]
  %v12857 = vld [vmem:[%s5 + $0x20] sm:$0xf]
  %v12858 = vld [vmem:[%s5 + $0x24] sm:$0xf]
  %v12859 = vld [vmem:[%s5 + $0x28] sm:$0xf]
  %v12860 = vld [vmem:[%s5 + $0x2c] sm:$0xf]
  %v12861 = vld [vmem:[%s5 + $0x30] sm:$0xf]
  %v12862 = vld [vmem:[%s5 + $0x34] sm:$0xf]
  %v12863 = vld [vmem:[%s5 + $0x38] sm:$0xf]
  %v12864 = vld [vmem:[%s5 + $0x3c] sm:$0xf]
  %v12865 = vld [vmem:[%s5 + $0x40] sm:$0xf]
  %v12866 = vld [vmem:[%s5 + $0x44] sm:$0xf]
  %v12867 = vld [vmem:[%s5 + $0x48] sm:$0xf]
  %v12868 = vld [vmem:[%s5 + $0x4c] sm:$0xf]
  %v12869 = vld [vmem:[%s5 + $0x50] sm:$0xf]
  %v12870 = vld [vmem:[%s5 + $0x54] sm:$0xf]
  %v12871 = vld [vmem:[%s5 + $0x58] sm:$0xf]
  %v12872 = vld [vmem:[%s5 + $0x5c] sm:$0xf]
  %v12873 = vld [vmem:[%s5 + $0x60] sm:$0xf]
  %v12874 = vld [vmem:[%s5 + $0x64] sm:$0xf]
  %v12875 = vld [vmem:[%s5 + $0x68] sm:$0xf]
  %v12876 = vld [vmem:[%s5 + $0x6c] sm:$0xf]
  %v12877 = vld [vmem:[%s5 + $0x70] sm:$0xf]
  %v12878 = vld [vmem:[%s5 + $0x74] sm:$0xf]
  %v12879 = vld [vmem:[%s5 + $0x78] sm:$0xf]
  %v12880 = vld [vmem:[%s5 + $0x7c] sm:$0xf]
  %v12881 = vld [vmem:[%s5 + $0x80] sm:$0xf]
  %v12882 = vld [vmem:[%s5 + $0x84] sm:$0xf]
  %v12883 = vld [vmem:[%s5 + $0x88] sm:$0xf]
  %v12884 = vld [vmem:[%s5 + $0x8c] sm:$0xf]
  %v12885 = vld [vmem:[%s5 + $0x90] sm:$0xf]
  %v12886 = vld [vmem:[%s5 + $0x94] sm:$0x3]
  %v12887 = vld [vmem:[#allocation2] sm:$0x1]
  %v12889 = vperm.slane %v12887, 0
  %v12929 = vunpack.c.l.b16 %v12849
  %v12930 = vunpack.c.l.b16 %v12850
  %v12931 = vunpack.c.l.b16 %v12851
  %v12932 = vunpack.c.l.b16 %v12852
  %v12933 = vunpack.c.l.b16 %v12853
  %v12934 = vunpack.c.l.b16 %v12854
  %v12935 = vunpack.c.l.b16 %v12855
  %v12936 = vunpack.c.l.b16 %v12856
  %v12937 = vunpack.c.l.b16 %v12857
  %v12938 = vunpack.c.l.b16 %v12858
  %v12939 = vunpack.c.l.b16 %v12859
  %v12940 = vunpack.c.l.b16 %v12860
  %v12941 = vunpack.c.l.b16 %v12861
  %v12942 = vunpack.c.l.b16 %v12862
  %v12943 = vunpack.c.l.b16 %v12863
  %v12944 = vunpack.c.l.b16 %v12864
  %v12945 = vunpack.c.l.b16 %v12865
  %v12946 = vunpack.c.l.b16 %v12866
  %v12947 = vunpack.c.l.b16 %v12867
  %v12948 = vunpack.c.l.b16 %v12868
  %v12949 = vunpack.c.l.b16 %v12869
  %v12950 = vunpack.c.l.b16 %v12870
  %v12951 = vunpack.c.l.b16 %v12871
  %v12952 = vunpack.c.l.b16 %v12872
  %v12953 = vunpack.c.l.b16 %v12873
  %v12954 = vunpack.c.l.b16 %v12874
  %v12955 = vunpack.c.l.b16 %v12875
  %v12956 = vunpack.c.l.b16 %v12876
  %v12957 = vunpack.c.l.b16 %v12877
  %v12958 = vunpack.c.l.b16 %v12878
  %v12959 = vunpack.c.l.b16 %v12879
  %v12960 = vunpack.c.l.b16 %v12880
  %v12961 = vunpack.c.l.b16 %v12881
  %v12962 = vunpack.c.l.b16 %v12882
  %v12963 = vunpack.c.l.b16 %v12883
  %v12964 = vunpack.c.l.b16 %v12884
  %v12965 = vunpack.c.l.b16 %v12885
  %v12966 = vunpack.c.l.b16 %v12886
  %v12967 = vpack.c.b16 %v12930, %v12929
  %v12968 = vpack.c.b16 %v12932, %v12931
  %v12969 = vpack.c.b16 %v12934, %v12933
  %v12970 = vpack.c.b16 %v12936, %v12935
  %v12971 = vpack.c.b16 %v12938, %v12937
  %v12972 = vpack.c.b16 %v12940, %v12939
  %v12973 = vpack.c.b16 %v12942, %v12941
  %v12974 = vpack.c.b16 %v12944, %v12943
  %v12975 = vpack.c.b16 %v12946, %v12945
  %v12976 = vpack.c.b16 %v12948, %v12947
  %v12977 = vpack.c.b16 %v12950, %v12949
  %v12978 = vpack.c.b16 %v12952, %v12951
  %v12979 = vpack.c.b16 %v12954, %v12953
  %v12980 = vpack.c.b16 %v12956, %v12955
  %v12981 = vpack.c.b16 %v12958, %v12957
  %v12982 = vpack.c.b16 %v12960, %v12959
  %v12983 = vpack.c.b16 %v12962, %v12961
  %v12984 = vpack.c.b16 %v12964, %v12963
  %v12985 = vpack.c.b16 %v12966, %v12965
  %vm13004 = vcmask 359424
  %v13006 = vsel %vm13004, %v12848, 0
  %vm13008 = vcmask 1045504
  %v13010 = vsel %vm13008, %v12985, 0
  %13012 = vmatpush.bf16.msra.mxu0 %v12974
  %13013 = vmatpush.bf16.msra.mxu0 %v12973
  %13014 = vmatpush.bf16.msra.mxu0 %v12972
  %13015 = vmatpush.bf16.msra.mxu0 %v12971
  %13016 = vmatpush.bf16.msra.mxu0 %v12970
  %13017 = vmatpush.bf16.msra.mxu0 %v12969
  %13018 = vmatpush.bf16.msra.mxu0 %v12968
  %13019 = vmatpush.bf16.msra.mxu0 %v12967
  %13020 = vmatmul.bf16.gmra.mxu0 %v12846
  %v13021 = vpop.f32.mrf.mxu0
  %v13022 = vadd.f32 %v12889, %v13021
  %v13023 = vpop.f32.mrf.mxu0
  %13024 = vdwg.mxu0
  %13025 = vmatpush.bf16.msra.mxu0 %v12982
  %13026 = vmatpush.bf16.msra.mxu0 %v12981
  %13027 = vmatpush.bf16.msra.mxu0 %v12980
  %13028 = vmatpush.bf16.msra.mxu0 %v12979
  %13029 = vmatpush.bf16.msra.mxu0 %v12978
  %13030 = vmatpush.bf16.msra.mxu0 %v12977
  %13031 = vmatpush.bf16.msra.mxu0 %v12976
  %13032 = vmatpush.bf16.msra.mxu0 %v12975
  %13033 = vmatmul.bf16.gmra.mxu0 %v12847
  %v13034 = vpop.f32.mrf.mxu0
  %v13035 = vadd.f32 %v13022, %v13034
  %v13036 = vpop.f32.mrf.mxu0
  %13037 = vdwg.mxu0
  %13038 = vmatpush.bf16.msra.mxu0 0
  %13039 = vmatpush.bf16.msra.mxu0 0
  %13040 = vmatpush.bf16.msra.mxu0 0
  %13041 = vmatpush.bf16.msra.mxu0 0
  %13042 = vmatpush.bf16.msra.mxu0 0
  %13043 = vmatpush.bf16.msra.mxu0 %v13010
  %13044 = vmatpush.bf16.msra.mxu0 %v12984
  %13045 = vmatpush.bf16.msra.mxu0 %v12983
  %13046 = vmatmul.bf16.gmra.mxu0 %v13006
  %v13047 = vpop.f32.mrf.mxu0
  %v13048 = vadd.f32 %v13035, %v13047
  %v13049 = vpop.f32.mrf.mxu0
  %13050 = vdwg.mxu0
  %vm13051 = vcmask 1024
  %13052 = vst.msk [vmem:[%s7] sm:$0x3] %vm13051, %v13048
  // Predicated region
  $region30: #{tpu_custom_call.1} parent=0 // pred_check
    _
  $region31: #{tpu_custom_call.1} parent=0 // pred_check_branch
    %13054 = sbr.rel (0) target = $region33
  $region32: #{tpu_custom_call.1} parent=0 // pred_region
    _
  $region33: #{tpu_custom_call.1} parent=0 // pred_fallthru
    _
  // Predicated region
  $region34: #{tpu_custom_call.1} parent=0 // pred_check
    _
  $region35: #{tpu_custom_call.1} parent=0 // pred_check_branch
    %13056 = sbr.rel (0) target = $region37
  $region36: #{tpu_custom_call.1} parent=0 // pred_region
    _
  $region37: #{tpu_custom_call.1} parent=0 // pred_fallthru
    _

</llo_original>
